<compile_context>
chip_gen: v7x
topology: tpu7x:2x2x1
jax: 0.10.0
libtpu: 0.0.40
codegen_flags: <defaults>
</compile_context>

<pallas_src>
import functools

import jax
import jax.numpy as jnp
from jax import lax
from jax.experimental import pallas as pl
from jax.experimental.pallas import tpu as pltpu

BN_EPS = 1e-5
LANES = 128
VMEM_LIMIT = 32 * 1024 * 1024


def _round_up(x, m):
    return (x + m - 1) // m * m


# --------------------------- Pallas kernels ---------------------------------

def _conv1_kernel(x_ref, w_ref, b_ref, y_ref, stat_ref, patch_ref,
                  *, th, wdt, cin):
    """Conv3x3(SAME) + bias for one (batch, row-tile) block, plus partial BN stats.

    x_ref:     (th+2, wdt+2, cin)  bf16  zero-padded input tile (halo included)
    w_ref:     (9*cin, cp)         bf16  tap-major weights
    b_ref:     (1, cp)             f32   conv bias
    y_ref:     (th*wdt, cp)        f32   conv + bias rows for this tile
    stat_ref:  (8, cp)             f32   row0 = sum, row1 = sum of squares
    patch_ref: (th, wdt, 9*cin)    bf16  VMEM scratch: assembled patch matrix
    """
    for idx in range(9):
        ky, kx = idx // 3, idx % 3
        patch_ref[:, :, idx * cin:(idx + 1) * cin] = \
            x_ref[ky:ky + th, kx:kx + wdt, :]

    patch = patch_ref[...].reshape(th * wdt, 9 * cin)
    acc = jnp.dot(patch, w_ref[...], preferred_element_type=jnp.float32)
    acc = acc + b_ref[...]
    y_ref[...] = acc

    stat_ref[...] = jnp.zeros_like(stat_ref)
    stat_ref[0:1, :] = jnp.sum(acc, axis=0, keepdims=True)
    stat_ref[1:2, :] = jnp.sum(acc * acc, axis=0, keepdims=True)


def _conv2_fused_kernel(x_ref, sc_ref, sh_ref, w_ref, b_ref, y_ref, stat_ref,
                        patch_ref, *, th, wdt, cp):
    """BN1+ReLU fused into conv2: normalize the raw conv1 tile in-kernel,
    re-apply the SAME zero padding via a border mask, then 3x3 conv + bias and
    partial BN2 stats.

    x_ref:     (th+2, wdt+2, cp)  f32  raw conv1 output tile (halo included)
    sc_ref:    (1, cp)            f32  BN1 scale
    sh_ref:    (1, cp)            f32  BN1 shift
    w_ref:     (9*cp, cp)         bf16 tap-major weights
    b_ref:     (1, cp)            f32  conv bias
    y_ref:     (th*wdt, cp)       f32  conv2 + bias rows
    stat_ref:  (8, cp)            f32  partial BN2 stats
    patch_ref: (th, wdt, 9*cp)    bf16 VMEM scratch
    """
    j = pl.program_id(1)
    n_h = pl.num_programs(1)

    # BN1 + ReLU on the raw conv1 values (VPU work, fully hidden under MXU).
    a = jnp.maximum(x_ref[...] * sc_ref[...] + sh_ref[...], 0.0)

    # Re-impose conv2's zero padding: the halo ring that corresponds to the
    # image border must stay exactly zero after BN+ReLU.
    row = lax.broadcasted_iota(jnp.int32, (th + 2, wdt + 2, 1), 0)
    col = lax.broadcasted_iota(jnp.int32, (th + 2, wdt + 2, 1), 1)
    valid = jnp.logical_and(col > 0, col < wdt + 1)
    valid = jnp.logical_and(valid, jnp.logical_or(j > 0, row > 0))
    valid = jnp.logical_and(valid, jnp.logical_or(j < n_h - 1, row < th + 1))
    a_bf = jnp.where(valid, a, 0.0).astype(jnp.bfloat16)

    for idx in range(9):
        ky, kx = idx // 3, idx % 3
        patch_ref[:, :, idx * cp:(idx + 1) * cp] = a_bf[ky:ky + th, kx:kx + wdt, :]

    patch = patch_ref[...].reshape(th * wdt, 9 * cp)
    acc = jnp.dot(patch, w_ref[...], preferred_element_type=jnp.float32)
    acc = acc + b_ref[...]
    y_ref[...] = acc

    stat_ref[...] = jnp.zeros_like(stat_ref)
    stat_ref[0:1, :] = jnp.sum(acc, axis=0, keepdims=True)
    stat_ref[1:2, :] = jnp.sum(acc * acc, axis=0, keepdims=True)


def _bn_stats_kernel(stat_ref, g_ref, be_ref, scale_ref, shift_ref,
                     *, groups, count):
    """Combine partial stats into per-channel scale/shift (training-mode BN)."""
    cp = g_ref.shape[-1]
    st = stat_ref[...].reshape(groups, 8, cp)
    tot = jnp.sum(st, axis=0)                      # row0=sum, row1=sumsq
    inv_n = 1.0 / float(count)
    mean = tot[0:1, :] * inv_n
    ex2 = tot[1:2, :] * inv_n
    var = jnp.maximum(ex2 - mean * mean, 0.0)
    scale = g_ref[...] * lax.rsqrt(var + BN_EPS)
    scale_ref[...] = scale
    shift_ref[...] = be_ref[...] - mean * scale


def _bn_act_kernel(y2_ref, sc2_ref, sh2_ref, o_ref):
    o_ref[...] = jnp.maximum(y2_ref[...] * sc2_ref[...] + sh2_ref[...], 0.0)


def _bn_res_act_kernel(y2_ref, y1_ref, sc2_ref, sh2_ref, sc1_ref, sh1_ref, o_ref):
    # Residual branch recomputes BN1+ReLU from the raw conv1 output (never
    # materialized post-BN in HBM).
    resid = jnp.maximum(y1_ref[...] * sc1_ref[...] + sh1_ref[...], 0.0)
    o_ref[...] = jnp.maximum(y2_ref[...] * sc2_ref[...] + sh2_ref[...] + resid, 0.0)


# --------------------------- pallas_call wrappers ----------------------------

def _conv1_pass(x_tiles, w_taps, bias, *, th, wdt, cin, cp, m):
    n, n_h = x_tiles.shape[0], x_tiles.shape[1]
    g = n * n_h
    tile_m = th * wdt
    k = 9 * cin
    kernel = functools.partial(_conv1_kernel, th=th, wdt=wdt, cin=cin)
    return pl.pallas_call(
        kernel,
        out_shape=(
            jax.ShapeDtypeStruct((m, cp), jnp.float32),       # conv1 + bias rows
            jax.ShapeDtypeStruct((8 * g, cp), jnp.float32),   # per-tile stats
        ),
        grid=(n, n_h),
        in_specs=[
            pl.BlockSpec((None, None, th + 2, wdt + 2, cin),
                         lambda i, j: (i, j, 0, 0, 0)),
            pl.BlockSpec((k, cp), lambda i, j: (0, 0)),
            pl.BlockSpec((1, cp), lambda i, j: (0, 0)),
        ],
        out_specs=(
            pl.BlockSpec((tile_m, cp), lambda i, j: (i * n_h + j, 0)),
            pl.BlockSpec((8, cp), lambda i, j: (i * n_h + j, 0)),
        ),
        scratch_shapes=[pltpu.VMEM((th, wdt, k), jnp.bfloat16)],
        compiler_params=pltpu.CompilerParams(
            dimension_semantics=("parallel", "parallel"),
            vmem_limit_bytes=VMEM_LIMIT,
        ),
    )(x_tiles, w_taps, bias)


def _conv2_pass(x_tiles, scale1, shift1, w_taps, bias, *, th, wdt, cp, m):
    n, n_h = x_tiles.shape[0], x_tiles.shape[1]
    g = n * n_h
    tile_m = th * wdt
    k = 9 * cp
    kernel = functools.partial(_conv2_fused_kernel, th=th, wdt=wdt, cp=cp)
    vec_spec = pl.BlockSpec((1, cp), lambda i, j: (0, 0))
    return pl.pallas_call(
        kernel,
        out_shape=(
            jax.ShapeDtypeStruct((m, cp), jnp.float32),       # conv2 + bias rows
            jax.ShapeDtypeStruct((8 * g, cp), jnp.float32),   # per-tile stats
        ),
        grid=(n, n_h),
        in_specs=[
            pl.BlockSpec((None, None, th + 2, wdt + 2, cp),
                         lambda i, j: (i, j, 0, 0, 0)),
            vec_spec,
            vec_spec,
            pl.BlockSpec((k, cp), lambda i, j: (0, 0)),
            vec_spec,
        ],
        out_specs=(
            pl.BlockSpec((tile_m, cp), lambda i, j: (i * n_h + j, 0)),
            pl.BlockSpec((8, cp), lambda i, j: (i * n_h + j, 0)),
        ),
        scratch_shapes=[pltpu.VMEM((th, wdt, k), jnp.bfloat16)],
        compiler_params=pltpu.CompilerParams(
            dimension_semantics=("parallel", "parallel"),
            vmem_limit_bytes=VMEM_LIMIT,
        ),
    )(x_tiles, scale1, shift1, w_taps, bias)


def _bn_stats_pass(stats, gamma, beta, *, groups, count, cp):
    kernel = functools.partial(_bn_stats_kernel, groups=groups, count=count)
    return pl.pallas_call(
        kernel,
        out_shape=(
            jax.ShapeDtypeStruct((1, cp), jnp.float32),   # scale
            jax.ShapeDtypeStruct((1, cp), jnp.float32),   # shift
        ),
        in_specs=[pl.BlockSpec(memory_space=pltpu.MemorySpace.VMEM)] * 3,
        out_specs=(
            pl.BlockSpec(memory_space=pltpu.MemorySpace.VMEM),
            pl.BlockSpec(memory_space=pltpu.MemorySpace.VMEM),
        ),
    )(stats, gamma, beta)


def _pick_row_tile(m, target=1024):
    best = m
    for t in range(8, min(m, target) + 1, 8):
        if m % t == 0:
            best = t
    return best


def _bn_act_pass(y2, scale2, shift2, y1=None, scale1=None, shift1=None):
    m, cp = y2.shape
    tile_m = _pick_row_tile(m)
    grid = (m // tile_m,)
    row_spec = pl.BlockSpec((tile_m, cp), lambda i: (i, 0))
    vec_spec = pl.BlockSpec((1, cp), lambda i: (0, 0))
    if y1 is None:
        kernel = _bn_act_kernel
        in_specs = [row_spec, vec_spec, vec_spec]
        args = (y2, scale2, shift2)
    else:
        kernel = _bn_res_act_kernel
        in_specs = [row_spec, row_spec, vec_spec, vec_spec, vec_spec, vec_spec]
        args = (y2, y1, scale2, shift2, scale1, shift1)
    return pl.pallas_call(
        kernel,
        out_shape=jax.ShapeDtypeStruct((m, cp), jnp.float32),
        grid=grid,
        in_specs=in_specs,
        out_specs=row_spec,
        compiler_params=pltpu.CompilerParams(
            dimension_semantics=("parallel",),
            vmem_limit_bytes=VMEM_LIMIT,
        ),
    )(*args)


# --------------------------- host-side glue ---------------------------------

def _w_to_taps(w_oihw, cin_pad, cout_pad):
    """PyTorch (Cout, Cin, 3, 3) -> (9*cin_pad, cout_pad) bf16, tap order ky*3+kx."""
    cout, cin = w_oihw.shape[0], w_oihw.shape[1]
    t = jnp.transpose(w_oihw, (2, 3, 1, 0)).reshape(9, cin, cout)
    t = jnp.pad(t, ((0, 0), (0, cin_pad - cin), (0, cout_pad - cout)))
    return t.reshape(9 * cin_pad, cout_pad).astype(jnp.bfloat16)


def _pad_vec(v, cp, fill=0.0):
    c = v.shape[0]
    return jnp.pad(v.astype(jnp.float32), (0, cp - c),
                   constant_values=fill).reshape(1, cp)


def _pick_h_tile(h, wdt, k):
    """Row-tile height: biggest th dividing h with th*wdt rows that keep the
    (th, wdt, k) bf16 patch scratch comfortably inside VMEM."""
    target_rows = min(1024, max(64, (6 * 1024 * 1024) // max(1, 2 * k)))
    best = h
    for th in range(1, h + 1):
        if h % th == 0 and (th * wdt) % 8 == 0 and th * wdt <= target_rows:
            best = th
    return best


def _h_tiles(xpad, th):
    """(N, H+2, W+2, C) -> (N, n_h, th+2, W+2, C) overlapping row tiles (halo=1)."""
    n, hp2, wp2, c = xpad.shape
    h = hp2 - 2
    n_h = h // th
    if n_h == 1:
        return xpad.reshape(n, 1, hp2, wp2, c)
    tiles = [lax.slice_in_dim(xpad, t * th, t * th + th + 2, axis=1)
             for t in range(n_h)]
    return jnp.stack(tiles, axis=1)


def init_down_params(key, in_ch, out_ch):
    k1, k2, k3, k4 = jax.random.split(key, 4)
    w1 = jax.random.normal(k1, (out_ch, in_ch, 3, 3), jnp.float32) * 0.1
    b1 = jax.random.normal(k2, (out_ch,), jnp.float32) * 0.1
    w2 = jax.random.normal(k3, (out_ch, out_ch, 3, 3), jnp.float32) * 0.1
    b2 = jax.random.normal(k4, (out_ch,), jnp.float32) * 0.1
    g1 = jnp.ones((out_ch,), jnp.float32)
    be1 = jnp.zeros((out_ch,), jnp.float32)
    g2 = jnp.ones((out_ch,), jnp.float32)
    be2 = jnp.zeros((out_ch,), jnp.float32)
    return dict(w1=w1, b1=b1, g1=g1, be1=be1, w2=w2, b2=b2, g2=g2, be2=be2)


def down_forward(x_nchw, params, is_res=True):
    """Pallas implementation of Down.forward. Input/output NCHW float32."""
    x = jnp.transpose(x_nchw, (0, 2, 3, 1)).astype(jnp.float32)   # -> NHWC
    n, h, wdt, _ = x.shape
    cout, cin = params["w1"].shape[0], params["w1"].shape[1]
    cp = _round_up(cout, LANES)            # lane-dense channel padding
    m = n * h * wdt

    w1 = _w_to_taps(params["w1"], cin, cp)
    w2 = _w_to_taps(params["w2"], cp, cp)  # conv2 input channels padded to cp
    b1 = _pad_vec(params["b1"], cp)
    b2 = _pad_vec(params["b2"], cp)
    g1 = _pad_vec(params["g1"], cp, fill=1.0)
    g2 = _pad_vec(params["g2"], cp, fill=1.0)
    be1 = _pad_vec(params["be1"], cp)
    be2 = _pad_vec(params["be2"], cp)

    # ConvBlock 1: conv3x3 + bias (tiled) + global training-mode BN scale/shift.
    xpad = jnp.pad(x.astype(jnp.bfloat16), ((0, 0), (1, 1), (1, 1), (0, 0)))
    th1 = _pick_h_tile(h, wdt, 9 * cin)
    x_tiles = _h_tiles(xpad, th1)
    y1c, stats1 = _conv1_pass(x_tiles, w1, b1,
                              th=th1, wdt=wdt, cin=cin, cp=cp, m=m)
    sc1, sh1 = _bn_stats_pass(stats1, g1, be1,
                              groups=x_tiles.shape[0] * x_tiles.shape[1],
                              count=m, cp=cp)

    # Conv2 with BN1 + ReLU fused into its input path (post-BN activation is
    # never written to HBM).
    y1c_pad = jnp.pad(y1c.reshape(n, h, wdt, cp), ((0, 0), (1, 1), (1, 1), (0, 0)))
    th2 = _pick_h_tile(h, wdt, 9 * cp)
    y1_tiles = _h_tiles(y1c_pad, th2)
    y2c, stats2 = _conv2_pass(y1_tiles, sc1, sh1, w2, b2,
                              th=th2, wdt=wdt, cp=cp, m=m)
    sc2, sh2 = _bn_stats_pass(stats2, g2, be2,
                              groups=y1_tiles.shape[0] * y1_tiles.shape[1],
                              count=m, cp=cp)

    # BN2 (+ recomputed BN1+ReLU residual) + final ReLU.
    if is_res:
        out = _bn_act_pass(y2c, sc2, sh2, y1=y1c, scale1=sc1, shift1=sh1)
    else:
        out = _bn_act_pass(y2c, sc2, sh2)

    out_nhwc = out.reshape(n, h, wdt, cp)[..., :cout]
    return jnp.transpose(out_nhwc, (0, 3, 1, 2))      # -> NCHW


down_forward_jit = jax.jit(down_forward, static_argnames=("is_res",))


# ---------------- pure-JAX reference (for correctness check) ----------------
def _ref_conv_bn(x_nhwc, w_oihw, b, g, be):
    y = lax.conv_general_dilated(
        x_nhwc, w_oihw, window_strides=(1, 1), padding="SAME",
        dimension_numbers=("NHWC", "OIHW", "NHWC"),
        precision=lax.Precision.HIGHEST,
    ) + b.reshape(1, 1, 1, -1)
    mean = y.mean(axis=(0, 1, 2), keepdims=True)
    var = ((y - mean) ** 2).mean(axis=(0, 1, 2), keepdims=True)
    return (y - mean) * lax.rsqrt(var + BN_EPS) * g.reshape(1, 1, 1, -1) \
        + be.reshape(1, 1, 1, -1)


def down_forward_ref(x_nchw, params, is_res=True):
    x = jnp.transpose(x_nchw, (0, 2, 3, 1)).astype(jnp.float32)
    y1 = jnp.maximum(_ref_conv_bn(x, params["w1"], params["b1"],
                                  params["g1"], params["be1"]), 0.0)
    y2 = _ref_conv_bn(y1, params["w2"], params["b2"], params["g2"], params["be2"])
    if is_res:
        y2 = y2 + y1
    out = jnp.maximum(y2, 0.0)
    return jnp.transpose(out, (0, 3, 1, 2))


if __name__ == "__main__":
    key = jax.random.PRNGKey(0)
    kx, kp = jax.random.split(key)

    N, Cin, Cout, H, W = 2, 4, 8, 16, 16
    x = jax.random.normal(kx, (N, Cin, H, W), jnp.float32)  # NCHW, like PyTorch
    params = init_down_params(kp, Cin, Cout)

    out = jax.block_until_ready(down_forward_jit(x, params, is_res=True))
    assert out.shape == (N, Cout, H, W), out.shape

    ref = jax.block_until_ready(down_forward_ref(x, params, is_res=True))
    max_err = float(jnp.max(jnp.abs(out - ref)))
    # bf16 MXU inputs (f32 accumulation / BN math) -> slightly looser tolerance.
    assert jnp.allclose(out, ref, atol=2e-2, rtol=2e-2), max_err

    print("KERNEL_OK")
</pallas_src>

<mosaic_0001>
module attributes {stable_mosaic.version = 11 : i64} {
  func.func @_conv1_kernel(%arg0: i32, %arg1: i32, %arg2: memref<1x1x18x18x4xbf16, #tpu.memory_space<vmem>>, %arg3: memref<36x128xbf16, #tpu.memory_space<vmem>>, %arg4: memref<1x128xf32, #tpu.memory_space<vmem>>, %arg5: memref<256x128xf32, #tpu.memory_space<vmem>>, %arg6: memref<8x128xf32, #tpu.memory_space<vmem>>, %arg7: memref<16x16x36xbf16, #tpu.memory_space<vmem>>) attributes {dimension_semantics = [#tpu.dimension_semantics<parallel>, #tpu.dimension_semantics<parallel>], iteration_bounds = array<i64: 2, 1>, scalar_prefetch = 0 : i64, scratch_operands = 1 : i64, tpu.core_type = #tpu.core_type<tc>, window_params = [{transform_indices = @transform_0, window_bounds = array<i64: 1, 1, 18, 18, 4>}, {pipeline_mode = #tpu.pipeline_mode<synchronous>, transform_indices = @transform_1, window_bounds = array<i64: 36, 128>}, {pipeline_mode = #tpu.pipeline_mode<synchronous>, transform_indices = @transform_2, window_bounds = array<i64: 1, 128>}, {transform_indices = @transform_3, window_bounds = array<i64: 256, 128>}, {transform_indices = @transform_4, window_bounds = array<i64: 8, 128>}]} {
    %c0 = arith.constant 0 : index
    %c0_0 = arith.constant 0 : index
    %c0_1 = arith.constant 0 : index
    %c0_2 = arith.constant 0 : index
    %c0_3 = arith.constant 0 : index
    %0 = vector.load %arg2[%c0, %c0_0, %c0_1, %c0_2, %c0_3] : memref<1x1x18x18x4xbf16, #tpu.memory_space<vmem>>, vector<1x1x16x16x4xbf16>
    %1 = vector.shape_cast %0 : vector<1x1x16x16x4xbf16> to vector<16x16x4xbf16>
    %c0_4 = arith.constant 0 : index
    %c0_5 = arith.constant 0 : index
    %c0_6 = arith.constant 0 : index
    %2 = vector.load %arg7[%c0_4, %c0_5, %c0_6] : memref<16x16x36xbf16, #tpu.memory_space<vmem>>, vector<16x16x4xbf16>
    tpu.vector_store %arg7[%c0_4, %c0_5, %c0_6], %1 {strides = array<i32>} : memref<16x16x36xbf16, #tpu.memory_space<vmem>>, vector<16x16x4xbf16>,
    %c0_7 = arith.constant 0 : index
    %c0_8 = arith.constant 0 : index
    %c0_9 = arith.constant 0 : index
    %c1 = arith.constant 1 : index
    %c0_10 = arith.constant 0 : index
    %3 = vector.load %arg2[%c0_7, %c0_8, %c0_9, %c1, %c0_10] : memref<1x1x18x18x4xbf16, #tpu.memory_space<vmem>>, vector<1x1x16x16x4xbf16>
    %4 = vector.shape_cast %3 : vector<1x1x16x16x4xbf16> to vector<16x16x4xbf16>
    %c0_11 = arith.constant 0 : index
    %c0_12 = arith.constant 0 : index
    %c4 = arith.constant 4 : index
    %5 = vector.load %arg7[%c0_11, %c0_12, %c4] : memref<16x16x36xbf16, #tpu.memory_space<vmem>>, vector<16x16x4xbf16>
    tpu.vector_store %arg7[%c0_11, %c0_12, %c4], %4 {strides = array<i32>} : memref<16x16x36xbf16, #tpu.memory_space<vmem>>, vector<16x16x4xbf16>,
    %c0_13 = arith.constant 0 : index
    %c0_14 = arith.constant 0 : index
    %c0_15 = arith.constant 0 : index
    %c2 = arith.constant 2 : index
    %c0_16 = arith.constant 0 : index
    %6 = vector.load %arg2[%c0_13, %c0_14, %c0_15, %c2, %c0_16] : memref<1x1x18x18x4xbf16, #tpu.memory_space<vmem>>, vector<1x1x16x16x4xbf16>
    %7 = vector.shape_cast %6 : vector<1x1x16x16x4xbf16> to vector<16x16x4xbf16>
    %c0_17 = arith.constant 0 : index
    %c0_18 = arith.constant 0 : index
    %c8 = arith.constant 8 : index
    %8 = vector.load %arg7[%c0_17, %c0_18, %c8] : memref<16x16x36xbf16, #tpu.memory_space<vmem>>, vector<16x16x4xbf16>
    tpu.vector_store %arg7[%c0_17, %c0_18, %c8], %7 {strides = array<i32>} : memref<16x16x36xbf16, #tpu.memory_space<vmem>>, vector<16x16x4xbf16>,
    %c0_19 = arith.constant 0 : index
    %c0_20 = arith.constant 0 : index
    %c1_21 = arith.constant 1 : index
    %c0_22 = arith.constant 0 : index
    %c0_23 = arith.constant 0 : index
    %9 = vector.load %arg2[%c0_19, %c0_20, %c1_21, %c0_22, %c0_23] : memref<1x1x18x18x4xbf16, #tpu.memory_space<vmem>>, vector<1x1x16x16x4xbf16>
    %10 = vector.shape_cast %9 : vector<1x1x16x16x4xbf16> to vector<16x16x4xbf16>
    %c0_24 = arith.constant 0 : index
    %c0_25 = arith.constant 0 : index
    %c12 = arith.constant 12 : index
    %11 = vector.load %arg7[%c0_24, %c0_25, %c12] : memref<16x16x36xbf16, #tpu.memory_space<vmem>>, vector<16x16x4xbf16>
    tpu.vector_store %arg7[%c0_24, %c0_25, %c12], %10 {strides = array<i32>} : memref<16x16x36xbf16, #tpu.memory_space<vmem>>, vector<16x16x4xbf16>,
    %c0_26 = arith.constant 0 : index
    %c0_27 = arith.constant 0 : index
    %c1_28 = arith.constant 1 : index
    %c1_29 = arith.constant 1 : index
    %c0_30 = arith.constant 0 : index
    %12 = vector.load %arg2[%c0_26, %c0_27, %c1_28, %c1_29, %c0_30] : memref<1x1x18x18x4xbf16, #tpu.memory_space<vmem>>, vector<1x1x16x16x4xbf16>
    %13 = vector.shape_cast %12 : vector<1x1x16x16x4xbf16> to vector<16x16x4xbf16>
    %c0_31 = arith.constant 0 : index
    %c0_32 = arith.constant 0 : index
    %c16 = arith.constant 16 : index
    %14 = vector.load %arg7[%c0_31, %c0_32, %c16] : memref<16x16x36xbf16, #tpu.memory_space<vmem>>, vector<16x16x4xbf16>
    tpu.vector_store %arg7[%c0_31, %c0_32, %c16], %13 {strides = array<i32>} : memref<16x16x36xbf16, #tpu.memory_space<vmem>>, vector<16x16x4xbf16>,
    %c0_33 = arith.constant 0 : index
    %c0_34 = arith.constant 0 : index
    %c1_35 = arith.constant 1 : index
    %c2_36 = arith.constant 2 : index
    %c0_37 = arith.constant 0 : index
    %15 = vector.load %arg2[%c0_33, %c0_34, %c1_35, %c2_36, %c0_37] : memref<1x1x18x18x4xbf16, #tpu.memory_space<vmem>>, vector<1x1x16x16x4xbf16>
    %16 = vector.shape_cast %15 : vector<1x1x16x16x4xbf16> to vector<16x16x4xbf16>
    %c0_38 = arith.constant 0 : index
    %c0_39 = arith.constant 0 : index
    %c20 = arith.constant 20 : index
    %17 = vector.load %arg7[%c0_38, %c0_39, %c20] : memref<16x16x36xbf16, #tpu.memory_space<vmem>>, vector<16x16x4xbf16>
    tpu.vector_store %arg7[%c0_38, %c0_39, %c20], %16 {strides = array<i32>} : memref<16x16x36xbf16, #tpu.memory_space<vmem>>, vector<16x16x4xbf16>,
    %c0_40 = arith.constant 0 : index
    %c0_41 = arith.constant 0 : index
    %c2_42 = arith.constant 2 : index
    %c0_43 = arith.constant 0 : index
    %c0_44 = arith.constant 0 : index
    %18 = vector.load %arg2[%c0_40, %c0_41, %c2_42, %c0_43, %c0_44] : memref<1x1x18x18x4xbf16, #tpu.memory_space<vmem>>, vector<1x1x16x16x4xbf16>
    %19 = vector.shape_cast %18 : vector<1x1x16x16x4xbf16> to vector<16x16x4xbf16>
    %c0_45 = arith.constant 0 : index
    %c0_46 = arith.constant 0 : index
    %c24 = arith.constant 24 : index
    %20 = vector.load %arg7[%c0_45, %c0_46, %c24] : memref<16x16x36xbf16, #tpu.memory_space<vmem>>, vector<16x16x4xbf16>
    tpu.vector_store %arg7[%c0_45, %c0_46, %c24], %19 {strides = array<i32>} : memref<16x16x36xbf16, #tpu.memory_space<vmem>>, vector<16x16x4xbf16>,
    %c0_47 = arith.constant 0 : index
    %c0_48 = arith.constant 0 : index
    %c2_49 = arith.constant 2 : index
    %c1_50 = arith.constant 1 : index
    %c0_51 = arith.constant 0 : index
    %21 = vector.load %arg2[%c0_47, %c0_48, %c2_49, %c1_50, %c0_51] : memref<1x1x18x18x4xbf16, #tpu.memory_space<vmem>>, vector<1x1x16x16x4xbf16>
    %22 = vector.shape_cast %21 : vector<1x1x16x16x4xbf16> to vector<16x16x4xbf16>
    %c0_52 = arith.constant 0 : index
    %c0_53 = arith.constant 0 : index
    %c28 = arith.constant 28 : index
    %23 = vector.load %arg7[%c0_52, %c0_53, %c28] : memref<16x16x36xbf16, #tpu.memory_space<vmem>>, vector<16x16x4xbf16>
    tpu.vector_store %arg7[%c0_52, %c0_53, %c28], %22 {strides = array<i32>} : memref<16x16x36xbf16, #tpu.memory_space<vmem>>, vector<16x16x4xbf16>,
    %c0_54 = arith.constant 0 : index
    %c0_55 = arith.constant 0 : index
    %c2_56 = arith.constant 2 : index
    %c2_57 = arith.constant 2 : index
    %c0_58 = arith.constant 0 : index
    %24 = vector.load %arg2[%c0_54, %c0_55, %c2_56, %c2_57, %c0_58] : memref<1x1x18x18x4xbf16, #tpu.memory_space<vmem>>, vector<1x1x16x16x4xbf16>
    %25 = vector.shape_cast %24 : vector<1x1x16x16x4xbf16> to vector<16x16x4xbf16>
    %c0_59 = arith.constant 0 : index
    %c0_60 = arith.constant 0 : index
    %c32 = arith.constant 32 : index
    %26 = vector.load %arg7[%c0_59, %c0_60, %c32] : memref<16x16x36xbf16, #tpu.memory_space<vmem>>, vector<16x16x4xbf16>
    tpu.vector_store %arg7[%c0_59, %c0_60, %c32], %25 {strides = array<i32>} : memref<16x16x36xbf16, #tpu.memory_space<vmem>>, vector<16x16x4xbf16>,
    %c0_61 = arith.constant 0 : index
    %c0_62 = arith.constant 0 : index
    %c0_63 = arith.constant 0 : index
    %27 = vector.load %arg7[%c0_61, %c0_62, %c0_63] : memref<16x16x36xbf16, #tpu.memory_space<vmem>>, vector<16x16x36xbf16>
    %28 = vector.shape_cast %27 : vector<16x16x36xbf16> to vector<256x36xbf16>
    %c0_64 = arith.constant 0 : index
    %c0_65 = arith.constant 0 : index
    %29 = vector.load %arg3[%c0_64, %c0_65] : memref<36x128xbf16, #tpu.memory_space<vmem>>, vector<36x128xbf16>
    %cst = arith.constant dense<0.000000e+00> : vector<256x128xf32>
    %30 = tpu.matmul %28, %29, %cst {dimension_numbers = #tpu.dot_dimension_numbers<[1], [0], [0], [1], [0, 0, 1, 1], [], []>} : vector<256x36xbf16>, vector<36x128xbf16>, vector<256x128xf32> -> vector<256x128xf32>
    %c0_66 = arith.constant 0 : index
    %c0_67 = arith.constant 0 : index
    %31 = vector.load %arg4[%c0_66, %c0_67] : memref<1x128xf32, #tpu.memory_space<vmem>>, vector<1x128xf32>
    %32 = vector.broadcast %31 : vector<1x128xf32> to vector<256x128xf32>
    %33 = arith.addf %30, %32 : vector<256x128xf32>
    %c0_68 = arith.constant 0 : index
    %c0_69 = arith.constant 0 : index
    %34 = vector.load %arg5[%c0_68, %c0_69] : memref<256x128xf32, #tpu.memory_space<vmem>>, vector<256x128xf32>
    tpu.vector_store %arg5[%c0_68, %c0_69], %33 {strides = array<i32>} : memref<256x128xf32, #tpu.memory_space<vmem>>, vector<256x128xf32>,
    %cst_70 = arith.constant 0.000000e+00 : f32
    %35 = vector.broadcast %cst_70 : f32 to vector<8x128xf32>
    %c0_71 = arith.constant 0 : index
    %c0_72 = arith.constant 0 : index
    %36 = vector.load %arg6[%c0_71, %c0_72] : memref<8x128xf32, #tpu.memory_space<vmem>>, vector<8x128xf32>
    tpu.vector_store %arg6[%c0_71, %c0_72], %35 {strides = array<i32>} : memref<8x128xf32, #tpu.memory_space<vmem>>, vector<8x128xf32>,
    %cst_73 = arith.constant dense<0.000000e+00> : vector<128xf32>
    %37 = vector.multi_reduction <add>, %33, %cst_73 [0] : vector<256x128xf32> to vector<128xf32>
    %38 = vector.shape_cast %37 : vector<128xf32> to vector<1x128xf32>
    %c0_74 = arith.constant 0 : index
    %c0_75 = arith.constant 0 : index
    %39 = vector.load %arg6[%c0_74, %c0_75] : memref<8x128xf32, #tpu.memory_space<vmem>>, vector<1x128xf32>
    tpu.vector_store %arg6[%c0_74, %c0_75], %38 {strides = array<i32>} : memref<8x128xf32, #tpu.memory_space<vmem>>, vector<1x128xf32>,
    %40 = arith.mulf %33, %33 : vector<256x128xf32>
    %cst_76 = arith.constant dense<0.000000e+00> : vector<128xf32>
    %41 = vector.multi_reduction <add>, %40, %cst_76 [0] : vector<256x128xf32> to vector<128xf32>
    %42 = vector.shape_cast %41 : vector<128xf32> to vector<1x128xf32>
    %c1_77 = arith.constant 1 : index
    %c0_78 = arith.constant 0 : index
    %43 = vector.load %arg6[%c1_77, %c0_78] : memref<8x128xf32, #tpu.memory_space<vmem>>, vector<1x128xf32>
    tpu.vector_store %arg6[%c1_77, %c0_78], %42 {strides = array<i32>} : memref<8x128xf32, #tpu.memory_space<vmem>>, vector<1x128xf32>,
    return
  }
  func.func @transform_0(%arg0: i32, %arg1: i32) -> (i32, i32, i32, i32, i32) {
    %c0_i32 = arith.constant 0 : i32
    %c0_i32_0 = arith.constant 0 : i32
    %c0_i32_1 = arith.constant 0 : i32
    %c0_i32_2 = arith.constant 0 : i32
    return %arg0, %arg1, %c0_i32, %c0_i32_0, %c0_i32_1 : i32, i32, i32, i32, i32
  }
  func.func @transform_1(%arg0: i32, %arg1: i32) -> (i32, i32) {
    %c0_i32 = arith.constant 0 : i32
    %c0_i32_0 = arith.constant 0 : i32
    %c0_i32_1 = arith.constant 0 : i32
    return %c0_i32, %c0_i32_0 : i32, i32
  }
  func.func @transform_2(%arg0: i32, %arg1: i32) -> (i32, i32) {
    %c0_i32 = arith.constant 0 : i32
    %c0_i32_0 = arith.constant 0 : i32
    %c0_i32_1 = arith.constant 0 : i32
    return %c0_i32, %c0_i32_0 : i32, i32
  }
  func.func @transform_3(%arg0: i32, %arg1: i32) -> (i32, i32) {
    %c1_i32 = arith.constant 1 : i32
    %0 = arith.muli %arg0, %c1_i32 : i32
    %1 = arith.addi %0, %arg1 : i32
    %c0_i32 = arith.constant 0 : i32
    %c0_i32_0 = arith.constant 0 : i32
    return %1, %c0_i32 : i32, i32
  }
  func.func @transform_4(%arg0: i32, %arg1: i32) -> (i32, i32) {
    %c1_i32 = arith.constant 1 : i32
    %0 = arith.muli %arg0, %c1_i32 : i32
    %1 = arith.addi %0, %arg1 : i32
    %c0_i32 = arith.constant 0 : i32
    %c0_i32_0 = arith.constant 0 : i32
    return %1, %c0_i32 : i32, i32
  }
}

module attributes {stable_mosaic.version = 11 : i64} {
  func.func @_bn_stats_kernel(%arg0: memref<16x128xf32, #tpu.memory_space<vmem>>, %arg1: memref<1x128xf32, #tpu.memory_space<vmem>>, %arg2: memref<1x128xf32, #tpu.memory_space<vmem>>, %arg3: memref<1x128xf32, #tpu.memory_space<vmem>>, %arg4: memref<1x128xf32, #tpu.memory_space<vmem>>) attributes {dimension_semantics = [], scalar_prefetch = 0 : i64, scratch_operands = 0 : i64, tpu.core_type = #tpu.core_type<tc>} {
    %c0 = arith.constant 0 : index
    %c0_0 = arith.constant 0 : index
    %0 = vector.load %arg0[%c0, %c0_0] : memref<16x128xf32, #tpu.memory_space<vmem>>, vector<16x128xf32>
    %1 = vector.shape_cast %0 : vector<16x128xf32> to vector<2x8x128xf32>
    %cst = arith.constant dense<0.000000e+00> : vector<8x128xf32>
    %2 = vector.multi_reduction <add>, %1, %cst [0] : vector<2x8x128xf32> to vector<8x128xf32>
    %3 = vector.extract_strided_slice %2 {offsets = [0, 0], sizes = [1, 128], strides = [1, 1]} : vector<8x128xf32> to vector<1x128xf32>
    %cst_1 = arith.constant 0.001953125 : f32
    %4 = vector.broadcast %cst_1 : f32 to vector<1x128xf32>
    %5 = arith.mulf %3, %4 : vector<1x128xf32>
    %6 = vector.extract_strided_slice %2 {offsets = [1, 0], sizes = [1, 128], strides = [1, 1]} : vector<8x128xf32> to vector<1x128xf32>
    %cst_2 = arith.constant 0.001953125 : f32
    %7 = vector.broadcast %cst_2 : f32 to vector<1x128xf32>
    %8 = arith.mulf %6, %7 : vector<1x128xf32>
    %9 = arith.mulf %5, %5 : vector<1x128xf32>
    %10 = arith.subf %8, %9 : vector<1x128xf32>
    %cst_3 = arith.constant 0.000000e+00 : f32
    %11 = vector.broadcast %cst_3 : f32 to vector<1x128xf32>
    %12 = arith.maximumf %10, %11 : vector<1x128xf32>
    %c0_4 = arith.constant 0 : index
    %c0_5 = arith.constant 0 : index
    %13 = vector.load %arg1[%c0_4, %c0_5] : memref<1x128xf32, #tpu.memory_space<vmem>>, vector<1x128xf32>
    %cst_6 = arith.constant 9.99999974E-6 : f32
    %14 = vector.broadcast %cst_6 : f32 to vector<1x128xf32>
    %15 = arith.addf %12, %14 : vector<1x128xf32>
    %16 = math.rsqrt %15 : vector<1x128xf32>
    %17 = arith.mulf %13, %16 : vector<1x128xf32>
    %c0_7 = arith.constant 0 : index
    %c0_8 = arith.constant 0 : index
    %18 = vector.load %arg3[%c0_7, %c0_8] : memref<1x128xf32, #tpu.memory_space<vmem>>, vector<1x128xf32>
    tpu.vector_store %arg3[%c0_7, %c0_8], %17 {strides = array<i32>} : memref<1x128xf32, #tpu.memory_space<vmem>>, vector<1x128xf32>,
    %c0_9 = arith.constant 0 : index
    %c0_10 = arith.constant 0 : index
    %19 = vector.load %arg2[%c0_9, %c0_10] : memref<1x128xf32, #tpu.memory_space<vmem>>, vector<1x128xf32>
    %20 = arith.mulf %5, %17 : vector<1x128xf32>
    %21 = arith.subf %19, %20 : vector<1x128xf32>
    %c0_11 = arith.constant 0 : index
    %c0_12 = arith.constant 0 : index
    %22 = vector.load %arg4[%c0_11, %c0_12] : memref<1x128xf32, #tpu.memory_space<vmem>>, vector<1x128xf32>
    tpu.vector_store %arg4[%c0_11, %c0_12], %21 {strides = array<i32>} : memref<1x128xf32, #tpu.memory_space<vmem>>, vector<1x128xf32>,
    return
  }
}

module attributes {stable_mosaic.version = 11 : i64} {
  func.func @_conv2_fused_kernel(%arg0: i32, %arg1: i32, %arg2: memref<1x1x18x18x128xf32, #tpu.memory_space<vmem>>, %arg3: memref<1x128xf32, #tpu.memory_space<vmem>>, %arg4: memref<1x128xf32, #tpu.memory_space<vmem>>, %arg5: memref<1152x128xbf16, #tpu.memory_space<vmem>>, %arg6: memref<1x128xf32, #tpu.memory_space<vmem>>, %arg7: memref<256x128xf32, #tpu.memory_space<vmem>>, %arg8: memref<8x128xf32, #tpu.memory_space<vmem>>, %arg9: memref<16x16x1152xbf16, #tpu.memory_space<vmem>>) attributes {dimension_semantics = [#tpu.dimension_semantics<parallel>, #tpu.dimension_semantics<parallel>], iteration_bounds = array<i64: 2, 1>, scalar_prefetch = 0 : i64, scratch_operands = 1 : i64, tpu.core_type = #tpu.core_type<tc>, window_params = [{transform_indices = @transform_0, window_bounds = array<i64: 1, 1, 18, 18, 128>}, {pipeline_mode = #tpu.pipeline_mode<synchronous>, transform_indices = @transform_1, window_bounds = array<i64: 1, 128>}, {pipeline_mode = #tpu.pipeline_mode<synchronous>, transform_indices = @transform_2, window_bounds = array<i64: 1, 128>}, {pipeline_mode = #tpu.pipeline_mode<synchronous>, transform_indices = @transform_3, window_bounds = array<i64: 1152, 128>}, {pipeline_mode = #tpu.pipeline_mode<synchronous>, transform_indices = @transform_4, window_bounds = array<i64: 1, 128>}, {transform_indices = @transform_5, window_bounds = array<i64: 256, 128>}, {transform_indices = @transform_6, window_bounds = array<i64: 8, 128>}]} {
    %c0 = arith.constant 0 : index
    %c0_0 = arith.constant 0 : index
    %c0_1 = arith.constant 0 : index
    %c0_2 = arith.constant 0 : index
    %c0_3 = arith.constant 0 : index
    %0 = vector.load %arg2[%c0, %c0_0, %c0_1, %c0_2, %c0_3] : memref<1x1x18x18x128xf32, #tpu.memory_space<vmem>>, vector<1x1x18x18x128xf32>
    %1 = vector.shape_cast %0 : vector<1x1x18x18x128xf32> to vector<18x18x128xf32>
    %c0_4 = arith.constant 0 : index
    %c0_5 = arith.constant 0 : index
    %2 = vector.load %arg3[%c0_4, %c0_5] : memref<1x128xf32, #tpu.memory_space<vmem>>, vector<1x128xf32>
    %3 = vector.shape_cast %2 : vector<1x128xf32> to vector<1x1x128xf32>
    %4 = vector.broadcast %3 : vector<1x1x128xf32> to vector<18x18x128xf32>
    %5 = arith.mulf %1, %4 : vector<18x18x128xf32>
    %c0_6 = arith.constant 0 : index
    %c0_7 = arith.constant 0 : index
    %6 = vector.load %arg4[%c0_6, %c0_7] : memref<1x128xf32, #tpu.memory_space<vmem>>, vector<1x128xf32>
    %7 = vector.shape_cast %6 : vector<1x128xf32> to vector<1x1x128xf32>
    %8 = vector.broadcast %7 : vector<1x1x128xf32> to vector<18x18x128xf32>
    %9 = arith.addf %5, %8 : vector<18x18x128xf32>
    %cst = arith.constant 0.000000e+00 : f32
    %10 = vector.broadcast %cst : f32 to vector<18x18x128xf32>
    %11 = arith.maximumf %9, %10 : vector<18x18x128xf32>
    %12 = tpu.iota {dimensions = array<i32: 0>} : vector<18x18x1xi32>
    %13 = tpu.iota {dimensions = array<i32: 1>} : vector<18x18x1xi32>
    %c0_i32 = arith.constant 0 : i32
    %14 = vector.broadcast %c0_i32 : i32 to vector<18x18x1xi32>
    %15 = arith.cmpi sgt, %13, %14 : vector<18x18x1xi32>
    %c17_i32 = arith.constant 17 : i32
    %16 = vector.broadcast %c17_i32 : i32 to vector<18x18x1xi32>
    %17 = arith.cmpi slt, %13, %16 : vector<18x18x1xi32>
    %18 = arith.andi %15, %17 : vector<18x18x1xi1>
    %c0_i32_8 = arith.constant 0 : i32
    %19 = arith.cmpi sgt, %arg1, %c0_i32_8 : i32
    %c0_i32_9 = arith.constant 0 : i32
    %20 = vector.broadcast %c0_i32_9 : i32 to vector<18x18x1xi32>
    %21 = arith.cmpi sgt, %12, %20 : vector<18x18x1xi32>
    %22 = vector.broadcast %19 : i1 to vector<18x18x1xi1>
    %23 = arith.ori %22, %21 : vector<18x18x1xi1>
    %24 = arith.andi %18, %23 : vector<18x18x1xi1>
    %c0_i32_10 = arith.constant 0 : i32
    %25 = arith.cmpi slt, %arg1, %c0_i32_10 : i32
    %c17_i32_11 = arith.constant 17 : i32
    %26 = vector.broadcast %c17_i32_11 : i32 to vector<18x18x1xi32>
    %27 = arith.cmpi slt, %12, %26 : vector<18x18x1xi32>
    %28 = vector.broadcast %25 : i1 to vector<18x18x1xi1>
    %29 = arith.ori %28, %27 : vector<18x18x1xi1>
    %30 = arith.andi %24, %29 : vector<18x18x1xi1>
    %cst_12 = arith.constant 0.000000e+00 : f32
    %31 = vector.shape_cast %30 : vector<18x18x1xi1> to vector<18x18x1xi1>
    %32 = vector.broadcast %31 : vector<18x18x1xi1> to vector<18x18x128xi1>
    %33 = vector.broadcast %cst_12 : f32 to vector<18x18x128xf32>
    %34 = arith.select %32, %11, %33 : vector<18x18x128xi1>, vector<18x18x128xf32>
    %35 = arith.truncf %34 : vector<18x18x128xf32> to vector<18x18x128xbf16>
    %36 = vector.extract_strided_slice %35 {offsets = [0, 0, 0], sizes = [16, 16, 128], strides = [1, 1, 1]} : vector<18x18x128xbf16> to vector<16x16x128xbf16>
    %c0_13 = arith.constant 0 : index
    %c0_14 = arith.constant 0 : index
    %c0_15 = arith.constant 0 : index
    %37 = vector.load %arg9[%c0_13, %c0_14, %c0_15] : memref<16x16x1152xbf16, #tpu.memory_space<vmem>>, vector<16x16x128xbf16>
    tpu.vector_store %arg9[%c0_13, %c0_14, %c0_15], %36 {strides = array<i32>} : memref<16x16x1152xbf16, #tpu.memory_space<vmem>>, vector<16x16x128xbf16>,
    %38 = vector.extract_strided_slice %35 {offsets = [0, 1, 0], sizes = [16, 16, 128], strides = [1, 1, 1]} : vector<18x18x128xbf16> to vector<16x16x128xbf16>
    %c0_16 = arith.constant 0 : index
    %c0_17 = arith.constant 0 : index
    %c128 = arith.constant 128 : index
    %39 = vector.load %arg9[%c0_16, %c0_17, %c128] : memref<16x16x1152xbf16, #tpu.memory_space<vmem>>, vector<16x16x128xbf16>
    tpu.vector_store %arg9[%c0_16, %c0_17, %c128], %38 {strides = array<i32>} : memref<16x16x1152xbf16, #tpu.memory_space<vmem>>, vector<16x16x128xbf16>,
    %40 = vector.extract_strided_slice %35 {offsets = [0, 2, 0], sizes = [16, 16, 128], strides = [1, 1, 1]} : vector<18x18x128xbf16> to vector<16x16x128xbf16>
    %c0_18 = arith.constant 0 : index
    %c0_19 = arith.constant 0 : index
    %c256 = arith.constant 256 : index
    %41 = vector.load %arg9[%c0_18, %c0_19, %c256] : memref<16x16x1152xbf16, #tpu.memory_space<vmem>>, vector<16x16x128xbf16>
    tpu.vector_store %arg9[%c0_18, %c0_19, %c256], %40 {strides = array<i32>} : memref<16x16x1152xbf16, #tpu.memory_space<vmem>>, vector<16x16x128xbf16>,
    %42 = vector.extract_strided_slice %35 {offsets = [1, 0, 0], sizes = [16, 16, 128], strides = [1, 1, 1]} : vector<18x18x128xbf16> to vector<16x16x128xbf16>
    %c0_20 = arith.constant 0 : index
    %c0_21 = arith.constant 0 : index
    %c384 = arith.constant 384 : index
    %43 = vector.load %arg9[%c0_20, %c0_21, %c384] : memref<16x16x1152xbf16, #tpu.memory_space<vmem>>, vector<16x16x128xbf16>
    tpu.vector_store %arg9[%c0_20, %c0_21, %c384], %42 {strides = array<i32>} : memref<16x16x1152xbf16, #tpu.memory_space<vmem>>, vector<16x16x128xbf16>,
    %44 = vector.extract_strided_slice %35 {offsets = [1, 1, 0], sizes = [16, 16, 128], strides = [1, 1, 1]} : vector<18x18x128xbf16> to vector<16x16x128xbf16>
    %c0_22 = arith.constant 0 : index
    %c0_23 = arith.constant 0 : index
    %c512 = arith.constant 512 : index
    %45 = vector.load %arg9[%c0_22, %c0_23, %c512] : memref<16x16x1152xbf16, #tpu.memory_space<vmem>>, vector<16x16x128xbf16>
    tpu.vector_store %arg9[%c0_22, %c0_23, %c512], %44 {strides = array<i32>} : memref<16x16x1152xbf16, #tpu.memory_space<vmem>>, vector<16x16x128xbf16>,
    %46 = vector.extract_strided_slice %35 {offsets = [1, 2, 0], sizes = [16, 16, 128], strides = [1, 1, 1]} : vector<18x18x128xbf16> to vector<16x16x128xbf16>
    %c0_24 = arith.constant 0 : index
    %c0_25 = arith.constant 0 : index
    %c640 = arith.constant 640 : index
    %47 = vector.load %arg9[%c0_24, %c0_25, %c640] : memref<16x16x1152xbf16, #tpu.memory_space<vmem>>, vector<16x16x128xbf16>
    tpu.vector_store %arg9[%c0_24, %c0_25, %c640], %46 {strides = array<i32>} : memref<16x16x1152xbf16, #tpu.memory_space<vmem>>, vector<16x16x128xbf16>,
    %48 = vector.extract_strided_slice %35 {offsets = [2, 0, 0], sizes = [16, 16, 128], strides = [1, 1, 1]} : vector<18x18x128xbf16> to vector<16x16x128xbf16>
    %c0_26 = arith.constant 0 : index
    %c0_27 = arith.constant 0 : index
    %c768 = arith.constant 768 : index
    %49 = vector.load %arg9[%c0_26, %c0_27, %c768] : memref<16x16x1152xbf16, #tpu.memory_space<vmem>>, vector<16x16x128xbf16>
    tpu.vector_store %arg9[%c0_26, %c0_27, %c768], %48 {strides = array<i32>} : memref<16x16x1152xbf16, #tpu.memory_space<vmem>>, vector<16x16x128xbf16>,
    %50 = vector.extract_strided_slice %35 {offsets = [2, 1, 0], sizes = [16, 16, 128], strides = [1, 1, 1]} : vector<18x18x128xbf16> to vector<16x16x128xbf16>
    %c0_28 = arith.constant 0 : index
    %c0_29 = arith.constant 0 : index
    %c896 = arith.constant 896 : index
    %51 = vector.load %arg9[%c0_28, %c0_29, %c896] : memref<16x16x1152xbf16, #tpu.memory_space<vmem>>, vector<16x16x128xbf16>
    tpu.vector_store %arg9[%c0_28, %c0_29, %c896], %50 {strides = array<i32>} : memref<16x16x1152xbf16, #tpu.memory_space<vmem>>, vector<16x16x128xbf16>,
    %52 = vector.extract_strided_slice %35 {offsets = [2, 2, 0], sizes = [16, 16, 128], strides = [1, 1, 1]} : vector<18x18x128xbf16> to vector<16x16x128xbf16>
    %c0_30 = arith.constant 0 : index
    %c0_31 = arith.constant 0 : index
    %c1024 = arith.constant 1024 : index
    %53 = vector.load %arg9[%c0_30, %c0_31, %c1024] : memref<16x16x1152xbf16, #tpu.memory_space<vmem>>, vector<16x16x128xbf16>
    tpu.vector_store %arg9[%c0_30, %c0_31, %c1024], %52 {strides = array<i32>} : memref<16x16x1152xbf16, #tpu.memory_space<vmem>>, vector<16x16x128xbf16>,
    %c0_32 = arith.constant 0 : index
    %c0_33 = arith.constant 0 : index
    %c0_34 = arith.constant 0 : index
    %54 = vector.load %arg9[%c0_32, %c0_33, %c0_34] : memref<16x16x1152xbf16, #tpu.memory_space<vmem>>, vector<16x16x1152xbf16>
    %55 = vector.shape_cast %54 : vector<16x16x1152xbf16> to vector<256x1152xbf16>
    %c0_35 = arith.constant 0 : index
    %c0_36 = arith.constant 0 : index
    %56 = vector.load %arg5[%c0_35, %c0_36] : memref<1152x128xbf16, #tpu.memory_space<vmem>>, vector<1152x128xbf16>
    %cst_37 = arith.constant dense<0.000000e+00> : vector<256x128xf32>
    %57 = tpu.matmul %55, %56, %cst_37 {dimension_numbers = #tpu.dot_dimension_numbers<[1], [0], [0], [1], [0, 0, 1, 1], [], []>} : vector<256x1152xbf16>, vector<1152x128xbf16>, vector<256x128xf32> -> vector<256x128xf32>
    %c0_38 = arith.constant 0 : index
    %c0_39 = arith.constant 0 : index
    %58 = vector.load %arg6[%c0_38, %c0_39] : memref<1x128xf32, #tpu.memory_space<vmem>>, vector<1x128xf32>
    %59 = vector.broadcast %58 : vector<1x128xf32> to vector<256x128xf32>
    %60 = arith.addf %57, %59 : vector<256x128xf32>
    %c0_40 = arith.constant 0 : index
    %c0_41 = arith.constant 0 : index
    %61 = vector.load %arg7[%c0_40, %c0_41] : memref<256x128xf32, #tpu.memory_space<vmem>>, vector<256x128xf32>
    tpu.vector_store %arg7[%c0_40, %c0_41], %60 {strides = array<i32>} : memref<256x128xf32, #tpu.memory_space<vmem>>, vector<256x128xf32>,
    %cst_42 = arith.constant 0.000000e+00 : f32
    %62 = vector.broadcast %cst_42 : f32 to vector<8x128xf32>
    %c0_43 = arith.constant 0 : index
    %c0_44 = arith.constant 0 : index
    %63 = vector.load %arg8[%c0_43, %c0_44] : memref<8x128xf32, #tpu.memory_space<vmem>>, vector<8x128xf32>
    tpu.vector_store %arg8[%c0_43, %c0_44], %62 {strides = array<i32>} : memref<8x128xf32, #tpu.memory_space<vmem>>, vector<8x128xf32>,
    %cst_45 = arith.constant dense<0.000000e+00> : vector<128xf32>
    %64 = vector.multi_reduction <add>, %60, %cst_45 [0] : vector<256x128xf32> to vector<128xf32>
    %65 = vector.shape_cast %64 : vector<128xf32> to vector<1x128xf32>
    %c0_46 = arith.constant 0 : index
    %c0_47 = arith.constant 0 : index
    %66 = vector.load %arg8[%c0_46, %c0_47] : memref<8x128xf32, #tpu.memory_space<vmem>>, vector<1x128xf32>
    tpu.vector_store %arg8[%c0_46, %c0_47], %65 {strides = array<i32>} : memref<8x128xf32, #tpu.memory_space<vmem>>, vector<1x128xf32>,
    %67 = arith.mulf %60, %60 : vector<256x128xf32>
    %cst_48 = arith.constant dense<0.000000e+00> : vector<128xf32>
    %68 = vector.multi_reduction <add>, %67, %cst_48 [0] : vector<256x128xf32> to vector<128xf32>
    %69 = vector.shape_cast %68 : vector<128xf32> to vector<1x128xf32>
    %c1 = arith.constant 1 : index
    %c0_49 = arith.constant 0 : index
    %70 = vector.load %arg8[%c1, %c0_49] : memref<8x128xf32, #tpu.memory_space<vmem>>, vector<1x128xf32>
    tpu.vector_store %arg8[%c1, %c0_49], %69 {strides = array<i32>} : memref<8x128xf32, #tpu.memory_space<vmem>>, vector<1x128xf32>,
    return
  }
  func.func @transform_0(%arg0: i32, %arg1: i32) -> (i32, i32, i32, i32, i32) {
    %c0_i32 = arith.constant 0 : i32
    %c0_i32_0 = arith.constant 0 : i32
    %c0_i32_1 = arith.constant 0 : i32
    %c0_i32_2 = arith.constant 0 : i32
    return %arg0, %arg1, %c0_i32, %c0_i32_0, %c0_i32_1 : i32, i32, i32, i32, i32
  }
  func.func @transform_1(%arg0: i32, %arg1: i32) -> (i32, i32) {
    %c0_i32 = arith.constant 0 : i32
    %c0_i32_0 = arith.constant 0 : i32
    %c0_i32_1 = arith.constant 0 : i32
    return %c0_i32, %c0_i32_0 : i32, i32
  }
  func.func @transform_2(%arg0: i32, %arg1: i32) -> (i32, i32) {
    %c0_i32 = arith.constant 0 : i32
    %c0_i32_0 = arith.constant 0 : i32
    %c0_i32_1 = arith.constant 0 : i32
    return %c0_i32, %c0_i32_0 : i32, i32
  }
  func.func @transform_3(%arg0: i32, %arg1: i32) -> (i32, i32) {
    %c0_i32 = arith.constant 0 : i32
    %c0_i32_0 = arith.constant 0 : i32
    %c0_i32_1 = arith.constant 0 : i32
    return %c0_i32, %c0_i32_0 : i32, i32
  }
  func.func @transform_4(%arg0: i32, %arg1: i32) -> (i32, i32) {
    %c0_i32 = arith.constant 0 : i32
    %c0_i32_0 = arith.constant 0 : i32
    %c0_i32_1 = arith.constant 0 : i32
    return %c0_i32, %c0_i32_0 : i32, i32
  }
  func.func @transform_5(%arg0: i32, %arg1: i32) -> (i32, i32) {
    %c1_i32 = arith.constant 1 : i32
    %0 = arith.muli %arg0, %c1_i32 : i32
    %1 = arith.addi %0, %arg1 : i32
    %c0_i32 = arith.constant 0 : i32
    %c0_i32_0 = arith.constant 0 : i32
    return %1, %c0_i32 : i32, i32
  }
  func.func @transform_6(%arg0: i32, %arg1: i32) -> (i32, i32) {
    %c1_i32 = arith.constant 1 : i32
    %0 = arith.muli %arg0, %c1_i32 : i32
    %1 = arith.addi %0, %arg1 : i32
    %c0_i32 = arith.constant 0 : i32
    %c0_i32_0 = arith.constant 0 : i32
    return %1, %c0_i32 : i32, i32
  }
}

module attributes {stable_mosaic.version = 11 : i64} {
  func.func @_bn_res_act_kernel(%arg0: i32, %arg1: memref<512x128xf32, #tpu.memory_space<vmem>>, %arg2: memref<512x128xf32, #tpu.memory_space<vmem>>, %arg3: memref<1x128xf32, #tpu.memory_space<vmem>>, %arg4: memref<1x128xf32, #tpu.memory_space<vmem>>, %arg5: memref<1x128xf32, #tpu.memory_space<vmem>>, %arg6: memref<1x128xf32, #tpu.memory_space<vmem>>, %arg7: memref<512x128xf32, #tpu.memory_space<vmem>>) attributes {dimension_semantics = [#tpu.dimension_semantics<parallel>], iteration_bounds = array<i64: 1>, scalar_prefetch = 0 : i64, scratch_operands = 0 : i64, tpu.core_type = #tpu.core_type<tc>, window_params = [{transform_indices = @transform_0, window_bounds = array<i64: 512, 128>}, {transform_indices = @transform_1, window_bounds = array<i64: 512, 128>}, {pipeline_mode = #tpu.pipeline_mode<synchronous>, transform_indices = @transform_2, window_bounds = array<i64: 1, 128>}, {pipeline_mode = #tpu.pipeline_mode<synchronous>, transform_indices = @transform_3, window_bounds = array<i64: 1, 128>}, {pipeline_mode = #tpu.pipeline_mode<synchronous>, transform_indices = @transform_4, window_bounds = array<i64: 1, 128>}, {pipeline_mode = #tpu.pipeline_mode<synchronous>, transform_indices = @transform_5, window_bounds = array<i64: 1, 128>}, {transform_indices = @transform_6, window_bounds = array<i64: 512, 128>}]} {
    %c0 = arith.constant 0 : index
    %c0_0 = arith.constant 0 : index
    %0 = vector.load %arg2[%c0, %c0_0] : memref<512x128xf32, #tpu.memory_space<vmem>>, vector<512x128xf32>
    %c0_1 = arith.constant 0 : index
    %c0_2 = arith.constant 0 : index
    %1 = vector.load %arg5[%c0_1, %c0_2] : memref<1x128xf32, #tpu.memory_space<vmem>>, vector<1x128xf32>
    %2 = vector.broadcast %1 : vector<1x128xf32> to vector<512x128xf32>
    %3 = arith.mulf %0, %2 : vector<512x128xf32>
    %c0_3 = arith.constant 0 : index
    %c0_4 = arith.constant 0 : index
    %4 = vector.load %arg6[%c0_3, %c0_4] : memref<1x128xf32, #tpu.memory_space<vmem>>, vector<1x128xf32>
    %5 = vector.broadcast %4 : vector<1x128xf32> to vector<512x128xf32>
    %6 = arith.addf %3, %5 : vector<512x128xf32>
    %cst = arith.constant 0.000000e+00 : f32
    %7 = vector.broadcast %cst : f32 to vector<512x128xf32>
    %8 = arith.maximumf %6, %7 : vector<512x128xf32>
    %c0_5 = arith.constant 0 : index
    %c0_6 = arith.constant 0 : index
    %9 = vector.load %arg1[%c0_5, %c0_6] : memref<512x128xf32, #tpu.memory_space<vmem>>, vector<512x128xf32>
    %c0_7 = arith.constant 0 : index
    %c0_8 = arith.constant 0 : index
    %10 = vector.load %arg3[%c0_7, %c0_8] : memref<1x128xf32, #tpu.memory_space<vmem>>, vector<1x128xf32>
    %11 = vector.broadcast %10 : vector<1x128xf32> to vector<512x128xf32>
    %12 = arith.mulf %9, %11 : vector<512x128xf32>
    %c0_9 = arith.constant 0 : index
    %c0_10 = arith.constant 0 : index
    %13 = vector.load %arg4[%c0_9, %c0_10] : memref<1x128xf32, #tpu.memory_space<vmem>>, vector<1x128xf32>
    %14 = vector.broadcast %13 : vector<1x128xf32> to vector<512x128xf32>
    %15 = arith.addf %12, %14 : vector<512x128xf32>
    %16 = arith.addf %15, %8 : vector<512x128xf32>
    %cst_11 = arith.constant 0.000000e+00 : f32
    %17 = vector.broadcast %cst_11 : f32 to vector<512x128xf32>
    %18 = arith.maximumf %16, %17 : vector<512x128xf32>
    %c0_12 = arith.constant 0 : index
    %c0_13 = arith.constant 0 : index
    %19 = vector.load %arg7[%c0_12, %c0_13] : memref<512x128xf32, #tpu.memory_space<vmem>>, vector<512x128xf32>
    tpu.vector_store %arg7[%c0_12, %c0_13], %18 {strides = array<i32>} : memref<512x128xf32, #tpu.memory_space<vmem>>, vector<512x128xf32>,
    return
  }
  func.func @transform_0(%arg0: i32) -> (i32, i32) {
    %c0_i32 = arith.constant 0 : i32
    %c0_i32_0 = arith.constant 0 : i32
    return %arg0, %c0_i32 : i32, i32
  }
  func.func @transform_1(%arg0: i32) -> (i32, i32) {
    %c0_i32 = arith.constant 0 : i32
    %c0_i32_0 = arith.constant 0 : i32
    return %arg0, %c0_i32 : i32, i32
  }
  func.func @transform_2(%arg0: i32) -> (i32, i32) {
    %c0_i32 = arith.constant 0 : i32
    %c0_i32_0 = arith.constant 0 : i32
    %c0_i32_1 = arith.constant 0 : i32
    return %c0_i32, %c0_i32_0 : i32, i32
  }
  func.func @transform_3(%arg0: i32) -> (i32, i32) {
    %c0_i32 = arith.constant 0 : i32
    %c0_i32_0 = arith.constant 0 : i32
    %c0_i32_1 = arith.constant 0 : i32
    return %c0_i32, %c0_i32_0 : i32, i32
  }
  func.func @transform_4(%arg0: i32) -> (i32, i32) {
    %c0_i32 = arith.constant 0 : i32
    %c0_i32_0 = arith.constant 0 : i32
    %c0_i32_1 = arith.constant 0 : i32
    return %c0_i32, %c0_i32_0 : i32, i32
  }
  func.func @transform_5(%arg0: i32) -> (i32, i32) {
    %c0_i32 = arith.constant 0 : i32
    %c0_i32_0 = arith.constant 0 : i32
    %c0_i32_1 = arith.constant 0 : i32
    return %c0_i32, %c0_i32_0 : i32, i32
  }
  func.func @transform_6(%arg0: i32) -> (i32, i32) {
    %c0_i32 = arith.constant 0 : i32
    %c0_i32_0 = arith.constant 0 : i32
    return %arg0, %c0_i32 : i32, i32
  }
}

</mosaic_0001>

<llo_original>
// kernel: down_forward.6
$region0: #{down_forward.6}
  #allocation0 [shape = 'u32[]', space=smem, size = 0x4, offset = 0x4, fixed_abs, tag = 'smem constant byte address 0x4 - core index']
  #allocation1 [shape = 'u32[144,128]{1,0:T(1,128)}', space=vmem, size = 0x12000, scoped, tag = 'internal scratch']
  %s0 = inlined_call_operand.vmem [shape: f32[16,128], index: 0, kind: input, shape index: {}]
  %s1 = inlined_call_operand.vmem [shape: f32[1,128], index: 1, kind: input, shape index: {}]
  %s2 = inlined_call_operand.vmem [shape: f32[1,128], index: 2, kind: input, shape index: {}]
  %s3 = inlined_call_operand.vmem [shape: f32[1,128], index: 3, kind: output, shape index: {0}]
  %s4 = inlined_call_operand.vmem [shape: f32[1,128], index: 4, kind: output, shape index: {1}]
  %5 = xla_tuple %s3, %s4
  %s6 = sld [smem:[#allocation0]]
  $region30: #{down_forward.6} parent=0
    _
  %s8 = ssub.s32 1, %s6
  %s9 = scalar_select 0, %s8, %s6
  // Predicated region
  $region2: #{down_forward.6} parent=0 // pred_check
    _
  $region3: #{down_forward.6} parent=0 // pred_check_branch
    %11 = sbr.rel (0) target = $region5
  $region4: #{down_forward.6} parent=0 // pred_region
    _
  $region5: #{down_forward.6} parent=0 // pred_fallthru
    _
  // Predicated region
  $region6: #{down_forward.6} parent=0 // pred_check
    _
  $region7: #{down_forward.6} parent=0 // pred_check_branch
    %13 = sbr.rel (0) target = $region9
  $region8: #{down_forward.6} parent=0 // pred_region
    _
  $region9: #{down_forward.6} parent=0 // pred_fallthru
    _
  // Predicated region
  $region10: #{down_forward.6} parent=0 // pred_check
    _
  $region11: #{down_forward.6} parent=0 // pred_check_branch
    %15 = sbr.rel (0) target = $region13
  $region12: #{down_forward.6} parent=0 // pred_region
    _
  $region13: #{down_forward.6} parent=0 // pred_fallthru
    _
  %v16 = vld [vmem:[%s0] sm:$0xff]
  %v17 = vld [vmem:[%s0 + $0x8] sm:$0xff]
  %v18 = vadd.f32 %v16, %v17
  %v19 = vmul.f32 %v18, 0.001953125
  %v20 = vmul.f32 %v19, %v19
  %v22 = vrot.slane %v20, 7
  %v24 = vsub.f32 %v19, %v22
  %v25 = vmax.f32 %v24, 0.0
  %v26 = vld [vmem:[%s1] sm:$0x1]
  %v27 = vadd.f32 %v25, 1e-05
  %v28 = vrsqrt.pop %v27
  %v31 = vunpack.c.l.s4 1966171168
  %v32 = vunpack.c.0.s8 %v31
  %v33 = vlaneseq
  %v34 = vshrl.u32 %v33, 7
  %v35 = vsub.s32 %v32, %v34
  %v36 = vrot.slane %v28, %v35
  %v37 = vcombine.high %v36, %v36
  %v39 = vunpack.c.l.s4 1966171168
  %v40 = vunpack.c.0.s8 %v39
  %v41 = vlaneseq
  %v42 = vshrl.u32 %v41, 7
  %v43 = vsub.s32 %v40, %v42
  %v44 = vrot.slane %v37, %v43
  %v46 = vmul.f32 %v26, %v44
  %47 = vst [vmem:[%s3] sm:$0x1] %v46
  %v48 = vld [vmem:[%s2] sm:$0x1]
  %v49 = vmul.f32 %v19, %v46
  %v50 = vsub.f32 %v48, %v49
  %51 = vst [vmem:[%s4] sm:$0x1] %v50
  // Predicated region
  $region14: #{down_forward.6} parent=0 // pred_check
    _
  $region15: #{down_forward.6} parent=0 // pred_check_branch
    %53 = sbr.rel (0) target = $region17
  $region16: #{down_forward.6} parent=0 // pred_region
    _
  $region17: #{down_forward.6} parent=0 // pred_fallthru
    _
  // Predicated region
  $region18: #{down_forward.6} parent=0 // pred_check
    _
  $region19: #{down_forward.6} parent=0 // pred_check_branch
    %55 = sbr.rel (0) target = $region21
  $region20: #{down_forward.6} parent=0 // pred_region
    _
  $region21: #{down_forward.6} parent=0 // pred_fallthru
    _
  // Predicated region
  $region22: #{down_forward.6} parent=0 // pred_check
    _
  $region23: #{down_forward.6} parent=0 // pred_check_branch
    %57 = sbr.rel (0) target = $region25
  $region24: #{down_forward.6} parent=0 // pred_region
    _
  $region25: #{down_forward.6} parent=0 // pred_fallthru
    _
  // Predicated region
  $region26: #{down_forward.6} parent=0 // pred_check
    _
  $region27: #{down_forward.6} parent=0 // pred_check_branch
    %59 = sbr.rel (0) target = $region29
  $region28: #{down_forward.6} parent=0 // pred_region
    _
  $region29: #{down_forward.6} parent=0 // pred_fallthru
    _

// kernel: down_forward.9
$region0: #{down_forward.9}
  #allocation0 [shape = 'u32[]', space=smem, size = 0x4, offset = 0x4, fixed_abs, tag = 'smem constant byte address 0x4 - core index']
  #allocation1 [shape = 'u32[144,128]{1,0:T(1,128)}', space=vmem, size = 0x12000, scoped, tag = 'internal scratch']
  %s0 = inlined_call_operand.vmem [shape: f32[512,128], index: 0, kind: input, shape index: {}]
  %s1 = inlined_call_operand.vmem [shape: f32[512,128], index: 1, kind: input, shape index: {}]
  %s2 = inlined_call_operand.vmem [shape: f32[1,128], index: 2, kind: input, shape index: {}]
  %s3 = inlined_call_operand.vmem [shape: f32[1,128], index: 3, kind: input, shape index: {}]
  %s4 = inlined_call_operand.vmem [shape: f32[1,128], index: 4, kind: input, shape index: {}]
  %s5 = inlined_call_operand.vmem [shape: f32[1,128], index: 5, kind: input, shape index: {}]
  %s6 = inlined_call_operand.vmem [shape: f32[512,128], index: 6, kind: output, shape index: {}]
  %s7 = sld [smem:[#allocation0]]
  $region34: #{down_forward.9} parent=0
    _
  %s9 = ssub.s32 1, %s7
  %s10 = scalar_select 0, %s9, %s7
  // Predicated region
  $region2: #{down_forward.9} parent=0 // pred_check
    _
  $region3: #{down_forward.9} parent=0 // pred_check_branch
    %12 = sbr.rel (0) target = $region5
  $region4: #{down_forward.9} parent=0 // pred_region
    _
  $region5: #{down_forward.9} parent=0 // pred_fallthru
    _
  // Predicated region
  $region6: #{down_forward.9} parent=0 // pred_check
    _
  $region7: #{down_forward.9} parent=0 // pred_check_branch
    %14 = sbr.rel (0) target = $region9
  $region8: #{down_forward.9} parent=0 // pred_region
    _
  $region9: #{down_forward.9} parent=0 // pred_fallthru
    _
  // Predicated region
  $region10: #{down_forward.9} parent=0 // pred_check
    _
  $region11: #{down_forward.9} parent=0 // pred_check_branch
    %16 = sbr.rel (0) target = $region13
  $region12: #{down_forward.9} parent=0 // pred_region
    _
  $region13: #{down_forward.9} parent=0 // pred_fallthru
    _
  // Predicated region
  $region14: #{down_forward.9} parent=0 // pred_check
    _
  $region15: #{down_forward.9} parent=0 // pred_check_branch
    %18 = sbr.rel (0) target = $region17
  $region16: #{down_forward.9} parent=0 // pred_region
    _
  $region17: #{down_forward.9} parent=0 // pred_fallthru
    _
  // Predicated region
  $region18: #{down_forward.9} parent=0 // pred_check
    _
  $region19: #{down_forward.9} parent=0 // pred_check_branch
    %20 = sbr.rel (0) target = $region21
  $region20: #{down_forward.9} parent=0 // pred_region
    _
  $region21: #{down_forward.9} parent=0 // pred_fallthru
    _
  // Predicated region
  $region22: #{down_forward.9} parent=0 // pred_check
    _
  $region23: #{down_forward.9} parent=0 // pred_check_branch
    %22 = sbr.rel (0) target = $region25
  $region24: #{down_forward.9} parent=0 // pred_region
    _
  $region25: #{down_forward.9} parent=0 // pred_fallthru
    _
  %v23 = vld [vmem:[%s1] sm:$0xff]
  %v24 = vld [vmem:[%s1 + $0x8] sm:$0xff]
  %v25 = vld [vmem:[%s1 + $0x10] sm:$0xff]
  %v26 = vld [vmem:[%s1 + $0x18] sm:$0xff]
  %v27 = vld [vmem:[%s1 + $0x20] sm:$0xff]
  %v28 = vld [vmem:[%s1 + $0x28] sm:$0xff]
  %v29 = vld [vmem:[%s1 + $0x30] sm:$0xff]
  %v30 = vld [vmem:[%s1 + $0x38] sm:$0xff]
  %v31 = vld [vmem:[%s1 + $0x40] sm:$0xff]
  %v32 = vld [vmem:[%s1 + $0x48] sm:$0xff]
  %v33 = vld [vmem:[%s1 + $0x50] sm:$0xff]
  %v34 = vld [vmem:[%s1 + $0x58] sm:$0xff]
  %v35 = vld [vmem:[%s1 + $0x60] sm:$0xff]
  %v36 = vld [vmem:[%s1 + $0x68] sm:$0xff]
  %v37 = vld [vmem:[%s1 + $0x70] sm:$0xff]
  %v38 = vld [vmem:[%s1 + $0x78] sm:$0xff]
  %v39 = vld [vmem:[%s1 + $0x80] sm:$0xff]
  %v40 = vld [vmem:[%s1 + $0x88] sm:$0xff]
  %v41 = vld [vmem:[%s1 + $0x90] sm:$0xff]
  %v42 = vld [vmem:[%s1 + $0x98] sm:$0xff]
  %v43 = vld [vmem:[%s1 + $0xa0] sm:$0xff]
  %v44 = vld [vmem:[%s1 + $0xa8] sm:$0xff]
  %v45 = vld [vmem:[%s1 + $0xb0] sm:$0xff]
  %v46 = vld [vmem:[%s1 + $0xb8] sm:$0xff]
  %v47 = vld [vmem:[%s1 + $0xc0] sm:$0xff]
  %v48 = vld [vmem:[%s1 + $0xc8] sm:$0xff]
  %v49 = vld [vmem:[%s1 + $0xd0] sm:$0xff]
  %v50 = vld [vmem:[%s1 + $0xd8] sm:$0xff]
  %v51 = vld [vmem:[%s1 + $0xe0] sm:$0xff]
  %v52 = vld [vmem:[%s1 + $0xe8] sm:$0xff]
  %v53 = vld [vmem:[%s1 + $0xf0] sm:$0xff]
  %v54 = vld [vmem:[%s1 + $0xf8] sm:$0xff]
  %v55 = vld [vmem:[%s1 + $0x100] sm:$0xff]
  %v56 = vld [vmem:[%s1 + $0x108] sm:$0xff]
  %v57 = vld [vmem:[%s1 + $0x110] sm:$0xff]
  %v58 = vld [vmem:[%s1 + $0x118] sm:$0xff]
  %v59 = vld [vmem:[%s1 + $0x120] sm:$0xff]
  %v60 = vld [vmem:[%s1 + $0x128] sm:$0xff]
  %v61 = vld [vmem:[%s1 + $0x130] sm:$0xff]
  %v62 = vld [vmem:[%s1 + $0x138] sm:$0xff]
  %v63 = vld [vmem:[%s1 + $0x140] sm:$0xff]
  %v64 = vld [vmem:[%s1 + $0x148] sm:$0xff]
  %v65 = vld [vmem:[%s1 + $0x150] sm:$0xff]
  %v66 = vld [vmem:[%s1 + $0x158] sm:$0xff]
  %v67 = vld [vmem:[%s1 + $0x160] sm:$0xff]
  %v68 = vld [vmem:[%s1 + $0x168] sm:$0xff]
  %v69 = vld [vmem:[%s1 + $0x170] sm:$0xff]
  %v70 = vld [vmem:[%s1 + $0x178] sm:$0xff]
  %v71 = vld [vmem:[%s1 + $0x180] sm:$0xff]
  %v72 = vld [vmem:[%s1 + $0x188] sm:$0xff]
  %v73 = vld [vmem:[%s1 + $0x190] sm:$0xff]
  %v74 = vld [vmem:[%s1 + $0x198] sm:$0xff]
  %v75 = vld [vmem:[%s1 + $0x1a0] sm:$0xff]
  %v76 = vld [vmem:[%s1 + $0x1a8] sm:$0xff]
  %v77 = vld [vmem:[%s1 + $0x1b0] sm:$0xff]
  %v78 = vld [vmem:[%s1 + $0x1b8] sm:$0xff]
  %v79 = vld [vmem:[%s1 + $0x1c0] sm:$0xff]
  %v80 = vld [vmem:[%s1 + $0x1c8] sm:$0xff]
  %v81 = vld [vmem:[%s1 + $0x1d0] sm:$0xff]
  %v82 = vld [vmem:[%s1 + $0x1d8] sm:$0xff]
  %v83 = vld [vmem:[%s1 + $0x1e0] sm:$0xff]
  %v84 = vld [vmem:[%s1 + $0x1e8] sm:$0xff]
  %v85 = vld [vmem:[%s1 + $0x1f0] sm:$0xff]
  %v86 = vld [vmem:[%s1 + $0x1f8] sm:$0xff]
  %v87 = vld [vmem:[%s4] sm:$0x1]
  %v89 = vlaneseq
  %v90 = vshrl.u32 %v89, 7
  %v91 = vsub.s32 0, %v90
  %v92 = vrot.slane %v87, %v91
  %v94 = vmul.f32 %v23, %v92
  %v95 = vmul.f32 %v24, %v92
  %v96 = vmul.f32 %v25, %v92
  %v97 = vmul.f32 %v26, %v92
  %v98 = vmul.f32 %v27, %v92
  %v99 = vmul.f32 %v28, %v92
  %v100 = vmul.f32 %v29, %v92
  %v101 = vmul.f32 %v30, %v92
  %v102 = vmul.f32 %v31, %v92
  %v103 = vmul.f32 %v32, %v92
  %v104 = vmul.f32 %v33, %v92
  %v105 = vmul.f32 %v34, %v92
  %v106 = vmul.f32 %v35, %v92
  %v107 = vmul.f32 %v36, %v92
  %v108 = vmul.f32 %v37, %v92
  %v109 = vmul.f32 %v38, %v92
  %v110 = vmul.f32 %v39, %v92
  %v111 = vmul.f32 %v40, %v92
  %v112 = vmul.f32 %v41, %v92
  %v113 = vmul.f32 %v42, %v92
  %v114 = vmul.f32 %v43, %v92
  %v115 = vmul.f32 %v44, %v92
  %v116 = vmul.f32 %v45, %v92
  %v117 = vmul.f32 %v46, %v92
  %v118 = vmul.f32 %v47, %v92
  %v119 = vmul.f32 %v48, %v92
  %v120 = vmul.f32 %v49, %v92
  %v121 = vmul.f32 %v50, %v92
  %v122 = vmul.f32 %v51, %v92
  %v123 = vmul.f32 %v52, %v92
  %v124 = vmul.f32 %v53, %v92
  %v125 = vmul.f32 %v54, %v92
  %v126 = vmul.f32 %v55, %v92
  %v127 = vmul.f32 %v56, %v92
  %v128 = vmul.f32 %v57, %v92
  %v129 = vmul.f32 %v58, %v92
  %v130 = vmul.f32 %v59, %v92
  %v131 = vmul.f32 %v60, %v92
  %v132 = vmul.f32 %v61, %v92
  %v133 = vmul.f32 %v62, %v92
  %v134 = vmul.f32 %v63, %v92
  %v135 = vmul.f32 %v64, %v92
  %v136 = vmul.f32 %v65, %v92
  %v137 = vmul.f32 %v66, %v92
  %v138 = vmul.f32 %v67, %v92
  %v139 = vmul.f32 %v68, %v92
  %v140 = vmul.f32 %v69, %v92
  %v141 = vmul.f32 %v70, %v92
  %v142 = vmul.f32 %v71, %v92
  %v143 = vmul.f32 %v72, %v92
  %v144 = vmul.f32 %v73, %v92
  %v145 = vmul.f32 %v74, %v92
  %v146 = vmul.f32 %v75, %v92
  %v147 = vmul.f32 %v76, %v92
  %v148 = vmul.f32 %v77, %v92
  %v149 = vmul.f32 %v78, %v92
  %v150 = vmul.f32 %v79, %v92
  %v151 = vmul.f32 %v80, %v92
  %v152 = vmul.f32 %v81, %v92
  %v153 = vmul.f32 %v82, %v92
  %v154 = vmul.f32 %v83, %v92
  %v155 = vmul.f32 %v84, %v92
  %v156 = vmul.f32 %v85, %v92
  %v157 = vmul.f32 %v86, %v92
  %v158 = vld [vmem:[%s5] sm:$0x1]
  %v160 = vlaneseq
  %v161 = vshrl.u32 %v160, 7
  %v162 = vsub.s32 0, %v161
  %v163 = vrot.slane %v158, %v162
  %v165 = vadd.f32 %v94, %v163
  %v166 = vadd.f32 %v95, %v163
  %v167 = vadd.f32 %v96, %v163
  %v168 = vadd.f32 %v97, %v163
  %v169 = vadd.f32 %v98, %v163
  %v170 = vadd.f32 %v99, %v163
  %v171 = vadd.f32 %v100, %v163
  %v172 = vadd.f32 %v101, %v163
  %v173 = vadd.f32 %v102, %v163
  %v174 = vadd.f32 %v103, %v163
  %v175 = vadd.f32 %v104, %v163
  %v176 = vadd.f32 %v105, %v163
  %v177 = vadd.f32 %v106, %v163
  %v178 = vadd.f32 %v107, %v163
  %v179 = vadd.f32 %v108, %v163
  %v180 = vadd.f32 %v109, %v163
  %v181 = vadd.f32 %v110, %v163
  %v182 = vadd.f32 %v111, %v163
  %v183 = vadd.f32 %v112, %v163
  %v184 = vadd.f32 %v113, %v163
  %v185 = vadd.f32 %v114, %v163
  %v186 = vadd.f32 %v115, %v163
  %v187 = vadd.f32 %v116, %v163
  %v188 = vadd.f32 %v117, %v163
  %v189 = vadd.f32 %v118, %v163
  %v190 = vadd.f32 %v119, %v163
  %v191 = vadd.f32 %v120, %v163
  %v192 = vadd.f32 %v121, %v163
  %v193 = vadd.f32 %v122, %v163
  %v194 = vadd.f32 %v123, %v163
  %v195 = vadd.f32 %v124, %v163
  %v196 = vadd.f32 %v125, %v163
  %v197 = vadd.f32 %v126, %v163
  %v198 = vadd.f32 %v127, %v163
  %v199 = vadd.f32 %v128, %v163
  %v200 = vadd.f32 %v129, %v163
  %v201 = vadd.f32 %v130, %v163
  %v202 = vadd.f32 %v131, %v163
  %v203 = vadd.f32 %v132, %v163
  %v204 = vadd.f32 %v133, %v163
  %v205 = vadd.f32 %v134, %v163
  %v206 = vadd.f32 %v135, %v163
  %v207 = vadd.f32 %v136, %v163
  %v208 = vadd.f32 %v137, %v163
  %v209 = vadd.f32 %v138, %v163
  %v210 = vadd.f32 %v139, %v163
  %v211 = vadd.f32 %v140, %v163
  %v212 = vadd.f32 %v141, %v163
  %v213 = vadd.f32 %v142, %v163
  %v214 = vadd.f32 %v143, %v163
  %v215 = vadd.f32 %v144, %v163
  %v216 = vadd.f32 %v145, %v163
  %v217 = vadd.f32 %v146, %v163
  %v218 = vadd.f32 %v147, %v163
  %v219 = vadd.f32 %v148, %v163
  %v220 = vadd.f32 %v149, %v163
  %v221 = vadd.f32 %v150, %v163
  %v222 = vadd.f32 %v151, %v163
  %v223 = vadd.f32 %v152, %v163
  %v224 = vadd.f32 %v153, %v163
  %v225 = vadd.f32 %v154, %v163
  %v226 = vadd.f32 %v155, %v163
  %v227 = vadd.f32 %v156, %v163
  %v228 = vadd.f32 %v157, %v163
  %v229 = vmax.f32 %v165, 0.0
  %v230 = vmax.f32 %v166, 0.0
  %v231 = vmax.f32 %v167, 0.0
  %v232 = vmax.f32 %v168, 0.0
  %v233 = vmax.f32 %v169, 0.0
  %v234 = vmax.f32 %v170, 0.0
  %v235 = vmax.f32 %v171, 0.0
  %v236 = vmax.f32 %v172, 0.0
  %v237 = vmax.f32 %v173, 0.0
  %v238 = vmax.f32 %v174, 0.0
  %v239 = vmax.f32 %v175, 0.0
  %v240 = vmax.f32 %v176, 0.0
  %v241 = vmax.f32 %v177, 0.0
  %v242 = vmax.f32 %v178, 0.0
  %v243 = vmax.f32 %v179, 0.0
  %v244 = vmax.f32 %v180, 0.0
  %v245 = vmax.f32 %v181, 0.0
  %v246 = vmax.f32 %v182, 0.0
  %v247 = vmax.f32 %v183, 0.0
  %v248 = vmax.f32 %v184, 0.0
  %v249 = vmax.f32 %v185, 0.0
  %v250 = vmax.f32 %v186, 0.0
  %v251 = vmax.f32 %v187, 0.0
  %v252 = vmax.f32 %v188, 0.0
  %v253 = vmax.f32 %v189, 0.0
  %v254 = vmax.f32 %v190, 0.0
  %v255 = vmax.f32 %v191, 0.0
  %v256 = vmax.f32 %v192, 0.0
  %v257 = vmax.f32 %v193, 0.0
  %v258 = vmax.f32 %v194, 0.0
  %v259 = vmax.f32 %v195, 0.0
  %v260 = vmax.f32 %v196, 0.0
  %v261 = vmax.f32 %v197, 0.0
  %v262 = vmax.f32 %v198, 0.0
  %v263 = vmax.f32 %v199, 0.0
  %v264 = vmax.f32 %v200, 0.0
  %v265 = vmax.f32 %v201, 0.0
  %v266 = vmax.f32 %v202, 0.0
  %v267 = vmax.f32 %v203, 0.0
  %v268 = vmax.f32 %v204, 0.0
  %v269 = vmax.f32 %v205, 0.0
  %v270 = vmax.f32 %v206, 0.0
  %v271 = vmax.f32 %v207, 0.0
  %v272 = vmax.f32 %v208, 0.0
  %v273 = vmax.f32 %v209, 0.0
  %v274 = vmax.f32 %v210, 0.0
  %v275 = vmax.f32 %v211, 0.0
  %v276 = vmax.f32 %v212, 0.0
  %v277 = vmax.f32 %v213, 0.0
  %v278 = vmax.f32 %v214, 0.0
  %v279 = vmax.f32 %v215, 0.0
  %v280 = vmax.f32 %v216, 0.0
  %v281 = vmax.f32 %v217, 0.0
  %v282 = vmax.f32 %v218, 0.0
  %v283 = vmax.f32 %v219, 0.0
  %v284 = vmax.f32 %v220, 0.0
  %v285 = vmax.f32 %v221, 0.0
  %v286 = vmax.f32 %v222, 0.0
  %v287 = vmax.f32 %v223, 0.0
  %v288 = vmax.f32 %v224, 0.0
  %v289 = vmax.f32 %v225, 0.0
  %v290 = vmax.f32 %v226, 0.0
  %v291 = vmax.f32 %v227, 0.0
  %v292 = vmax.f32 %v228, 0.0
  %v293 = vld [vmem:[%s0] sm:$0xff]
  %v294 = vld [vmem:[%s0 + $0x8] sm:$0xff]
  %v295 = vld [vmem:[%s0 + $0x10] sm:$0xff]
  %v296 = vld [vmem:[%s0 + $0x18] sm:$0xff]
  %v297 = vld [vmem:[%s0 + $0x20] sm:$0xff]
  %v298 = vld [vmem:[%s0 + $0x28] sm:$0xff]
  %v299 = vld [vmem:[%s0 + $0x30] sm:$0xff]
  %v300 = vld [vmem:[%s0 + $0x38] sm:$0xff]
  %v301 = vld [vmem:[%s0 + $0x40] sm:$0xff]
  %v302 = vld [vmem:[%s0 + $0x48] sm:$0xff]
  %v303 = vld [vmem:[%s0 + $0x50] sm:$0xff]
  %v304 = vld [vmem:[%s0 + $0x58] sm:$0xff]
  %v305 = vld [vmem:[%s0 + $0x60] sm:$0xff]
  %v306 = vld [vmem:[%s0 + $0x68] sm:$0xff]
  %v307 = vld [vmem:[%s0 + $0x70] sm:$0xff]
  %v308 = vld [vmem:[%s0 + $0x78] sm:$0xff]
  %v309 = vld [vmem:[%s0 + $0x80] sm:$0xff]
  %v310 = vld [vmem:[%s0 + $0x88] sm:$0xff]
  %v311 = vld [vmem:[%s0 + $0x90] sm:$0xff]
  %v312 = vld [vmem:[%s0 + $0x98] sm:$0xff]
  %v313 = vld [vmem:[%s0 + $0xa0] sm:$0xff]
  %v314 = vld [vmem:[%s0 + $0xa8] sm:$0xff]
  %v315 = vld [vmem:[%s0 + $0xb0] sm:$0xff]
  %v316 = vld [vmem:[%s0 + $0xb8] sm:$0xff]
  %v317 = vld [vmem:[%s0 + $0xc0] sm:$0xff]
  %v318 = vld [vmem:[%s0 + $0xc8] sm:$0xff]
  %v319 = vld [vmem:[%s0 + $0xd0] sm:$0xff]
  %v320 = vld [vmem:[%s0 + $0xd8] sm:$0xff]
  %v321 = vld [vmem:[%s0 + $0xe0] sm:$0xff]
  %v322 = vld [vmem:[%s0 + $0xe8] sm:$0xff]
  %v323 = vld [vmem:[%s0 + $0xf0] sm:$0xff]
  %v324 = vld [vmem:[%s0 + $0xf8] sm:$0xff]
  %v325 = vld [vmem:[%s0 + $0x100] sm:$0xff]
  %v326 = vld [vmem:[%s0 + $0x108] sm:$0xff]
  %v327 = vld [vmem:[%s0 + $0x110] sm:$0xff]
  %v328 = vld [vmem:[%s0 + $0x118] sm:$0xff]
  %v329 = vld [vmem:[%s0 + $0x120] sm:$0xff]
  %v330 = vld [vmem:[%s0 + $0x128] sm:$0xff]
  %v331 = vld [vmem:[%s0 + $0x130] sm:$0xff]
  %v332 = vld [vmem:[%s0 + $0x138] sm:$0xff]
  %v333 = vld [vmem:[%s0 + $0x140] sm:$0xff]
  %v334 = vld [vmem:[%s0 + $0x148] sm:$0xff]
  %v335 = vld [vmem:[%s0 + $0x150] sm:$0xff]
  %v336 = vld [vmem:[%s0 + $0x158] sm:$0xff]
  %v337 = vld [vmem:[%s0 + $0x160] sm:$0xff]
  %v338 = vld [vmem:[%s0 + $0x168] sm:$0xff]
  %v339 = vld [vmem:[%s0 + $0x170] sm:$0xff]
  %v340 = vld [vmem:[%s0 + $0x178] sm:$0xff]
  %v341 = vld [vmem:[%s0 + $0x180] sm:$0xff]
  %v342 = vld [vmem:[%s0 + $0x188] sm:$0xff]
  %v343 = vld [vmem:[%s0 + $0x190] sm:$0xff]
  %v344 = vld [vmem:[%s0 + $0x198] sm:$0xff]
  %v345 = vld [vmem:[%s0 + $0x1a0] sm:$0xff]
  %v346 = vld [vmem:[%s0 + $0x1a8] sm:$0xff]
  %v347 = vld [vmem:[%s0 + $0x1b0] sm:$0xff]
  %v348 = vld [vmem:[%s0 + $0x1b8] sm:$0xff]
  %v349 = vld [vmem:[%s0 + $0x1c0] sm:$0xff]
  %v350 = vld [vmem:[%s0 + $0x1c8] sm:$0xff]
  %v351 = vld [vmem:[%s0 + $0x1d0] sm:$0xff]
  %v352 = vld [vmem:[%s0 + $0x1d8] sm:$0xff]
  %v353 = vld [vmem:[%s0 + $0x1e0] sm:$0xff]
  %v354 = vld [vmem:[%s0 + $0x1e8] sm:$0xff]
  %v355 = vld [vmem:[%s0 + $0x1f0] sm:$0xff]
  %v356 = vld [vmem:[%s0 + $0x1f8] sm:$0xff]
  %v357 = vld [vmem:[%s2] sm:$0x1]
  %v359 = vlaneseq
  %v360 = vshrl.u32 %v359, 7
  %v361 = vsub.s32 0, %v360
  %v362 = vrot.slane %v357, %v361
  %v364 = vmul.f32 %v293, %v362
  %v365 = vmul.f32 %v294, %v362
  %v366 = vmul.f32 %v295, %v362
  %v367 = vmul.f32 %v296, %v362
  %v368 = vmul.f32 %v297, %v362
  %v369 = vmul.f32 %v298, %v362
  %v370 = vmul.f32 %v299, %v362
  %v371 = vmul.f32 %v300, %v362
  %v372 = vmul.f32 %v301, %v362
  %v373 = vmul.f32 %v302, %v362
  %v374 = vmul.f32 %v303, %v362
  %v375 = vmul.f32 %v304, %v362
  %v376 = vmul.f32 %v305, %v362
  %v377 = vmul.f32 %v306, %v362
  %v378 = vmul.f32 %v307, %v362
  %v379 = vmul.f32 %v308, %v362
  %v380 = vmul.f32 %v309, %v362
  %v381 = vmul.f32 %v310, %v362
  %v382 = vmul.f32 %v311, %v362
  %v383 = vmul.f32 %v312, %v362
  %v384 = vmul.f32 %v313, %v362
  %v385 = vmul.f32 %v314, %v362
  %v386 = vmul.f32 %v315, %v362
  %v387 = vmul.f32 %v316, %v362
  %v388 = vmul.f32 %v317, %v362
  %v389 = vmul.f32 %v318, %v362
  %v390 = vmul.f32 %v319, %v362
  %v391 = vmul.f32 %v320, %v362
  %v392 = vmul.f32 %v321, %v362
  %v393 = vmul.f32 %v322, %v362
  %v394 = vmul.f32 %v323, %v362
  %v395 = vmul.f32 %v324, %v362
  %v396 = vmul.f32 %v325, %v362
  %v397 = vmul.f32 %v326, %v362
  %v398 = vmul.f32 %v327, %v362
  %v399 = vmul.f32 %v328, %v362
  %v400 = vmul.f32 %v329, %v362
  %v401 = vmul.f32 %v330, %v362
  %v402 = vmul.f32 %v331, %v362
  %v403 = vmul.f32 %v332, %v362
  %v404 = vmul.f32 %v333, %v362
  %v405 = vmul.f32 %v334, %v362
  %v406 = vmul.f32 %v335, %v362
  %v407 = vmul.f32 %v336, %v362
  %v408 = vmul.f32 %v337, %v362
  %v409 = vmul.f32 %v338, %v362
  %v410 = vmul.f32 %v339, %v362
  %v411 = vmul.f32 %v340, %v362
  %v412 = vmul.f32 %v341, %v362
  %v413 = vmul.f32 %v342, %v362
  %v414 = vmul.f32 %v343, %v362
  %v415 = vmul.f32 %v344, %v362
  %v416 = vmul.f32 %v345, %v362
  %v417 = vmul.f32 %v346, %v362
  %v418 = vmul.f32 %v347, %v362
  %v419 = vmul.f32 %v348, %v362
  %v420 = vmul.f32 %v349, %v362
  %v421 = vmul.f32 %v350, %v362
  %v422 = vmul.f32 %v351, %v362
  %v423 = vmul.f32 %v352, %v362
  %v424 = vmul.f32 %v353, %v362
  %v425 = vmul.f32 %v354, %v362
  %v426 = vmul.f32 %v355, %v362
  %v427 = vmul.f32 %v356, %v362
  %v428 = vld [vmem:[%s3] sm:$0x1]
  %v430 = vlaneseq
  %v431 = vshrl.u32 %v430, 7
  %v432 = vsub.s32 0, %v431
  %v433 = vrot.slane %v428, %v432
  %v435 = vadd.f32 %v364, %v433
  %v436 = vadd.f32 %v365, %v433
  %v437 = vadd.f32 %v366, %v433
  %v438 = vadd.f32 %v367, %v433
  %v439 = vadd.f32 %v368, %v433
  %v440 = vadd.f32 %v369, %v433
  %v441 = vadd.f32 %v370, %v433
  %v442 = vadd.f32 %v371, %v433
  %v443 = vadd.f32 %v372, %v433
  %v444 = vadd.f32 %v373, %v433
  %v445 = vadd.f32 %v374, %v433
  %v446 = vadd.f32 %v375, %v433
  %v447 = vadd.f32 %v376, %v433
  %v448 = vadd.f32 %v377, %v433
  %v449 = vadd.f32 %v378, %v433
  %v450 = vadd.f32 %v379, %v433
  %v451 = vadd.f32 %v380, %v433
  %v452 = vadd.f32 %v381, %v433
  %v453 = vadd.f32 %v382, %v433
  %v454 = vadd.f32 %v383, %v433
  %v455 = vadd.f32 %v384, %v433
  %v456 = vadd.f32 %v385, %v433
  %v457 = vadd.f32 %v386, %v433
  %v458 = vadd.f32 %v387, %v433
  %v459 = vadd.f32 %v388, %v433
  %v460 = vadd.f32 %v389, %v433
  %v461 = vadd.f32 %v390, %v433
  %v462 = vadd.f32 %v391, %v433
  %v463 = vadd.f32 %v392, %v433
  %v464 = vadd.f32 %v393, %v433
  %v465 = vadd.f32 %v394, %v433
  %v466 = vadd.f32 %v395, %v433
  %v467 = vadd.f32 %v396, %v433
  %v468 = vadd.f32 %v397, %v433
  %v469 = vadd.f32 %v398, %v433
  %v470 = vadd.f32 %v399, %v433
  %v471 = vadd.f32 %v400, %v433
  %v472 = vadd.f32 %v401, %v433
  %v473 = vadd.f32 %v402, %v433
  %v474 = vadd.f32 %v403, %v433
  %v475 = vadd.f32 %v404, %v433
  %v476 = vadd.f32 %v405, %v433
  %v477 = vadd.f32 %v406, %v433
  %v478 = vadd.f32 %v407, %v433
  %v479 = vadd.f32 %v408, %v433
  %v480 = vadd.f32 %v409, %v433
  %v481 = vadd.f32 %v410, %v433
  %v482 = vadd.f32 %v411, %v433
  %v483 = vadd.f32 %v412, %v433
  %v484 = vadd.f32 %v413, %v433
  %v485 = vadd.f32 %v414, %v433
  %v486 = vadd.f32 %v415, %v433
  %v487 = vadd.f32 %v416, %v433
  %v488 = vadd.f32 %v417, %v433
  %v489 = vadd.f32 %v418, %v433
  %v490 = vadd.f32 %v419, %v433
  %v491 = vadd.f32 %v420, %v433
  %v492 = vadd.f32 %v421, %v433
  %v493 = vadd.f32 %v422, %v433
  %v494 = vadd.f32 %v423, %v433
  %v495 = vadd.f32 %v424, %v433
  %v496 = vadd.f32 %v425, %v433
  %v497 = vadd.f32 %v426, %v433
  %v498 = vadd.f32 %v427, %v433
  %v499 = vadd.f32 %v435, %v229
  %v500 = vadd.f32 %v436, %v230
  %v501 = vadd.f32 %v437, %v231
  %v502 = vadd.f32 %v438, %v232
  %v503 = vadd.f32 %v439, %v233
  %v504 = vadd.f32 %v440, %v234
  %v505 = vadd.f32 %v441, %v235
  %v506 = vadd.f32 %v442, %v236
  %v507 = vadd.f32 %v443, %v237
  %v508 = vadd.f32 %v444, %v238
  %v509 = vadd.f32 %v445, %v239
  %v510 = vadd.f32 %v446, %v240
  %v511 = vadd.f32 %v447, %v241
  %v512 = vadd.f32 %v448, %v242
  %v513 = vadd.f32 %v449, %v243
  %v514 = vadd.f32 %v450, %v244
  %v515 = vadd.f32 %v451, %v245
  %v516 = vadd.f32 %v452, %v246
  %v517 = vadd.f32 %v453, %v247
  %v518 = vadd.f32 %v454, %v248
  %v519 = vadd.f32 %v455, %v249
  %v520 = vadd.f32 %v456, %v250
  %v521 = vadd.f32 %v457, %v251
  %v522 = vadd.f32 %v458, %v252
  %v523 = vadd.f32 %v459, %v253
  %v524 = vadd.f32 %v460, %v254
  %v525 = vadd.f32 %v461, %v255
  %v526 = vadd.f32 %v462, %v256
  %v527 = vadd.f32 %v463, %v257
  %v528 = vadd.f32 %v464, %v258
  %v529 = vadd.f32 %v465, %v259
  %v530 = vadd.f32 %v466, %v260
  %v531 = vadd.f32 %v467, %v261
  %v532 = vadd.f32 %v468, %v262
  %v533 = vadd.f32 %v469, %v263
  %v534 = vadd.f32 %v470, %v264
  %v535 = vadd.f32 %v471, %v265
  %v536 = vadd.f32 %v472, %v266
  %v537 = vadd.f32 %v473, %v267
  %v538 = vadd.f32 %v474, %v268
  %v539 = vadd.f32 %v475, %v269
  %v540 = vadd.f32 %v476, %v270
  %v541 = vadd.f32 %v477, %v271
  %v542 = vadd.f32 %v478, %v272
  %v543 = vadd.f32 %v479, %v273
  %v544 = vadd.f32 %v480, %v274
  %v545 = vadd.f32 %v481, %v275
  %v546 = vadd.f32 %v482, %v276
  %v547 = vadd.f32 %v483, %v277
  %v548 = vadd.f32 %v484, %v278
  %v549 = vadd.f32 %v485, %v279
  %v550 = vadd.f32 %v486, %v280
  %v551 = vadd.f32 %v487, %v281
  %v552 = vadd.f32 %v488, %v282
  %v553 = vadd.f32 %v489, %v283
  %v554 = vadd.f32 %v490, %v284
  %v555 = vadd.f32 %v491, %v285
  %v556 = vadd.f32 %v492, %v286
  %v557 = vadd.f32 %v493, %v287
  %v558 = vadd.f32 %v494, %v288
  %v559 = vadd.f32 %v495, %v289
  %v560 = vadd.f32 %v496, %v290
  %v561 = vadd.f32 %v497, %v291
  %v562 = vadd.f32 %v498, %v292
  %v563 = vmax.f32 %v499, 0.0
  %v564 = vmax.f32 %v500, 0.0
  %v565 = vmax.f32 %v501, 0.0
  %v566 = vmax.f32 %v502, 0.0
  %v567 = vmax.f32 %v503, 0.0
  %v568 = vmax.f32 %v504, 0.0
  %v569 = vmax.f32 %v505, 0.0
  %v570 = vmax.f32 %v506, 0.0
  %v571 = vmax.f32 %v507, 0.0
  %v572 = vmax.f32 %v508, 0.0
  %v573 = vmax.f32 %v509, 0.0
  %v574 = vmax.f32 %v510, 0.0
  %v575 = vmax.f32 %v511, 0.0
  %v576 = vmax.f32 %v512, 0.0
  %v577 = vmax.f32 %v513, 0.0
  %v578 = vmax.f32 %v514, 0.0
  %v579 = vmax.f32 %v515, 0.0
  %v580 = vmax.f32 %v516, 0.0
  %v581 = vmax.f32 %v517, 0.0
  %v582 = vmax.f32 %v518, 0.0
  %v583 = vmax.f32 %v519, 0.0
  %v584 = vmax.f32 %v520, 0.0
  %v585 = vmax.f32 %v521, 0.0
  %v586 = vmax.f32 %v522, 0.0
  %v587 = vmax.f32 %v523, 0.0
  %v588 = vmax.f32 %v524, 0.0
  %v589 = vmax.f32 %v525, 0.0
  %v590 = vmax.f32 %v526, 0.0
  %v591 = vmax.f32 %v527, 0.0
  %v592 = vmax.f32 %v528, 0.0
  %v593 = vmax.f32 %v529, 0.0
  %v594 = vmax.f32 %v530, 0.0
  %v595 = vmax.f32 %v531, 0.0
  %v596 = vmax.f32 %v532, 0.0
  %v597 = vmax.f32 %v533, 0.0
  %v598 = vmax.f32 %v534, 0.0
  %v599 = vmax.f32 %v535, 0.0
  %v600 = vmax.f32 %v536, 0.0
  %v601 = vmax.f32 %v537, 0.0
  %v602 = vmax.f32 %v538, 0.0
  %v603 = vmax.f32 %v539, 0.0
  %v604 = vmax.f32 %v540, 0.0
  %v605 = vmax.f32 %v541, 0.0
  %v606 = vmax.f32 %v542, 0.0
  %v607 = vmax.f32 %v543, 0.0
  %v608 = vmax.f32 %v544, 0.0
  %v609 = vmax.f32 %v545, 0.0
  %v610 = vmax.f32 %v546, 0.0
  %v611 = vmax.f32 %v547, 0.0
  %v612 = vmax.f32 %v548, 0.0
  %v613 = vmax.f32 %v549, 0.0
  %v614 = vmax.f32 %v550, 0.0
  %v615 = vmax.f32 %v551, 0.0
  %v616 = vmax.f32 %v552, 0.0
  %v617 = vmax.f32 %v553, 0.0
  %v618 = vmax.f32 %v554, 0.0
  %v619 = vmax.f32 %v555, 0.0
  %v620 = vmax.f32 %v556, 0.0
  %v621 = vmax.f32 %v557, 0.0
  %v622 = vmax.f32 %v558, 0.0
  %v623 = vmax.f32 %v559, 0.0
  %v624 = vmax.f32 %v560, 0.0
  %v625 = vmax.f32 %v561, 0.0
  %v626 = vmax.f32 %v562, 0.0
  %627 = vst [vmem:[%s6] sm:$0xff] %v563
  %628 = vst [vmem:[%s6 + $0x8] sm:$0xff] %v564
  %629 = vst [vmem:[%s6 + $0x10] sm:$0xff] %v565
  %630 = vst [vmem:[%s6 + $0x18] sm:$0xff] %v566
  %631 = vst [vmem:[%s6 + $0x20] sm:$0xff] %v567
  %632 = vst [vmem:[%s6 + $0x28] sm:$0xff] %v568
  %633 = vst [vmem:[%s6 + $0x30] sm:$0xff] %v569
  %634 = vst [vmem:[%s6 + $0x38] sm:$0xff] %v570
  %635 = vst [vmem:[%s6 + $0x40] sm:$0xff] %v571
  %636 = vst [vmem:[%s6 + $0x48] sm:$0xff] %v572
  %637 = vst [vmem:[%s6 + $0x50] sm:$0xff] %v573
  %638 = vst [vmem:[%s6 + $0x58] sm:$0xff] %v574
  %639 = vst [vmem:[%s6 + $0x60] sm:$0xff] %v575
  %640 = vst [vmem:[%s6 + $0x68] sm:$0xff] %v576
  %641 = vst [vmem:[%s6 + $0x70] sm:$0xff] %v577
  %642 = vst [vmem:[%s6 + $0x78] sm:$0xff] %v578
  %643 = vst [vmem:[%s6 + $0x80] sm:$0xff] %v579
  %644 = vst [vmem:[%s6 + $0x88] sm:$0xff] %v580
  %645 = vst [vmem:[%s6 + $0x90] sm:$0xff] %v581
  %646 = vst [vmem:[%s6 + $0x98] sm:$0xff] %v582
  %647 = vst [vmem:[%s6 + $0xa0] sm:$0xff] %v583
  %648 = vst [vmem:[%s6 + $0xa8] sm:$0xff] %v584
  %649 = vst [vmem:[%s6 + $0xb0] sm:$0xff] %v585
  %650 = vst [vmem:[%s6 + $0xb8] sm:$0xff] %v586
  %651 = vst [vmem:[%s6 + $0xc0] sm:$0xff] %v587
  %652 = vst [vmem:[%s6 + $0xc8] sm:$0xff] %v588
  %653 = vst [vmem:[%s6 + $0xd0] sm:$0xff] %v589
  %654 = vst [vmem:[%s6 + $0xd8] sm:$0xff] %v590
  %655 = vst [vmem:[%s6 + $0xe0] sm:$0xff] %v591
  %656 = vst [vmem:[%s6 + $0xe8] sm:$0xff] %v592
  %657 = vst [vmem:[%s6 + $0xf0] sm:$0xff] %v593
  %658 = vst [vmem:[%s6 + $0xf8] sm:$0xff] %v594
  %659 = vst [vmem:[%s6 + $0x100] sm:$0xff] %v595
  %660 = vst [vmem:[%s6 + $0x108] sm:$0xff] %v596
  %661 = vst [vmem:[%s6 + $0x110] sm:$0xff] %v597
  %662 = vst [vmem:[%s6 + $0x118] sm:$0xff] %v598
  %663 = vst [vmem:[%s6 + $0x120] sm:$0xff] %v599
  %664 = vst [vmem:[%s6 + $0x128] sm:$0xff] %v600
  %665 = vst [vmem:[%s6 + $0x130] sm:$0xff] %v601
  %666 = vst [vmem:[%s6 + $0x138] sm:$0xff] %v602
  %667 = vst [vmem:[%s6 + $0x140] sm:$0xff] %v603
  %668 = vst [vmem:[%s6 + $0x148] sm:$0xff] %v604
  %669 = vst [vmem:[%s6 + $0x150] sm:$0xff] %v605
  %670 = vst [vmem:[%s6 + $0x158] sm:$0xff] %v606
  %671 = vst [vmem:[%s6 + $0x160] sm:$0xff] %v607
  %672 = vst [vmem:[%s6 + $0x168] sm:$0xff] %v608
  %673 = vst [vmem:[%s6 + $0x170] sm:$0xff] %v609
  %674 = vst [vmem:[%s6 + $0x178] sm:$0xff] %v610
  %675 = vst [vmem:[%s6 + $0x180] sm:$0xff] %v611
  %676 = vst [vmem:[%s6 + $0x188] sm:$0xff] %v612
  %677 = vst [vmem:[%s6 + $0x190] sm:$0xff] %v613
  %678 = vst [vmem:[%s6 + $0x198] sm:$0xff] %v614
  %679 = vst [vmem:[%s6 + $0x1a0] sm:$0xff] %v615
  %680 = vst [vmem:[%s6 + $0x1a8] sm:$0xff] %v616
  %681 = vst [vmem:[%s6 + $0x1b0] sm:$0xff] %v617
  %682 = vst [vmem:[%s6 + $0x1b8] sm:$0xff] %v618
  %683 = vst [vmem:[%s6 + $0x1c0] sm:$0xff] %v619
  %684 = vst [vmem:[%s6 + $0x1c8] sm:$0xff] %v620
  %685 = vst [vmem:[%s6 + $0x1d0] sm:$0xff] %v621
  %686 = vst [vmem:[%s6 + $0x1d8] sm:$0xff] %v622
  %687 = vst [vmem:[%s6 + $0x1e0] sm:$0xff] %v623
  %688 = vst [vmem:[%s6 + $0x1e8] sm:$0xff] %v624
  %689 = vst [vmem:[%s6 + $0x1f0] sm:$0xff] %v625
  %690 = vst [vmem:[%s6 + $0x1f8] sm:$0xff] %v626
  // Predicated region
  $region26: #{down_forward.9} parent=0 // pred_check
    _
  $region27: #{down_forward.9} parent=0 // pred_check_branch
    %692 = sbr.rel (0) target = $region29
  $region28: #{down_forward.9} parent=0 // pred_region
    _
  $region29: #{down_forward.9} parent=0 // pred_fallthru
    _
  // Predicated region
  $region30: #{down_forward.9} parent=0 // pred_check
    _
  $region31: #{down_forward.9} parent=0 // pred_check_branch
    %694 = sbr.rel (0) target = $region33
  $region32: #{down_forward.9} parent=0 // pred_region
    _
  $region33: #{down_forward.9} parent=0 // pred_fallthru
    _

// kernel: down_forward.7
$region0: #{down_forward.7}
  #allocation0 [shape = 'u32[]', space=smem, size = 0x4, offset = 0x4, fixed_abs, tag = 'smem constant byte address 0x4 - core index']
  #allocation1 [shape = 'u32[144,128]{1,0:T(1,128)}', space=vmem, size = 0x12000, scoped, tag = 'internal scratch']
  #allocation2 [shape = 'bf16[16,16,1152]{2,1,0:T(16,128)(2,1)}', space=vmem, size = 0x90000, scoped, tag = 'scratch operand']
  %s0 = inlined_call_operand.vmem [shape: f32[2,1,18,18,128], index: 0, kind: input, shape index: {}]
  %s1 = inlined_call_operand.vmem [shape: f32[1,128], index: 1, kind: input, shape index: {}]
  %s2 = inlined_call_operand.vmem [shape: f32[1,128], index: 2, kind: input, shape index: {}]
  %s3 = inlined_call_operand.vmem [shape: bf16[1152,128], index: 3, kind: input, shape index: {}]
  %s4 = inlined_call_operand.vmem [shape: f32[1,128], index: 4, kind: input, shape index: {}]
  %s5 = inlined_call_operand.vmem [shape: f32[512,128], index: 5, kind: output, shape index: {0}]
  %s6 = inlined_call_operand.vmem [shape: f32[16,128], index: 6, kind: output, shape index: {1}]
  %7 = xla_tuple %s5, %s6
  %s8 = sld [smem:[#allocation0]]
  $region61: #{down_forward.7} parent=0
    _
  %s10 = ssub.s32 1, %s8
  %s11 = scalar_select 0, %s10, %s8
  loop: start=0, step=1, limit=4
  $region2: #{down_forward.7} parent=0 // loop_pre_header
    _
  $region3: #{down_forward.7} parent=0 // loop_header
    %s13 = sphi 0, %s17
    %p14 = scmp.ge.s32.totalorder %s13, 4
    %s20 = sphi 0, %s32
    %s21 = sphi 0, %s28
    %s22 = sphi 0, %s20
    %s23 = sphi 0, %s21
    %s24 = sphi 0, %s22
    %s25 = sphi 0, %s23
    %s37 = sphi 0, %s39
    %s40 = sphi 0, %s37
    %s41 = sphi 0, %s40
    %s57 = sphi 0, %s41
    %s61 = sphi 0, %s61
    %s63 = sphi 0, %s61
    %s64 = sphi 0, %s63
    %s78 = sphi 0, %s64
    %s82 = sphi 0, %s82
    %s84 = sphi 0, %s82
    %s85 = sphi 0, %s84
    %s99 = sphi 0, %s85
    %s103 = sphi 0, %s103
    %s105 = sphi 0, %s103
    %s106 = sphi 0, %s105
    %s120 = sphi 0, %s106
    %s124 = sphi 0, %s124
    %s126 = sphi 0, %s124
    %s127 = sphi 0, %s126
    %s141 = sphi 0, %s127
    %s149 = sphi 0, %s151
    %s152 = sphi 0, %s149
    %s153 = sphi 0, %s152
    %s169 = sphi 0, %s153
    %s177 = sphi 0, %s179
    %s180 = sphi 0, %s177
    %s181 = sphi 0, %s180
    %s197 = sphi 0, %s181
  $region4: #{down_forward.7} parent=0 // loop_header_branch
    %16 = sbr.rel (%p14) target = $region8
  $region5: #{down_forward.7} parent=0 // loop_body
    %s18 = ssub.s32 %s13, 1
    %s19 = ssub.s32 %s13, 2
    %s26 = sadd.s32 1, %s21
    %p27 = scmp.ge.s32.totalorder %s26, 1
    %s28 = scalar_select %p27, 0, %s26
    %s29 = sadd.s32 1, %s20
    %s30 = scalar_select %p27, %s29, %s20
    %p31 = scmp.ge.s32.totalorder %s30, 2
    %s32 = scalar_select %p31, 0, %s30
    %s33 = ssub.s32 %s20, %s32
    %s34 = ssub.s32 %s21, %s28
    %s35 = sor.u32 %s33, %s34
    %p36 = scmp.eq.s32.totalorder %s35, 0
    %s38 = sadd.s32 %s37, 1
    %s39 = scalar_select %p36, %s37, %s38
    %p42 = pneg %p36
    %p43 = scmp.eq.s32.totalorder %s13, 1
    %p44 = por %p42, %p43
    %p45 = scmp.ne.s32.totalorder %s37, %s40
    %p46 = scmp.eq.s32.totalorder %s13, 0
    %p47 = por %p45, %p46
    %p48 = scmp.ne.s32.totalorder %s37, %s40
    %p49 = scmp.eq.s32.totalorder %s18, 1
    %p50 = por %p48, %p49
    %p51 = scmp.ne.s32.totalorder %s40, %s41
    %p52 = scmp.eq.s32.totalorder %s18, 0
    %p53 = por %p51, %p52
    %p54 = scmp.ne.s32.totalorder %s40, %s41
    %p55 = scmp.eq.s32.totalorder %s19, 1
    %p56 = por %p54, %p55
    %p58 = scmp.ne.s32.totalorder %s41, %s57
    %p59 = scmp.eq.s32.totalorder %s19, 0
    %p60 = por %p58, %p59
    %s62 = sadd.s32 %s61, 1
    %p65 = scmp.eq.s32.totalorder %s13, 1
    %p66 = scmp.ne.s32.totalorder %s61, %s63
    %p67 = scmp.eq.s32.totalorder %s13, 0
    %p68 = por %p66, %p67
    %p69 = scmp.ne.s32.totalorder %s61, %s63
    %p70 = scmp.eq.s32.totalorder %s18, 1
    %p71 = por %p69, %p70
    %p72 = scmp.ne.s32.totalorder %s63, %s64
    %p73 = scmp.eq.s32.totalorder %s18, 0
    %p74 = por %p72, %p73
    %p75 = scmp.ne.s32.totalorder %s63, %s64
    %p76 = scmp.eq.s32.totalorder %s19, 1
    %p77 = por %p75, %p76
    %p79 = scmp.ne.s32.totalorder %s64, %s78
    %p80 = scmp.eq.s32.totalorder %s19, 0
    %p81 = por %p79, %p80
    %s83 = sadd.s32 %s82, 1
    %p86 = scmp.eq.s32.totalorder %s13, 1
    %p87 = scmp.ne.s32.totalorder %s82, %s84
    %p88 = scmp.eq.s32.totalorder %s13, 0
    %p89 = por %p87, %p88
    %p90 = scmp.ne.s32.totalorder %s82, %s84
    %p91 = scmp.eq.s32.totalorder %s18, 1
    %p92 = por %p90, %p91
    %p93 = scmp.ne.s32.totalorder %s84, %s85
    %p94 = scmp.eq.s32.totalorder %s18, 0
    %p95 = por %p93, %p94
    %p96 = scmp.ne.s32.totalorder %s84, %s85
    %p97 = scmp.eq.s32.totalorder %s19, 1
    %p98 = por %p96, %p97
    %p100 = scmp.ne.s32.totalorder %s85, %s99
    %p101 = scmp.eq.s32.totalorder %s19, 0
    %p102 = por %p100, %p101
    %s104 = sadd.s32 %s103, 1
    %p107 = scmp.eq.s32.totalorder %s13, 1
    %p108 = scmp.ne.s32.totalorder %s103, %s105
    %p109 = scmp.eq.s32.totalorder %s13, 0
    %p110 = por %p108, %p109
    %p111 = scmp.ne.s32.totalorder %s103, %s105
    %p112 = scmp.eq.s32.totalorder %s18, 1
    %p113 = por %p111, %p112
    %p114 = scmp.ne.s32.totalorder %s105, %s106
    %p115 = scmp.eq.s32.totalorder %s18, 0
    %p116 = por %p114, %p115
    %p117 = scmp.ne.s32.totalorder %s105, %s106
    %p118 = scmp.eq.s32.totalorder %s19, 1
    %p119 = por %p117, %p118
    %p121 = scmp.ne.s32.totalorder %s106, %s120
    %p122 = scmp.eq.s32.totalorder %s19, 0
    %p123 = por %p121, %p122
    %s125 = sadd.s32 %s124, 1
    %p128 = scmp.eq.s32.totalorder %s13, 1
    %p129 = scmp.ne.s32.totalorder %s124, %s126
    %p130 = scmp.eq.s32.totalorder %s13, 0
    %p131 = por %p129, %p130
    %p132 = scmp.ne.s32.totalorder %s124, %s126
    %p133 = scmp.eq.s32.totalorder %s18, 1
    %p134 = por %p132, %p133
    %p135 = scmp.ne.s32.totalorder %s126, %s127
    %p136 = scmp.eq.s32.totalorder %s18, 0
    %p137 = por %p135, %p136
    %p138 = scmp.ne.s32.totalorder %s126, %s127
    %p139 = scmp.eq.s32.totalorder %s19, 1
    %p140 = por %p138, %p139
    %p142 = scmp.ne.s32.totalorder %s127, %s141
    %p143 = scmp.eq.s32.totalorder %s19, 0
    %p144 = por %p142, %p143
    %s145 = sadd.s32 %s20, %s21
    %s146 = sadd.s32 %s32, %s28
    %s147 = ssub.s32 %s145, %s146
    %p148 = scmp.eq.s32.totalorder %s147, 0
    %s150 = sadd.s32 %s149, 1
    %s151 = scalar_select %p148, %s149, %s150
    %p154 = pneg %p148
    %p155 = scmp.eq.s32.totalorder %s13, 1
    %p156 = por %p154, %p155
    %p157 = scmp.ne.s32.totalorder %s149, %s152
    %p158 = scmp.eq.s32.totalorder %s13, 0
    %p159 = por %p157, %p158
    %p160 = scmp.ne.s32.totalorder %s149, %s152
    %p161 = scmp.eq.s32.totalorder %s18, 1
    %p162 = por %p160, %p161
    %p163 = scmp.ne.s32.totalorder %s152, %s153
    %p164 = scmp.eq.s32.totalorder %s18, 0
    %p165 = por %p163, %p164
    %p166 = scmp.ne.s32.totalorder %s152, %s153
    %p167 = scmp.eq.s32.totalorder %s19, 1
    %p168 = por %p166, %p167
    %p170 = scmp.ne.s32.totalorder %s153, %s169
    %p171 = scmp.eq.s32.totalorder %s19, 0
    %p172 = por %p170, %p171
    %s173 = sadd.s32 %s20, %s21
    %s174 = sadd.s32 %s32, %s28
    %s175 = ssub.s32 %s173, %s174
    %p176 = scmp.eq.s32.totalorder %s175, 0
    %s178 = sadd.s32 %s177, 1
    %s179 = scalar_select %p176, %s177, %s178
    %p182 = pneg %p176
    %p183 = scmp.eq.s32.totalorder %s13, 1
    %p184 = por %p182, %p183
    %p185 = scmp.ne.s32.totalorder %s177, %s180
    %p186 = scmp.eq.s32.totalorder %s13, 0
    %p187 = por %p185, %p186
    %p188 = scmp.ne.s32.totalorder %s177, %s180
    %p189 = scmp.eq.s32.totalorder %s18, 1
    %p190 = por %p188, %p189
    %p191 = scmp.ne.s32.totalorder %s180, %s181
    %p192 = scmp.eq.s32.totalorder %s18, 0
    %p193 = por %p191, %p192
    %p194 = scmp.ne.s32.totalorder %s180, %s181
    %p195 = scmp.eq.s32.totalorder %s19, 1
    %p196 = por %p194, %p195
    %p198 = scmp.ne.s32.totalorder %s181, %s197
    %p199 = scmp.eq.s32.totalorder %s19, 0
    %p200 = por %p198, %p199
    %p201 = scmp.le.s32.totalorder 1, %s13
    %p202 = scmp.lt.s32.totalorder %s13, 3
    %p203 = pnand %p201, %p202
    %p204 = pneg %p203
    // Predicated region
    $region9: #{down_forward.7} parent=5 // pred_check
      _
    $region10: #{down_forward.7} parent=5 // pred_check_branch
      %206 = sbr.rel (%p203) target = $region12
    $region11: #{down_forward.7} parent=5 // pred_region
      %s207 = ssub.s32 %s13, 1
      // Predicated region
      $region13: #{down_forward.7} parent=11 // pred_check
        %p208 = pneg %p74
      $region14: #{down_forward.7} parent=11 // pred_check_branch
        %210 = sbr.rel (%p208) target = $region16
      $region15: #{down_forward.7} parent=11 // pred_region
        _
      $region16: #{down_forward.7} parent=11 // pred_fallthru
        _
      // Predicated region
      $region17: #{down_forward.7} parent=11 // pred_check
        %p211 = pneg %p95
      $region18: #{down_forward.7} parent=11 // pred_check_branch
        %213 = sbr.rel (%p211) target = $region20
      $region19: #{down_forward.7} parent=11 // pred_region
        _
      $region20: #{down_forward.7} parent=11 // pred_fallthru
        _
      // Predicated region
      $region21: #{down_forward.7} parent=11 // pred_check
        %p214 = pneg %p116
      $region22: #{down_forward.7} parent=11 // pred_check_branch
        %216 = sbr.rel (%p214) target = $region24
      $region23: #{down_forward.7} parent=11 // pred_region
        _
      $region24: #{down_forward.7} parent=11 // pred_fallthru
        _
      // Predicated region
      $region25: #{down_forward.7} parent=11 // pred_check
        %p217 = pneg %p137
      $region26: #{down_forward.7} parent=11 // pred_check_branch
        %219 = sbr.rel (%p217) target = $region28
      $region27: #{down_forward.7} parent=11 // pred_region
        _
      $region28: #{down_forward.7} parent=11 // pred_fallthru
        _
    $region12: #{down_forward.7} parent=5 // pred_fallthru
      _
    %p220 = scmp.lt.s32.totalorder %s13, 2
    // Predicated region
    $region29: #{down_forward.7} parent=5 // pred_check
      %p221 = pneg %p220
    $region30: #{down_forward.7} parent=5 // pred_check_branch
      %223 = sbr.rel (%p221) target = $region32
    $region31: #{down_forward.7} parent=5 // pred_region
      // Predicated region
      $region33: #{down_forward.7} parent=31 // pred_check
        %p224 = pneg %p47
      $region34: #{down_forward.7} parent=31 // pred_check_branch
        %226 = sbr.rel (%p224) target = $region36
      $region35: #{down_forward.7} parent=31 // pred_region
        %p227 = scmp.lt.s32.totalorder %s20, 1
        %s228 = scalar_select %p227, %s20, 1
        %p229 = scmp.lt.s32.totalorder %s21, 0
        %s230 = scalar_select %p229, %s21, 0
        %s231 = smul.addr %s230, 54
        %s232 = smul.addr %s228, 54
        %s233 = sadd.s32 %s231, %s232
        %s234 = smul.addr %s233, 8
        %s235 = scalar_lea.vmem %s0, %s234
      $region36: #{down_forward.7} parent=31 // pred_fallthru
        _
    $region32: #{down_forward.7} parent=5 // pred_fallthru
      _
    %p236 = scmp.le.s32.totalorder 1, %s13
    %p237 = scmp.lt.s32.totalorder %s13, 3
    %p238 = pnand %p236, %p237
    %p239 = pneg %p238
    // Predicated region
    $region37: #{down_forward.7} parent=5 // pred_check
      _
    $region38: #{down_forward.7} parent=5 // pred_check_branch
      %241 = sbr.rel (%p238) target = $region40
    $region39: #{down_forward.7} parent=5 // pred_region
      %s242 = ssub.s32 %s13, 1
      %p243 = scmp.lt.s32.totalorder %s22, 1
      %s244 = scalar_select %p243, %s22, 1
      %p245 = scmp.lt.s32.totalorder %s23, 0
      %s246 = scalar_select %p245, %s23, 0
      %s247 = smul.addr %s246, 54
      %s248 = smul.addr %s244, 54
      %s249 = sadd.s32 %s247, %s248
      %s250 = smul.addr %s249, 8
      %s251 = scalar_lea.vmem %s0, %s250
      %p252 = pneg %p53
      %p253 = pneg %p50
      %p254 = pneg %p74
      %p255 = pneg %p71
      %p256 = pneg %p95
      %p257 = pneg %p92
      %p258 = pneg %p116
      %p259 = pneg %p113
      %p260 = pneg %p137
      %p261 = pneg %p134
      %p262 = pneg %p165
      %p263 = pneg %p162
      %s264 = sadd.s32 %s22, %s23
      %s265 = smul.u32 32, %s264
      %p266 = scmp.lt.s32.totalorder %s265, 63
      %s267 = scalar_select %p266, %s265, 63
      %s268 = smul.addr %s267, 8
      %s269 = scalar_lea.vmem %s5, %s268
      %p270 = pneg %p193
      %p271 = pneg %p190
      %s272 = sadd.s32 %s22, %s23
      %p273 = scmp.lt.s32.totalorder %s272, 1
      %s274 = scalar_select %p273, %s272, 1
      %s275 = smul.addr %s274, 8
      %s276 = scalar_lea.vmem %s6, %s275
      %p277 = scmp.lt.s32.totalorder %s22, 1
      %s278 = scalar_select %p277, %s22, 1
      %p279 = scmp.lt.s32.totalorder %s23, 0
      %s280 = scalar_select %p279, %s23, 0
      %s281 = smul.addr %s280, 54
      %s282 = smul.addr %s278, 54
      %s283 = sadd.s32 %s281, %s282
      %s284 = smul.addr %s283, 8
      %s285 = scalar_lea.vmem %s0, %s284
      %s286 = sadd.s32 %s22, %s23
      %s287 = smul.u32 32, %s286
      %p288 = scmp.lt.s32.totalorder %s287, 63
      %s289 = scalar_select %p288, %s287, 63
      %s290 = smul.addr %s289, 8
      %s291 = scalar_lea.vmem %s5, %s290
      %s292 = sadd.s32 %s22, %s23
      %s293 = smul.u32 32, %s292
      %s294 = sadd.s32 %s22, %s23
      %p295 = scmp.lt.s32.totalorder %s294, 1
      %s296 = scalar_select %p295, %s294, 1
      %s297 = smul.addr %s296, 8
      %s298 = scalar_lea.vmem %s6, %s297
      %s299 = sadd.s32 %s22, %s23
      %v301 = vld [vmem:[%s285] sm:$0xff]
      %v302 = vld [vmem:[%s285 + $0x8] sm:$0xff]
      %v303 = vld [vmem:[%s285 + $0x10] sm:$0x3]
      %v304 = vld [vmem:[%s285 + $0x18] sm:$0xff]
      %v305 = vld [vmem:[%s285 + $0x20] sm:$0xff]
      %v306 = vld [vmem:[%s285 + $0x28] sm:$0x3]
      %v307 = vld [vmem:[%s285 + $0x30] sm:$0xff]
      %v308 = vld [vmem:[%s285 + $0x38] sm:$0xff]
      %v309 = vld [vmem:[%s285 + $0x40] sm:$0x3]
      %v310 = vld [vmem:[%s285 + $0x48] sm:$0xff]
      %v311 = vld [vmem:[%s285 + $0x50] sm:$0xff]
      %v312 = vld [vmem:[%s285 + $0x58] sm:$0x3]
      %v313 = vld [vmem:[%s285 + $0x60] sm:$0xff]
      %v314 = vld [vmem:[%s285 + $0x68] sm:$0xff]
      %v315 = vld [vmem:[%s285 + $0x70] sm:$0x3]
      %v316 = vld [vmem:[%s285 + $0x78] sm:$0xff]
      %v317 = vld [vmem:[%s285 + $0x80] sm:$0xff]
      %v318 = vld [vmem:[%s285 + $0x88] sm:$0x3]
      %v319 = vld [vmem:[%s285 + $0x90] sm:$0xff]
      %v320 = vld [vmem:[%s285 + $0x98] sm:$0xff]
      %v321 = vld [vmem:[%s285 + $0xa0] sm:$0x3]
      %v322 = vld [vmem:[%s285 + $0xa8] sm:$0xff]
      %v323 = vld [vmem:[%s285 + $0xb0] sm:$0xff]
      %v324 = vld [vmem:[%s285 + $0xb8] sm:$0x3]
      %v325 = vld [vmem:[%s285 + $0xc0] sm:$0xff]
      %v326 = vld [vmem:[%s285 + $0xc8] sm:$0xff]
      %v327 = vld [vmem:[%s285 + $0xd0] sm:$0x3]
      %v328 = vld [vmem:[%s285 + $0xd8] sm:$0xff]
      %v329 = vld [vmem:[%s285 + $0xe0] sm:$0xff]
      %v330 = vld [vmem:[%s285 + $0xe8] sm:$0x3]
      %v331 = vld [vmem:[%s285 + $0xf0] sm:$0xff]
      %v332 = vld [vmem:[%s285 + $0xf8] sm:$0xff]
      %v333 = vld [vmem:[%s285 + $0x100] sm:$0x3]
      %v334 = vld [vmem:[%s285 + $0x108] sm:$0xff]
      %v335 = vld [vmem:[%s285 + $0x110] sm:$0xff]
      %v336 = vld [vmem:[%s285 + $0x118] sm:$0x3]
      %v337 = vld [vmem:[%s285 + $0x120] sm:$0xff]
      %v338 = vld [vmem:[%s285 + $0x128] sm:$0xff]
      %v339 = vld [vmem:[%s285 + $0x130] sm:$0x3]
      %v340 = vld [vmem:[%s285 + $0x138] sm:$0xff]
      %v341 = vld [vmem:[%s285 + $0x140] sm:$0xff]
      %v342 = vld [vmem:[%s285 + $0x148] sm:$0x3]
      %v343 = vld [vmem:[%s285 + $0x150] sm:$0xff]
      %v344 = vld [vmem:[%s285 + $0x158] sm:$0xff]
      %v345 = vld [vmem:[%s285 + $0x160] sm:$0x3]
      %v346 = vld [vmem:[%s285 + $0x168] sm:$0xff]
      %v347 = vld [vmem:[%s285 + $0x170] sm:$0xff]
      %v348 = vld [vmem:[%s285 + $0x178] sm:$0x3]
      %v349 = vld [vmem:[%s285 + $0x180] sm:$0xff]
      %v350 = vld [vmem:[%s285 + $0x188] sm:$0xff]
      %v351 = vld [vmem:[%s285 + $0x190] sm:$0x3]
      %v352 = vld [vmem:[%s285 + $0x198] sm:$0xff]
      %v353 = vld [vmem:[%s285 + $0x1a0] sm:$0xff]
      %v354 = vld [vmem:[%s285 + $0x1a8] sm:$0x3]
      %v355 = vld [vmem:[%s1] sm:$0x1]
      %v357 = vlaneseq
      %v358 = vshrl.u32 %v357, 7
      %v359 = vsub.s32 0, %v358
      %v360 = vrot.slane %v355, %v359
      %v362 = vmul.f32 %v301, %v360
      %v363 = vmul.f32 %v302, %v360
      %v364 = vmul.f32 %v303, %v360
      %v365 = vmul.f32 %v304, %v360
      %v366 = vmul.f32 %v305, %v360
      %v367 = vmul.f32 %v306, %v360
      %v368 = vmul.f32 %v307, %v360
      %v369 = vmul.f32 %v308, %v360
      %v370 = vmul.f32 %v309, %v360
      %v371 = vmul.f32 %v310, %v360
      %v372 = vmul.f32 %v311, %v360
      %v373 = vmul.f32 %v312, %v360
      %v374 = vmul.f32 %v313, %v360
      %v375 = vmul.f32 %v314, %v360
      %v376 = vmul.f32 %v315, %v360
      %v377 = vmul.f32 %v316, %v360
      %v378 = vmul.f32 %v317, %v360
      %v379 = vmul.f32 %v318, %v360
      %v380 = vmul.f32 %v319, %v360
      %v381 = vmul.f32 %v320, %v360
      %v382 = vmul.f32 %v321, %v360
      %v383 = vmul.f32 %v322, %v360
      %v384 = vmul.f32 %v323, %v360
      %v385 = vmul.f32 %v324, %v360
      %v386 = vmul.f32 %v325, %v360
      %v387 = vmul.f32 %v326, %v360
      %v388 = vmul.f32 %v327, %v360
      %v389 = vmul.f32 %v328, %v360
      %v390 = vmul.f32 %v329, %v360
      %v391 = vmul.f32 %v330, %v360
      %v392 = vmul.f32 %v331, %v360
      %v393 = vmul.f32 %v332, %v360
      %v394 = vmul.f32 %v333, %v360
      %v395 = vmul.f32 %v334, %v360
      %v396 = vmul.f32 %v335, %v360
      %v397 = vmul.f32 %v336, %v360
      %v398 = vmul.f32 %v337, %v360
      %v399 = vmul.f32 %v338, %v360
      %v400 = vmul.f32 %v339, %v360
      %v401 = vmul.f32 %v340, %v360
      %v402 = vmul.f32 %v341, %v360
      %v403 = vmul.f32 %v342, %v360
      %v404 = vmul.f32 %v343, %v360
      %v405 = vmul.f32 %v344, %v360
      %v406 = vmul.f32 %v345, %v360
      %v407 = vmul.f32 %v346, %v360
      %v408 = vmul.f32 %v347, %v360
      %v409 = vmul.f32 %v348, %v360
      %v410 = vmul.f32 %v349, %v360
      %v411 = vmul.f32 %v350, %v360
      %v412 = vmul.f32 %v351, %v360
      %v413 = vmul.f32 %v352, %v360
      %v414 = vmul.f32 %v353, %v360
      %v415 = vmul.f32 %v354, %v360
      %v416 = vld [vmem:[%s2] sm:$0x1]
      %v418 = vlaneseq
      %v419 = vshrl.u32 %v418, 7
      %v420 = vsub.s32 0, %v419
      %v421 = vrot.slane %v416, %v420
      %v423 = vadd.f32 %v362, %v421
      %v424 = vadd.f32 %v363, %v421
      %v425 = vadd.f32 %v364, %v421
      %v426 = vadd.f32 %v365, %v421
      %v427 = vadd.f32 %v366, %v421
      %v428 = vadd.f32 %v367, %v421
      %v429 = vadd.f32 %v368, %v421
      %v430 = vadd.f32 %v369, %v421
      %v431 = vadd.f32 %v370, %v421
      %v432 = vadd.f32 %v371, %v421
      %v433 = vadd.f32 %v372, %v421
      %v434 = vadd.f32 %v373, %v421
      %v435 = vadd.f32 %v374, %v421
      %v436 = vadd.f32 %v375, %v421
      %v437 = vadd.f32 %v376, %v421
      %v438 = vadd.f32 %v377, %v421
      %v439 = vadd.f32 %v378, %v421
      %v440 = vadd.f32 %v379, %v421
      %v441 = vadd.f32 %v380, %v421
      %v442 = vadd.f32 %v381, %v421
      %v443 = vadd.f32 %v382, %v421
      %v444 = vadd.f32 %v383, %v421
      %v445 = vadd.f32 %v384, %v421
      %v446 = vadd.f32 %v385, %v421
      %v447 = vadd.f32 %v386, %v421
      %v448 = vadd.f32 %v387, %v421
      %v449 = vadd.f32 %v388, %v421
      %v450 = vadd.f32 %v389, %v421
      %v451 = vadd.f32 %v390, %v421
      %v452 = vadd.f32 %v391, %v421
      %v453 = vadd.f32 %v392, %v421
      %v454 = vadd.f32 %v393, %v421
      %v455 = vadd.f32 %v394, %v421
      %v456 = vadd.f32 %v395, %v421
      %v457 = vadd.f32 %v396, %v421
      %v458 = vadd.f32 %v397, %v421
      %v459 = vadd.f32 %v398, %v421
      %v460 = vadd.f32 %v399, %v421
      %v461 = vadd.f32 %v400, %v421
      %v462 = vadd.f32 %v401, %v421
      %v463 = vadd.f32 %v402, %v421
      %v464 = vadd.f32 %v403, %v421
      %v465 = vadd.f32 %v404, %v421
      %v466 = vadd.f32 %v405, %v421
      %v467 = vadd.f32 %v406, %v421
      %v468 = vadd.f32 %v407, %v421
      %v469 = vadd.f32 %v408, %v421
      %v470 = vadd.f32 %v409, %v421
      %v471 = vadd.f32 %v410, %v421
      %v472 = vadd.f32 %v411, %v421
      %v473 = vadd.f32 %v412, %v421
      %v474 = vadd.f32 %v413, %v421
      %v475 = vadd.f32 %v414, %v421
      %v476 = vadd.f32 %v415, %v421
      %v477 = vmax.f32 %v423, 0.0
      %v478 = vmax.f32 %v424, 0.0
      %v479 = vmax.f32 %v425, 0.0
      %v480 = vmax.f32 %v426, 0.0
      %v481 = vmax.f32 %v427, 0.0
      %v482 = vmax.f32 %v428, 0.0
      %v483 = vmax.f32 %v429, 0.0
      %v484 = vmax.f32 %v430, 0.0
      %v485 = vmax.f32 %v431, 0.0
      %v486 = vmax.f32 %v432, 0.0
      %v487 = vmax.f32 %v433, 0.0
      %v488 = vmax.f32 %v434, 0.0
      %v489 = vmax.f32 %v435, 0.0
      %v490 = vmax.f32 %v436, 0.0
      %v491 = vmax.f32 %v437, 0.0
      %v492 = vmax.f32 %v438, 0.0
      %v493 = vmax.f32 %v439, 0.0
      %v494 = vmax.f32 %v440, 0.0
      %v495 = vmax.f32 %v441, 0.0
      %v496 = vmax.f32 %v442, 0.0
      %v497 = vmax.f32 %v443, 0.0
      %v498 = vmax.f32 %v444, 0.0
      %v499 = vmax.f32 %v445, 0.0
      %v500 = vmax.f32 %v446, 0.0
      %v501 = vmax.f32 %v447, 0.0
      %v502 = vmax.f32 %v448, 0.0
      %v503 = vmax.f32 %v449, 0.0
      %v504 = vmax.f32 %v450, 0.0
      %v505 = vmax.f32 %v451, 0.0
      %v506 = vmax.f32 %v452, 0.0
      %v507 = vmax.f32 %v453, 0.0
      %v508 = vmax.f32 %v454, 0.0
      %v509 = vmax.f32 %v455, 0.0
      %v510 = vmax.f32 %v456, 0.0
      %v511 = vmax.f32 %v457, 0.0
      %v512 = vmax.f32 %v458, 0.0
      %v513 = vmax.f32 %v459, 0.0
      %v514 = vmax.f32 %v460, 0.0
      %v515 = vmax.f32 %v461, 0.0
      %v516 = vmax.f32 %v462, 0.0
      %v517 = vmax.f32 %v463, 0.0
      %v518 = vmax.f32 %v464, 0.0
      %v519 = vmax.f32 %v465, 0.0
      %v520 = vmax.f32 %v466, 0.0
      %v521 = vmax.f32 %v467, 0.0
      %v522 = vmax.f32 %v468, 0.0
      %v523 = vmax.f32 %v469, 0.0
      %v524 = vmax.f32 %v470, 0.0
      %v525 = vmax.f32 %v471, 0.0
      %v526 = vmax.f32 %v472, 0.0
      %v527 = vmax.f32 %v473, 0.0
      %v528 = vmax.f32 %v474, 0.0
      %v529 = vmax.f32 %v475, 0.0
      %v530 = vmax.f32 %v476, 0.0
      %v531 = vlaneseq
      %v532 = vshrl.u32 %v531, 7
      %v533 = vadd.s32 %v532, 8
      %v534 = vadd.s32 %v532, 16
      %vm535 = vcmp.gt.s32.totalorder %v532, 0
      %vm536 = vcmp.gt.s32.totalorder %v533, 0
      %vm537 = vcmp.gt.s32.totalorder %v534, 0
      %vm538 = vcmp.lt.s32.totalorder %v532, 17
      %vm539 = vcmp.lt.s32.totalorder %v533, 17
      %vm540 = vcmp.lt.s32.totalorder %v534, 17
      %vm541 = vmand %vm535, %vm538
      %vm542 = vmand %vm536, %vm539
      %vm543 = vmand %vm537, %vm540
      %p544 = scmp.gt.s32.totalorder %s23, 0
      %s545 = scalar_select %p544, 1, 0
      %v546 = vstv %s545
      %vm547 = vcmp.eq.s32.totalorder %v546, 1
      %vm548 = vmand %vm541, %vm547
      %vm549 = vmand %vm542, %vm547
      %vm550 = vmand %vm543, %vm547
      %vm551 = vmand %vm541, 1
      %vm552 = vmand %vm542, 1
      %vm553 = vmand %vm543, 1
      %p554 = scmp.lt.s32.totalorder %s23, 0
      %s555 = scalar_select %p554, 1, 0
      %v556 = vstv %s555
      %vm557 = vcmp.eq.s32.totalorder %v556, 1
      %vm558 = vmand %vm548, 1
      %vm559 = vmand %vm549, 1
      %vm560 = vmand %vm550, 1
      %vm561 = vmand %vm551, %vm557
      %vm562 = vmand %vm552, %vm557
      %vm563 = vmand %vm553, %vm557
      %v564 = vsel %vm558, 1, 0
      %v565 = vsel %vm559, 1, 0
      %v566 = vsel %vm560, 1, 0
      %v567 = vsel %vm551, 1, 0
      %v568 = vsel %vm552, 1, 0
      %v569 = vsel %vm553, 1, 0
      %v570 = vsel %vm561, 1, 0
      %v571 = vsel %vm562, 1, 0
      %v572 = vsel %vm563, 1, 0
      %vm573 = vcmp.eq.s32.totalorder %v564, 1
      %vm574 = vcmp.eq.s32.totalorder %v565, 1
      %vm575 = vcmp.eq.s32.totalorder %v566, 1
      %vm576 = vcmp.eq.s32.totalorder %v567, 1
      %vm577 = vcmp.eq.s32.totalorder %v568, 1
      %vm578 = vcmp.eq.s32.totalorder %v569, 1
      %vm579 = vcmp.eq.s32.totalorder %v570, 1
      %vm580 = vcmp.eq.s32.totalorder %v571, 1
      %vm581 = vcmp.eq.s32.totalorder %v572, 1
      %v582 = vsel %vm573, %v477, 0.0
      %v583 = vsel %vm574, %v478, 0.0
      %v584 = vsel %vm575, %v479, 0.0
      %v585 = vsel %vm576, %v480, 0.0
      %v586 = vsel %vm577, %v481, 0.0
      %v587 = vsel %vm578, %v482, 0.0
      %v588 = vsel %vm576, %v483, 0.0
      %v589 = vsel %vm577, %v484, 0.0
      %v590 = vsel %vm578, %v485, 0.0
      %v591 = vsel %vm576, %v486, 0.0
      %v592 = vsel %vm577, %v487, 0.0
      %v593 = vsel %vm578, %v488, 0.0
      %v594 = vsel %vm576, %v489, 0.0
      %v595 = vsel %vm577, %v490, 0.0
      %v596 = vsel %vm578, %v491, 0.0
      %v597 = vsel %vm576, %v492, 0.0
      %v598 = vsel %vm577, %v493, 0.0
      %v599 = vsel %vm578, %v494, 0.0
      %v600 = vsel %vm576, %v495, 0.0
      %v601 = vsel %vm577, %v496, 0.0
      %v602 = vsel %vm578, %v497, 0.0
      %v603 = vsel %vm576, %v498, 0.0
      %v604 = vsel %vm577, %v499, 0.0
      %v605 = vsel %vm578, %v500, 0.0
      %v606 = vsel %vm576, %v501, 0.0
      %v607 = vsel %vm577, %v502, 0.0
      %v608 = vsel %vm578, %v503, 0.0
      %v609 = vsel %vm576, %v504, 0.0
      %v610 = vsel %vm577, %v505, 0.0
      %v611 = vsel %vm578, %v506, 0.0
      %v612 = vsel %vm576, %v507, 0.0
      %v613 = vsel %vm577, %v508, 0.0
      %v614 = vsel %vm578, %v509, 0.0
      %v615 = vsel %vm576, %v510, 0.0
      %v616 = vsel %vm577, %v511, 0.0
      %v617 = vsel %vm578, %v512, 0.0
      %v618 = vsel %vm576, %v513, 0.0
      %v619 = vsel %vm577, %v514, 0.0
      %v620 = vsel %vm578, %v515, 0.0
      %v621 = vsel %vm576, %v516, 0.0
      %v622 = vsel %vm577, %v517, 0.0
      %v623 = vsel %vm578, %v518, 0.0
      %v624 = vsel %vm576, %v519, 0.0
      %v625 = vsel %vm577, %v520, 0.0
      %v626 = vsel %vm578, %v521, 0.0
      %v627 = vsel %vm576, %v522, 0.0
      %v628 = vsel %vm577, %v523, 0.0
      %v629 = vsel %vm578, %v524, 0.0
      %v630 = vsel %vm576, %v525, 0.0
      %v631 = vsel %vm577, %v526, 0.0
      %v632 = vsel %vm578, %v527, 0.0
      %v633 = vsel %vm579, %v528, 0.0
      %v634 = vsel %vm580, %v529, 0.0
      %v635 = vsel %vm581, %v530, 0.0
      %v636 = vpack.c.bf16 %v583, %v582
      %v637 = vpack.c.bf16 %v584, %v584
      %v638 = vpack.c.bf16 %v586, %v585
      %v639 = vpack.c.bf16 %v587, %v587
      %v640 = vpack.c.bf16 %v589, %v588
      %v641 = vpack.c.bf16 %v590, %v590
      %v642 = vpack.c.bf16 %v592, %v591
      %v643 = vpack.c.bf16 %v593, %v593
      %v644 = vpack.c.bf16 %v595, %v594
      %v645 = vpack.c.bf16 %v596, %v596
      %v646 = vpack.c.bf16 %v598, %v597
      %v647 = vpack.c.bf16 %v599, %v599
      %v648 = vpack.c.bf16 %v601, %v600
      %v649 = vpack.c.bf16 %v602, %v602
      %v650 = vpack.c.bf16 %v604, %v603
      %v651 = vpack.c.bf16 %v605, %v605
      %v652 = vpack.c.bf16 %v607, %v606
      %v653 = vpack.c.bf16 %v608, %v608
      %v654 = vpack.c.bf16 %v610, %v609
      %v655 = vpack.c.bf16 %v611, %v611
      %v656 = vpack.c.bf16 %v613, %v612
      %v657 = vpack.c.bf16 %v614, %v614
      %v658 = vpack.c.bf16 %v616, %v615
      %v659 = vpack.c.bf16 %v617, %v617
      %v660 = vpack.c.bf16 %v619, %v618
      %v661 = vpack.c.bf16 %v620, %v620
      %v662 = vpack.c.bf16 %v622, %v621
      %v663 = vpack.c.bf16 %v623, %v623
      %v664 = vpack.c.bf16 %v625, %v624
      %v665 = vpack.c.bf16 %v626, %v626
      %v666 = vpack.c.bf16 %v628, %v627
      %v667 = vpack.c.bf16 %v629, %v629
      %v668 = vpack.c.bf16 %v631, %v630
      %v669 = vpack.c.bf16 %v632, %v632
      %v670 = vpack.c.bf16 %v634, %v633
      %v671 = vpack.c.bf16 %v635, %v635
      %672 = vst [vmem:[#allocation2] sm:$0xff] %v636
      %673 = vst [vmem:[#allocation2 + $0x48] sm:$0xff] %v638
      %674 = vst [vmem:[#allocation2 + $0x90] sm:$0xff] %v640
      %675 = vst [vmem:[#allocation2 + $0xd8] sm:$0xff] %v642
      %676 = vst [vmem:[#allocation2 + $0x120] sm:$0xff] %v644
      %677 = vst [vmem:[#allocation2 + $0x168] sm:$0xff] %v646
      %678 = vst [vmem:[#allocation2 + $0x1b0] sm:$0xff] %v648
      %679 = vst [vmem:[#allocation2 + $0x1f8] sm:$0xff] %v650
      %680 = vst [vmem:[#allocation2 + $0x240] sm:$0xff] %v652
      %681 = vst [vmem:[#allocation2 + $0x288] sm:$0xff] %v654
      %682 = vst [vmem:[#allocation2 + $0x2d0] sm:$0xff] %v656
      %683 = vst [vmem:[#allocation2 + $0x318] sm:$0xff] %v658
      %684 = vst [vmem:[#allocation2 + $0x360] sm:$0xff] %v660
      %685 = vst [vmem:[#allocation2 + $0x3a8] sm:$0xff] %v662
      %686 = vst [vmem:[#allocation2 + $0x3f0] sm:$0xff] %v664
      %687 = vst [vmem:[#allocation2 + $0x438] sm:$0xff] %v666
      %vm688 = vsmask.f32 7424
      %v690 = vshrl.u32 %v636, 16
      %v692 = vshll.u32 %v636, 16
      %v694 = vrot.slane %v692, 1
      %v695 = vor.u32 %v690, %v694
      %v697 = vshll.u32 %v637, 16
      %v699 = vrot.slane %v697, 1
      %v700 = vsel %vm688, %v695, %v699
      %v702 = vshrl.u32 %v638, 16
      %v704 = vshll.u32 %v638, 16
      %v706 = vrot.slane %v704, 1
      %v707 = vor.u32 %v702, %v706
      %v709 = vshll.u32 %v639, 16
      %v711 = vrot.slane %v709, 1
      %v712 = vsel %vm688, %v707, %v711
      %v714 = vshrl.u32 %v640, 16
      %v716 = vshll.u32 %v640, 16
      %v718 = vrot.slane %v716, 1
      %v719 = vor.u32 %v714, %v718
      %v721 = vshll.u32 %v641, 16
      %v723 = vrot.slane %v721, 1
      %v724 = vsel %vm688, %v719, %v723
      %v726 = vshrl.u32 %v642, 16
      %v728 = vshll.u32 %v642, 16
      %v730 = vrot.slane %v728, 1
      %v731 = vor.u32 %v726, %v730
      %v733 = vshll.u32 %v643, 16
      %v735 = vrot.slane %v733, 1
      %v736 = vsel %vm688, %v731, %v735
      %v738 = vshrl.u32 %v644, 16
      %v740 = vshll.u32 %v644, 16
      %v742 = vrot.slane %v740, 1
      %v743 = vor.u32 %v738, %v742
      %v745 = vshll.u32 %v645, 16
      %v747 = vrot.slane %v745, 1
      %v748 = vsel %vm688, %v743, %v747
      %v750 = vshrl.u32 %v646, 16
      %v752 = vshll.u32 %v646, 16
      %v754 = vrot.slane %v752, 1
      %v755 = vor.u32 %v750, %v754
      %v757 = vshll.u32 %v647, 16
      %v759 = vrot.slane %v757, 1
      %v760 = vsel %vm688, %v755, %v759
      %v762 = vshrl.u32 %v648, 16
      %v764 = vshll.u32 %v648, 16
      %v766 = vrot.slane %v764, 1
      %v767 = vor.u32 %v762, %v766
      %v769 = vshll.u32 %v649, 16
      %v771 = vrot.slane %v769, 1
      %v772 = vsel %vm688, %v767, %v771
      %v774 = vshrl.u32 %v650, 16
      %v776 = vshll.u32 %v650, 16
      %v778 = vrot.slane %v776, 1
      %v779 = vor.u32 %v774, %v778
      %v781 = vshll.u32 %v651, 16
      %v783 = vrot.slane %v781, 1
      %v784 = vsel %vm688, %v779, %v783
      %v786 = vshrl.u32 %v652, 16
      %v788 = vshll.u32 %v652, 16
      %v790 = vrot.slane %v788, 1
      %v791 = vor.u32 %v786, %v790
      %v793 = vshll.u32 %v653, 16
      %v795 = vrot.slane %v793, 1
      %v796 = vsel %vm688, %v791, %v795
      %v798 = vshrl.u32 %v654, 16
      %v800 = vshll.u32 %v654, 16
      %v802 = vrot.slane %v800, 1
      %v803 = vor.u32 %v798, %v802
      %v805 = vshll.u32 %v655, 16
      %v807 = vrot.slane %v805, 1
      %v808 = vsel %vm688, %v803, %v807
      %v810 = vshrl.u32 %v656, 16
      %v812 = vshll.u32 %v656, 16
      %v814 = vrot.slane %v812, 1
      %v815 = vor.u32 %v810, %v814
      %v817 = vshll.u32 %v657, 16
      %v819 = vrot.slane %v817, 1
      %v820 = vsel %vm688, %v815, %v819
      %v822 = vshrl.u32 %v658, 16
      %v824 = vshll.u32 %v658, 16
      %v826 = vrot.slane %v824, 1
      %v827 = vor.u32 %v822, %v826
      %v829 = vshll.u32 %v659, 16
      %v831 = vrot.slane %v829, 1
      %v832 = vsel %vm688, %v827, %v831
      %v834 = vshrl.u32 %v660, 16
      %v836 = vshll.u32 %v660, 16
      %v838 = vrot.slane %v836, 1
      %v839 = vor.u32 %v834, %v838
      %v841 = vshll.u32 %v661, 16
      %v843 = vrot.slane %v841, 1
      %v844 = vsel %vm688, %v839, %v843
      %v846 = vshrl.u32 %v662, 16
      %v848 = vshll.u32 %v662, 16
      %v850 = vrot.slane %v848, 1
      %v851 = vor.u32 %v846, %v850
      %v853 = vshll.u32 %v663, 16
      %v855 = vrot.slane %v853, 1
      %v856 = vsel %vm688, %v851, %v855
      %v858 = vshrl.u32 %v664, 16
      %v860 = vshll.u32 %v664, 16
      %v862 = vrot.slane %v860, 1
      %v863 = vor.u32 %v858, %v862
      %v865 = vshll.u32 %v665, 16
      %v867 = vrot.slane %v865, 1
      %v868 = vsel %vm688, %v863, %v867
      %v870 = vshrl.u32 %v666, 16
      %v872 = vshll.u32 %v666, 16
      %v874 = vrot.slane %v872, 1
      %v875 = vor.u32 %v870, %v874
      %v877 = vshll.u32 %v667, 16
      %v879 = vrot.slane %v877, 1
      %v880 = vsel %vm688, %v875, %v879
      %897 = vst [vmem:[#allocation2 + $0x8] sm:$0xff] %v700
      %898 = vst [vmem:[#allocation2 + $0x50] sm:$0xff] %v712
      %899 = vst [vmem:[#allocation2 + $0x98] sm:$0xff] %v724
      %900 = vst [vmem:[#allocation2 + $0xe0] sm:$0xff] %v736
      %901 = vst [vmem:[#allocation2 + $0x128] sm:$0xff] %v748
      %902 = vst [vmem:[#allocation2 + $0x170] sm:$0xff] %v760
      %903 = vst [vmem:[#allocation2 + $0x1b8] sm:$0xff] %v772
      %904 = vst [vmem:[#allocation2 + $0x200] sm:$0xff] %v784
      %905 = vst [vmem:[#allocation2 + $0x248] sm:$0xff] %v796
      %906 = vst [vmem:[#allocation2 + $0x290] sm:$0xff] %v808
      %907 = vst [vmem:[#allocation2 + $0x2d8] sm:$0xff] %v820
      %908 = vst [vmem:[#allocation2 + $0x320] sm:$0xff] %v832
      %909 = vst [vmem:[#allocation2 + $0x368] sm:$0xff] %v844
      %910 = vst [vmem:[#allocation2 + $0x3b0] sm:$0xff] %v856
      %911 = vst [vmem:[#allocation2 + $0x3f8] sm:$0xff] %v868
      %912 = vst [vmem:[#allocation2 + $0x440] sm:$0xff] %v880
      %vm945 = vcmask 1046528
      %v946 = vrot.slane %v636, 1
      %v947 = vrot.slane %v637, 1
      %v948 = vsel %vm945, %v946, %v947
      %v949 = vrot.slane %v638, 1
      %v950 = vrot.slane %v639, 1
      %v951 = vsel %vm945, %v949, %v950
      %v952 = vrot.slane %v640, 1
      %v953 = vrot.slane %v641, 1
      %v954 = vsel %vm945, %v952, %v953
      %v955 = vrot.slane %v642, 1
      %v956 = vrot.slane %v643, 1
      %v957 = vsel %vm945, %v955, %v956
      %v958 = vrot.slane %v644, 1
      %v959 = vrot.slane %v645, 1
      %v960 = vsel %vm945, %v958, %v959
      %v961 = vrot.slane %v646, 1
      %v962 = vrot.slane %v647, 1
      %v963 = vsel %vm945, %v961, %v962
      %v964 = vrot.slane %v648, 1
      %v965 = vrot.slane %v649, 1
      %v966 = vsel %vm945, %v964, %v965
      %v967 = vrot.slane %v650, 1
      %v968 = vrot.slane %v651, 1
      %v969 = vsel %vm945, %v967, %v968
      %v970 = vrot.slane %v652, 1
      %v971 = vrot.slane %v653, 1
      %v972 = vsel %vm945, %v970, %v971
      %v973 = vrot.slane %v654, 1
      %v974 = vrot.slane %v655, 1
      %v975 = vsel %vm945, %v973, %v974
      %v976 = vrot.slane %v656, 1
      %v977 = vrot.slane %v657, 1
      %v978 = vsel %vm945, %v976, %v977
      %v979 = vrot.slane %v658, 1
      %v980 = vrot.slane %v659, 1
      %v981 = vsel %vm945, %v979, %v980
      %v982 = vrot.slane %v660, 1
      %v983 = vrot.slane %v661, 1
      %v984 = vsel %vm945, %v982, %v983
      %v985 = vrot.slane %v662, 1
      %v986 = vrot.slane %v663, 1
      %v987 = vsel %vm945, %v985, %v986
      %v988 = vrot.slane %v664, 1
      %v989 = vrot.slane %v665, 1
      %v990 = vsel %vm945, %v988, %v989
      %v991 = vrot.slane %v666, 1
      %v992 = vrot.slane %v667, 1
      %v993 = vsel %vm945, %v991, %v992
      %1010 = vst [vmem:[#allocation2 + $0x10] sm:$0xff] %v948
      %1011 = vst [vmem:[#allocation2 + $0x58] sm:$0xff] %v951
      %1012 = vst [vmem:[#allocation2 + $0xa0] sm:$0xff] %v954
      %1013 = vst [vmem:[#allocation2 + $0xe8] sm:$0xff] %v957
      %1014 = vst [vmem:[#allocation2 + $0x130] sm:$0xff] %v960
      %1015 = vst [vmem:[#allocation2 + $0x178] sm:$0xff] %v963
      %1016 = vst [vmem:[#allocation2 + $0x1c0] sm:$0xff] %v966
      %1017 = vst [vmem:[#allocation2 + $0x208] sm:$0xff] %v969
      %1018 = vst [vmem:[#allocation2 + $0x250] sm:$0xff] %v972
      %1019 = vst [vmem:[#allocation2 + $0x298] sm:$0xff] %v975
      %1020 = vst [vmem:[#allocation2 + $0x2e0] sm:$0xff] %v978
      %1021 = vst [vmem:[#allocation2 + $0x328] sm:$0xff] %v981
      %1022 = vst [vmem:[#allocation2 + $0x370] sm:$0xff] %v984
      %1023 = vst [vmem:[#allocation2 + $0x3b8] sm:$0xff] %v987
      %1024 = vst [vmem:[#allocation2 + $0x400] sm:$0xff] %v990
      %1025 = vst [vmem:[#allocation2 + $0x448] sm:$0xff] %v993
      %1026 = vst [vmem:[#allocation2 + $0x18] sm:$0xff] %v638
      %1027 = vst [vmem:[#allocation2 + $0x60] sm:$0xff] %v640
      %1028 = vst [vmem:[#allocation2 + $0xa8] sm:$0xff] %v642
      %1029 = vst [vmem:[#allocation2 + $0xf0] sm:$0xff] %v644
      %1030 = vst [vmem:[#allocation2 + $0x138] sm:$0xff] %v646
      %1031 = vst [vmem:[#allocation2 + $0x180] sm:$0xff] %v648
      %1032 = vst [vmem:[#allocation2 + $0x1c8] sm:$0xff] %v650
      %1033 = vst [vmem:[#allocation2 + $0x210] sm:$0xff] %v652
      %1034 = vst [vmem:[#allocation2 + $0x258] sm:$0xff] %v654
      %1035 = vst [vmem:[#allocation2 + $0x2a0] sm:$0xff] %v656
      %1036 = vst [vmem:[#allocation2 + $0x2e8] sm:$0xff] %v658
      %1037 = vst [vmem:[#allocation2 + $0x330] sm:$0xff] %v660
      %1038 = vst [vmem:[#allocation2 + $0x378] sm:$0xff] %v662
      %1039 = vst [vmem:[#allocation2 + $0x3c0] sm:$0xff] %v664
      %1040 = vst [vmem:[#allocation2 + $0x408] sm:$0xff] %v666
      %1041 = vst [vmem:[#allocation2 + $0x450] sm:$0xff] %v668
      %v1043 = vshrl.u32 %v668, 16
      %v1045 = vshll.u32 %v668, 16
      %v1047 = vrot.slane %v1045, 1
      %v1048 = vor.u32 %v1043, %v1047
      %v1050 = vshll.u32 %v669, 16
      %v1052 = vrot.slane %v1050, 1
      %v1053 = vsel %vm688, %v1048, %v1052
      %1055 = vst [vmem:[#allocation2 + $0x20] sm:$0xff] %v712
      %1056 = vst [vmem:[#allocation2 + $0x68] sm:$0xff] %v724
      %1057 = vst [vmem:[#allocation2 + $0xb0] sm:$0xff] %v736
      %1058 = vst [vmem:[#allocation2 + $0xf8] sm:$0xff] %v748
      %1059 = vst [vmem:[#allocation2 + $0x140] sm:$0xff] %v760
      %1060 = vst [vmem:[#allocation2 + $0x188] sm:$0xff] %v772
      %1061 = vst [vmem:[#allocation2 + $0x1d0] sm:$0xff] %v784
      %1062 = vst [vmem:[#allocation2 + $0x218] sm:$0xff] %v796
      %1063 = vst [vmem:[#allocation2 + $0x260] sm:$0xff] %v808
      %1064 = vst [vmem:[#allocation2 + $0x2a8] sm:$0xff] %v820
      %1065 = vst [vmem:[#allocation2 + $0x2f0] sm:$0xff] %v832
      %1066 = vst [vmem:[#allocation2 + $0x338] sm:$0xff] %v844
      %1067 = vst [vmem:[#allocation2 + $0x380] sm:$0xff] %v856
      %1068 = vst [vmem:[#allocation2 + $0x3c8] sm:$0xff] %v868
      %1069 = vst [vmem:[#allocation2 + $0x410] sm:$0xff] %v880
      %1070 = vst [vmem:[#allocation2 + $0x458] sm:$0xff] %v1053
      %v1073 = vrot.slane %v668, 1
      %v1074 = vrot.slane %v669, 1
      %v1075 = vsel %vm945, %v1073, %v1074
      %1077 = vst [vmem:[#allocation2 + $0x28] sm:$0xff] %v951
      %1078 = vst [vmem:[#allocation2 + $0x70] sm:$0xff] %v954
      %1079 = vst [vmem:[#allocation2 + $0xb8] sm:$0xff] %v957
      %1080 = vst [vmem:[#allocation2 + $0x100] sm:$0xff] %v960
      %1081 = vst [vmem:[#allocation2 + $0x148] sm:$0xff] %v963
      %1082 = vst [vmem:[#allocation2 + $0x190] sm:$0xff] %v966
      %1083 = vst [vmem:[#allocation2 + $0x1d8] sm:$0xff] %v969
      %1084 = vst [vmem:[#allocation2 + $0x220] sm:$0xff] %v972
      %1085 = vst [vmem:[#allocation2 + $0x268] sm:$0xff] %v975
      %1086 = vst [vmem:[#allocation2 + $0x2b0] sm:$0xff] %v978
      %1087 = vst [vmem:[#allocation2 + $0x2f8] sm:$0xff] %v981
      %1088 = vst [vmem:[#allocation2 + $0x340] sm:$0xff] %v984
      %1089 = vst [vmem:[#allocation2 + $0x388] sm:$0xff] %v987
      %1090 = vst [vmem:[#allocation2 + $0x3d0] sm:$0xff] %v990
      %1091 = vst [vmem:[#allocation2 + $0x418] sm:$0xff] %v993
      %1092 = vst [vmem:[#allocation2 + $0x460] sm:$0xff] %v1075
      %1093 = vst [vmem:[#allocation2 + $0x30] sm:$0xff] %v640
      %1094 = vst [vmem:[#allocation2 + $0x78] sm:$0xff] %v642
      %1095 = vst [vmem:[#allocation2 + $0xc0] sm:$0xff] %v644
      %1096 = vst [vmem:[#allocation2 + $0x108] sm:$0xff] %v646
      %1097 = vst [vmem:[#allocation2 + $0x150] sm:$0xff] %v648
      %1098 = vst [vmem:[#allocation2 + $0x198] sm:$0xff] %v650
      %1099 = vst [vmem:[#allocation2 + $0x1e0] sm:$0xff] %v652
      %1100 = vst [vmem:[#allocation2 + $0x228] sm:$0xff] %v654
      %1101 = vst [vmem:[#allocation2 + $0x270] sm:$0xff] %v656
      %1102 = vst [vmem:[#allocation2 + $0x2b8] sm:$0xff] %v658
      %1103 = vst [vmem:[#allocation2 + $0x300] sm:$0xff] %v660
      %1104 = vst [vmem:[#allocation2 + $0x348] sm:$0xff] %v662
      %1105 = vst [vmem:[#allocation2 + $0x390] sm:$0xff] %v664
      %1106 = vst [vmem:[#allocation2 + $0x3d8] sm:$0xff] %v666
      %1107 = vst [vmem:[#allocation2 + $0x420] sm:$0xff] %v668
      %1108 = vst [vmem:[#allocation2 + $0x468] sm:$0xff] %v670
      %v1110 = vshrl.u32 %v670, 16
      %v1112 = vshll.u32 %v670, 16
      %v1114 = vrot.slane %v1112, 1
      %v1115 = vor.u32 %v1110, %v1114
      %v1117 = vshll.u32 %v671, 16
      %v1119 = vrot.slane %v1117, 1
      %v1120 = vsel %vm688, %v1115, %v1119
      %1122 = vst [vmem:[#allocation2 + $0x38] sm:$0xff] %v724
      %1123 = vst [vmem:[#allocation2 + $0x80] sm:$0xff] %v736
      %1124 = vst [vmem:[#allocation2 + $0xc8] sm:$0xff] %v748
      %1125 = vst [vmem:[#allocation2 + $0x110] sm:$0xff] %v760
      %1126 = vst [vmem:[#allocation2 + $0x158] sm:$0xff] %v772
      %1127 = vst [vmem:[#allocation2 + $0x1a0] sm:$0xff] %v784
      %1128 = vst [vmem:[#allocation2 + $0x1e8] sm:$0xff] %v796
      %1129 = vst [vmem:[#allocation2 + $0x230] sm:$0xff] %v808
      %1130 = vst [vmem:[#allocation2 + $0x278] sm:$0xff] %v820
      %1131 = vst [vmem:[#allocation2 + $0x2c0] sm:$0xff] %v832
      %1132 = vst [vmem:[#allocation2 + $0x308] sm:$0xff] %v844
      %1133 = vst [vmem:[#allocation2 + $0x350] sm:$0xff] %v856
      %1134 = vst [vmem:[#allocation2 + $0x398] sm:$0xff] %v868
      %1135 = vst [vmem:[#allocation2 + $0x3e0] sm:$0xff] %v880
      %1136 = vst [vmem:[#allocation2 + $0x428] sm:$0xff] %v1053
      %1137 = vst [vmem:[#allocation2 + $0x470] sm:$0xff] %v1120
      %v1140 = vrot.slane %v670, 1
      %v1141 = vrot.slane %v671, 1
      %v1142 = vsel %vm945, %v1140, %v1141
      %1144 = vst [vmem:[#allocation2 + $0x40] sm:$0xff] %v954
      %1145 = vst [vmem:[#allocation2 + $0x88] sm:$0xff] %v957
      %1146 = vst [vmem:[#allocation2 + $0xd0] sm:$0xff] %v960
      %1147 = vst [vmem:[#allocation2 + $0x118] sm:$0xff] %v963
      %1148 = vst [vmem:[#allocation2 + $0x160] sm:$0xff] %v966
      %1149 = vst [vmem:[#allocation2 + $0x1a8] sm:$0xff] %v969
      %1150 = vst [vmem:[#allocation2 + $0x1f0] sm:$0xff] %v972
      %1151 = vst [vmem:[#allocation2 + $0x238] sm:$0xff] %v975
      %1152 = vst [vmem:[#allocation2 + $0x280] sm:$0xff] %v978
      %1153 = vst [vmem:[#allocation2 + $0x2c8] sm:$0xff] %v981
      %1154 = vst [vmem:[#allocation2 + $0x310] sm:$0xff] %v984
      %1155 = vst [vmem:[#allocation2 + $0x358] sm:$0xff] %v987
      %1156 = vst [vmem:[#allocation2 + $0x3a0] sm:$0xff] %v990
      %1157 = vst [vmem:[#allocation2 + $0x3e8] sm:$0xff] %v993
      %1158 = vst [vmem:[#allocation2 + $0x430] sm:$0xff] %v1075
      %1159 = vst [vmem:[#allocation2 + $0x478] sm:$0xff] %v1142
      %v1160 = vld [vmem:[#allocation2] sm:$0xff]
      %v1161 = vld [vmem:[#allocation2 + $0x8] sm:$0xff]
      %v1162 = vld [vmem:[#allocation2 + $0x10] sm:$0xff]
      %v1163 = vld [vmem:[#allocation2 + $0x18] sm:$0xff]
      %v1164 = vld [vmem:[#allocation2 + $0x20] sm:$0xff]
      %v1165 = vld [vmem:[#allocation2 + $0x28] sm:$0xff]
      %v1166 = vld [vmem:[#allocation2 + $0x30] sm:$0xff]
      %v1167 = vld [vmem:[#allocation2 + $0x38] sm:$0xff]
      %v1168 = vld [vmem:[#allocation2 + $0x40] sm:$0xff]
      %v1169 = vld [vmem:[#allocation2 + $0x48] sm:$0xff]
      %v1170 = vld [vmem:[#allocation2 + $0x50] sm:$0xff]
      %v1171 = vld [vmem:[#allocation2 + $0x58] sm:$0xff]
      %v1172 = vld [vmem:[#allocation2 + $0x60] sm:$0xff]
      %v1173 = vld [vmem:[#allocation2 + $0x68] sm:$0xff]
      %v1174 = vld [vmem:[#allocation2 + $0x70] sm:$0xff]
      %v1175 = vld [vmem:[#allocation2 + $0x78] sm:$0xff]
      %v1176 = vld [vmem:[#allocation2 + $0x80] sm:$0xff]
      %v1177 = vld [vmem:[#allocation2 + $0x88] sm:$0xff]
      %v1178 = vld [vmem:[#allocation2 + $0x90] sm:$0xff]
      %v1179 = vld [vmem:[#allocation2 + $0x98] sm:$0xff]
      %v1180 = vld [vmem:[#allocation2 + $0xa0] sm:$0xff]
      %v1181 = vld [vmem:[#allocation2 + $0xa8] sm:$0xff]
      %v1182 = vld [vmem:[#allocation2 + $0xb0] sm:$0xff]
      %v1183 = vld [vmem:[#allocation2 + $0xb8] sm:$0xff]
      %v1184 = vld [vmem:[#allocation2 + $0xc0] sm:$0xff]
      %v1185 = vld [vmem:[#allocation2 + $0xc8] sm:$0xff]
      %v1186 = vld [vmem:[#allocation2 + $0xd0] sm:$0xff]
      %v1187 = vld [vmem:[#allocation2 + $0xd8] sm:$0xff]
      %v1188 = vld [vmem:[#allocation2 + $0xe0] sm:$0xff]
      %v1189 = vld [vmem:[#allocation2 + $0xe8] sm:$0xff]
      %v1190 = vld [vmem:[#allocation2 + $0xf0] sm:$0xff]
      %v1191 = vld [vmem:[#allocation2 + $0xf8] sm:$0xff]
      %v1192 = vld [vmem:[#allocation2 + $0x100] sm:$0xff]
      %v1193 = vld [vmem:[#allocation2 + $0x108] sm:$0xff]
      %v1194 = vld [vmem:[#allocation2 + $0x110] sm:$0xff]
      %v1195 = vld [vmem:[#allocation2 + $0x118] sm:$0xff]
      %v1196 = vld [vmem:[#allocation2 + $0x120] sm:$0xff]
      %v1197 = vld [vmem:[#allocation2 + $0x128] sm:$0xff]
      %v1198 = vld [vmem:[#allocation2 + $0x130] sm:$0xff]
      %v1199 = vld [vmem:[#allocation2 + $0x138] sm:$0xff]
      %v1200 = vld [vmem:[#allocation2 + $0x140] sm:$0xff]
      %v1201 = vld [vmem:[#allocation2 + $0x148] sm:$0xff]
      %v1202 = vld [vmem:[#allocation2 + $0x150] sm:$0xff]
      %v1203 = vld [vmem:[#allocation2 + $0x158] sm:$0xff]
      %v1204 = vld [vmem:[#allocation2 + $0x160] sm:$0xff]
      %v1205 = vld [vmem:[#allocation2 + $0x168] sm:$0xff]
      %v1206 = vld [vmem:[#allocation2 + $0x170] sm:$0xff]
      %v1207 = vld [vmem:[#allocation2 + $0x178] sm:$0xff]
      %v1208 = vld [vmem:[#allocation2 + $0x180] sm:$0xff]
      %v1209 = vld [vmem:[#allocation2 + $0x188] sm:$0xff]
      %v1210 = vld [vmem:[#allocation2 + $0x190] sm:$0xff]
      %v1211 = vld [vmem:[#allocation2 + $0x198] sm:$0xff]
      %v1212 = vld [vmem:[#allocation2 + $0x1a0] sm:$0xff]
      %v1213 = vld [vmem:[#allocation2 + $0x1a8] sm:$0xff]
      %v1214 = vld [vmem:[#allocation2 + $0x1b0] sm:$0xff]
      %v1215 = vld [vmem:[#allocation2 + $0x1b8] sm:$0xff]
      %v1216 = vld [vmem:[#allocation2 + $0x1c0] sm:$0xff]
      %v1217 = vld [vmem:[#allocation2 + $0x1c8] sm:$0xff]
      %v1218 = vld [vmem:[#allocation2 + $0x1d0] sm:$0xff]
      %v1219 = vld [vmem:[#allocation2 + $0x1d8] sm:$0xff]
      %v1220 = vld [vmem:[#allocation2 + $0x1e0] sm:$0xff]
      %v1221 = vld [vmem:[#allocation2 + $0x1e8] sm:$0xff]
      %v1222 = vld [vmem:[#allocation2 + $0x1f0] sm:$0xff]
      %v1223 = vld [vmem:[#allocation2 + $0x1f8] sm:$0xff]
      %v1224 = vld [vmem:[#allocation2 + $0x200] sm:$0xff]
      %v1225 = vld [vmem:[#allocation2 + $0x208] sm:$0xff]
      %v1226 = vld [vmem:[#allocation2 + $0x210] sm:$0xff]
      %v1227 = vld [vmem:[#allocation2 + $0x218] sm:$0xff]
      %v1228 = vld [vmem:[#allocation2 + $0x220] sm:$0xff]
      %v1229 = vld [vmem:[#allocation2 + $0x228] sm:$0xff]
      %v1230 = vld [vmem:[#allocation2 + $0x230] sm:$0xff]
      %v1231 = vld [vmem:[#allocation2 + $0x238] sm:$0xff]
      %v1232 = vld [vmem:[#allocation2 + $0x240] sm:$0xff]
      %v1233 = vld [vmem:[#allocation2 + $0x248] sm:$0xff]
      %v1234 = vld [vmem:[#allocation2 + $0x250] sm:$0xff]
      %v1235 = vld [vmem:[#allocation2 + $0x258] sm:$0xff]
      %v1236 = vld [vmem:[#allocation2 + $0x260] sm:$0xff]
      %v1237 = vld [vmem:[#allocation2 + $0x268] sm:$0xff]
      %v1238 = vld [vmem:[#allocation2 + $0x270] sm:$0xff]
      %v1239 = vld [vmem:[#allocation2 + $0x278] sm:$0xff]
      %v1240 = vld [vmem:[#allocation2 + $0x280] sm:$0xff]
      %v1241 = vld [vmem:[#allocation2 + $0x288] sm:$0xff]
      %v1242 = vld [vmem:[#allocation2 + $0x290] sm:$0xff]
      %v1243 = vld [vmem:[#allocation2 + $0x298] sm:$0xff]
      %v1244 = vld [vmem:[#allocation2 + $0x2a0] sm:$0xff]
      %v1245 = vld [vmem:[#allocation2 + $0x2a8] sm:$0xff]
      %v1246 = vld [vmem:[#allocation2 + $0x2b0] sm:$0xff]
      %v1247 = vld [vmem:[#allocation2 + $0x2b8] sm:$0xff]
      %v1248 = vld [vmem:[#allocation2 + $0x2c0] sm:$0xff]
      %v1249 = vld [vmem:[#allocation2 + $0x2c8] sm:$0xff]
      %v1250 = vld [vmem:[#allocation2 + $0x2d0] sm:$0xff]
      %v1251 = vld [vmem:[#allocation2 + $0x2d8] sm:$0xff]
      %v1252 = vld [vmem:[#allocation2 + $0x2e0] sm:$0xff]
      %v1253 = vld [vmem:[#allocation2 + $0x2e8] sm:$0xff]
      %v1254 = vld [vmem:[#allocation2 + $0x2f0] sm:$0xff]
      %v1255 = vld [vmem:[#allocation2 + $0x2f8] sm:$0xff]
      %v1256 = vld [vmem:[#allocation2 + $0x300] sm:$0xff]
      %v1257 = vld [vmem:[#allocation2 + $0x308] sm:$0xff]
      %v1258 = vld [vmem:[#allocation2 + $0x310] sm:$0xff]
      %v1259 = vld [vmem:[#allocation2 + $0x318] sm:$0xff]
      %v1260 = vld [vmem:[#allocation2 + $0x320] sm:$0xff]
      %v1261 = vld [vmem:[#allocation2 + $0x328] sm:$0xff]
      %v1262 = vld [vmem:[#allocation2 + $0x330] sm:$0xff]
      %v1263 = vld [vmem:[#allocation2 + $0x338] sm:$0xff]
      %v1264 = vld [vmem:[#allocation2 + $0x340] sm:$0xff]
      %v1265 = vld [vmem:[#allocation2 + $0x348] sm:$0xff]
      %v1266 = vld [vmem:[#allocation2 + $0x350] sm:$0xff]
      %v1267 = vld [vmem:[#allocation2 + $0x358] sm:$0xff]
      %v1268 = vld [vmem:[#allocation2 + $0x360] sm:$0xff]
      %v1269 = vld [vmem:[#allocation2 + $0x368] sm:$0xff]
      %v1270 = vld [vmem:[#allocation2 + $0x370] sm:$0xff]
      %v1271 = vld [vmem:[#allocation2 + $0x378] sm:$0xff]
      %v1272 = vld [vmem:[#allocation2 + $0x380] sm:$0xff]
      %v1273 = vld [vmem:[#allocation2 + $0x388] sm:$0xff]
      %v1274 = vld [vmem:[#allocation2 + $0x390] sm:$0xff]
      %v1275 = vld [vmem:[#allocation2 + $0x398] sm:$0xff]
      %v1276 = vld [vmem:[#allocation2 + $0x3a0] sm:$0xff]
      %v1277 = vld [vmem:[#allocation2 + $0x3a8] sm:$0xff]
      %v1278 = vld [vmem:[#allocation2 + $0x3b0] sm:$0xff]
      %v1279 = vld [vmem:[#allocation2 + $0x3b8] sm:$0xff]
      %v1280 = vld [vmem:[#allocation2 + $0x3c0] sm:$0xff]
      %v1281 = vld [vmem:[#allocation2 + $0x3c8] sm:$0xff]
      %v1282 = vld [vmem:[#allocation2 + $0x3d0] sm:$0xff]
      %v1283 = vld [vmem:[#allocation2 + $0x3d8] sm:$0xff]
      %v1284 = vld [vmem:[#allocation2 + $0x3e0] sm:$0xff]
      %v1285 = vld [vmem:[#allocation2 + $0x3e8] sm:$0xff]
      %v1286 = vld [vmem:[#allocation2 + $0x3f0] sm:$0xff]
      %v1287 = vld [vmem:[#allocation2 + $0x3f8] sm:$0xff]
      %v1288 = vld [vmem:[#allocation2 + $0x400] sm:$0xff]
      %v1289 = vld [vmem:[#allocation2 + $0x408] sm:$0xff]
      %v1290 = vld [vmem:[#allocation2 + $0x410] sm:$0xff]
      %v1291 = vld [vmem:[#allocation2 + $0x418] sm:$0xff]
      %v1292 = vld [vmem:[#allocation2 + $0x420] sm:$0xff]
      %v1293 = vld [vmem:[#allocation2 + $0x428] sm:$0xff]
      %v1294 = vld [vmem:[#allocation2 + $0x430] sm:$0xff]
      %v1295 = vld [vmem:[#allocation2 + $0x438] sm:$0xff]
      %v1296 = vld [vmem:[#allocation2 + $0x440] sm:$0xff]
      %v1297 = vld [vmem:[#allocation2 + $0x448] sm:$0xff]
      %v1298 = vld [vmem:[#allocation2 + $0x450] sm:$0xff]
      %v1299 = vld [vmem:[#allocation2 + $0x458] sm:$0xff]
      %v1300 = vld [vmem:[#allocation2 + $0x460] sm:$0xff]
      %v1301 = vld [vmem:[#allocation2 + $0x468] sm:$0xff]
      %v1302 = vld [vmem:[#allocation2 + $0x470] sm:$0xff]
      %v1303 = vld [vmem:[#allocation2 + $0x478] sm:$0xff]
      %v1304 = vld [vmem:[%s3] sm:$0xf]
      %v1305 = vld [vmem:[%s3 + $0x4] sm:$0xf]
      %v1306 = vld [vmem:[%s3 + $0x8] sm:$0xf]
      %v1307 = vld [vmem:[%s3 + $0xc] sm:$0xf]
      %v1308 = vld [vmem:[%s3 + $0x10] sm:$0xf]
      %v1309 = vld [vmem:[%s3 + $0x14] sm:$0xf]
      %v1310 = vld [vmem:[%s3 + $0x18] sm:$0xf]
      %v1311 = vld [vmem:[%s3 + $0x1c] sm:$0xf]
      %v1312 = vld [vmem:[%s3 + $0x20] sm:$0xf]
      %v1313 = vld [vmem:[%s3 + $0x24] sm:$0xf]
      %v1314 = vld [vmem:[%s3 + $0x28] sm:$0xf]
      %v1315 = vld [vmem:[%s3 + $0x2c] sm:$0xf]
      %v1316 = vld [vmem:[%s3 + $0x30] sm:$0xf]
      %v1317 = vld [vmem:[%s3 + $0x34] sm:$0xf]
      %v1318 = vld [vmem:[%s3 + $0x38] sm:$0xf]
      %v1319 = vld [vmem:[%s3 + $0x3c] sm:$0xf]
      %v1320 = vld [vmem:[%s3 + $0x40] sm:$0xf]
      %v1321 = vld [vmem:[%s3 + $0x44] sm:$0xf]
      %v1322 = vld [vmem:[%s3 + $0x48] sm:$0xf]
      %v1323 = vld [vmem:[%s3 + $0x4c] sm:$0xf]
      %v1324 = vld [vmem:[%s3 + $0x50] sm:$0xf]
      %v1325 = vld [vmem:[%s3 + $0x54] sm:$0xf]
      %v1326 = vld [vmem:[%s3 + $0x58] sm:$0xf]
      %v1327 = vld [vmem:[%s3 + $0x5c] sm:$0xf]
      %v1328 = vld [vmem:[%s3 + $0x60] sm:$0xf]
      %v1329 = vld [vmem:[%s3 + $0x64] sm:$0xf]
      %v1330 = vld [vmem:[%s3 + $0x68] sm:$0xf]
      %v1331 = vld [vmem:[%s3 + $0x6c] sm:$0xf]
      %v1332 = vld [vmem:[%s3 + $0x70] sm:$0xf]
      %v1333 = vld [vmem:[%s3 + $0x74] sm:$0xf]
      %v1334 = vld [vmem:[%s3 + $0x78] sm:$0xf]
      %v1335 = vld [vmem:[%s3 + $0x7c] sm:$0xf]
      %v1336 = vld [vmem:[%s3 + $0x80] sm:$0xf]
      %v1337 = vld [vmem:[%s3 + $0x84] sm:$0xf]
      %v1338 = vld [vmem:[%s3 + $0x88] sm:$0xf]
      %v1339 = vld [vmem:[%s3 + $0x8c] sm:$0xf]
      %v1340 = vld [vmem:[%s3 + $0x90] sm:$0xf]
      %v1341 = vld [vmem:[%s3 + $0x94] sm:$0xf]
      %v1342 = vld [vmem:[%s3 + $0x98] sm:$0xf]
      %v1343 = vld [vmem:[%s3 + $0x9c] sm:$0xf]
      %v1344 = vld [vmem:[%s3 + $0xa0] sm:$0xf]
      %v1345 = vld [vmem:[%s3 + $0xa4] sm:$0xf]
      %v1346 = vld [vmem:[%s3 + $0xa8] sm:$0xf]
      %v1347 = vld [vmem:[%s3 + $0xac] sm:$0xf]
      %v1348 = vld [vmem:[%s3 + $0xb0] sm:$0xf]
      %v1349 = vld [vmem:[%s3 + $0xb4] sm:$0xf]
      %v1350 = vld [vmem:[%s3 + $0xb8] sm:$0xf]
      %v1351 = vld [vmem:[%s3 + $0xbc] sm:$0xf]
      %v1352 = vld [vmem:[%s3 + $0xc0] sm:$0xf]
      %v1353 = vld [vmem:[%s3 + $0xc4] sm:$0xf]
      %v1354 = vld [vmem:[%s3 + $0xc8] sm:$0xf]
      %v1355 = vld [vmem:[%s3 + $0xcc] sm:$0xf]
      %v1356 = vld [vmem:[%s3 + $0xd0] sm:$0xf]
      %v1357 = vld [vmem:[%s3 + $0xd4] sm:$0xf]
      %v1358 = vld [vmem:[%s3 + $0xd8] sm:$0xf]
      %v1359 = vld [vmem:[%s3 + $0xdc] sm:$0xf]
      %v1360 = vld [vmem:[%s3 + $0xe0] sm:$0xf]
      %v1361 = vld [vmem:[%s3 + $0xe4] sm:$0xf]
      %v1362 = vld [vmem:[%s3 + $0xe8] sm:$0xf]
      %v1363 = vld [vmem:[%s3 + $0xec] sm:$0xf]
      %v1364 = vld [vmem:[%s3 + $0xf0] sm:$0xf]
      %v1365 = vld [vmem:[%s3 + $0xf4] sm:$0xf]
      %v1366 = vld [vmem:[%s3 + $0xf8] sm:$0xf]
      %v1367 = vld [vmem:[%s3 + $0xfc] sm:$0xf]
      %v1368 = vld [vmem:[%s3 + $0x100] sm:$0xf]
      %v1369 = vld [vmem:[%s3 + $0x104] sm:$0xf]
      %v1370 = vld [vmem:[%s3 + $0x108] sm:$0xf]
      %v1371 = vld [vmem:[%s3 + $0x10c] sm:$0xf]
      %v1372 = vld [vmem:[%s3 + $0x110] sm:$0xf]
      %v1373 = vld [vmem:[%s3 + $0x114] sm:$0xf]
      %v1374 = vld [vmem:[%s3 + $0x118] sm:$0xf]
      %v1375 = vld [vmem:[%s3 + $0x11c] sm:$0xf]
      %v1376 = vld [vmem:[%s3 + $0x120] sm:$0xf]
      %v1377 = vld [vmem:[%s3 + $0x124] sm:$0xf]
      %v1378 = vld [vmem:[%s3 + $0x128] sm:$0xf]
      %v1379 = vld [vmem:[%s3 + $0x12c] sm:$0xf]
      %v1380 = vld [vmem:[%s3 + $0x130] sm:$0xf]
      %v1381 = vld [vmem:[%s3 + $0x134] sm:$0xf]
      %v1382 = vld [vmem:[%s3 + $0x138] sm:$0xf]
      %v1383 = vld [vmem:[%s3 + $0x13c] sm:$0xf]
      %v1384 = vld [vmem:[%s3 + $0x140] sm:$0xf]
      %v1385 = vld [vmem:[%s3 + $0x144] sm:$0xf]
      %v1386 = vld [vmem:[%s3 + $0x148] sm:$0xf]
      %v1387 = vld [vmem:[%s3 + $0x14c] sm:$0xf]
      %v1388 = vld [vmem:[%s3 + $0x150] sm:$0xf]
      %v1389 = vld [vmem:[%s3 + $0x154] sm:$0xf]
      %v1390 = vld [vmem:[%s3 + $0x158] sm:$0xf]
      %v1391 = vld [vmem:[%s3 + $0x15c] sm:$0xf]
      %v1392 = vld [vmem:[%s3 + $0x160] sm:$0xf]
      %v1393 = vld [vmem:[%s3 + $0x164] sm:$0xf]
      %v1394 = vld [vmem:[%s3 + $0x168] sm:$0xf]
      %v1395 = vld [vmem:[%s3 + $0x16c] sm:$0xf]
      %v1396 = vld [vmem:[%s3 + $0x170] sm:$0xf]
      %v1397 = vld [vmem:[%s3 + $0x174] sm:$0xf]
      %v1398 = vld [vmem:[%s3 + $0x178] sm:$0xf]
      %v1399 = vld [vmem:[%s3 + $0x17c] sm:$0xf]
      %v1400 = vld [vmem:[%s3 + $0x180] sm:$0xf]
      %v1401 = vld [vmem:[%s3 + $0x184] sm:$0xf]
      %v1402 = vld [vmem:[%s3 + $0x188] sm:$0xf]
      %v1403 = vld [vmem:[%s3 + $0x18c] sm:$0xf]
      %v1404 = vld [vmem:[%s3 + $0x190] sm:$0xf]
      %v1405 = vld [vmem:[%s3 + $0x194] sm:$0xf]
      %v1406 = vld [vmem:[%s3 + $0x198] sm:$0xf]
      %v1407 = vld [vmem:[%s3 + $0x19c] sm:$0xf]
      %v1408 = vld [vmem:[%s3 + $0x1a0] sm:$0xf]
      %v1409 = vld [vmem:[%s3 + $0x1a4] sm:$0xf]
      %v1410 = vld [vmem:[%s3 + $0x1a8] sm:$0xf]
      %v1411 = vld [vmem:[%s3 + $0x1ac] sm:$0xf]
      %v1412 = vld [vmem:[%s3 + $0x1b0] sm:$0xf]
      %v1413 = vld [vmem:[%s3 + $0x1b4] sm:$0xf]
      %v1414 = vld [vmem:[%s3 + $0x1b8] sm:$0xf]
      %v1415 = vld [vmem:[%s3 + $0x1bc] sm:$0xf]
      %v1416 = vld [vmem:[%s3 + $0x1c0] sm:$0xf]
      %v1417 = vld [vmem:[%s3 + $0x1c4] sm:$0xf]
      %v1418 = vld [vmem:[%s3 + $0x1c8] sm:$0xf]
      %v1419 = vld [vmem:[%s3 + $0x1cc] sm:$0xf]
      %v1420 = vld [vmem:[%s3 + $0x1d0] sm:$0xf]
      %v1421 = vld [vmem:[%s3 + $0x1d4] sm:$0xf]
      %v1422 = vld [vmem:[%s3 + $0x1d8] sm:$0xf]
      %v1423 = vld [vmem:[%s3 + $0x1dc] sm:$0xf]
      %v1424 = vld [vmem:[%s3 + $0x1e0] sm:$0xf]
      %v1425 = vld [vmem:[%s3 + $0x1e4] sm:$0xf]
      %v1426 = vld [vmem:[%s3 + $0x1e8] sm:$0xf]
      %v1427 = vld [vmem:[%s3 + $0x1ec] sm:$0xf]
      %v1428 = vld [vmem:[%s3 + $0x1f0] sm:$0xf]
      %v1429 = vld [vmem:[%s3 + $0x1f4] sm:$0xf]
      %v1430 = vld [vmem:[%s3 + $0x1f8] sm:$0xf]
      %v1431 = vld [vmem:[%s3 + $0x1fc] sm:$0xf]
      %v1432 = vld [vmem:[%s3 + $0x200] sm:$0xf]
      %v1433 = vld [vmem:[%s3 + $0x204] sm:$0xf]
      %v1434 = vld [vmem:[%s3 + $0x208] sm:$0xf]
      %v1435 = vld [vmem:[%s3 + $0x20c] sm:$0xf]
      %v1436 = vld [vmem:[%s3 + $0x210] sm:$0xf]
      %v1437 = vld [vmem:[%s3 + $0x214] sm:$0xf]
      %v1438 = vld [vmem:[%s3 + $0x218] sm:$0xf]
      %v1439 = vld [vmem:[%s3 + $0x21c] sm:$0xf]
      %v1440 = vld [vmem:[%s3 + $0x220] sm:$0xf]
      %v1441 = vld [vmem:[%s3 + $0x224] sm:$0xf]
      %v1442 = vld [vmem:[%s3 + $0x228] sm:$0xf]
      %v1443 = vld [vmem:[%s3 + $0x22c] sm:$0xf]
      %v1444 = vld [vmem:[%s3 + $0x230] sm:$0xf]
      %v1445 = vld [vmem:[%s3 + $0x234] sm:$0xf]
      %v1446 = vld [vmem:[%s3 + $0x238] sm:$0xf]
      %v1447 = vld [vmem:[%s3 + $0x23c] sm:$0xf]
      %v1448 = vld [vmem:[%s4] sm:$0x1]
      %v1450 = vlaneseq
      %v1451 = vshrl.u32 %v1450, 7
      %v1452 = vsub.s32 0, %v1451
      %v1453 = vrot.slane %v1448, %v1452
      %v1599 = vunpack.c.l.b16 %v1304
      %v1600 = vunpack.c.l.b16 %v1305
      %v1601 = vunpack.c.l.b16 %v1306
      %v1602 = vunpack.c.l.b16 %v1307
      %v1603 = vunpack.c.l.b16 %v1308
      %v1604 = vunpack.c.l.b16 %v1309
      %v1605 = vunpack.c.l.b16 %v1310
      %v1606 = vunpack.c.l.b16 %v1311
      %v1607 = vunpack.c.l.b16 %v1312
      %v1608 = vunpack.c.l.b16 %v1313
      %v1609 = vunpack.c.l.b16 %v1314
      %v1610 = vunpack.c.l.b16 %v1315
      %v1611 = vunpack.c.l.b16 %v1316
      %v1612 = vunpack.c.l.b16 %v1317
      %v1613 = vunpack.c.l.b16 %v1318
      %v1614 = vunpack.c.l.b16 %v1319
      %v1615 = vunpack.c.l.b16 %v1320
      %v1616 = vunpack.c.l.b16 %v1321
      %v1617 = vunpack.c.l.b16 %v1322
      %v1618 = vunpack.c.l.b16 %v1323
      %v1619 = vunpack.c.l.b16 %v1324
      %v1620 = vunpack.c.l.b16 %v1325
      %v1621 = vunpack.c.l.b16 %v1326
      %v1622 = vunpack.c.l.b16 %v1327
      %v1623 = vunpack.c.l.b16 %v1328
      %v1624 = vunpack.c.l.b16 %v1329
      %v1625 = vunpack.c.l.b16 %v1330
      %v1626 = vunpack.c.l.b16 %v1331
      %v1627 = vunpack.c.l.b16 %v1332
      %v1628 = vunpack.c.l.b16 %v1333
      %v1629 = vunpack.c.l.b16 %v1334
      %v1630 = vunpack.c.l.b16 %v1335
      %v1631 = vunpack.c.l.b16 %v1336
      %v1632 = vunpack.c.l.b16 %v1337
      %v1633 = vunpack.c.l.b16 %v1338
      %v1634 = vunpack.c.l.b16 %v1339
      %v1635 = vunpack.c.l.b16 %v1340
      %v1636 = vunpack.c.l.b16 %v1341
      %v1637 = vunpack.c.l.b16 %v1342
      %v1638 = vunpack.c.l.b16 %v1343
      %v1639 = vunpack.c.l.b16 %v1344
      %v1640 = vunpack.c.l.b16 %v1345
      %v1641 = vunpack.c.l.b16 %v1346
      %v1642 = vunpack.c.l.b16 %v1347
      %v1643 = vunpack.c.l.b16 %v1348
      %v1644 = vunpack.c.l.b16 %v1349
      %v1645 = vunpack.c.l.b16 %v1350
      %v1646 = vunpack.c.l.b16 %v1351
      %v1647 = vunpack.c.l.b16 %v1352
      %v1648 = vunpack.c.l.b16 %v1353
      %v1649 = vunpack.c.l.b16 %v1354
      %v1650 = vunpack.c.l.b16 %v1355
      %v1651 = vunpack.c.l.b16 %v1356
      %v1652 = vunpack.c.l.b16 %v1357
      %v1653 = vunpack.c.l.b16 %v1358
      %v1654 = vunpack.c.l.b16 %v1359
      %v1655 = vunpack.c.l.b16 %v1360
      %v1656 = vunpack.c.l.b16 %v1361
      %v1657 = vunpack.c.l.b16 %v1362
      %v1658 = vunpack.c.l.b16 %v1363
      %v1659 = vunpack.c.l.b16 %v1364
      %v1660 = vunpack.c.l.b16 %v1365
      %v1661 = vunpack.c.l.b16 %v1366
      %v1662 = vunpack.c.l.b16 %v1367
      %v1663 = vunpack.c.l.b16 %v1368
      %v1664 = vunpack.c.l.b16 %v1369
      %v1665 = vunpack.c.l.b16 %v1370
      %v1666 = vunpack.c.l.b16 %v1371
      %v1667 = vunpack.c.l.b16 %v1372
      %v1668 = vunpack.c.l.b16 %v1373
      %v1669 = vunpack.c.l.b16 %v1374
      %v1670 = vunpack.c.l.b16 %v1375
      %v1671 = vunpack.c.l.b16 %v1376
      %v1672 = vunpack.c.l.b16 %v1377
      %v1673 = vunpack.c.l.b16 %v1378
      %v1674 = vunpack.c.l.b16 %v1379
      %v1675 = vunpack.c.l.b16 %v1380
      %v1676 = vunpack.c.l.b16 %v1381
      %v1677 = vunpack.c.l.b16 %v1382
      %v1678 = vunpack.c.l.b16 %v1383
      %v1679 = vunpack.c.l.b16 %v1384
      %v1680 = vunpack.c.l.b16 %v1385
      %v1681 = vunpack.c.l.b16 %v1386
      %v1682 = vunpack.c.l.b16 %v1387
      %v1683 = vunpack.c.l.b16 %v1388
      %v1684 = vunpack.c.l.b16 %v1389
      %v1685 = vunpack.c.l.b16 %v1390
      %v1686 = vunpack.c.l.b16 %v1391
      %v1687 = vunpack.c.l.b16 %v1392
      %v1688 = vunpack.c.l.b16 %v1393
      %v1689 = vunpack.c.l.b16 %v1394
      %v1690 = vunpack.c.l.b16 %v1395
      %v1691 = vunpack.c.l.b16 %v1396
      %v1692 = vunpack.c.l.b16 %v1397
      %v1693 = vunpack.c.l.b16 %v1398
      %v1694 = vunpack.c.l.b16 %v1399
      %v1695 = vunpack.c.l.b16 %v1400
      %v1696 = vunpack.c.l.b16 %v1401
      %v1697 = vunpack.c.l.b16 %v1402
      %v1698 = vunpack.c.l.b16 %v1403
      %v1699 = vunpack.c.l.b16 %v1404
      %v1700 = vunpack.c.l.b16 %v1405
      %v1701 = vunpack.c.l.b16 %v1406
      %v1702 = vunpack.c.l.b16 %v1407
      %v1703 = vunpack.c.l.b16 %v1408
      %v1704 = vunpack.c.l.b16 %v1409
      %v1705 = vunpack.c.l.b16 %v1410
      %v1706 = vunpack.c.l.b16 %v1411
      %v1707 = vunpack.c.l.b16 %v1412
      %v1708 = vunpack.c.l.b16 %v1413
      %v1709 = vunpack.c.l.b16 %v1414
      %v1710 = vunpack.c.l.b16 %v1415
      %v1711 = vunpack.c.l.b16 %v1416
      %v1712 = vunpack.c.l.b16 %v1417
      %v1713 = vunpack.c.l.b16 %v1418
      %v1714 = vunpack.c.l.b16 %v1419
      %v1715 = vunpack.c.l.b16 %v1420
      %v1716 = vunpack.c.l.b16 %v1421
      %v1717 = vunpack.c.l.b16 %v1422
      %v1718 = vunpack.c.l.b16 %v1423
      %v1719 = vunpack.c.l.b16 %v1424
      %v1720 = vunpack.c.l.b16 %v1425
      %v1721 = vunpack.c.l.b16 %v1426
      %v1722 = vunpack.c.l.b16 %v1427
      %v1723 = vunpack.c.l.b16 %v1428
      %v1724 = vunpack.c.l.b16 %v1429
      %v1725 = vunpack.c.l.b16 %v1430
      %v1726 = vunpack.c.l.b16 %v1431
      %v1727 = vunpack.c.l.b16 %v1432
      %v1728 = vunpack.c.l.b16 %v1433
      %v1729 = vunpack.c.l.b16 %v1434
      %v1730 = vunpack.c.l.b16 %v1435
      %v1731 = vunpack.c.l.b16 %v1436
      %v1732 = vunpack.c.l.b16 %v1437
      %v1733 = vunpack.c.l.b16 %v1438
      %v1734 = vunpack.c.l.b16 %v1439
      %v1735 = vunpack.c.l.b16 %v1440
      %v1736 = vunpack.c.l.b16 %v1441
      %v1737 = vunpack.c.l.b16 %v1442
      %v1738 = vunpack.c.l.b16 %v1443
      %v1739 = vunpack.c.l.b16 %v1444
      %v1740 = vunpack.c.l.b16 %v1445
      %v1741 = vunpack.c.l.b16 %v1446
      %v1742 = vunpack.c.l.b16 %v1447
      %v1743 = vpack.c.b16 %v1600, %v1599
      %v1744 = vpack.c.b16 %v1602, %v1601
      %v1745 = vpack.c.b16 %v1604, %v1603
      %v1746 = vpack.c.b16 %v1606, %v1605
      %v1747 = vpack.c.b16 %v1608, %v1607
      %v1748 = vpack.c.b16 %v1610, %v1609
      %v1749 = vpack.c.b16 %v1612, %v1611
      %v1750 = vpack.c.b16 %v1614, %v1613
      %v1751 = vpack.c.b16 %v1616, %v1615
      %v1752 = vpack.c.b16 %v1618, %v1617
      %v1753 = vpack.c.b16 %v1620, %v1619
      %v1754 = vpack.c.b16 %v1622, %v1621
      %v1755 = vpack.c.b16 %v1624, %v1623
      %v1756 = vpack.c.b16 %v1626, %v1625
      %v1757 = vpack.c.b16 %v1628, %v1627
      %v1758 = vpack.c.b16 %v1630, %v1629
      %v1759 = vpack.c.b16 %v1632, %v1631
      %v1760 = vpack.c.b16 %v1634, %v1633
      %v1761 = vpack.c.b16 %v1636, %v1635
      %v1762 = vpack.c.b16 %v1638, %v1637
      %v1763 = vpack.c.b16 %v1640, %v1639
      %v1764 = vpack.c.b16 %v1642, %v1641
      %v1765 = vpack.c.b16 %v1644, %v1643
      %v1766 = vpack.c.b16 %v1646, %v1645
      %v1767 = vpack.c.b16 %v1648, %v1647
      %v1768 = vpack.c.b16 %v1650, %v1649
      %v1769 = vpack.c.b16 %v1652, %v1651
      %v1770 = vpack.c.b16 %v1654, %v1653
      %v1771 = vpack.c.b16 %v1656, %v1655
      %v1772 = vpack.c.b16 %v1658, %v1657
      %v1773 = vpack.c.b16 %v1660, %v1659
      %v1774 = vpack.c.b16 %v1662, %v1661
      %v1775 = vpack.c.b16 %v1664, %v1663
      %v1776 = vpack.c.b16 %v1666, %v1665
      %v1777 = vpack.c.b16 %v1668, %v1667
      %v1778 = vpack.c.b16 %v1670, %v1669
      %v1779 = vpack.c.b16 %v1672, %v1671
      %v1780 = vpack.c.b16 %v1674, %v1673
      %v1781 = vpack.c.b16 %v1676, %v1675
      %v1782 = vpack.c.b16 %v1678, %v1677
      %v1783 = vpack.c.b16 %v1680, %v1679
      %v1784 = vpack.c.b16 %v1682, %v1681
      %v1785 = vpack.c.b16 %v1684, %v1683
      %v1786 = vpack.c.b16 %v1686, %v1685
      %v1787 = vpack.c.b16 %v1688, %v1687
      %v1788 = vpack.c.b16 %v1690, %v1689
      %v1789 = vpack.c.b16 %v1692, %v1691
      %v1790 = vpack.c.b16 %v1694, %v1693
      %v1791 = vpack.c.b16 %v1696, %v1695
      %v1792 = vpack.c.b16 %v1698, %v1697
      %v1793 = vpack.c.b16 %v1700, %v1699
      %v1794 = vpack.c.b16 %v1702, %v1701
      %v1795 = vpack.c.b16 %v1704, %v1703
      %v1796 = vpack.c.b16 %v1706, %v1705
      %v1797 = vpack.c.b16 %v1708, %v1707
      %v1798 = vpack.c.b16 %v1710, %v1709
      %v1799 = vpack.c.b16 %v1712, %v1711
      %v1800 = vpack.c.b16 %v1714, %v1713
      %v1801 = vpack.c.b16 %v1716, %v1715
      %v1802 = vpack.c.b16 %v1718, %v1717
      %v1803 = vpack.c.b16 %v1720, %v1719
      %v1804 = vpack.c.b16 %v1722, %v1721
      %v1805 = vpack.c.b16 %v1724, %v1723
      %v1806 = vpack.c.b16 %v1726, %v1725
      %v1807 = vpack.c.b16 %v1728, %v1727
      %v1808 = vpack.c.b16 %v1730, %v1729
      %v1809 = vpack.c.b16 %v1732, %v1731
      %v1810 = vpack.c.b16 %v1734, %v1733
      %v1811 = vpack.c.b16 %v1736, %v1735
      %v1812 = vpack.c.b16 %v1738, %v1737
      %v1813 = vpack.c.b16 %v1740, %v1739
      %v1814 = vpack.c.b16 %v1742, %v1741
      %1887 = vmatprep.subr.bf16.mxu0 0
      %1888 = vmatpush1.bf16.msra.mxu0 %v1743
      %1889 = vmatprep.subr.bf16.mxu0 0
      %1890 = vmatpush1.bf16.msra.mxu0 %v1744
      %1891 = vmatprep.subr.bf16.mxu0 0
      %1892 = vmatpush1.bf16.msra.mxu0 %v1745
      %1893 = vmatprep.subr.bf16.mxu0 0
      %1894 = vmatpush1.bf16.msra.mxu0 %v1746
      %1895 = vmatprep.subr.bf16.mxu0 0
      %1896 = vmatpush1.bf16.msra.mxu0 %v1747
      %1897 = vmatprep.subr.bf16.mxu0 0
      %1898 = vmatpush1.bf16.msra.mxu0 %v1748
      %1899 = vmatprep.subr.bf16.mxu0 0
      %1900 = vmatpush1.bf16.msra.mxu0 %v1749
      %1901 = vmatprep.subr.bf16.mxu0 0
      %1902 = vmatpush1.bf16.msra.mxu0 %v1750
      %1903 = vmatprep.subr.bf16.mxu0 0
      %1904 = vmatpush1.bf16.msra.mxu0 %v1751
      %1905 = vmatprep.subr.bf16.mxu0 0
      %1906 = vmatpush1.bf16.msra.mxu0 %v1752
      %1907 = vmatprep.subr.bf16.mxu0 0
      %1908 = vmatpush1.bf16.msra.mxu0 %v1753
      %1909 = vmatprep.subr.bf16.mxu0 0
      %1910 = vmatpush1.bf16.msra.mxu0 %v1754
      %1911 = vmatprep.subr.bf16.mxu0 0
      %1912 = vmatpush1.bf16.msra.mxu0 %v1755
      %1913 = vmatprep.subr.bf16.mxu0 0
      %1914 = vmatpush1.bf16.msra.mxu0 %v1756
      %1915 = vmatprep.subr.bf16.mxu0 0
      %1916 = vmatpush1.bf16.msra.mxu0 %v1757
      %1917 = vmatprep.subr.bf16.mxu0 0
      %1918 = vmatpush1.bf16.msra.mxu0 %v1758
      %1919 = vmatprep.mubr.bf16.mxu0 %v1161
      %1920 = vmatmul.mubr.bf16.gmra.mrb[0].mxu0 %v1160
      %v1921 = vpop.f32.mrb[0].mxu0
      %v1922 = vadd.f32 %v1453, %v1921
      %v1923 = vpop.f32.mrb[0].mxu0
      %v1924 = vpop.f32.mrb[0].mxu0
      %v1925 = vadd.f32 %v1453, %v1924
      %v1926 = vpop.f32.mrb[0].mxu0
      %1927 = vmatprep.mubr.bf16.mxu0 %v1170
      %1928 = vmatmul.mubr.bf16.gmra.mrb[0].mxu0 %v1169
      %v1929 = vpop.f32.mrb[0].mxu0
      %v1930 = vadd.f32 %v1453, %v1929
      %v1931 = vpop.f32.mrb[0].mxu0
      %v1932 = vpop.f32.mrb[0].mxu0
      %v1933 = vadd.f32 %v1453, %v1932
      %v1934 = vpop.f32.mrb[0].mxu0
      %1935 = vmatprep.mubr.bf16.mxu0 %v1179
      %1936 = vmatmul.mubr.bf16.gmra.mrb[0].mxu0 %v1178
      %v1937 = vpop.f32.mrb[0].mxu0
      %v1938 = vadd.f32 %v1453, %v1937
      %v1939 = vpop.f32.mrb[0].mxu0
      %v1940 = vpop.f32.mrb[0].mxu0
      %v1941 = vadd.f32 %v1453, %v1940
      %v1942 = vpop.f32.mrb[0].mxu0
      %1943 = vmatprep.mubr.bf16.mxu0 %v1188
      %1944 = vmatmul.mubr.bf16.gmra.mrb[0].mxu0 %v1187
      %v1945 = vpop.f32.mrb[0].mxu0
      %v1946 = vadd.f32 %v1453, %v1945
      %v1947 = vpop.f32.mrb[0].mxu0
      %v1948 = vpop.f32.mrb[0].mxu0
      %v1949 = vadd.f32 %v1453, %v1948
      %v1950 = vpop.f32.mrb[0].mxu0
      %1951 = vmatprep.mubr.bf16.mxu0 %v1197
      %1952 = vmatmul.mubr.bf16.gmra.mrb[0].mxu0 %v1196
      %v1953 = vpop.f32.mrb[0].mxu0
      %v1954 = vadd.f32 %v1453, %v1953
      %v1955 = vpop.f32.mrb[0].mxu0
      %v1956 = vpop.f32.mrb[0].mxu0
      %v1957 = vadd.f32 %v1453, %v1956
      %v1958 = vpop.f32.mrb[0].mxu0
      %1959 = vmatprep.mubr.bf16.mxu0 %v1206
      %1960 = vmatmul.mubr.bf16.gmra.mrb[0].mxu0 %v1205
      %v1961 = vpop.f32.mrb[0].mxu0
      %v1962 = vadd.f32 %v1453, %v1961
      %v1963 = vpop.f32.mrb[0].mxu0
      %v1964 = vpop.f32.mrb[0].mxu0
      %v1965 = vadd.f32 %v1453, %v1964
      %v1966 = vpop.f32.mrb[0].mxu0
      %1967 = vmatprep.mubr.bf16.mxu0 %v1215
      %1968 = vmatmul.mubr.bf16.gmra.mrb[0].mxu0 %v1214
      %v1969 = vpop.f32.mrb[0].mxu0
      %v1970 = vadd.f32 %v1453, %v1969
      %v1971 = vpop.f32.mrb[0].mxu0
      %v1972 = vpop.f32.mrb[0].mxu0
      %v1973 = vadd.f32 %v1453, %v1972
      %v1974 = vpop.f32.mrb[0].mxu0
      %1975 = vmatprep.mubr.bf16.mxu0 %v1224
      %1976 = vmatmul.mubr.bf16.gmra.mrb[0].mxu0 %v1223
      %v1977 = vpop.f32.mrb[0].mxu0
      %v1978 = vadd.f32 %v1453, %v1977
      %v1979 = vpop.f32.mrb[0].mxu0
      %v1980 = vpop.f32.mrb[0].mxu0
      %v1981 = vadd.f32 %v1453, %v1980
      %v1982 = vpop.f32.mrb[0].mxu0
      %1983 = vmatprep.mubr.bf16.mxu0 %v1233
      %1984 = vmatmul.mubr.bf16.gmra.mrb[0].mxu0 %v1232
      %v1985 = vpop.f32.mrb[0].mxu0
      %v1986 = vadd.f32 %v1453, %v1985
      %v1987 = vpop.f32.mrb[0].mxu0
      %v1988 = vpop.f32.mrb[0].mxu0
      %v1989 = vadd.f32 %v1453, %v1988
      %v1990 = vpop.f32.mrb[0].mxu0
      %1991 = vmatprep.mubr.bf16.mxu0 %v1242
      %1992 = vmatmul.mubr.bf16.gmra.mrb[0].mxu0 %v1241
      %v1993 = vpop.f32.mrb[0].mxu0
      %v1994 = vadd.f32 %v1453, %v1993
      %v1995 = vpop.f32.mrb[0].mxu0
      %v1996 = vpop.f32.mrb[0].mxu0
      %v1997 = vadd.f32 %v1453, %v1996
      %v1998 = vpop.f32.mrb[0].mxu0
      %1999 = vmatprep.mubr.bf16.mxu0 %v1251
      %2000 = vmatmul.mubr.bf16.gmra.mrb[0].mxu0 %v1250
      %v2001 = vpop.f32.mrb[0].mxu0
      %v2002 = vadd.f32 %v1453, %v2001
      %v2003 = vpop.f32.mrb[0].mxu0
      %v2004 = vpop.f32.mrb[0].mxu0
      %v2005 = vadd.f32 %v1453, %v2004
      %v2006 = vpop.f32.mrb[0].mxu0
      %2007 = vmatprep.mubr.bf16.mxu0 %v1260
      %2008 = vmatmul.mubr.bf16.gmra.mrb[0].mxu0 %v1259
      %v2009 = vpop.f32.mrb[0].mxu0
      %v2010 = vadd.f32 %v1453, %v2009
      %v2011 = vpop.f32.mrb[0].mxu0
      %v2012 = vpop.f32.mrb[0].mxu0
      %v2013 = vadd.f32 %v1453, %v2012
      %v2014 = vpop.f32.mrb[0].mxu0
      %2015 = vmatprep.mubr.bf16.mxu0 %v1269
      %2016 = vmatmul.mubr.bf16.gmra.mrb[0].mxu0 %v1268
      %v2017 = vpop.f32.mrb[0].mxu0
      %v2018 = vadd.f32 %v1453, %v2017
      %v2019 = vpop.f32.mrb[0].mxu0
      %v2020 = vpop.f32.mrb[0].mxu0
      %v2021 = vadd.f32 %v1453, %v2020
      %v2022 = vpop.f32.mrb[0].mxu0
      %2023 = vmatprep.mubr.bf16.mxu0 %v1278
      %2024 = vmatmul.mubr.bf16.gmra.mrb[0].mxu0 %v1277
      %v2025 = vpop.f32.mrb[0].mxu0
      %v2026 = vadd.f32 %v1453, %v2025
      %v2027 = vpop.f32.mrb[0].mxu0
      %v2028 = vpop.f32.mrb[0].mxu0
      %v2029 = vadd.f32 %v1453, %v2028
      %v2030 = vpop.f32.mrb[0].mxu0
      %2031 = vmatprep.mubr.bf16.mxu0 %v1287
      %2032 = vmatmul.mubr.bf16.gmra.mrb[0].mxu0 %v1286
      %v2033 = vpop.f32.mrb[0].mxu0
      %v2034 = vadd.f32 %v1453, %v2033
      %v2035 = vpop.f32.mrb[0].mxu0
      %v2036 = vpop.f32.mrb[0].mxu0
      %v2037 = vadd.f32 %v1453, %v2036
      %v2038 = vpop.f32.mrb[0].mxu0
      %2039 = vmatprep.mubr.bf16.mxu0 %v1296
      %2040 = vmatmul.mubr.bf16.gmra.mrb[0].mxu0 %v1295
      %v2041 = vpop.f32.mrb[0].mxu0
      %v2042 = vadd.f32 %v1453, %v2041
      %v2043 = vpop.f32.mrb[0].mxu0
      %v2044 = vpop.f32.mrb[0].mxu0
      %v2045 = vadd.f32 %v1453, %v2044
      %v2046 = vpop.f32.mrb[0].mxu0
      %2047 = vdwg.mxu0
      %2048 = vmatprep.subr.bf16.mxu0 0
      %2049 = vmatpush1.bf16.msra.mxu0 %v1759
      %2050 = vmatprep.subr.bf16.mxu0 0
      %2051 = vmatpush1.bf16.msra.mxu0 %v1760
      %2052 = vmatprep.subr.bf16.mxu0 0
      %2053 = vmatpush1.bf16.msra.mxu0 %v1761
      %2054 = vmatprep.subr.bf16.mxu0 0
      %2055 = vmatpush1.bf16.msra.mxu0 %v1762
      %2056 = vmatprep.subr.bf16.mxu0 0
      %2057 = vmatpush1.bf16.msra.mxu0 %v1763
      %2058 = vmatprep.subr.bf16.mxu0 0
      %2059 = vmatpush1.bf16.msra.mxu0 %v1764
      %2060 = vmatprep.subr.bf16.mxu0 0
      %2061 = vmatpush1.bf16.msra.mxu0 %v1765
      %2062 = vmatprep.subr.bf16.mxu0 0
      %2063 = vmatpush1.bf16.msra.mxu0 %v1766
      %2064 = vmatprep.subr.bf16.mxu0 0
      %2065 = vmatpush1.bf16.msra.mxu0 %v1767
      %2066 = vmatprep.subr.bf16.mxu0 0
      %2067 = vmatpush1.bf16.msra.mxu0 %v1768
      %2068 = vmatprep.subr.bf16.mxu0 0
      %2069 = vmatpush1.bf16.msra.mxu0 %v1769
      %2070 = vmatprep.subr.bf16.mxu0 0
      %2071 = vmatpush1.bf16.msra.mxu0 %v1770
      %2072 = vmatprep.subr.bf16.mxu0 0
      %2073 = vmatpush1.bf16.msra.mxu0 %v1771
      %2074 = vmatprep.subr.bf16.mxu0 0
      %2075 = vmatpush1.bf16.msra.mxu0 %v1772
      %2076 = vmatprep.subr.bf16.mxu0 0
      %2077 = vmatpush1.bf16.msra.mxu0 %v1773
      %2078 = vmatprep.subr.bf16.mxu0 0
      %2079 = vmatpush1.bf16.msra.mxu0 %v1774
      %2080 = vmatprep.mubr.bf16.mxu0 %v1163
      %2081 = vmatmul.mubr.bf16.gmra.mrb[0].mxu0 %v1162
      %v2082 = vpop.f32.mrb[0].mxu0
      %v2083 = vadd.f32 %v1922, %v2082
      %v2084 = vpop.f32.mrb[0].mxu0
      %v2085 = vpop.f32.mrb[0].mxu0
      %v2086 = vadd.f32 %v1925, %v2085
      %v2087 = vpop.f32.mrb[0].mxu0
      %2088 = vmatprep.mubr.bf16.mxu0 %v1172
      %2089 = vmatmul.mubr.bf16.gmra.mrb[0].mxu0 %v1171
      %v2090 = vpop.f32.mrb[0].mxu0
      %v2091 = vadd.f32 %v1930, %v2090
      %v2092 = vpop.f32.mrb[0].mxu0
      %v2093 = vpop.f32.mrb[0].mxu0
      %v2094 = vadd.f32 %v1933, %v2093
      %v2095 = vpop.f32.mrb[0].mxu0
      %2096 = vmatprep.mubr.bf16.mxu0 %v1181
      %2097 = vmatmul.mubr.bf16.gmra.mrb[0].mxu0 %v1180
      %v2098 = vpop.f32.mrb[0].mxu0
      %v2099 = vadd.f32 %v1938, %v2098
      %v2100 = vpop.f32.mrb[0].mxu0
      %v2101 = vpop.f32.mrb[0].mxu0
      %v2102 = vadd.f32 %v1941, %v2101
      %v2103 = vpop.f32.mrb[0].mxu0
      %2104 = vmatprep.mubr.bf16.mxu0 %v1190
      %2105 = vmatmul.mubr.bf16.gmra.mrb[0].mxu0 %v1189
      %v2106 = vpop.f32.mrb[0].mxu0
      %v2107 = vadd.f32 %v1946, %v2106
      %v2108 = vpop.f32.mrb[0].mxu0
      %v2109 = vpop.f32.mrb[0].mxu0
      %v2110 = vadd.f32 %v1949, %v2109
      %v2111 = vpop.f32.mrb[0].mxu0
      %2112 = vmatprep.mubr.bf16.mxu0 %v1199
      %2113 = vmatmul.mubr.bf16.gmra.mrb[0].mxu0 %v1198
      %v2114 = vpop.f32.mrb[0].mxu0
      %v2115 = vadd.f32 %v1954, %v2114
      %v2116 = vpop.f32.mrb[0].mxu0
      %v2117 = vpop.f32.mrb[0].mxu0
      %v2118 = vadd.f32 %v1957, %v2117
      %v2119 = vpop.f32.mrb[0].mxu0
      %2120 = vmatprep.mubr.bf16.mxu0 %v1208
      %2121 = vmatmul.mubr.bf16.gmra.mrb[0].mxu0 %v1207
      %v2122 = vpop.f32.mrb[0].mxu0
      %v2123 = vadd.f32 %v1962, %v2122
      %v2124 = vpop.f32.mrb[0].mxu0
      %v2125 = vpop.f32.mrb[0].mxu0
      %v2126 = vadd.f32 %v1965, %v2125
      %v2127 = vpop.f32.mrb[0].mxu0
      %2128 = vmatprep.mubr.bf16.mxu0 %v1217
      %2129 = vmatmul.mubr.bf16.gmra.mrb[0].mxu0 %v1216
      %v2130 = vpop.f32.mrb[0].mxu0
      %v2131 = vadd.f32 %v1970, %v2130
      %v2132 = vpop.f32.mrb[0].mxu0
      %v2133 = vpop.f32.mrb[0].mxu0
      %v2134 = vadd.f32 %v1973, %v2133
      %v2135 = vpop.f32.mrb[0].mxu0
      %2136 = vmatprep.mubr.bf16.mxu0 %v1226
      %2137 = vmatmul.mubr.bf16.gmra.mrb[0].mxu0 %v1225
      %v2138 = vpop.f32.mrb[0].mxu0
      %v2139 = vadd.f32 %v1978, %v2138
      %v2140 = vpop.f32.mrb[0].mxu0
      %v2141 = vpop.f32.mrb[0].mxu0
      %v2142 = vadd.f32 %v1981, %v2141
      %v2143 = vpop.f32.mrb[0].mxu0
      %2144 = vmatprep.mubr.bf16.mxu0 %v1235
      %2145 = vmatmul.mubr.bf16.gmra.mrb[0].mxu0 %v1234
      %v2146 = vpop.f32.mrb[0].mxu0
      %v2147 = vadd.f32 %v1986, %v2146
      %v2148 = vpop.f32.mrb[0].mxu0
      %v2149 = vpop.f32.mrb[0].mxu0
      %v2150 = vadd.f32 %v1989, %v2149
      %v2151 = vpop.f32.mrb[0].mxu0
      %2152 = vmatprep.mubr.bf16.mxu0 %v1244
      %2153 = vmatmul.mubr.bf16.gmra.mrb[0].mxu0 %v1243
      %v2154 = vpop.f32.mrb[0].mxu0
      %v2155 = vadd.f32 %v1994, %v2154
      %v2156 = vpop.f32.mrb[0].mxu0
      %v2157 = vpop.f32.mrb[0].mxu0
      %v2158 = vadd.f32 %v1997, %v2157
      %v2159 = vpop.f32.mrb[0].mxu0
      %2160 = vmatprep.mubr.bf16.mxu0 %v1253
      %2161 = vmatmul.mubr.bf16.gmra.mrb[0].mxu0 %v1252
      %v2162 = vpop.f32.mrb[0].mxu0
      %v2163 = vadd.f32 %v2002, %v2162
      %v2164 = vpop.f32.mrb[0].mxu0
      %v2165 = vpop.f32.mrb[0].mxu0
      %v2166 = vadd.f32 %v2005, %v2165
      %v2167 = vpop.f32.mrb[0].mxu0
      %2168 = vmatprep.mubr.bf16.mxu0 %v1262
      %2169 = vmatmul.mubr.bf16.gmra.mrb[0].mxu0 %v1261
      %v2170 = vpop.f32.mrb[0].mxu0
      %v2171 = vadd.f32 %v2010, %v2170
      %v2172 = vpop.f32.mrb[0].mxu0
      %v2173 = vpop.f32.mrb[0].mxu0
      %v2174 = vadd.f32 %v2013, %v2173
      %v2175 = vpop.f32.mrb[0].mxu0
      %2176 = vmatprep.mubr.bf16.mxu0 %v1271
      %2177 = vmatmul.mubr.bf16.gmra.mrb[0].mxu0 %v1270
      %v2178 = vpop.f32.mrb[0].mxu0
      %v2179 = vadd.f32 %v2018, %v2178
      %v2180 = vpop.f32.mrb[0].mxu0
      %v2181 = vpop.f32.mrb[0].mxu0
      %v2182 = vadd.f32 %v2021, %v2181
      %v2183 = vpop.f32.mrb[0].mxu0
      %2184 = vmatprep.mubr.bf16.mxu0 %v1280
      %2185 = vmatmul.mubr.bf16.gmra.mrb[0].mxu0 %v1279
      %v2186 = vpop.f32.mrb[0].mxu0
      %v2187 = vadd.f32 %v2026, %v2186
      %v2188 = vpop.f32.mrb[0].mxu0
      %v2189 = vpop.f32.mrb[0].mxu0
      %v2190 = vadd.f32 %v2029, %v2189
      %v2191 = vpop.f32.mrb[0].mxu0
      %2192 = vmatprep.mubr.bf16.mxu0 %v1289
      %2193 = vmatmul.mubr.bf16.gmra.mrb[0].mxu0 %v1288
      %v2194 = vpop.f32.mrb[0].mxu0
      %v2195 = vadd.f32 %v2034, %v2194
      %v2196 = vpop.f32.mrb[0].mxu0
      %v2197 = vpop.f32.mrb[0].mxu0
      %v2198 = vadd.f32 %v2037, %v2197
      %v2199 = vpop.f32.mrb[0].mxu0
      %2200 = vmatprep.mubr.bf16.mxu0 %v1298
      %2201 = vmatmul.mubr.bf16.gmra.mrb[0].mxu0 %v1297
      %v2202 = vpop.f32.mrb[0].mxu0
      %v2203 = vadd.f32 %v2042, %v2202
      %v2204 = vpop.f32.mrb[0].mxu0
      %v2205 = vpop.f32.mrb[0].mxu0
      %v2206 = vadd.f32 %v2045, %v2205
      %v2207 = vpop.f32.mrb[0].mxu0
      %2208 = vdwg.mxu0
      %2209 = vmatprep.subr.bf16.mxu0 0
      %2210 = vmatpush1.bf16.msra.mxu0 %v1775
      %2211 = vmatprep.subr.bf16.mxu0 0
      %2212 = vmatpush1.bf16.msra.mxu0 %v1776
      %2213 = vmatprep.subr.bf16.mxu0 0
      %2214 = vmatpush1.bf16.msra.mxu0 %v1777
      %2215 = vmatprep.subr.bf16.mxu0 0
      %2216 = vmatpush1.bf16.msra.mxu0 %v1778
      %2217 = vmatprep.subr.bf16.mxu0 0
      %2218 = vmatpush1.bf16.msra.mxu0 %v1779
      %2219 = vmatprep.subr.bf16.mxu0 0
      %2220 = vmatpush1.bf16.msra.mxu0 %v1780
      %2221 = vmatprep.subr.bf16.mxu0 0
      %2222 = vmatpush1.bf16.msra.mxu0 %v1781
      %2223 = vmatprep.subr.bf16.mxu0 0
      %2224 = vmatpush1.bf16.msra.mxu0 %v1782
      %2225 = vmatprep.subr.bf16.mxu0 0
      %2226 = vmatpush1.bf16.msra.mxu0 %v1783
      %2227 = vmatprep.subr.bf16.mxu0 0
      %2228 = vmatpush1.bf16.msra.mxu0 %v1784
      %2229 = vmatprep.subr.bf16.mxu0 0
      %2230 = vmatpush1.bf16.msra.mxu0 %v1785
      %2231 = vmatprep.subr.bf16.mxu0 0
      %2232 = vmatpush1.bf16.msra.mxu0 %v1786
      %2233 = vmatprep.subr.bf16.mxu0 0
      %2234 = vmatpush1.bf16.msra.mxu0 %v1787
      %2235 = vmatprep.subr.bf16.mxu0 0
      %2236 = vmatpush1.bf16.msra.mxu0 %v1788
      %2237 = vmatprep.subr.bf16.mxu0 0
      %2238 = vmatpush1.bf16.msra.mxu0 %v1789
      %2239 = vmatprep.subr.bf16.mxu0 0
      %2240 = vmatpush1.bf16.msra.mxu0 %v1790
      %2241 = vmatprep.mubr.bf16.mxu0 %v1165
      %2242 = vmatmul.mubr.bf16.gmra.mrb[0].mxu0 %v1164
      %v2243 = vpop.f32.mrb[0].mxu0
      %v2244 = vadd.f32 %v2083, %v2243
      %v2245 = vpop.f32.mrb[0].mxu0
      %v2246 = vpop.f32.mrb[0].mxu0
      %v2247 = vadd.f32 %v2086, %v2246
      %v2248 = vpop.f32.mrb[0].mxu0
      %2249 = vmatprep.mubr.bf16.mxu0 %v1174
      %2250 = vmatmul.mubr.bf16.gmra.mrb[0].mxu0 %v1173
      %v2251 = vpop.f32.mrb[0].mxu0
      %v2252 = vadd.f32 %v2091, %v2251
      %v2253 = vpop.f32.mrb[0].mxu0
      %v2254 = vpop.f32.mrb[0].mxu0
      %v2255 = vadd.f32 %v2094, %v2254
      %v2256 = vpop.f32.mrb[0].mxu0
      %2257 = vmatprep.mubr.bf16.mxu0 %v1183
      %2258 = vmatmul.mubr.bf16.gmra.mrb[0].mxu0 %v1182
      %v2259 = vpop.f32.mrb[0].mxu0
      %v2260 = vadd.f32 %v2099, %v2259
      %v2261 = vpop.f32.mrb[0].mxu0
      %v2262 = vpop.f32.mrb[0].mxu0
      %v2263 = vadd.f32 %v2102, %v2262
      %v2264 = vpop.f32.mrb[0].mxu0
      %2265 = vmatprep.mubr.bf16.mxu0 %v1192
      %2266 = vmatmul.mubr.bf16.gmra.mrb[0].mxu0 %v1191
      %v2267 = vpop.f32.mrb[0].mxu0
      %v2268 = vadd.f32 %v2107, %v2267
      %v2269 = vpop.f32.mrb[0].mxu0
      %v2270 = vpop.f32.mrb[0].mxu0
      %v2271 = vadd.f32 %v2110, %v2270
      %v2272 = vpop.f32.mrb[0].mxu0
      %2273 = vmatprep.mubr.bf16.mxu0 %v1201
      %2274 = vmatmul.mubr.bf16.gmra.mrb[0].mxu0 %v1200
      %v2275 = vpop.f32.mrb[0].mxu0
      %v2276 = vadd.f32 %v2115, %v2275
      %v2277 = vpop.f32.mrb[0].mxu0
      %v2278 = vpop.f32.mrb[0].mxu0
      %v2279 = vadd.f32 %v2118, %v2278
      %v2280 = vpop.f32.mrb[0].mxu0
      %2281 = vmatprep.mubr.bf16.mxu0 %v1210
      %2282 = vmatmul.mubr.bf16.gmra.mrb[0].mxu0 %v1209
      %v2283 = vpop.f32.mrb[0].mxu0
      %v2284 = vadd.f32 %v2123, %v2283
      %v2285 = vpop.f32.mrb[0].mxu0
      %v2286 = vpop.f32.mrb[0].mxu0
      %v2287 = vadd.f32 %v2126, %v2286
      %v2288 = vpop.f32.mrb[0].mxu0
      %2289 = vmatprep.mubr.bf16.mxu0 %v1219
      %2290 = vmatmul.mubr.bf16.gmra.mrb[0].mxu0 %v1218
      %v2291 = vpop.f32.mrb[0].mxu0
      %v2292 = vadd.f32 %v2131, %v2291
      %v2293 = vpop.f32.mrb[0].mxu0
      %v2294 = vpop.f32.mrb[0].mxu0
      %v2295 = vadd.f32 %v2134, %v2294
      %v2296 = vpop.f32.mrb[0].mxu0
      %2297 = vmatprep.mubr.bf16.mxu0 %v1228
      %2298 = vmatmul.mubr.bf16.gmra.mrb[0].mxu0 %v1227
      %v2299 = vpop.f32.mrb[0].mxu0
      %v2300 = vadd.f32 %v2139, %v2299
      %v2301 = vpop.f32.mrb[0].mxu0
      %v2302 = vpop.f32.mrb[0].mxu0
      %v2303 = vadd.f32 %v2142, %v2302
      %v2304 = vpop.f32.mrb[0].mxu0
      %2305 = vmatprep.mubr.bf16.mxu0 %v1237
      %2306 = vmatmul.mubr.bf16.gmra.mrb[0].mxu0 %v1236
      %v2307 = vpop.f32.mrb[0].mxu0
      %v2308 = vadd.f32 %v2147, %v2307
      %v2309 = vpop.f32.mrb[0].mxu0
      %v2310 = vpop.f32.mrb[0].mxu0
      %v2311 = vadd.f32 %v2150, %v2310
      %v2312 = vpop.f32.mrb[0].mxu0
      %2313 = vmatprep.mubr.bf16.mxu0 %v1246
      %2314 = vmatmul.mubr.bf16.gmra.mrb[0].mxu0 %v1245
      %v2315 = vpop.f32.mrb[0].mxu0
      %v2316 = vadd.f32 %v2155, %v2315
      %v2317 = vpop.f32.mrb[0].mxu0
      %v2318 = vpop.f32.mrb[0].mxu0
      %v2319 = vadd.f32 %v2158, %v2318
      %v2320 = vpop.f32.mrb[0].mxu0
      %2321 = vmatprep.mubr.bf16.mxu0 %v1255
      %2322 = vmatmul.mubr.bf16.gmra.mrb[0].mxu0 %v1254
      %v2323 = vpop.f32.mrb[0].mxu0
      %v2324 = vadd.f32 %v2163, %v2323
      %v2325 = vpop.f32.mrb[0].mxu0
      %v2326 = vpop.f32.mrb[0].mxu0
      %v2327 = vadd.f32 %v2166, %v2326
      %v2328 = vpop.f32.mrb[0].mxu0
      %2329 = vmatprep.mubr.bf16.mxu0 %v1264
      %2330 = vmatmul.mubr.bf16.gmra.mrb[0].mxu0 %v1263
      %v2331 = vpop.f32.mrb[0].mxu0
      %v2332 = vadd.f32 %v2171, %v2331
      %v2333 = vpop.f32.mrb[0].mxu0
      %v2334 = vpop.f32.mrb[0].mxu0
      %v2335 = vadd.f32 %v2174, %v2334
      %v2336 = vpop.f32.mrb[0].mxu0
      %2337 = vmatprep.mubr.bf16.mxu0 %v1273
      %2338 = vmatmul.mubr.bf16.gmra.mrb[0].mxu0 %v1272
      %v2339 = vpop.f32.mrb[0].mxu0
      %v2340 = vadd.f32 %v2179, %v2339
      %v2341 = vpop.f32.mrb[0].mxu0
      %v2342 = vpop.f32.mrb[0].mxu0
      %v2343 = vadd.f32 %v2182, %v2342
      %v2344 = vpop.f32.mrb[0].mxu0
      %2345 = vmatprep.mubr.bf16.mxu0 %v1282
      %2346 = vmatmul.mubr.bf16.gmra.mrb[0].mxu0 %v1281
      %v2347 = vpop.f32.mrb[0].mxu0
      %v2348 = vadd.f32 %v2187, %v2347
      %v2349 = vpop.f32.mrb[0].mxu0
      %v2350 = vpop.f32.mrb[0].mxu0
      %v2351 = vadd.f32 %v2190, %v2350
      %v2352 = vpop.f32.mrb[0].mxu0
      %2353 = vmatprep.mubr.bf16.mxu0 %v1291
      %2354 = vmatmul.mubr.bf16.gmra.mrb[0].mxu0 %v1290
      %v2355 = vpop.f32.mrb[0].mxu0
      %v2356 = vadd.f32 %v2195, %v2355
      %v2357 = vpop.f32.mrb[0].mxu0
      %v2358 = vpop.f32.mrb[0].mxu0
      %v2359 = vadd.f32 %v2198, %v2358
      %v2360 = vpop.f32.mrb[0].mxu0
      %2361 = vmatprep.mubr.bf16.mxu0 %v1300
      %2362 = vmatmul.mubr.bf16.gmra.mrb[0].mxu0 %v1299
      %v2363 = vpop.f32.mrb[0].mxu0
      %v2364 = vadd.f32 %v2203, %v2363
      %v2365 = vpop.f32.mrb[0].mxu0
      %v2366 = vpop.f32.mrb[0].mxu0
      %v2367 = vadd.f32 %v2206, %v2366
      %v2368 = vpop.f32.mrb[0].mxu0
      %2369 = vdwg.mxu0
      %2370 = vmatprep.subr.bf16.mxu0 0
      %2371 = vmatpush1.bf16.msra.mxu0 %v1791
      %2372 = vmatprep.subr.bf16.mxu0 0
      %2373 = vmatpush1.bf16.msra.mxu0 %v1792
      %2374 = vmatprep.subr.bf16.mxu0 0
      %2375 = vmatpush1.bf16.msra.mxu0 %v1793
      %2376 = vmatprep.subr.bf16.mxu0 0
      %2377 = vmatpush1.bf16.msra.mxu0 %v1794
      %2378 = vmatprep.subr.bf16.mxu0 0
      %2379 = vmatpush1.bf16.msra.mxu0 %v1795
      %2380 = vmatprep.subr.bf16.mxu0 0
      %2381 = vmatpush1.bf16.msra.mxu0 %v1796
      %2382 = vmatprep.subr.bf16.mxu0 0
      %2383 = vmatpush1.bf16.msra.mxu0 %v1797
      %2384 = vmatprep.subr.bf16.mxu0 0
      %2385 = vmatpush1.bf16.msra.mxu0 %v1798
      %2386 = vmatprep.subr.bf16.mxu0 0
      %2387 = vmatpush1.bf16.msra.mxu0 %v1799
      %2388 = vmatprep.subr.bf16.mxu0 0
      %2389 = vmatpush1.bf16.msra.mxu0 %v1800
      %2390 = vmatprep.subr.bf16.mxu0 0
      %2391 = vmatpush1.bf16.msra.mxu0 %v1801
      %2392 = vmatprep.subr.bf16.mxu0 0
      %2393 = vmatpush1.bf16.msra.mxu0 %v1802
      %2394 = vmatprep.subr.bf16.mxu0 0
      %2395 = vmatpush1.bf16.msra.mxu0 %v1803
      %2396 = vmatprep.subr.bf16.mxu0 0
      %2397 = vmatpush1.bf16.msra.mxu0 %v1804
      %2398 = vmatprep.subr.bf16.mxu0 0
      %2399 = vmatpush1.bf16.msra.mxu0 %v1805
      %2400 = vmatprep.subr.bf16.mxu0 0
      %2401 = vmatpush1.bf16.msra.mxu0 %v1806
      %2402 = vmatprep.mubr.bf16.mxu0 %v1167
      %2403 = vmatmul.mubr.bf16.gmra.mrb[0].mxu0 %v1166
      %v2404 = vpop.f32.mrb[0].mxu0
      %v2405 = vadd.f32 %v2244, %v2404
      %v2406 = vpop.f32.mrb[0].mxu0
      %v2407 = vpop.f32.mrb[0].mxu0
      %v2408 = vadd.f32 %v2247, %v2407
      %v2409 = vpop.f32.mrb[0].mxu0
      %2410 = vmatprep.mubr.bf16.mxu0 %v1176
      %2411 = vmatmul.mubr.bf16.gmra.mrb[0].mxu0 %v1175
      %v2412 = vpop.f32.mrb[0].mxu0
      %v2413 = vadd.f32 %v2252, %v2412
      %v2414 = vpop.f32.mrb[0].mxu0
      %v2415 = vpop.f32.mrb[0].mxu0
      %v2416 = vadd.f32 %v2255, %v2415
      %v2417 = vpop.f32.mrb[0].mxu0
      %2418 = vmatprep.mubr.bf16.mxu0 %v1185
      %2419 = vmatmul.mubr.bf16.gmra.mrb[0].mxu0 %v1184
      %v2420 = vpop.f32.mrb[0].mxu0
      %v2421 = vadd.f32 %v2260, %v2420
      %v2422 = vpop.f32.mrb[0].mxu0
      %v2423 = vpop.f32.mrb[0].mxu0
      %v2424 = vadd.f32 %v2263, %v2423
      %v2425 = vpop.f32.mrb[0].mxu0
      %2426 = vmatprep.mubr.bf16.mxu0 %v1194
      %2427 = vmatmul.mubr.bf16.gmra.mrb[0].mxu0 %v1193
      %v2428 = vpop.f32.mrb[0].mxu0
      %v2429 = vadd.f32 %v2268, %v2428
      %v2430 = vpop.f32.mrb[0].mxu0
      %v2431 = vpop.f32.mrb[0].mxu0
      %v2432 = vadd.f32 %v2271, %v2431
      %v2433 = vpop.f32.mrb[0].mxu0
      %2434 = vmatprep.mubr.bf16.mxu0 %v1203
      %2435 = vmatmul.mubr.bf16.gmra.mrb[0].mxu0 %v1202
      %v2436 = vpop.f32.mrb[0].mxu0
      %v2437 = vadd.f32 %v2276, %v2436
      %v2438 = vpop.f32.mrb[0].mxu0
      %v2439 = vpop.f32.mrb[0].mxu0
      %v2440 = vadd.f32 %v2279, %v2439
      %v2441 = vpop.f32.mrb[0].mxu0
      %2442 = vmatprep.mubr.bf16.mxu0 %v1212
      %2443 = vmatmul.mubr.bf16.gmra.mrb[0].mxu0 %v1211
      %v2444 = vpop.f32.mrb[0].mxu0
      %v2445 = vadd.f32 %v2284, %v2444
      %v2446 = vpop.f32.mrb[0].mxu0
      %v2447 = vpop.f32.mrb[0].mxu0
      %v2448 = vadd.f32 %v2287, %v2447
      %v2449 = vpop.f32.mrb[0].mxu0
      %2450 = vmatprep.mubr.bf16.mxu0 %v1221
      %2451 = vmatmul.mubr.bf16.gmra.mrb[0].mxu0 %v1220
      %v2452 = vpop.f32.mrb[0].mxu0
      %v2453 = vadd.f32 %v2292, %v2452
      %v2454 = vpop.f32.mrb[0].mxu0
      %v2455 = vpop.f32.mrb[0].mxu0
      %v2456 = vadd.f32 %v2295, %v2455
      %v2457 = vpop.f32.mrb[0].mxu0
      %2458 = vmatprep.mubr.bf16.mxu0 %v1230
      %2459 = vmatmul.mubr.bf16.gmra.mrb[0].mxu0 %v1229
      %v2460 = vpop.f32.mrb[0].mxu0
      %v2461 = vadd.f32 %v2300, %v2460
      %v2462 = vpop.f32.mrb[0].mxu0
      %v2463 = vpop.f32.mrb[0].mxu0
      %v2464 = vadd.f32 %v2303, %v2463
      %v2465 = vpop.f32.mrb[0].mxu0
      %2466 = vmatprep.mubr.bf16.mxu0 %v1239
      %2467 = vmatmul.mubr.bf16.gmra.mrb[0].mxu0 %v1238
      %v2468 = vpop.f32.mrb[0].mxu0
      %v2469 = vadd.f32 %v2308, %v2468
      %v2470 = vpop.f32.mrb[0].mxu0
      %v2471 = vpop.f32.mrb[0].mxu0
      %v2472 = vadd.f32 %v2311, %v2471
      %v2473 = vpop.f32.mrb[0].mxu0
      %2474 = vmatprep.mubr.bf16.mxu0 %v1248
      %2475 = vmatmul.mubr.bf16.gmra.mrb[0].mxu0 %v1247
      %v2476 = vpop.f32.mrb[0].mxu0
      %v2477 = vadd.f32 %v2316, %v2476
      %v2478 = vpop.f32.mrb[0].mxu0
      %v2479 = vpop.f32.mrb[0].mxu0
      %v2480 = vadd.f32 %v2319, %v2479
      %v2481 = vpop.f32.mrb[0].mxu0
      %2482 = vmatprep.mubr.bf16.mxu0 %v1257
      %2483 = vmatmul.mubr.bf16.gmra.mrb[0].mxu0 %v1256
      %v2484 = vpop.f32.mrb[0].mxu0
      %v2485 = vadd.f32 %v2324, %v2484
      %v2486 = vpop.f32.mrb[0].mxu0
      %v2487 = vpop.f32.mrb[0].mxu0
      %v2488 = vadd.f32 %v2327, %v2487
      %v2489 = vpop.f32.mrb[0].mxu0
      %2490 = vmatprep.mubr.bf16.mxu0 %v1266
      %2491 = vmatmul.mubr.bf16.gmra.mrb[0].mxu0 %v1265
      %v2492 = vpop.f32.mrb[0].mxu0
      %v2493 = vadd.f32 %v2332, %v2492
      %v2494 = vpop.f32.mrb[0].mxu0
      %v2495 = vpop.f32.mrb[0].mxu0
      %v2496 = vadd.f32 %v2335, %v2495
      %v2497 = vpop.f32.mrb[0].mxu0
      %2498 = vmatprep.mubr.bf16.mxu0 %v1275
      %2499 = vmatmul.mubr.bf16.gmra.mrb[0].mxu0 %v1274
      %v2500 = vpop.f32.mrb[0].mxu0
      %v2501 = vadd.f32 %v2340, %v2500
      %v2502 = vpop.f32.mrb[0].mxu0
      %v2503 = vpop.f32.mrb[0].mxu0
      %v2504 = vadd.f32 %v2343, %v2503
      %v2505 = vpop.f32.mrb[0].mxu0
      %2506 = vmatprep.mubr.bf16.mxu0 %v1284
      %2507 = vmatmul.mubr.bf16.gmra.mrb[0].mxu0 %v1283
      %v2508 = vpop.f32.mrb[0].mxu0
      %v2509 = vadd.f32 %v2348, %v2508
      %v2510 = vpop.f32.mrb[0].mxu0
      %v2511 = vpop.f32.mrb[0].mxu0
      %v2512 = vadd.f32 %v2351, %v2511
      %v2513 = vpop.f32.mrb[0].mxu0
      %2514 = vmatprep.mubr.bf16.mxu0 %v1293
      %2515 = vmatmul.mubr.bf16.gmra.mrb[0].mxu0 %v1292
      %v2516 = vpop.f32.mrb[0].mxu0
      %v2517 = vadd.f32 %v2356, %v2516
      %v2518 = vpop.f32.mrb[0].mxu0
      %v2519 = vpop.f32.mrb[0].mxu0
      %v2520 = vadd.f32 %v2359, %v2519
      %v2521 = vpop.f32.mrb[0].mxu0
      %2522 = vmatprep.mubr.bf16.mxu0 %v1302
      %2523 = vmatmul.mubr.bf16.gmra.mrb[0].mxu0 %v1301
      %v2524 = vpop.f32.mrb[0].mxu0
      %v2525 = vadd.f32 %v2364, %v2524
      %v2526 = vpop.f32.mrb[0].mxu0
      %v2527 = vpop.f32.mrb[0].mxu0
      %v2528 = vadd.f32 %v2367, %v2527
      %v2529 = vpop.f32.mrb[0].mxu0
      %2530 = vdwg.mxu0
      %2531 = vmatprep.subr.bf16.mxu0 0
      %2532 = vmatpush1.bf16.msra.mxu0 %v1807
      %2533 = vmatprep.subr.bf16.mxu0 0
      %2534 = vmatpush1.bf16.msra.mxu0 %v1808
      %2535 = vmatprep.subr.bf16.mxu0 0
      %2536 = vmatpush1.bf16.msra.mxu0 %v1809
      %2537 = vmatprep.subr.bf16.mxu0 0
      %2538 = vmatpush1.bf16.msra.mxu0 %v1810
      %2539 = vmatprep.subr.bf16.mxu0 0
      %2540 = vmatpush1.bf16.msra.mxu0 %v1811
      %2541 = vmatprep.subr.bf16.mxu0 0
      %2542 = vmatpush1.bf16.msra.mxu0 %v1812
      %2543 = vmatprep.subr.bf16.mxu0 0
      %2544 = vmatpush1.bf16.msra.mxu0 %v1813
      %2545 = vmatprep.subr.bf16.mxu0 0
      %2546 = vmatpush1.bf16.msra.mxu0 %v1814
      %2547 = vmatprep.subr.bf16.mxu0 0
      %2548 = vmatpush1.bf16.msra.mxu0 0
      %2549 = vmatprep.subr.bf16.mxu0 0
      %2550 = vmatpush1.bf16.msra.mxu0 0
      %2551 = vmatprep.subr.bf16.mxu0 0
      %2552 = vmatpush1.bf16.msra.mxu0 0
      %2553 = vmatprep.subr.bf16.mxu0 0
      %2554 = vmatpush1.bf16.msra.mxu0 0
      %2555 = vmatprep.subr.bf16.mxu0 0
      %2556 = vmatpush1.bf16.msra.mxu0 0
      %2557 = vmatprep.subr.bf16.mxu0 0
      %2558 = vmatpush1.bf16.msra.mxu0 0
      %2559 = vmatprep.subr.bf16.mxu0 0
      %2560 = vmatpush1.bf16.msra.mxu0 0
      %2561 = vmatprep.subr.bf16.mxu0 0
      %2562 = vmatpush1.bf16.msra.mxu0 0
      %2563 = vmatprep.mubr.bf16.mxu0 0
      %2564 = vmatmul.mubr.bf16.gmra.mrb[0].mxu0 %v1168
      %v2565 = vpop.f32.mrb[0].mxu0
      %v2566 = vadd.f32 %v2405, %v2565
      %v2567 = vpop.f32.mrb[0].mxu0
      %v2568 = vpop.f32.mrb[0].mxu0
      %v2569 = vadd.f32 %v2408, %v2568
      %v2570 = vpop.f32.mrb[0].mxu0
      %2571 = vmatprep.mubr.bf16.mxu0 0
      %2572 = vmatmul.mubr.bf16.gmra.mrb[0].mxu0 %v1177
      %v2573 = vpop.f32.mrb[0].mxu0
      %v2574 = vadd.f32 %v2413, %v2573
      %v2575 = vpop.f32.mrb[0].mxu0
      %v2576 = vpop.f32.mrb[0].mxu0
      %v2577 = vadd.f32 %v2416, %v2576
      %v2578 = vpop.f32.mrb[0].mxu0
      %2579 = vmatprep.mubr.bf16.mxu0 0
      %2580 = vmatmul.mubr.bf16.gmra.mrb[0].mxu0 %v1186
      %v2581 = vpop.f32.mrb[0].mxu0
      %v2582 = vadd.f32 %v2421, %v2581
      %v2583 = vpop.f32.mrb[0].mxu0
      %v2584 = vpop.f32.mrb[0].mxu0
      %v2585 = vadd.f32 %v2424, %v2584
      %v2586 = vpop.f32.mrb[0].mxu0
      %2587 = vmatprep.mubr.bf16.mxu0 0
      %2588 = vmatmul.mubr.bf16.gmra.mrb[0].mxu0 %v1195
      %v2589 = vpop.f32.mrb[0].mxu0
      %v2590 = vadd.f32 %v2429, %v2589
      %v2591 = vpop.f32.mrb[0].mxu0
      %v2592 = vpop.f32.mrb[0].mxu0
      %v2593 = vadd.f32 %v2432, %v2592
      %v2594 = vpop.f32.mrb[0].mxu0
      %2595 = vmatprep.mubr.bf16.mxu0 0
      %2596 = vmatmul.mubr.bf16.gmra.mrb[0].mxu0 %v1204
      %v2597 = vpop.f32.mrb[0].mxu0
      %v2598 = vadd.f32 %v2437, %v2597
      %v2599 = vpop.f32.mrb[0].mxu0
      %v2600 = vpop.f32.mrb[0].mxu0
      %v2601 = vadd.f32 %v2440, %v2600
      %v2602 = vpop.f32.mrb[0].mxu0
      %2603 = vmatprep.mubr.bf16.mxu0 0
      %2604 = vmatmul.mubr.bf16.gmra.mrb[0].mxu0 %v1213
      %v2605 = vpop.f32.mrb[0].mxu0
      %v2606 = vadd.f32 %v2445, %v2605
      %v2607 = vpop.f32.mrb[0].mxu0
      %v2608 = vpop.f32.mrb[0].mxu0
      %v2609 = vadd.f32 %v2448, %v2608
      %v2610 = vpop.f32.mrb[0].mxu0
      %2611 = vmatprep.mubr.bf16.mxu0 0
      %2612 = vmatmul.mubr.bf16.gmra.mrb[0].mxu0 %v1222
      %v2613 = vpop.f32.mrb[0].mxu0
      %v2614 = vadd.f32 %v2453, %v2613
      %v2615 = vpop.f32.mrb[0].mxu0
      %v2616 = vpop.f32.mrb[0].mxu0
      %v2617 = vadd.f32 %v2456, %v2616
      %v2618 = vpop.f32.mrb[0].mxu0
      %2619 = vmatprep.mubr.bf16.mxu0 0
      %2620 = vmatmul.mubr.bf16.gmra.mrb[0].mxu0 %v1231
      %v2621 = vpop.f32.mrb[0].mxu0
      %v2622 = vadd.f32 %v2461, %v2621
      %v2623 = vpop.f32.mrb[0].mxu0
      %v2624 = vpop.f32.mrb[0].mxu0
      %v2625 = vadd.f32 %v2464, %v2624
      %v2626 = vpop.f32.mrb[0].mxu0
      %2627 = vmatprep.mubr.bf16.mxu0 0
      %2628 = vmatmul.mubr.bf16.gmra.mrb[0].mxu0 %v1240
      %v2629 = vpop.f32.mrb[0].mxu0
      %v2630 = vadd.f32 %v2469, %v2629
      %v2631 = vpop.f32.mrb[0].mxu0
      %v2632 = vpop.f32.mrb[0].mxu0
      %v2633 = vadd.f32 %v2472, %v2632
      %v2634 = vpop.f32.mrb[0].mxu0
      %2635 = vmatprep.mubr.bf16.mxu0 0
      %2636 = vmatmul.mubr.bf16.gmra.mrb[0].mxu0 %v1249
      %v2637 = vpop.f32.mrb[0].mxu0
      %v2638 = vadd.f32 %v2477, %v2637
      %v2639 = vpop.f32.mrb[0].mxu0
      %v2640 = vpop.f32.mrb[0].mxu0
      %v2641 = vadd.f32 %v2480, %v2640
      %v2642 = vpop.f32.mrb[0].mxu0
      %2643 = vmatprep.mubr.bf16.mxu0 0
      %2644 = vmatmul.mubr.bf16.gmra.mrb[0].mxu0 %v1258
      %v2645 = vpop.f32.mrb[0].mxu0
      %v2646 = vadd.f32 %v2485, %v2645
      %v2647 = vpop.f32.mrb[0].mxu0
      %v2648 = vpop.f32.mrb[0].mxu0
      %v2649 = vadd.f32 %v2488, %v2648
      %v2650 = vpop.f32.mrb[0].mxu0
      %2651 = vmatprep.mubr.bf16.mxu0 0
      %2652 = vmatmul.mubr.bf16.gmra.mrb[0].mxu0 %v1267
      %v2653 = vpop.f32.mrb[0].mxu0
      %v2654 = vadd.f32 %v2493, %v2653
      %v2655 = vpop.f32.mrb[0].mxu0
      %v2656 = vpop.f32.mrb[0].mxu0
      %v2657 = vadd.f32 %v2496, %v2656
      %v2658 = vpop.f32.mrb[0].mxu0
      %2659 = vmatprep.mubr.bf16.mxu0 0
      %2660 = vmatmul.mubr.bf16.gmra.mrb[0].mxu0 %v1276
      %v2661 = vpop.f32.mrb[0].mxu0
      %v2662 = vadd.f32 %v2501, %v2661
      %v2663 = vpop.f32.mrb[0].mxu0
      %v2664 = vpop.f32.mrb[0].mxu0
      %v2665 = vadd.f32 %v2504, %v2664
      %v2666 = vpop.f32.mrb[0].mxu0
      %2667 = vmatprep.mubr.bf16.mxu0 0
      %2668 = vmatmul.mubr.bf16.gmra.mrb[0].mxu0 %v1285
      %v2669 = vpop.f32.mrb[0].mxu0
      %v2670 = vadd.f32 %v2509, %v2669
      %v2671 = vpop.f32.mrb[0].mxu0
      %v2672 = vpop.f32.mrb[0].mxu0
      %v2673 = vadd.f32 %v2512, %v2672
      %v2674 = vpop.f32.mrb[0].mxu0
      %2675 = vmatprep.mubr.bf16.mxu0 0
      %2676 = vmatmul.mubr.bf16.gmra.mrb[0].mxu0 %v1294
      %v2677 = vpop.f32.mrb[0].mxu0
      %v2678 = vadd.f32 %v2517, %v2677
      %v2679 = vpop.f32.mrb[0].mxu0
      %v2680 = vpop.f32.mrb[0].mxu0
      %v2681 = vadd.f32 %v2520, %v2680
      %v2682 = vpop.f32.mrb[0].mxu0
      %2683 = vmatprep.mubr.bf16.mxu0 0
      %2684 = vmatmul.mubr.bf16.gmra.mrb[0].mxu0 %v1303
      %v2685 = vpop.f32.mrb[0].mxu0
      %v2686 = vadd.f32 %v2525, %v2685
      %v2687 = vpop.f32.mrb[0].mxu0
      %v2688 = vpop.f32.mrb[0].mxu0
      %v2689 = vadd.f32 %v2528, %v2688
      %v2690 = vpop.f32.mrb[0].mxu0
      %2691 = vdwg.mxu0
      %2692 = vst [vmem:[%s291] sm:$0xff] %v2566
      %2693 = vst [vmem:[%s291 + $0x8] sm:$0xff] %v2569
      %2694 = vst [vmem:[%s291 + $0x10] sm:$0xff] %v2574
      %2695 = vst [vmem:[%s291 + $0x18] sm:$0xff] %v2577
      %2696 = vst [vmem:[%s291 + $0x20] sm:$0xff] %v2582
      %2697 = vst [vmem:[%s291 + $0x28] sm:$0xff] %v2585
      %2698 = vst [vmem:[%s291 + $0x30] sm:$0xff] %v2590
      %2699 = vst [vmem:[%s291 + $0x38] sm:$0xff] %v2593
      %2700 = vst [vmem:[%s291 + $0x40] sm:$0xff] %v2598
      %2701 = vst [vmem:[%s291 + $0x48] sm:$0xff] %v2601
      %2702 = vst [vmem:[%s291 + $0x50] sm:$0xff] %v2606
      %2703 = vst [vmem:[%s291 + $0x58] sm:$0xff] %v2609
      %2704 = vst [vmem:[%s291 + $0x60] sm:$0xff] %v2614
      %2705 = vst [vmem:[%s291 + $0x68] sm:$0xff] %v2617
      %2706 = vst [vmem:[%s291 + $0x70] sm:$0xff] %v2622
      %2707 = vst [vmem:[%s291 + $0x78] sm:$0xff] %v2625
      %2708 = vst [vmem:[%s291 + $0x80] sm:$0xff] %v2630
      %2709 = vst [vmem:[%s291 + $0x88] sm:$0xff] %v2633
      %2710 = vst [vmem:[%s291 + $0x90] sm:$0xff] %v2638
      %2711 = vst [vmem:[%s291 + $0x98] sm:$0xff] %v2641
      %2712 = vst [vmem:[%s291 + $0xa0] sm:$0xff] %v2646
      %2713 = vst [vmem:[%s291 + $0xa8] sm:$0xff] %v2649
      %2714 = vst [vmem:[%s291 + $0xb0] sm:$0xff] %v2654
      %2715 = vst [vmem:[%s291 + $0xb8] sm:$0xff] %v2657
      %2716 = vst [vmem:[%s291 + $0xc0] sm:$0xff] %v2662
      %2717 = vst [vmem:[%s291 + $0xc8] sm:$0xff] %v2665
      %2718 = vst [vmem:[%s291 + $0xd0] sm:$0xff] %v2670
      %2719 = vst [vmem:[%s291 + $0xd8] sm:$0xff] %v2673
      %2720 = vst [vmem:[%s291 + $0xe0] sm:$0xff] %v2678
      %2721 = vst [vmem:[%s291 + $0xe8] sm:$0xff] %v2681
      %2722 = vst [vmem:[%s291 + $0xf0] sm:$0xff] %v2686
      %2723 = vst [vmem:[%s291 + $0xf8] sm:$0xff] %v2689
      %2724 = vst [vmem:[%s298] sm:$0xff] 0.0
      %v2725 = vadd.f32 %v2566, %v2569
      %v2726 = vadd.f32 %v2725, %v2574
      %v2727 = vadd.f32 %v2726, %v2577
      %v2728 = vadd.f32 %v2727, %v2582
      %v2729 = vadd.f32 %v2728, %v2585
      %v2730 = vadd.f32 %v2729, %v2590
      %v2731 = vadd.f32 %v2730, %v2593
      %v2732 = vadd.f32 %v2731, %v2598
      %v2733 = vadd.f32 %v2732, %v2601
      %v2734 = vadd.f32 %v2733, %v2606
      %v2735 = vadd.f32 %v2734, %v2609
      %v2736 = vadd.f32 %v2735, %v2614
      %v2737 = vadd.f32 %v2736, %v2617
      %v2738 = vadd.f32 %v2737, %v2622
      %v2739 = vadd.f32 %v2738, %v2625
      %v2740 = vadd.f32 %v2739, %v2630
      %v2741 = vadd.f32 %v2740, %v2633
      %v2742 = vadd.f32 %v2741, %v2638
      %v2743 = vadd.f32 %v2742, %v2641
      %v2744 = vadd.f32 %v2743, %v2646
      %v2745 = vadd.f32 %v2744, %v2649
      %v2746 = vadd.f32 %v2745, %v2654
      %v2747 = vadd.f32 %v2746, %v2657
      %v2748 = vadd.f32 %v2747, %v2662
      %v2749 = vadd.f32 %v2748, %v2665
      %v2750 = vadd.f32 %v2749, %v2670
      %v2751 = vadd.f32 %v2750, %v2673
      %v2752 = vadd.f32 %v2751, %v2678
      %v2753 = vadd.f32 %v2752, %v2681
      %v2754 = vadd.f32 %v2753, %v2686
      %v2755 = vadd.f32 %v2754, %v2689
      %v2756 = vrot.slane %v2755, 4
      %v2757 = vadd.f32 %v2755, %v2756
      %v2758 = vrot.slane %v2757, 2
      %v2759 = vadd.f32 %v2757, %v2758
      %v2760 = vrot.slane %v2759, 1
      %v2761 = vadd.f32 %v2759, %v2760
      %2762 = vst [vmem:[%s298] sm:$0x1] %v2761
      %v2763 = vmul.f32 %v2566, %v2566
      %v2764 = vmul.f32 %v2569, %v2569
      %v2765 = vmul.f32 %v2574, %v2574
      %v2766 = vmul.f32 %v2577, %v2577
      %v2767 = vmul.f32 %v2582, %v2582
      %v2768 = vmul.f32 %v2585, %v2585
      %v2769 = vmul.f32 %v2590, %v2590
      %v2770 = vmul.f32 %v2593, %v2593
      %v2771 = vmul.f32 %v2598, %v2598
      %v2772 = vmul.f32 %v2601, %v2601
      %v2773 = vmul.f32 %v2606, %v2606
      %v2774 = vmul.f32 %v2609, %v2609
      %v2775 = vmul.f32 %v2614, %v2614
      %v2776 = vmul.f32 %v2617, %v2617
      %v2777 = vmul.f32 %v2622, %v2622
      %v2778 = vmul.f32 %v2625, %v2625
      %v2779 = vmul.f32 %v2630, %v2630
      %v2780 = vmul.f32 %v2633, %v2633
      %v2781 = vmul.f32 %v2638, %v2638
      %v2782 = vmul.f32 %v2641, %v2641
      %v2783 = vmul.f32 %v2646, %v2646
      %v2784 = vmul.f32 %v2649, %v2649
      %v2785 = vmul.f32 %v2654, %v2654
      %v2786 = vmul.f32 %v2657, %v2657
      %v2787 = vmul.f32 %v2662, %v2662
      %v2788 = vmul.f32 %v2665, %v2665
      %v2789 = vmul.f32 %v2670, %v2670
      %v2790 = vmul.f32 %v2673, %v2673
      %v2791 = vmul.f32 %v2678, %v2678
      %v2792 = vmul.f32 %v2681, %v2681
      %v2793 = vmul.f32 %v2686, %v2686
      %v2794 = vmul.f32 %v2689, %v2689
      %v2795 = vadd.f32 %v2763, %v2764
      %v2796 = vadd.f32 %v2795, %v2765
      %v2797 = vadd.f32 %v2796, %v2766
      %v2798 = vadd.f32 %v2797, %v2767
      %v2799 = vadd.f32 %v2798, %v2768
      %v2800 = vadd.f32 %v2799, %v2769
      %v2801 = vadd.f32 %v2800, %v2770
      %v2802 = vadd.f32 %v2801, %v2771
      %v2803 = vadd.f32 %v2802, %v2772
      %v2804 = vadd.f32 %v2803, %v2773
      %v2805 = vadd.f32 %v2804, %v2774
      %v2806 = vadd.f32 %v2805, %v2775
      %v2807 = vadd.f32 %v2806, %v2776
      %v2808 = vadd.f32 %v2807, %v2777
      %v2809 = vadd.f32 %v2808, %v2778
      %v2810 = vadd.f32 %v2809, %v2779
      %v2811 = vadd.f32 %v2810, %v2780
      %v2812 = vadd.f32 %v2811, %v2781
      %v2813 = vadd.f32 %v2812, %v2782
      %v2814 = vadd.f32 %v2813, %v2783
      %v2815 = vadd.f32 %v2814, %v2784
      %v2816 = vadd.f32 %v2815, %v2785
      %v2817 = vadd.f32 %v2816, %v2786
      %v2818 = vadd.f32 %v2817, %v2787
      %v2819 = vadd.f32 %v2818, %v2788
      %v2820 = vadd.f32 %v2819, %v2789
      %v2821 = vadd.f32 %v2820, %v2790
      %v2822 = vadd.f32 %v2821, %v2791
      %v2823 = vadd.f32 %v2822, %v2792
      %v2824 = vadd.f32 %v2823, %v2793
      %v2825 = vadd.f32 %v2824, %v2794
      %v2826 = vrot.slane %v2825, 4
      %v2827 = vadd.f32 %v2825, %v2826
      %v2828 = vrot.slane %v2827, 2
      %v2829 = vadd.f32 %v2827, %v2828
      %v2830 = vrot.slane %v2829, 1
      %v2831 = vadd.f32 %v2829, %v2830
      %2832 = vst [vmem:[%s298 + $0x1] sm:$0x1] %v2831
      %s2833 = sadd.s32 %s22, %s23
      %s2834 = smul.u32 32, %s2833
      %p2835 = scmp.lt.s32.totalorder %s2834, 63
      %s2836 = scalar_select %p2835, %s2834, 63
      %s2837 = smul.addr %s2836, 8
      %s2838 = scalar_lea.vmem %s5, %s2837
      %s2839 = sadd.s32 %s22, %s23
      %p2840 = scmp.lt.s32.totalorder %s2839, 1
      %s2841 = scalar_select %p2840, %s2839, 1
      %s2842 = smul.addr %s2841, 8
      %s2843 = scalar_lea.vmem %s6, %s2842
      // Predicated region
      $region41: #{down_forward.7} parent=39 // pred_check
        %p2844 = pneg %p162
      $region42: #{down_forward.7} parent=39 // pred_check_branch
        %2846 = sbr.rel (%p2844) target = $region44
      $region43: #{down_forward.7} parent=39 // pred_region
        %s2847 = sadd.s32 %s22, %s23
        %s2848 = smul.u32 32, %s2847
      $region44: #{down_forward.7} parent=39 // pred_fallthru
        _
      // Predicated region
      $region45: #{down_forward.7} parent=39 // pred_check
        %p2849 = pneg %p190
      $region46: #{down_forward.7} parent=39 // pred_check_branch
        %2851 = sbr.rel (%p2849) target = $region48
      $region47: #{down_forward.7} parent=39 // pred_region
        %s2852 = sadd.s32 %s22, %s23
      $region48: #{down_forward.7} parent=39 // pred_fallthru
        _
    $region40: #{down_forward.7} parent=5 // pred_fallthru
      _
    %p2853 = scmp.le.s32.totalorder 2, %s13
    // Predicated region
    $region49: #{down_forward.7} parent=5 // pred_check
      %p2854 = pneg %p2853
    $region50: #{down_forward.7} parent=5 // pred_check_branch
      %2856 = sbr.rel (%p2854) target = $region52
    $region51: #{down_forward.7} parent=5 // pred_region
      %s2857 = ssub.s32 %s13, 2
      // Predicated region
      $region53: #{down_forward.7} parent=51 // pred_check
        %p2858 = pneg %p168
      $region54: #{down_forward.7} parent=51 // pred_check_branch
        %2860 = sbr.rel (%p2858) target = $region56
      $region55: #{down_forward.7} parent=51 // pred_region
        %s2861 = sadd.s32 %s24, %s25
        %s2862 = smul.u32 32, %s2861
        %p2863 = scmp.lt.s32.totalorder %s2862, 63
        %s2864 = scalar_select %p2863, %s2862, 63
        %s2865 = smul.addr %s2864, 8
        %s2866 = scalar_lea.vmem %s5, %s2865
      $region56: #{down_forward.7} parent=51 // pred_fallthru
        _
      // Predicated region
      $region57: #{down_forward.7} parent=51 // pred_check
        %p2867 = pneg %p196
      $region58: #{down_forward.7} parent=51 // pred_check_branch
        %2869 = sbr.rel (%p2867) target = $region60
      $region59: #{down_forward.7} parent=51 // pred_region
        %s2870 = sadd.s32 %s24, %s25
        %p2871 = scmp.lt.s32.totalorder %s2870, 1
        %s2872 = scalar_select %p2871, %s2870, 1
        %s2873 = smul.addr %s2872, 8
        %s2874 = scalar_lea.vmem %s6, %s2873
      $region60: #{down_forward.7} parent=51 // pred_fallthru
        _
    $region52: #{down_forward.7} parent=5 // pred_fallthru
      _
  $region6: #{down_forward.7} parent=0 // loop_footer
    %s17 = sadd.s32 1, %s13
  $region7: #{down_forward.7} parent=0 // loop_footer_branch
    %12 = sbr.rel target = $region3
  $region8: #{down_forward.7} parent=0 // loop_exit
    _

// kernel: down_forward.5
$region0: #{down_forward.5}
  #allocation0 [shape = 'u32[]', space=smem, size = 0x4, offset = 0x4, fixed_abs, tag = 'smem constant byte address 0x4 - core index']
  #allocation1 [shape = 'u32[144,128]{1,0:T(1,128)}', space=vmem, size = 0x12000, scoped, tag = 'internal scratch']
  #allocation2 [shape = 'bf16[16,16,36]{2,1,0:T(16,128)(2,1)}', space=vmem, size = 0x10000, scoped, tag = 'scratch operand']
  %s0 = inlined_call_operand.vmem [shape: bf16[2,1,18,18,4], index: 0, kind: input, shape index: {}]
  %s1 = inlined_call_operand.vmem [shape: bf16[36,128], index: 1, kind: input, shape index: {}]
  %s2 = inlined_call_operand.vmem [shape: f32[1,128], index: 2, kind: input, shape index: {}]
  %s3 = inlined_call_operand.vmem [shape: f32[512,128], index: 3, kind: output, shape index: {0}]
  %s4 = inlined_call_operand.vmem [shape: f32[16,128], index: 4, kind: output, shape index: {1}]
  %5 = xla_tuple %s3, %s4
  %s6 = sld [smem:[#allocation0]]
  $region53: #{down_forward.5} parent=0
    _
  %s8 = ssub.s32 1, %s6
  %s9 = scalar_select 0, %s8, %s6
  loop: start=0, step=1, limit=4
  $region2: #{down_forward.5} parent=0 // loop_pre_header
    _
  $region3: #{down_forward.5} parent=0 // loop_header
    %s11 = sphi 0, %s15
    %p12 = scmp.ge.s32.totalorder %s11, 4
    %s18 = sphi 0, %s30
    %s19 = sphi 0, %s26
    %s20 = sphi 0, %s18
    %s21 = sphi 0, %s19
    %s22 = sphi 0, %s20
    %s23 = sphi 0, %s21
    %s35 = sphi 0, %s37
    %s38 = sphi 0, %s35
    %s39 = sphi 0, %s38
    %s55 = sphi 0, %s39
    %s59 = sphi 0, %s59
    %s61 = sphi 0, %s59
    %s62 = sphi 0, %s61
    %s76 = sphi 0, %s62
    %s80 = sphi 0, %s80
    %s82 = sphi 0, %s80
    %s83 = sphi 0, %s82
    %s97 = sphi 0, %s83
    %s105 = sphi 0, %s107
    %s108 = sphi 0, %s105
    %s109 = sphi 0, %s108
    %s125 = sphi 0, %s109
    %s133 = sphi 0, %s135
    %s136 = sphi 0, %s133
    %s137 = sphi 0, %s136
    %s153 = sphi 0, %s137
  $region4: #{down_forward.5} parent=0 // loop_header_branch
    %14 = sbr.rel (%p12) target = $region8
  $region5: #{down_forward.5} parent=0 // loop_body
    %s16 = ssub.s32 %s11, 1
    %s17 = ssub.s32 %s11, 2
    %s24 = sadd.s32 1, %s19
    %p25 = scmp.ge.s32.totalorder %s24, 1
    %s26 = scalar_select %p25, 0, %s24
    %s27 = sadd.s32 1, %s18
    %s28 = scalar_select %p25, %s27, %s18
    %p29 = scmp.ge.s32.totalorder %s28, 2
    %s30 = scalar_select %p29, 0, %s28
    %s31 = ssub.s32 %s18, %s30
    %s32 = ssub.s32 %s19, %s26
    %s33 = sor.u32 %s31, %s32
    %p34 = scmp.eq.s32.totalorder %s33, 0
    %s36 = sadd.s32 %s35, 1
    %s37 = scalar_select %p34, %s35, %s36
    %p40 = pneg %p34
    %p41 = scmp.eq.s32.totalorder %s11, 1
    %p42 = por %p40, %p41
    %p43 = scmp.ne.s32.totalorder %s35, %s38
    %p44 = scmp.eq.s32.totalorder %s11, 0
    %p45 = por %p43, %p44
    %p46 = scmp.ne.s32.totalorder %s35, %s38
    %p47 = scmp.eq.s32.totalorder %s16, 1
    %p48 = por %p46, %p47
    %p49 = scmp.ne.s32.totalorder %s38, %s39
    %p50 = scmp.eq.s32.totalorder %s16, 0
    %p51 = por %p49, %p50
    %p52 = scmp.ne.s32.totalorder %s38, %s39
    %p53 = scmp.eq.s32.totalorder %s17, 1
    %p54 = por %p52, %p53
    %p56 = scmp.ne.s32.totalorder %s39, %s55
    %p57 = scmp.eq.s32.totalorder %s17, 0
    %p58 = por %p56, %p57
    %s60 = sadd.s32 %s59, 1
    %p63 = scmp.eq.s32.totalorder %s11, 1
    %p64 = scmp.ne.s32.totalorder %s59, %s61
    %p65 = scmp.eq.s32.totalorder %s11, 0
    %p66 = por %p64, %p65
    %p67 = scmp.ne.s32.totalorder %s59, %s61
    %p68 = scmp.eq.s32.totalorder %s16, 1
    %p69 = por %p67, %p68
    %p70 = scmp.ne.s32.totalorder %s61, %s62
    %p71 = scmp.eq.s32.totalorder %s16, 0
    %p72 = por %p70, %p71
    %p73 = scmp.ne.s32.totalorder %s61, %s62
    %p74 = scmp.eq.s32.totalorder %s17, 1
    %p75 = por %p73, %p74
    %p77 = scmp.ne.s32.totalorder %s62, %s76
    %p78 = scmp.eq.s32.totalorder %s17, 0
    %p79 = por %p77, %p78
    %s81 = sadd.s32 %s80, 1
    %p84 = scmp.eq.s32.totalorder %s11, 1
    %p85 = scmp.ne.s32.totalorder %s80, %s82
    %p86 = scmp.eq.s32.totalorder %s11, 0
    %p87 = por %p85, %p86
    %p88 = scmp.ne.s32.totalorder %s80, %s82
    %p89 = scmp.eq.s32.totalorder %s16, 1
    %p90 = por %p88, %p89
    %p91 = scmp.ne.s32.totalorder %s82, %s83
    %p92 = scmp.eq.s32.totalorder %s16, 0
    %p93 = por %p91, %p92
    %p94 = scmp.ne.s32.totalorder %s82, %s83
    %p95 = scmp.eq.s32.totalorder %s17, 1
    %p96 = por %p94, %p95
    %p98 = scmp.ne.s32.totalorder %s83, %s97
    %p99 = scmp.eq.s32.totalorder %s17, 0
    %p100 = por %p98, %p99
    %s101 = sadd.s32 %s18, %s19
    %s102 = sadd.s32 %s30, %s26
    %s103 = ssub.s32 %s101, %s102
    %p104 = scmp.eq.s32.totalorder %s103, 0
    %s106 = sadd.s32 %s105, 1
    %s107 = scalar_select %p104, %s105, %s106
    %p110 = pneg %p104
    %p111 = scmp.eq.s32.totalorder %s11, 1
    %p112 = por %p110, %p111
    %p113 = scmp.ne.s32.totalorder %s105, %s108
    %p114 = scmp.eq.s32.totalorder %s11, 0
    %p115 = por %p113, %p114
    %p116 = scmp.ne.s32.totalorder %s105, %s108
    %p117 = scmp.eq.s32.totalorder %s16, 1
    %p118 = por %p116, %p117
    %p119 = scmp.ne.s32.totalorder %s108, %s109
    %p120 = scmp.eq.s32.totalorder %s16, 0
    %p121 = por %p119, %p120
    %p122 = scmp.ne.s32.totalorder %s108, %s109
    %p123 = scmp.eq.s32.totalorder %s17, 1
    %p124 = por %p122, %p123
    %p126 = scmp.ne.s32.totalorder %s109, %s125
    %p127 = scmp.eq.s32.totalorder %s17, 0
    %p128 = por %p126, %p127
    %s129 = sadd.s32 %s18, %s19
    %s130 = sadd.s32 %s30, %s26
    %s131 = ssub.s32 %s129, %s130
    %p132 = scmp.eq.s32.totalorder %s131, 0
    %s134 = sadd.s32 %s133, 1
    %s135 = scalar_select %p132, %s133, %s134
    %p138 = pneg %p132
    %p139 = scmp.eq.s32.totalorder %s11, 1
    %p140 = por %p138, %p139
    %p141 = scmp.ne.s32.totalorder %s133, %s136
    %p142 = scmp.eq.s32.totalorder %s11, 0
    %p143 = por %p141, %p142
    %p144 = scmp.ne.s32.totalorder %s133, %s136
    %p145 = scmp.eq.s32.totalorder %s16, 1
    %p146 = por %p144, %p145
    %p147 = scmp.ne.s32.totalorder %s136, %s137
    %p148 = scmp.eq.s32.totalorder %s16, 0
    %p149 = por %p147, %p148
    %p150 = scmp.ne.s32.totalorder %s136, %s137
    %p151 = scmp.eq.s32.totalorder %s17, 1
    %p152 = por %p150, %p151
    %p154 = scmp.ne.s32.totalorder %s137, %s153
    %p155 = scmp.eq.s32.totalorder %s17, 0
    %p156 = por %p154, %p155
    %p157 = scmp.le.s32.totalorder 1, %s11
    %p158 = scmp.lt.s32.totalorder %s11, 3
    %p159 = pnand %p157, %p158
    %p160 = pneg %p159
    // Predicated region
    $region9: #{down_forward.5} parent=5 // pred_check
      _
    $region10: #{down_forward.5} parent=5 // pred_check_branch
      %162 = sbr.rel (%p159) target = $region12
    $region11: #{down_forward.5} parent=5 // pred_region
      %s163 = ssub.s32 %s11, 1
      // Predicated region
      $region13: #{down_forward.5} parent=11 // pred_check
        %p164 = pneg %p72
      $region14: #{down_forward.5} parent=11 // pred_check_branch
        %166 = sbr.rel (%p164) target = $region16
      $region15: #{down_forward.5} parent=11 // pred_region
        _
      $region16: #{down_forward.5} parent=11 // pred_fallthru
        _
      // Predicated region
      $region17: #{down_forward.5} parent=11 // pred_check
        %p167 = pneg %p93
      $region18: #{down_forward.5} parent=11 // pred_check_branch
        %169 = sbr.rel (%p167) target = $region20
      $region19: #{down_forward.5} parent=11 // pred_region
        _
      $region20: #{down_forward.5} parent=11 // pred_fallthru
        _
    $region12: #{down_forward.5} parent=5 // pred_fallthru
      _
    %p170 = scmp.lt.s32.totalorder %s11, 2
    // Predicated region
    $region21: #{down_forward.5} parent=5 // pred_check
      %p171 = pneg %p170
    $region22: #{down_forward.5} parent=5 // pred_check_branch
      %173 = sbr.rel (%p171) target = $region24
    $region23: #{down_forward.5} parent=5 // pred_region
      // Predicated region
      $region25: #{down_forward.5} parent=23 // pred_check
        %p174 = pneg %p45
      $region26: #{down_forward.5} parent=23 // pred_check_branch
        %176 = sbr.rel (%p174) target = $region28
      $region27: #{down_forward.5} parent=23 // pred_region
        %p177 = scmp.lt.s32.totalorder %s18, 1
        %s178 = scalar_select %p177, %s18, 1
        %p179 = scmp.lt.s32.totalorder %s19, 0
        %s180 = scalar_select %p179, %s19, 0
        %s181 = smul.addr %s180, 54
        %s182 = smul.addr %s178, 54
        %s183 = sadd.s32 %s181, %s182
        %s184 = smul.addr %s183, 4
        %s185 = scalar_lea.vmem %s0, %s184
      $region28: #{down_forward.5} parent=23 // pred_fallthru
        _
    $region24: #{down_forward.5} parent=5 // pred_fallthru
      _
    %p186 = scmp.le.s32.totalorder 1, %s11
    %p187 = scmp.lt.s32.totalorder %s11, 3
    %p188 = pnand %p186, %p187
    %p189 = pneg %p188
    // Predicated region
    $region29: #{down_forward.5} parent=5 // pred_check
      _
    $region30: #{down_forward.5} parent=5 // pred_check_branch
      %191 = sbr.rel (%p188) target = $region32
    $region31: #{down_forward.5} parent=5 // pred_region
      %s192 = ssub.s32 %s11, 1
      %p193 = scmp.lt.s32.totalorder %s20, 1
      %s194 = scalar_select %p193, %s20, 1
      %p195 = scmp.lt.s32.totalorder %s21, 0
      %s196 = scalar_select %p195, %s21, 0
      %s197 = smul.addr %s196, 54
      %s198 = smul.addr %s194, 54
      %s199 = sadd.s32 %s197, %s198
      %s200 = smul.addr %s199, 4
      %s201 = scalar_lea.vmem %s0, %s200
      %p202 = pneg %p51
      %p203 = pneg %p48
      %p204 = pneg %p72
      %p205 = pneg %p69
      %p206 = pneg %p93
      %p207 = pneg %p90
      %p208 = pneg %p121
      %p209 = pneg %p118
      %s210 = sadd.s32 %s20, %s21
      %s211 = smul.u32 32, %s210
      %p212 = scmp.lt.s32.totalorder %s211, 63
      %s213 = scalar_select %p212, %s211, 63
      %s214 = smul.addr %s213, 8
      %s215 = scalar_lea.vmem %s3, %s214
      %p216 = pneg %p149
      %p217 = pneg %p146
      %s218 = sadd.s32 %s20, %s21
      %p219 = scmp.lt.s32.totalorder %s218, 1
      %s220 = scalar_select %p219, %s218, 1
      %s221 = smul.addr %s220, 8
      %s222 = scalar_lea.vmem %s4, %s221
      %p223 = scmp.lt.s32.totalorder %s20, 1
      %s224 = scalar_select %p223, %s20, 1
      %p225 = scmp.lt.s32.totalorder %s21, 0
      %s226 = scalar_select %p225, %s21, 0
      %s227 = smul.addr %s226, 54
      %s228 = smul.addr %s224, 54
      %s229 = sadd.s32 %s227, %s228
      %s230 = smul.addr %s229, 4
      %s231 = scalar_lea.vmem %s0, %s230
      %s232 = sadd.s32 %s20, %s21
      %s233 = smul.u32 32, %s232
      %p234 = scmp.lt.s32.totalorder %s233, 63
      %s235 = scalar_select %p234, %s233, 63
      %s236 = smul.addr %s235, 8
      %s237 = scalar_lea.vmem %s3, %s236
      %s238 = sadd.s32 %s20, %s21
      %s239 = smul.u32 32, %s238
      %s240 = sadd.s32 %s20, %s21
      %p241 = scmp.lt.s32.totalorder %s240, 1
      %s242 = scalar_select %p241, %s240, 1
      %s243 = smul.addr %s242, 8
      %s244 = scalar_lea.vmem %s4, %s243
      %s245 = sadd.s32 %s20, %s21
      %v247 = vld [vmem:[%s231] sm:$0xf]
      %v248 = vld [vmem:[%s231 + $0x4] sm:$0xf]
      %v249 = vld [vmem:[%s231 + $0xc] sm:$0xf]
      %v250 = vld [vmem:[%s231 + $0x10] sm:$0xf]
      %v251 = vld [vmem:[%s231 + $0x18] sm:$0xf]
      %v252 = vld [vmem:[%s231 + $0x1c] sm:$0xf]
      %v253 = vld [vmem:[%s231 + $0x24] sm:$0xf]
      %v254 = vld [vmem:[%s231 + $0x28] sm:$0xf]
      %v255 = vld [vmem:[%s231 + $0x30] sm:$0xf]
      %v256 = vld [vmem:[%s231 + $0x34] sm:$0xf]
      %v257 = vld [vmem:[%s231 + $0x3c] sm:$0xf]
      %v258 = vld [vmem:[%s231 + $0x40] sm:$0xf]
      %v259 = vld [vmem:[%s231 + $0x48] sm:$0xf]
      %v260 = vld [vmem:[%s231 + $0x4c] sm:$0xf]
      %v261 = vld [vmem:[%s231 + $0x54] sm:$0xf]
      %v262 = vld [vmem:[%s231 + $0x58] sm:$0xf]
      %v263 = vld [vmem:[%s231 + $0x60] sm:$0xf]
      %v264 = vld [vmem:[%s231 + $0x64] sm:$0xf]
      %v265 = vld [vmem:[%s231 + $0x6c] sm:$0xf]
      %v266 = vld [vmem:[%s231 + $0x70] sm:$0xf]
      %v267 = vld [vmem:[%s231 + $0x78] sm:$0xf]
      %v268 = vld [vmem:[%s231 + $0x7c] sm:$0xf]
      %v269 = vld [vmem:[%s231 + $0x84] sm:$0xf]
      %v270 = vld [vmem:[%s231 + $0x88] sm:$0xf]
      %v271 = vld [vmem:[%s231 + $0x90] sm:$0xf]
      %v272 = vld [vmem:[%s231 + $0x94] sm:$0xf]
      %v273 = vld [vmem:[%s231 + $0x9c] sm:$0xf]
      %v274 = vld [vmem:[%s231 + $0xa0] sm:$0xf]
      %v275 = vld [vmem:[%s231 + $0xa8] sm:$0xf]
      %v276 = vld [vmem:[%s231 + $0xac] sm:$0xf]
      %v277 = vld [vmem:[%s231 + $0xb4] sm:$0xf]
      %v278 = vld [vmem:[%s231 + $0xb8] sm:$0xf]
      %v311 = vunpack.c.l.b16 %v247
      %v312 = vunpack.c.l.b16 %v248
      %v313 = vunpack.c.l.b16 %v249
      %v314 = vunpack.c.l.b16 %v250
      %v315 = vunpack.c.l.b16 %v251
      %v316 = vunpack.c.l.b16 %v252
      %v317 = vunpack.c.l.b16 %v253
      %v318 = vunpack.c.l.b16 %v254
      %v319 = vunpack.c.l.b16 %v255
      %v320 = vunpack.c.l.b16 %v256
      %v321 = vunpack.c.l.b16 %v257
      %v322 = vunpack.c.l.b16 %v258
      %v323 = vunpack.c.l.b16 %v259
      %v324 = vunpack.c.l.b16 %v260
      %v325 = vunpack.c.l.b16 %v261
      %v326 = vunpack.c.l.b16 %v262
      %v327 = vunpack.c.l.b16 %v263
      %v328 = vunpack.c.l.b16 %v264
      %v329 = vunpack.c.l.b16 %v265
      %v330 = vunpack.c.l.b16 %v266
      %v331 = vunpack.c.l.b16 %v267
      %v332 = vunpack.c.l.b16 %v268
      %v333 = vunpack.c.l.b16 %v269
      %v334 = vunpack.c.l.b16 %v270
      %v335 = vunpack.c.l.b16 %v271
      %v336 = vunpack.c.l.b16 %v272
      %v337 = vunpack.c.l.b16 %v273
      %v338 = vunpack.c.l.b16 %v274
      %v339 = vunpack.c.l.b16 %v275
      %v340 = vunpack.c.l.b16 %v276
      %v341 = vunpack.c.l.b16 %v277
      %v342 = vunpack.c.l.b16 %v278
      %v343 = vpack.c.b16 %v312, %v311
      %v344 = vpack.c.b16 %v314, %v313
      %v345 = vpack.c.b16 %v316, %v315
      %v346 = vpack.c.b16 %v318, %v317
      %v347 = vpack.c.b16 %v320, %v319
      %v348 = vpack.c.b16 %v322, %v321
      %v349 = vpack.c.b16 %v324, %v323
      %v350 = vpack.c.b16 %v326, %v325
      %v351 = vpack.c.b16 %v328, %v327
      %v352 = vpack.c.b16 %v330, %v329
      %v353 = vpack.c.b16 %v332, %v331
      %v354 = vpack.c.b16 %v334, %v333
      %v355 = vpack.c.b16 %v336, %v335
      %v356 = vpack.c.b16 %v338, %v337
      %v357 = vpack.c.b16 %v340, %v339
      %v358 = vpack.c.b16 %v342, %v341
      %vm375 = vcmask 31744
      %376 = vst.msk [vmem:[#allocation2] sm:$0xff] %vm375, %v343
      %377 = vst.msk [vmem:[#allocation2 + $0x8] sm:$0xff] %vm375, %v344
      %378 = vst.msk [vmem:[#allocation2 + $0x10] sm:$0xff] %vm375, %v345
      %379 = vst.msk [vmem:[#allocation2 + $0x18] sm:$0xff] %vm375, %v346
      %380 = vst.msk [vmem:[#allocation2 + $0x20] sm:$0xff] %vm375, %v347
      %381 = vst.msk [vmem:[#allocation2 + $0x28] sm:$0xff] %vm375, %v348
      %382 = vst.msk [vmem:[#allocation2 + $0x30] sm:$0xff] %vm375, %v349
      %383 = vst.msk [vmem:[#allocation2 + $0x38] sm:$0xff] %vm375, %v350
      %384 = vst.msk [vmem:[#allocation2 + $0x40] sm:$0xff] %vm375, %v351
      %385 = vst.msk [vmem:[#allocation2 + $0x48] sm:$0xff] %vm375, %v352
      %386 = vst.msk [vmem:[#allocation2 + $0x50] sm:$0xff] %vm375, %v353
      %387 = vst.msk [vmem:[#allocation2 + $0x58] sm:$0xff] %vm375, %v354
      %388 = vst.msk [vmem:[#allocation2 + $0x60] sm:$0xff] %vm375, %v355
      %389 = vst.msk [vmem:[#allocation2 + $0x68] sm:$0xff] %vm375, %v356
      %390 = vst.msk [vmem:[#allocation2 + $0x70] sm:$0xff] %vm375, %v357
      %391 = vst.msk [vmem:[#allocation2 + $0x78] sm:$0xff] %vm375, %v358
      %v392 = vld [vmem:[%s231] sm:$0xf]
      %v393 = vld [vmem:[%s231 + $0x4] sm:$0xf]
      %v394 = vld [vmem:[%s231 + $0x8] sm:$0x1]
      %v395 = vld [vmem:[%s231 + $0xc] sm:$0xf]
      %v396 = vld [vmem:[%s231 + $0x10] sm:$0xf]
      %v397 = vld [vmem:[%s231 + $0x14] sm:$0x1]
      %v398 = vld [vmem:[%s231 + $0x18] sm:$0xf]
      %v399 = vld [vmem:[%s231 + $0x1c] sm:$0xf]
      %v400 = vld [vmem:[%s231 + $0x20] sm:$0x1]
      %v401 = vld [vmem:[%s231 + $0x24] sm:$0xf]
      %v402 = vld [vmem:[%s231 + $0x28] sm:$0xf]
      %v403 = vld [vmem:[%s231 + $0x2c] sm:$0x1]
      %v404 = vld [vmem:[%s231 + $0x30] sm:$0xf]
      %v405 = vld [vmem:[%s231 + $0x34] sm:$0xf]
      %v406 = vld [vmem:[%s231 + $0x38] sm:$0x1]
      %v407 = vld [vmem:[%s231 + $0x3c] sm:$0xf]
      %v408 = vld [vmem:[%s231 + $0x40] sm:$0xf]
      %v409 = vld [vmem:[%s231 + $0x44] sm:$0x1]
      %v410 = vld [vmem:[%s231 + $0x48] sm:$0xf]
      %v411 = vld [vmem:[%s231 + $0x4c] sm:$0xf]
      %v412 = vld [vmem:[%s231 + $0x50] sm:$0x1]
      %v413 = vld [vmem:[%s231 + $0x54] sm:$0xf]
      %v414 = vld [vmem:[%s231 + $0x58] sm:$0xf]
      %v415 = vld [vmem:[%s231 + $0x5c] sm:$0x1]
      %v416 = vld [vmem:[%s231 + $0x60] sm:$0xf]
      %v417 = vld [vmem:[%s231 + $0x64] sm:$0xf]
      %v418 = vld [vmem:[%s231 + $0x68] sm:$0x1]
      %v419 = vld [vmem:[%s231 + $0x6c] sm:$0xf]
      %v420 = vld [vmem:[%s231 + $0x70] sm:$0xf]
      %v421 = vld [vmem:[%s231 + $0x74] sm:$0x1]
      %v422 = vld [vmem:[%s231 + $0x78] sm:$0xf]
      %v423 = vld [vmem:[%s231 + $0x7c] sm:$0xf]
      %v424 = vld [vmem:[%s231 + $0x80] sm:$0x1]
      %v425 = vld [vmem:[%s231 + $0x84] sm:$0xf]
      %v426 = vld [vmem:[%s231 + $0x88] sm:$0xf]
      %v427 = vld [vmem:[%s231 + $0x8c] sm:$0x1]
      %v428 = vld [vmem:[%s231 + $0x90] sm:$0xf]
      %v429 = vld [vmem:[%s231 + $0x94] sm:$0xf]
      %v430 = vld [vmem:[%s231 + $0x98] sm:$0x1]
      %v431 = vld [vmem:[%s231 + $0x9c] sm:$0xf]
      %v432 = vld [vmem:[%s231 + $0xa0] sm:$0xf]
      %v433 = vld [vmem:[%s231 + $0xa4] sm:$0x1]
      %v434 = vld [vmem:[%s231 + $0xa8] sm:$0xf]
      %v435 = vld [vmem:[%s231 + $0xac] sm:$0xf]
      %v436 = vld [vmem:[%s231 + $0xb0] sm:$0x1]
      %v437 = vld [vmem:[%s231 + $0xb4] sm:$0xf]
      %v438 = vld [vmem:[%s231 + $0xb8] sm:$0xf]
      %v439 = vld [vmem:[%s231 + $0xbc] sm:$0x1]
      %v488 = vunpack.c.l.b16 %v392
      %v489 = vunpack.c.l.b16 %v393
      %v490 = vunpack.c.l.b16 %v394
      %v491 = vunpack.c.l.b16 %v395
      %v492 = vunpack.c.l.b16 %v396
      %v493 = vunpack.c.l.b16 %v397
      %v494 = vunpack.c.l.b16 %v398
      %v495 = vunpack.c.l.b16 %v399
      %v496 = vunpack.c.l.b16 %v400
      %v497 = vunpack.c.l.b16 %v401
      %v498 = vunpack.c.l.b16 %v402
      %v499 = vunpack.c.l.b16 %v403
      %v500 = vunpack.c.l.b16 %v404
      %v501 = vunpack.c.l.b16 %v405
      %v502 = vunpack.c.l.b16 %v406
      %v503 = vunpack.c.l.b16 %v407
      %v504 = vunpack.c.l.b16 %v408
      %v505 = vunpack.c.l.b16 %v409
      %v506 = vunpack.c.l.b16 %v410
      %v507 = vunpack.c.l.b16 %v411
      %v508 = vunpack.c.l.b16 %v412
      %v509 = vunpack.c.l.b16 %v413
      %v510 = vunpack.c.l.b16 %v414
      %v511 = vunpack.c.l.b16 %v415
      %v512 = vunpack.c.l.b16 %v416
      %v513 = vunpack.c.l.b16 %v417
      %v514 = vunpack.c.l.b16 %v418
      %v515 = vunpack.c.l.b16 %v419
      %v516 = vunpack.c.l.b16 %v420
      %v517 = vunpack.c.l.b16 %v421
      %v518 = vunpack.c.l.b16 %v422
      %v519 = vunpack.c.l.b16 %v423
      %v520 = vunpack.c.l.b16 %v424
      %v521 = vunpack.c.l.b16 %v425
      %v522 = vunpack.c.l.b16 %v426
      %v523 = vunpack.c.l.b16 %v427
      %v524 = vunpack.c.l.b16 %v428
      %v525 = vunpack.c.l.b16 %v429
      %v526 = vunpack.c.l.b16 %v430
      %v527 = vunpack.c.l.b16 %v431
      %v528 = vunpack.c.l.b16 %v432
      %v529 = vunpack.c.l.b16 %v433
      %v530 = vunpack.c.l.b16 %v434
      %v531 = vunpack.c.l.b16 %v435
      %v532 = vunpack.c.l.b16 %v436
      %v533 = vunpack.c.l.b16 %v437
      %v534 = vunpack.c.l.b16 %v438
      %v535 = vunpack.c.l.b16 %v439
      %v536 = vpack.c.b16 %v489, %v488
      %v537 = vpack.c.b16 %v490, %v490
      %v538 = vpack.c.b16 %v492, %v491
      %v539 = vpack.c.b16 %v493, %v493
      %v540 = vpack.c.b16 %v495, %v494
      %v541 = vpack.c.b16 %v496, %v496
      %v542 = vpack.c.b16 %v498, %v497
      %v543 = vpack.c.b16 %v499, %v499
      %v544 = vpack.c.b16 %v501, %v500
      %v545 = vpack.c.b16 %v502, %v502
      %v546 = vpack.c.b16 %v504, %v503
      %v547 = vpack.c.b16 %v505, %v505
      %v548 = vpack.c.b16 %v507, %v506
      %v549 = vpack.c.b16 %v508, %v508
      %v550 = vpack.c.b16 %v510, %v509
      %v551 = vpack.c.b16 %v511, %v511
      %v552 = vpack.c.b16 %v513, %v512
      %v553 = vpack.c.b16 %v514, %v514
      %v554 = vpack.c.b16 %v516, %v515
      %v555 = vpack.c.b16 %v517, %v517
      %v556 = vpack.c.b16 %v519, %v518
      %v557 = vpack.c.b16 %v520, %v520
      %v558 = vpack.c.b16 %v522, %v521
      %v559 = vpack.c.b16 %v523, %v523
      %v560 = vpack.c.b16 %v525, %v524
      %v561 = vpack.c.b16 %v526, %v526
      %v562 = vpack.c.b16 %v528, %v527
      %v563 = vpack.c.b16 %v529, %v529
      %v564 = vpack.c.b16 %v531, %v530
      %v565 = vpack.c.b16 %v532, %v532
      %v566 = vpack.c.b16 %v534, %v533
      %v567 = vpack.c.b16 %v535, %v535
      %vm568 = vsmask.f32 7424
      %v570 = vshrl.u32 %v536, 16
      %v572 = vshll.u32 %v536, 16
      %v574 = vrot.slane %v572, 1
      %v575 = vor.u32 %v570, %v574
      %v577 = vshll.u32 %v537, 16
      %v579 = vrot.slane %v577, 1
      %v580 = vsel %vm568, %v575, %v579
      %v582 = vshrl.u32 %v538, 16
      %v584 = vshll.u32 %v538, 16
      %v586 = vrot.slane %v584, 1
      %v587 = vor.u32 %v582, %v586
      %v589 = vshll.u32 %v539, 16
      %v591 = vrot.slane %v589, 1
      %v592 = vsel %vm568, %v587, %v591
      %v594 = vshrl.u32 %v540, 16
      %v596 = vshll.u32 %v540, 16
      %v598 = vrot.slane %v596, 1
      %v599 = vor.u32 %v594, %v598
      %v601 = vshll.u32 %v541, 16
      %v603 = vrot.slane %v601, 1
      %v604 = vsel %vm568, %v599, %v603
      %v606 = vshrl.u32 %v542, 16
      %v608 = vshll.u32 %v542, 16
      %v610 = vrot.slane %v608, 1
      %v611 = vor.u32 %v606, %v610
      %v613 = vshll.u32 %v543, 16
      %v615 = vrot.slane %v613, 1
      %v616 = vsel %vm568, %v611, %v615
      %v618 = vshrl.u32 %v544, 16
      %v620 = vshll.u32 %v544, 16
      %v622 = vrot.slane %v620, 1
      %v623 = vor.u32 %v618, %v622
      %v625 = vshll.u32 %v545, 16
      %v627 = vrot.slane %v625, 1
      %v628 = vsel %vm568, %v623, %v627
      %v630 = vshrl.u32 %v546, 16
      %v632 = vshll.u32 %v546, 16
      %v634 = vrot.slane %v632, 1
      %v635 = vor.u32 %v630, %v634
      %v637 = vshll.u32 %v547, 16
      %v639 = vrot.slane %v637, 1
      %v640 = vsel %vm568, %v635, %v639
      %v642 = vshrl.u32 %v548, 16
      %v644 = vshll.u32 %v548, 16
      %v646 = vrot.slane %v644, 1
      %v647 = vor.u32 %v642, %v646
      %v649 = vshll.u32 %v549, 16
      %v651 = vrot.slane %v649, 1
      %v652 = vsel %vm568, %v647, %v651
      %v654 = vshrl.u32 %v550, 16
      %v656 = vshll.u32 %v550, 16
      %v658 = vrot.slane %v656, 1
      %v659 = vor.u32 %v654, %v658
      %v661 = vshll.u32 %v551, 16
      %v663 = vrot.slane %v661, 1
      %v664 = vsel %vm568, %v659, %v663
      %v666 = vshrl.u32 %v552, 16
      %v668 = vshll.u32 %v552, 16
      %v670 = vrot.slane %v668, 1
      %v671 = vor.u32 %v666, %v670
      %v673 = vshll.u32 %v553, 16
      %v675 = vrot.slane %v673, 1
      %v676 = vsel %vm568, %v671, %v675
      %v678 = vshrl.u32 %v554, 16
      %v680 = vshll.u32 %v554, 16
      %v682 = vrot.slane %v680, 1
      %v683 = vor.u32 %v678, %v682
      %v685 = vshll.u32 %v555, 16
      %v687 = vrot.slane %v685, 1
      %v688 = vsel %vm568, %v683, %v687
      %v690 = vshrl.u32 %v556, 16
      %v692 = vshll.u32 %v556, 16
      %v694 = vrot.slane %v692, 1
      %v695 = vor.u32 %v690, %v694
      %v697 = vshll.u32 %v557, 16
      %v699 = vrot.slane %v697, 1
      %v700 = vsel %vm568, %v695, %v699
      %v702 = vshrl.u32 %v558, 16
      %v704 = vshll.u32 %v558, 16
      %v706 = vrot.slane %v704, 1
      %v707 = vor.u32 %v702, %v706
      %v709 = vshll.u32 %v559, 16
      %v711 = vrot.slane %v709, 1
      %v712 = vsel %vm568, %v707, %v711
      %v714 = vshrl.u32 %v560, 16
      %v716 = vshll.u32 %v560, 16
      %v718 = vrot.slane %v716, 1
      %v719 = vor.u32 %v714, %v718
      %v721 = vshll.u32 %v561, 16
      %v723 = vrot.slane %v721, 1
      %v724 = vsel %vm568, %v719, %v723
      %v726 = vshrl.u32 %v562, 16
      %v728 = vshll.u32 %v562, 16
      %v730 = vrot.slane %v728, 1
      %v731 = vor.u32 %v726, %v730
      %v733 = vshll.u32 %v563, 16
      %v735 = vrot.slane %v733, 1
      %v736 = vsel %vm568, %v731, %v735
      %v738 = vshrl.u32 %v564, 16
      %v740 = vshll.u32 %v564, 16
      %v742 = vrot.slane %v740, 1
      %v743 = vor.u32 %v738, %v742
      %v745 = vshll.u32 %v565, 16
      %v747 = vrot.slane %v745, 1
      %v748 = vsel %vm568, %v743, %v747
      %v750 = vshrl.u32 %v566, 16
      %v752 = vshll.u32 %v566, 16
      %v754 = vrot.slane %v752, 1
      %v755 = vor.u32 %v750, %v754
      %v757 = vshll.u32 %v567, 16
      %v759 = vrot.slane %v757, 1
      %v760 = vsel %vm568, %v755, %v759
      %761 = vrot.lane.b32.xlu0 %v580, 4
      %v762 = vpop.permute.xlu0 %761
      %763 = vrot.lane.b32.xlu0 %v592, 4
      %v764 = vpop.permute.xlu0 %763
      %765 = vrot.lane.b32.xlu0 %v604, 4
      %v766 = vpop.permute.xlu0 %765
      %767 = vrot.lane.b32.xlu0 %v616, 4
      %v768 = vpop.permute.xlu0 %767
      %769 = vrot.lane.b32.xlu0 %v628, 4
      %v770 = vpop.permute.xlu0 %769
      %771 = vrot.lane.b32.xlu0 %v640, 4
      %v772 = vpop.permute.xlu0 %771
      %773 = vrot.lane.b32.xlu0 %v652, 4
      %v774 = vpop.permute.xlu0 %773
      %775 = vrot.lane.b32.xlu0 %v664, 4
      %v776 = vpop.permute.xlu0 %775
      %777 = vrot.lane.b32.xlu0 %v676, 4
      %v778 = vpop.permute.xlu0 %777
      %779 = vrot.lane.b32.xlu0 %v688, 4
      %v780 = vpop.permute.xlu0 %779
      %781 = vrot.lane.b32.xlu0 %v700, 4
      %v782 = vpop.permute.xlu0 %781
      %783 = vrot.lane.b32.xlu0 %v712, 4
      %v784 = vpop.permute.xlu0 %783
      %785 = vrot.lane.b32.xlu0 %v724, 4
      %v786 = vpop.permute.xlu0 %785
      %787 = vrot.lane.b32.xlu0 %v736, 4
      %v788 = vpop.permute.xlu0 %787
      %789 = vrot.lane.b32.xlu0 %v748, 4
      %v790 = vpop.permute.xlu0 %789
      %791 = vrot.lane.b32.xlu0 %v760, 4
      %v792 = vpop.permute.xlu0 %791
      %vm809 = vcmask 64544
      %810 = vst.msk [vmem:[#allocation2] sm:$0xff] %vm809, %v762
      %811 = vst.msk [vmem:[#allocation2 + $0x8] sm:$0xff] %vm809, %v764
      %812 = vst.msk [vmem:[#allocation2 + $0x10] sm:$0xff] %vm809, %v766
      %813 = vst.msk [vmem:[#allocation2 + $0x18] sm:$0xff] %vm809, %v768
      %814 = vst.msk [vmem:[#allocation2 + $0x20] sm:$0xff] %vm809, %v770
      %815 = vst.msk [vmem:[#allocation2 + $0x28] sm:$0xff] %vm809, %v772
      %816 = vst.msk [vmem:[#allocation2 + $0x30] sm:$0xff] %vm809, %v774
      %817 = vst.msk [vmem:[#allocation2 + $0x38] sm:$0xff] %vm809, %v776
      %818 = vst.msk [vmem:[#allocation2 + $0x40] sm:$0xff] %vm809, %v778
      %819 = vst.msk [vmem:[#allocation2 + $0x48] sm:$0xff] %vm809, %v780
      %820 = vst.msk [vmem:[#allocation2 + $0x50] sm:$0xff] %vm809, %v782
      %821 = vst.msk [vmem:[#allocation2 + $0x58] sm:$0xff] %vm809, %v784
      %822 = vst.msk [vmem:[#allocation2 + $0x60] sm:$0xff] %vm809, %v786
      %823 = vst.msk [vmem:[#allocation2 + $0x68] sm:$0xff] %vm809, %v788
      %824 = vst.msk [vmem:[#allocation2 + $0x70] sm:$0xff] %vm809, %v790
      %825 = vst.msk [vmem:[#allocation2 + $0x78] sm:$0xff] %vm809, %v792
      %v826 = vld [vmem:[%s231] sm:$0xe]
      %v827 = vld [vmem:[%s231 + $0x4] sm:$0xf]
      %v828 = vld [vmem:[%s231 + $0x8] sm:$0x1]
      %v829 = vld [vmem:[%s231 + $0xc] sm:$0xe]
      %v830 = vld [vmem:[%s231 + $0x10] sm:$0xf]
      %v831 = vld [vmem:[%s231 + $0x14] sm:$0x1]
      %v832 = vld [vmem:[%s231 + $0x18] sm:$0xe]
      %v833 = vld [vmem:[%s231 + $0x1c] sm:$0xf]
      %v834 = vld [vmem:[%s231 + $0x20] sm:$0x1]
      %v835 = vld [vmem:[%s231 + $0x24] sm:$0xe]
      %v836 = vld [vmem:[%s231 + $0x28] sm:$0xf]
      %v837 = vld [vmem:[%s231 + $0x2c] sm:$0x1]
      %v838 = vld [vmem:[%s231 + $0x30] sm:$0xe]
      %v839 = vld [vmem:[%s231 + $0x34] sm:$0xf]
      %v840 = vld [vmem:[%s231 + $0x38] sm:$0x1]
      %v841 = vld [vmem:[%s231 + $0x3c] sm:$0xe]
      %v842 = vld [vmem:[%s231 + $0x40] sm:$0xf]
      %v843 = vld [vmem:[%s231 + $0x44] sm:$0x1]
      %v844 = vld [vmem:[%s231 + $0x48] sm:$0xe]
      %v845 = vld [vmem:[%s231 + $0x4c] sm:$0xf]
      %v846 = vld [vmem:[%s231 + $0x50] sm:$0x1]
      %v847 = vld [vmem:[%s231 + $0x54] sm:$0xe]
      %v848 = vld [vmem:[%s231 + $0x58] sm:$0xf]
      %v849 = vld [vmem:[%s231 + $0x5c] sm:$0x1]
      %v850 = vld [vmem:[%s231 + $0x60] sm:$0xe]
      %v851 = vld [vmem:[%s231 + $0x64] sm:$0xf]
      %v852 = vld [vmem:[%s231 + $0x68] sm:$0x1]
      %v853 = vld [vmem:[%s231 + $0x6c] sm:$0xe]
      %v854 = vld [vmem:[%s231 + $0x70] sm:$0xf]
      %v855 = vld [vmem:[%s231 + $0x74] sm:$0x1]
      %v856 = vld [vmem:[%s231 + $0x78] sm:$0xe]
      %v857 = vld [vmem:[%s231 + $0x7c] sm:$0xf]
      %v858 = vld [vmem:[%s231 + $0x80] sm:$0x1]
      %v859 = vld [vmem:[%s231 + $0x84] sm:$0xe]
      %v860 = vld [vmem:[%s231 + $0x88] sm:$0xf]
      %v861 = vld [vmem:[%s231 + $0x8c] sm:$0x1]
      %v862 = vld [vmem:[%s231 + $0x90] sm:$0xe]
      %v863 = vld [vmem:[%s231 + $0x94] sm:$0xf]
      %v864 = vld [vmem:[%s231 + $0x98] sm:$0x1]
      %v865 = vld [vmem:[%s231 + $0x9c] sm:$0xe]
      %v866 = vld [vmem:[%s231 + $0xa0] sm:$0xf]
      %v867 = vld [vmem:[%s231 + $0xa4] sm:$0x1]
      %v868 = vld [vmem:[%s231 + $0xa8] sm:$0xe]
      %v869 = vld [vmem:[%s231 + $0xac] sm:$0xf]
      %v870 = vld [vmem:[%s231 + $0xb0] sm:$0x1]
      %v871 = vld [vmem:[%s231 + $0xb4] sm:$0xe]
      %v872 = vld [vmem:[%s231 + $0xb8] sm:$0xf]
      %v873 = vld [vmem:[%s231 + $0xbc] sm:$0x1]
      %v922 = vunpack.c.l.b16 %v826
      %v923 = vunpack.c.l.b16 %v827
      %v924 = vunpack.c.l.b16 %v828
      %v925 = vunpack.c.l.b16 %v829
      %v926 = vunpack.c.l.b16 %v830
      %v927 = vunpack.c.l.b16 %v831
      %v928 = vunpack.c.l.b16 %v832
      %v929 = vunpack.c.l.b16 %v833
      %v930 = vunpack.c.l.b16 %v834
      %v931 = vunpack.c.l.b16 %v835
      %v932 = vunpack.c.l.b16 %v836
      %v933 = vunpack.c.l.b16 %v837
      %v934 = vunpack.c.l.b16 %v838
      %v935 = vunpack.c.l.b16 %v839
      %v936 = vunpack.c.l.b16 %v840
      %v937 = vunpack.c.l.b16 %v841
      %v938 = vunpack.c.l.b16 %v842
      %v939 = vunpack.c.l.b16 %v843
      %v940 = vunpack.c.l.b16 %v844
      %v941 = vunpack.c.l.b16 %v845
      %v942 = vunpack.c.l.b16 %v846
      %v943 = vunpack.c.l.b16 %v847
      %v944 = vunpack.c.l.b16 %v848
      %v945 = vunpack.c.l.b16 %v849
      %v946 = vunpack.c.l.b16 %v850
      %v947 = vunpack.c.l.b16 %v851
      %v948 = vunpack.c.l.b16 %v852
      %v949 = vunpack.c.l.b16 %v853
      %v950 = vunpack.c.l.b16 %v854
      %v951 = vunpack.c.l.b16 %v855
      %v952 = vunpack.c.l.b16 %v856
      %v953 = vunpack.c.l.b16 %v857
      %v954 = vunpack.c.l.b16 %v858
      %v955 = vunpack.c.l.b16 %v859
      %v956 = vunpack.c.l.b16 %v860
      %v957 = vunpack.c.l.b16 %v861
      %v958 = vunpack.c.l.b16 %v862
      %v959 = vunpack.c.l.b16 %v863
      %v960 = vunpack.c.l.b16 %v864
      %v961 = vunpack.c.l.b16 %v865
      %v962 = vunpack.c.l.b16 %v866
      %v963 = vunpack.c.l.b16 %v867
      %v964 = vunpack.c.l.b16 %v868
      %v965 = vunpack.c.l.b16 %v869
      %v966 = vunpack.c.l.b16 %v870
      %v967 = vunpack.c.l.b16 %v871
      %v968 = vunpack.c.l.b16 %v872
      %v969 = vunpack.c.l.b16 %v873
      %v970 = vpack.c.b16 %v923, %v922
      %v971 = vpack.c.b16 %v924, %v924
      %v972 = vpack.c.b16 %v926, %v925
      %v973 = vpack.c.b16 %v927, %v927
      %v974 = vpack.c.b16 %v929, %v928
      %v975 = vpack.c.b16 %v930, %v930
      %v976 = vpack.c.b16 %v932, %v931
      %v977 = vpack.c.b16 %v933, %v933
      %v978 = vpack.c.b16 %v935, %v934
      %v979 = vpack.c.b16 %v936, %v936
      %v980 = vpack.c.b16 %v938, %v937
      %v981 = vpack.c.b16 %v939, %v939
      %v982 = vpack.c.b16 %v941, %v940
      %v983 = vpack.c.b16 %v942, %v942
      %v984 = vpack.c.b16 %v944, %v943
      %v985 = vpack.c.b16 %v945, %v945
      %v986 = vpack.c.b16 %v947, %v946
      %v987 = vpack.c.b16 %v948, %v948
      %v988 = vpack.c.b16 %v950, %v949
      %v989 = vpack.c.b16 %v951, %v951
      %v990 = vpack.c.b16 %v953, %v952
      %v991 = vpack.c.b16 %v954, %v954
      %v992 = vpack.c.b16 %v956, %v955
      %v993 = vpack.c.b16 %v957, %v957
      %v994 = vpack.c.b16 %v959, %v958
      %v995 = vpack.c.b16 %v960, %v960
      %v996 = vpack.c.b16 %v962, %v961
      %v997 = vpack.c.b16 %v963, %v963
      %v998 = vpack.c.b16 %v965, %v964
      %v999 = vpack.c.b16 %v966, %v966
      %v1000 = vpack.c.b16 %v968, %v967
      %v1001 = vpack.c.b16 %v969, %v969
      %vm1002 = vcmask 1046528
      %v1003 = vrot.slane %v970, 1
      %v1004 = vrot.slane %v971, 1
      %v1005 = vsel %vm1002, %v1003, %v1004
      %v1006 = vrot.slane %v972, 1
      %v1007 = vrot.slane %v973, 1
      %v1008 = vsel %vm1002, %v1006, %v1007
      %v1009 = vrot.slane %v974, 1
      %v1010 = vrot.slane %v975, 1
      %v1011 = vsel %vm1002, %v1009, %v1010
      %v1012 = vrot.slane %v976, 1
      %v1013 = vrot.slane %v977, 1
      %v1014 = vsel %vm1002, %v1012, %v1013
      %v1015 = vrot.slane %v978, 1
      %v1016 = vrot.slane %v979, 1
      %v1017 = vsel %vm1002, %v1015, %v1016
      %v1018 = vrot.slane %v980, 1
      %v1019 = vrot.slane %v981, 1
      %v1020 = vsel %vm1002, %v1018, %v1019
      %v1021 = vrot.slane %v982, 1
      %v1022 = vrot.slane %v983, 1
      %v1023 = vsel %vm1002, %v1021, %v1022
      %v1024 = vrot.slane %v984, 1
      %v1025 = vrot.slane %v985, 1
      %v1026 = vsel %vm1002, %v1024, %v1025
      %v1027 = vrot.slane %v986, 1
      %v1028 = vrot.slane %v987, 1
      %v1029 = vsel %vm1002, %v1027, %v1028
      %v1030 = vrot.slane %v988, 1
      %v1031 = vrot.slane %v989, 1
      %v1032 = vsel %vm1002, %v1030, %v1031
      %v1033 = vrot.slane %v990, 1
      %v1034 = vrot.slane %v991, 1
      %v1035 = vsel %vm1002, %v1033, %v1034
      %v1036 = vrot.slane %v992, 1
      %v1037 = vrot.slane %v993, 1
      %v1038 = vsel %vm1002, %v1036, %v1037
      %v1039 = vrot.slane %v994, 1
      %v1040 = vrot.slane %v995, 1
      %v1041 = vsel %vm1002, %v1039, %v1040
      %v1042 = vrot.slane %v996, 1
      %v1043 = vrot.slane %v997, 1
      %v1044 = vsel %vm1002, %v1042, %v1043
      %v1045 = vrot.slane %v998, 1
      %v1046 = vrot.slane %v999, 1
      %v1047 = vsel %vm1002, %v1045, %v1046
      %v1048 = vrot.slane %v1000, 1
      %v1049 = vrot.slane %v1001, 1
      %v1050 = vsel %vm1002, %v1048, %v1049
      %1051 = vrot.lane.b32.xlu0 %v1005, 8
      %v1052 = vpop.permute.xlu0 %1051
      %1053 = vrot.lane.b32.xlu0 %v1008, 8
      %v1054 = vpop.permute.xlu0 %1053
      %1055 = vrot.lane.b32.xlu0 %v1011, 8
      %v1056 = vpop.permute.xlu0 %1055
      %1057 = vrot.lane.b32.xlu0 %v1014, 8
      %v1058 = vpop.permute.xlu0 %1057
      %1059 = vrot.lane.b32.xlu0 %v1017, 8
      %v1060 = vpop.permute.xlu0 %1059
      %1061 = vrot.lane.b32.xlu0 %v1020, 8
      %v1062 = vpop.permute.xlu0 %1061
      %1063 = vrot.lane.b32.xlu0 %v1023, 8
      %v1064 = vpop.permute.xlu0 %1063
      %1065 = vrot.lane.b32.xlu0 %v1026, 8
      %v1066 = vpop.permute.xlu0 %1065
      %1067 = vrot.lane.b32.xlu0 %v1029, 8
      %v1068 = vpop.permute.xlu0 %1067
      %1069 = vrot.lane.b32.xlu0 %v1032, 8
      %v1070 = vpop.permute.xlu0 %1069
      %1071 = vrot.lane.b32.xlu0 %v1035, 8
      %v1072 = vpop.permute.xlu0 %1071
      %1073 = vrot.lane.b32.xlu0 %v1038, 8
      %v1074 = vpop.permute.xlu0 %1073
      %1075 = vrot.lane.b32.xlu0 %v1041, 8
      %v1076 = vpop.permute.xlu0 %1075
      %1077 = vrot.lane.b32.xlu0 %v1044, 8
      %v1078 = vpop.permute.xlu0 %1077
      %1079 = vrot.lane.b32.xlu0 %v1047, 8
      %v1080 = vpop.permute.xlu0 %1079
      %1081 = vrot.lane.b32.xlu0 %v1050, 8
      %v1082 = vpop.permute.xlu0 %1081
      %vm1099 = vcmask 97344
      %1100 = vst.msk [vmem:[#allocation2] sm:$0xff] %vm1099, %v1052
      %1101 = vst.msk [vmem:[#allocation2 + $0x8] sm:$0xff] %vm1099, %v1054
      %1102 = vst.msk [vmem:[#allocation2 + $0x10] sm:$0xff] %vm1099, %v1056
      %1103 = vst.msk [vmem:[#allocation2 + $0x18] sm:$0xff] %vm1099, %v1058
      %1104 = vst.msk [vmem:[#allocation2 + $0x20] sm:$0xff] %vm1099, %v1060
      %1105 = vst.msk [vmem:[#allocation2 + $0x28] sm:$0xff] %vm1099, %v1062
      %1106 = vst.msk [vmem:[#allocation2 + $0x30] sm:$0xff] %vm1099, %v1064
      %1107 = vst.msk [vmem:[#allocation2 + $0x38] sm:$0xff] %vm1099, %v1066
      %1108 = vst.msk [vmem:[#allocation2 + $0x40] sm:$0xff] %vm1099, %v1068
      %1109 = vst.msk [vmem:[#allocation2 + $0x48] sm:$0xff] %vm1099, %v1070
      %1110 = vst.msk [vmem:[#allocation2 + $0x50] sm:$0xff] %vm1099, %v1072
      %1111 = vst.msk [vmem:[#allocation2 + $0x58] sm:$0xff] %vm1099, %v1074
      %1112 = vst.msk [vmem:[#allocation2 + $0x60] sm:$0xff] %vm1099, %v1076
      %1113 = vst.msk [vmem:[#allocation2 + $0x68] sm:$0xff] %vm1099, %v1078
      %1114 = vst.msk [vmem:[#allocation2 + $0x70] sm:$0xff] %vm1099, %v1080
      %1115 = vst.msk [vmem:[#allocation2 + $0x78] sm:$0xff] %vm1099, %v1082
      %s1116 = scalar_lea.vmem %s231, 12
      %v1117 = vld [vmem:[%s1116] sm:$0xf]
      %v1118 = vld [vmem:[%s1116 + $0x4] sm:$0xf]
      %v1119 = vld [vmem:[%s1116 + $0xc] sm:$0xf]
      %v1120 = vld [vmem:[%s1116 + $0x10] sm:$0xf]
      %v1121 = vld [vmem:[%s1116 + $0x18] sm:$0xf]
      %v1122 = vld [vmem:[%s1116 + $0x1c] sm:$0xf]
      %v1123 = vld [vmem:[%s1116 + $0x24] sm:$0xf]
      %v1124 = vld [vmem:[%s1116 + $0x28] sm:$0xf]
      %v1125 = vld [vmem:[%s1116 + $0x30] sm:$0xf]
      %v1126 = vld [vmem:[%s1116 + $0x34] sm:$0xf]
      %v1127 = vld [vmem:[%s1116 + $0x3c] sm:$0xf]
      %v1128 = vld [vmem:[%s1116 + $0x40] sm:$0xf]
      %v1129 = vld [vmem:[%s1116 + $0x48] sm:$0xf]
      %v1130 = vld [vmem:[%s1116 + $0x4c] sm:$0xf]
      %v1131 = vld [vmem:[%s1116 + $0x54] sm:$0xf]
      %v1132 = vld [vmem:[%s1116 + $0x58] sm:$0xf]
      %v1133 = vld [vmem:[%s1116 + $0x60] sm:$0xf]
      %v1134 = vld [vmem:[%s1116 + $0x64] sm:$0xf]
      %v1135 = vld [vmem:[%s1116 + $0x6c] sm:$0xf]
      %v1136 = vld [vmem:[%s1116 + $0x70] sm:$0xf]
      %v1137 = vld [vmem:[%s1116 + $0x78] sm:$0xf]
      %v1138 = vld [vmem:[%s1116 + $0x7c] sm:$0xf]
      %v1139 = vld [vmem:[%s1116 + $0x84] sm:$0xf]
      %v1140 = vld [vmem:[%s1116 + $0x88] sm:$0xf]
      %v1141 = vld [vmem:[%s1116 + $0x90] sm:$0xf]
      %v1142 = vld [vmem:[%s1116 + $0x94] sm:$0xf]
      %v1143 = vld [vmem:[%s1116 + $0x9c] sm:$0xf]
      %v1144 = vld [vmem:[%s1116 + $0xa0] sm:$0xf]
      %v1145 = vld [vmem:[%s1116 + $0xa8] sm:$0xf]
      %v1146 = vld [vmem:[%s1116 + $0xac] sm:$0xf]
      %v1147 = vld [vmem:[%s1116 + $0xb4] sm:$0xf]
      %v1148 = vld [vmem:[%s1116 + $0xb8] sm:$0xf]
      %v1181 = vunpack.c.l.b16 %v1117
      %v1182 = vunpack.c.l.b16 %v1118
      %v1183 = vunpack.c.l.b16 %v1119
      %v1184 = vunpack.c.l.b16 %v1120
      %v1185 = vunpack.c.l.b16 %v1121
      %v1186 = vunpack.c.l.b16 %v1122
      %v1187 = vunpack.c.l.b16 %v1123
      %v1188 = vunpack.c.l.b16 %v1124
      %v1189 = vunpack.c.l.b16 %v1125
      %v1190 = vunpack.c.l.b16 %v1126
      %v1191 = vunpack.c.l.b16 %v1127
      %v1192 = vunpack.c.l.b16 %v1128
      %v1193 = vunpack.c.l.b16 %v1129
      %v1194 = vunpack.c.l.b16 %v1130
      %v1195 = vunpack.c.l.b16 %v1131
      %v1196 = vunpack.c.l.b16 %v1132
      %v1197 = vunpack.c.l.b16 %v1133
      %v1198 = vunpack.c.l.b16 %v1134
      %v1199 = vunpack.c.l.b16 %v1135
      %v1200 = vunpack.c.l.b16 %v1136
      %v1201 = vunpack.c.l.b16 %v1137
      %v1202 = vunpack.c.l.b16 %v1138
      %v1203 = vunpack.c.l.b16 %v1139
      %v1204 = vunpack.c.l.b16 %v1140
      %v1205 = vunpack.c.l.b16 %v1141
      %v1206 = vunpack.c.l.b16 %v1142
      %v1207 = vunpack.c.l.b16 %v1143
      %v1208 = vunpack.c.l.b16 %v1144
      %v1209 = vunpack.c.l.b16 %v1145
      %v1210 = vunpack.c.l.b16 %v1146
      %v1211 = vunpack.c.l.b16 %v1147
      %v1212 = vunpack.c.l.b16 %v1148
      %v1213 = vpack.c.b16 %v1182, %v1181
      %v1214 = vpack.c.b16 %v1184, %v1183
      %v1215 = vpack.c.b16 %v1186, %v1185
      %v1216 = vpack.c.b16 %v1188, %v1187
      %v1217 = vpack.c.b16 %v1190, %v1189
      %v1218 = vpack.c.b16 %v1192, %v1191
      %v1219 = vpack.c.b16 %v1194, %v1193
      %v1220 = vpack.c.b16 %v1196, %v1195
      %v1221 = vpack.c.b16 %v1198, %v1197
      %v1222 = vpack.c.b16 %v1200, %v1199
      %v1223 = vpack.c.b16 %v1202, %v1201
      %v1224 = vpack.c.b16 %v1204, %v1203
      %v1225 = vpack.c.b16 %v1206, %v1205
      %v1226 = vpack.c.b16 %v1208, %v1207
      %v1227 = vpack.c.b16 %v1210, %v1209
      %v1228 = vpack.c.b16 %v1212, %v1211
      %1229 = vrot.lane.b32.xlu0 %v1213, 12
      %v1230 = vpop.permute.xlu0 %1229
      %1231 = vrot.lane.b32.xlu0 %v1214, 12
      %v1232 = vpop.permute.xlu0 %1231
      %1233 = vrot.lane.b32.xlu0 %v1215, 12
      %v1234 = vpop.permute.xlu0 %1233
      %1235 = vrot.lane.b32.xlu0 %v1216, 12
      %v1236 = vpop.permute.xlu0 %1235
      %1237 = vrot.lane.b32.xlu0 %v1217, 12
      %v1238 = vpop.permute.xlu0 %1237
      %1239 = vrot.lane.b32.xlu0 %v1218, 12
      %v1240 = vpop.permute.xlu0 %1239
      %1241 = vrot.lane.b32.xlu0 %v1219, 12
      %v1242 = vpop.permute.xlu0 %1241
      %1243 = vrot.lane.b32.xlu0 %v1220, 12
      %v1244 = vpop.permute.xlu0 %1243
      %1245 = vrot.lane.b32.xlu0 %v1221, 12
      %v1246 = vpop.permute.xlu0 %1245
      %1247 = vrot.lane.b32.xlu0 %v1222, 12
      %v1248 = vpop.permute.xlu0 %1247
      %1249 = vrot.lane.b32.xlu0 %v1223, 12
      %v1250 = vpop.permute.xlu0 %1249
      %1251 = vrot.lane.b32.xlu0 %v1224, 12
      %v1252 = vpop.permute.xlu0 %1251
      %1253 = vrot.lane.b32.xlu0 %v1225, 12
      %v1254 = vpop.permute.xlu0 %1253
      %1255 = vrot.lane.b32.xlu0 %v1226, 12
      %v1256 = vpop.permute.xlu0 %1255
      %1257 = vrot.lane.b32.xlu0 %v1227, 12
      %v1258 = vpop.permute.xlu0 %1257
      %1259 = vrot.lane.b32.xlu0 %v1228, 12
      %v1260 = vpop.permute.xlu0 %1259
      %vm1277 = vcmask 130144
      %1278 = vst.msk [vmem:[#allocation2] sm:$0xff] %vm1277, %v1230
      %1279 = vst.msk [vmem:[#allocation2 + $0x8] sm:$0xff] %vm1277, %v1232
      %1280 = vst.msk [vmem:[#allocation2 + $0x10] sm:$0xff] %vm1277, %v1234
      %1281 = vst.msk [vmem:[#allocation2 + $0x18] sm:$0xff] %vm1277, %v1236
      %1282 = vst.msk [vmem:[#allocation2 + $0x20] sm:$0xff] %vm1277, %v1238
      %1283 = vst.msk [vmem:[#allocation2 + $0x28] sm:$0xff] %vm1277, %v1240
      %1284 = vst.msk [vmem:[#allocation2 + $0x30] sm:$0xff] %vm1277, %v1242
      %1285 = vst.msk [vmem:[#allocation2 + $0x38] sm:$0xff] %vm1277, %v1244
      %1286 = vst.msk [vmem:[#allocation2 + $0x40] sm:$0xff] %vm1277, %v1246
      %1287 = vst.msk [vmem:[#allocation2 + $0x48] sm:$0xff] %vm1277, %v1248
      %1288 = vst.msk [vmem:[#allocation2 + $0x50] sm:$0xff] %vm1277, %v1250
      %1289 = vst.msk [vmem:[#allocation2 + $0x58] sm:$0xff] %vm1277, %v1252
      %1290 = vst.msk [vmem:[#allocation2 + $0x60] sm:$0xff] %vm1277, %v1254
      %1291 = vst.msk [vmem:[#allocation2 + $0x68] sm:$0xff] %vm1277, %v1256
      %1292 = vst.msk [vmem:[#allocation2 + $0x70] sm:$0xff] %vm1277, %v1258
      %1293 = vst.msk [vmem:[#allocation2 + $0x78] sm:$0xff] %vm1277, %v1260
      %v1294 = vld [vmem:[%s1116] sm:$0xf]
      %v1295 = vld [vmem:[%s1116 + $0x4] sm:$0xf]
      %v1296 = vld [vmem:[%s1116 + $0x8] sm:$0x1]
      %v1297 = vld [vmem:[%s1116 + $0xc] sm:$0xf]
      %v1298 = vld [vmem:[%s1116 + $0x10] sm:$0xf]
      %v1299 = vld [vmem:[%s1116 + $0x14] sm:$0x1]
      %v1300 = vld [vmem:[%s1116 + $0x18] sm:$0xf]
      %v1301 = vld [vmem:[%s1116 + $0x1c] sm:$0xf]
      %v1302 = vld [vmem:[%s1116 + $0x20] sm:$0x1]
      %v1303 = vld [vmem:[%s1116 + $0x24] sm:$0xf]
      %v1304 = vld [vmem:[%s1116 + $0x28] sm:$0xf]
      %v1305 = vld [vmem:[%s1116 + $0x2c] sm:$0x1]
      %v1306 = vld [vmem:[%s1116 + $0x30] sm:$0xf]
      %v1307 = vld [vmem:[%s1116 + $0x34] sm:$0xf]
      %v1308 = vld [vmem:[%s1116 + $0x38] sm:$0x1]
      %v1309 = vld [vmem:[%s1116 + $0x3c] sm:$0xf]
      %v1310 = vld [vmem:[%s1116 + $0x40] sm:$0xf]
      %v1311 = vld [vmem:[%s1116 + $0x44] sm:$0x1]
      %v1312 = vld [vmem:[%s1116 + $0x48] sm:$0xf]
      %v1313 = vld [vmem:[%s1116 + $0x4c] sm:$0xf]
      %v1314 = vld [vmem:[%s1116 + $0x50] sm:$0x1]
      %v1315 = vld [vmem:[%s1116 + $0x54] sm:$0xf]
      %v1316 = vld [vmem:[%s1116 + $0x58] sm:$0xf]
      %v1317 = vld [vmem:[%s1116 + $0x5c] sm:$0x1]
      %v1318 = vld [vmem:[%s1116 + $0x60] sm:$0xf]
      %v1319 = vld [vmem:[%s1116 + $0x64] sm:$0xf]
      %v1320 = vld [vmem:[%s1116 + $0x68] sm:$0x1]
      %v1321 = vld [vmem:[%s1116 + $0x6c] sm:$0xf]
      %v1322 = vld [vmem:[%s1116 + $0x70] sm:$0xf]
      %v1323 = vld [vmem:[%s1116 + $0x74] sm:$0x1]
      %v1324 = vld [vmem:[%s1116 + $0x78] sm:$0xf]
      %v1325 = vld [vmem:[%s1116 + $0x7c] sm:$0xf]
      %v1326 = vld [vmem:[%s1116 + $0x80] sm:$0x1]
      %v1327 = vld [vmem:[%s1116 + $0x84] sm:$0xf]
      %v1328 = vld [vmem:[%s1116 + $0x88] sm:$0xf]
      %v1329 = vld [vmem:[%s1116 + $0x8c] sm:$0x1]
      %v1330 = vld [vmem:[%s1116 + $0x90] sm:$0xf]
      %v1331 = vld [vmem:[%s1116 + $0x94] sm:$0xf]
      %v1332 = vld [vmem:[%s1116 + $0x98] sm:$0x1]
      %v1333 = vld [vmem:[%s1116 + $0x9c] sm:$0xf]
      %v1334 = vld [vmem:[%s1116 + $0xa0] sm:$0xf]
      %v1335 = vld [vmem:[%s1116 + $0xa4] sm:$0x1]
      %v1336 = vld [vmem:[%s1116 + $0xa8] sm:$0xf]
      %v1337 = vld [vmem:[%s1116 + $0xac] sm:$0xf]
      %v1338 = vld [vmem:[%s1116 + $0xb0] sm:$0x1]
      %v1339 = vld [vmem:[%s1116 + $0xb4] sm:$0xf]
      %v1340 = vld [vmem:[%s1116 + $0xb8] sm:$0xf]
      %v1341 = vld [vmem:[%s1116 + $0xbc] sm:$0x1]
      %v1390 = vunpack.c.l.b16 %v1294
      %v1391 = vunpack.c.l.b16 %v1295
      %v1392 = vunpack.c.l.b16 %v1296
      %v1393 = vunpack.c.l.b16 %v1297
      %v1394 = vunpack.c.l.b16 %v1298
      %v1395 = vunpack.c.l.b16 %v1299
      %v1396 = vunpack.c.l.b16 %v1300
      %v1397 = vunpack.c.l.b16 %v1301
      %v1398 = vunpack.c.l.b16 %v1302
      %v1399 = vunpack.c.l.b16 %v1303
      %v1400 = vunpack.c.l.b16 %v1304
      %v1401 = vunpack.c.l.b16 %v1305
      %v1402 = vunpack.c.l.b16 %v1306
      %v1403 = vunpack.c.l.b16 %v1307
      %v1404 = vunpack.c.l.b16 %v1308
      %v1405 = vunpack.c.l.b16 %v1309
      %v1406 = vunpack.c.l.b16 %v1310
      %v1407 = vunpack.c.l.b16 %v1311
      %v1408 = vunpack.c.l.b16 %v1312
      %v1409 = vunpack.c.l.b16 %v1313
      %v1410 = vunpack.c.l.b16 %v1314
      %v1411 = vunpack.c.l.b16 %v1315
      %v1412 = vunpack.c.l.b16 %v1316
      %v1413 = vunpack.c.l.b16 %v1317
      %v1414 = vunpack.c.l.b16 %v1318
      %v1415 = vunpack.c.l.b16 %v1319
      %v1416 = vunpack.c.l.b16 %v1320
      %v1417 = vunpack.c.l.b16 %v1321
      %v1418 = vunpack.c.l.b16 %v1322
      %v1419 = vunpack.c.l.b16 %v1323
      %v1420 = vunpack.c.l.b16 %v1324
      %v1421 = vunpack.c.l.b16 %v1325
      %v1422 = vunpack.c.l.b16 %v1326
      %v1423 = vunpack.c.l.b16 %v1327
      %v1424 = vunpack.c.l.b16 %v1328
      %v1425 = vunpack.c.l.b16 %v1329
      %v1426 = vunpack.c.l.b16 %v1330
      %v1427 = vunpack.c.l.b16 %v1331
      %v1428 = vunpack.c.l.b16 %v1332
      %v1429 = vunpack.c.l.b16 %v1333
      %v1430 = vunpack.c.l.b16 %v1334
      %v1431 = vunpack.c.l.b16 %v1335
      %v1432 = vunpack.c.l.b16 %v1336
      %v1433 = vunpack.c.l.b16 %v1337
      %v1434 = vunpack.c.l.b16 %v1338
      %v1435 = vunpack.c.l.b16 %v1339
      %v1436 = vunpack.c.l.b16 %v1340
      %v1437 = vunpack.c.l.b16 %v1341
      %v1438 = vpack.c.b16 %v1391, %v1390
      %v1439 = vpack.c.b16 %v1392, %v1392
      %v1440 = vpack.c.b16 %v1394, %v1393
      %v1441 = vpack.c.b16 %v1395, %v1395
      %v1442 = vpack.c.b16 %v1397, %v1396
      %v1443 = vpack.c.b16 %v1398, %v1398
      %v1444 = vpack.c.b16 %v1400, %v1399
      %v1445 = vpack.c.b16 %v1401, %v1401
      %v1446 = vpack.c.b16 %v1403, %v1402
      %v1447 = vpack.c.b16 %v1404, %v1404
      %v1448 = vpack.c.b16 %v1406, %v1405
      %v1449 = vpack.c.b16 %v1407, %v1407
      %v1450 = vpack.c.b16 %v1409, %v1408
      %v1451 = vpack.c.b16 %v1410, %v1410
      %v1452 = vpack.c.b16 %v1412, %v1411
      %v1453 = vpack.c.b16 %v1413, %v1413
      %v1454 = vpack.c.b16 %v1415, %v1414
      %v1455 = vpack.c.b16 %v1416, %v1416
      %v1456 = vpack.c.b16 %v1418, %v1417
      %v1457 = vpack.c.b16 %v1419, %v1419
      %v1458 = vpack.c.b16 %v1421, %v1420
      %v1459 = vpack.c.b16 %v1422, %v1422
      %v1460 = vpack.c.b16 %v1424, %v1423
      %v1461 = vpack.c.b16 %v1425, %v1425
      %v1462 = vpack.c.b16 %v1427, %v1426
      %v1463 = vpack.c.b16 %v1428, %v1428
      %v1464 = vpack.c.b16 %v1430, %v1429
      %v1465 = vpack.c.b16 %v1431, %v1431
      %v1466 = vpack.c.b16 %v1433, %v1432
      %v1467 = vpack.c.b16 %v1434, %v1434
      %v1468 = vpack.c.b16 %v1436, %v1435
      %v1469 = vpack.c.b16 %v1437, %v1437
      %v1471 = vshrl.u32 %v1438, 16
      %v1473 = vshll.u32 %v1438, 16
      %v1475 = vrot.slane %v1473, 1
      %v1476 = vor.u32 %v1471, %v1475
      %v1478 = vshll.u32 %v1439, 16
      %v1480 = vrot.slane %v1478, 1
      %v1481 = vsel %vm568, %v1476, %v1480
      %v1483 = vshrl.u32 %v1440, 16
      %v1485 = vshll.u32 %v1440, 16
      %v1487 = vrot.slane %v1485, 1
      %v1488 = vor.u32 %v1483, %v1487
      %v1490 = vshll.u32 %v1441, 16
      %v1492 = vrot.slane %v1490, 1
      %v1493 = vsel %vm568, %v1488, %v1492
      %v1495 = vshrl.u32 %v1442, 16
      %v1497 = vshll.u32 %v1442, 16
      %v1499 = vrot.slane %v1497, 1
      %v1500 = vor.u32 %v1495, %v1499
      %v1502 = vshll.u32 %v1443, 16
      %v1504 = vrot.slane %v1502, 1
      %v1505 = vsel %vm568, %v1500, %v1504
      %v1507 = vshrl.u32 %v1444, 16
      %v1509 = vshll.u32 %v1444, 16
      %v1511 = vrot.slane %v1509, 1
      %v1512 = vor.u32 %v1507, %v1511
      %v1514 = vshll.u32 %v1445, 16
      %v1516 = vrot.slane %v1514, 1
      %v1517 = vsel %vm568, %v1512, %v1516
      %v1519 = vshrl.u32 %v1446, 16
      %v1521 = vshll.u32 %v1446, 16
      %v1523 = vrot.slane %v1521, 1
      %v1524 = vor.u32 %v1519, %v1523
      %v1526 = vshll.u32 %v1447, 16
      %v1528 = vrot.slane %v1526, 1
      %v1529 = vsel %vm568, %v1524, %v1528
      %v1531 = vshrl.u32 %v1448, 16
      %v1533 = vshll.u32 %v1448, 16
      %v1535 = vrot.slane %v1533, 1
      %v1536 = vor.u32 %v1531, %v1535
      %v1538 = vshll.u32 %v1449, 16
      %v1540 = vrot.slane %v1538, 1
      %v1541 = vsel %vm568, %v1536, %v1540
      %v1543 = vshrl.u32 %v1450, 16
      %v1545 = vshll.u32 %v1450, 16
      %v1547 = vrot.slane %v1545, 1
      %v1548 = vor.u32 %v1543, %v1547
      %v1550 = vshll.u32 %v1451, 16
      %v1552 = vrot.slane %v1550, 1
      %v1553 = vsel %vm568, %v1548, %v1552
      %v1555 = vshrl.u32 %v1452, 16
      %v1557 = vshll.u32 %v1452, 16
      %v1559 = vrot.slane %v1557, 1
      %v1560 = vor.u32 %v1555, %v1559
      %v1562 = vshll.u32 %v1453, 16
      %v1564 = vrot.slane %v1562, 1
      %v1565 = vsel %vm568, %v1560, %v1564
      %v1567 = vshrl.u32 %v1454, 16
      %v1569 = vshll.u32 %v1454, 16
      %v1571 = vrot.slane %v1569, 1
      %v1572 = vor.u32 %v1567, %v1571
      %v1574 = vshll.u32 %v1455, 16
      %v1576 = vrot.slane %v1574, 1
      %v1577 = vsel %vm568, %v1572, %v1576
      %v1579 = vshrl.u32 %v1456, 16
      %v1581 = vshll.u32 %v1456, 16
      %v1583 = vrot.slane %v1581, 1
      %v1584 = vor.u32 %v1579, %v1583
      %v1586 = vshll.u32 %v1457, 16
      %v1588 = vrot.slane %v1586, 1
      %v1589 = vsel %vm568, %v1584, %v1588
      %v1591 = vshrl.u32 %v1458, 16
      %v1593 = vshll.u32 %v1458, 16
      %v1595 = vrot.slane %v1593, 1
      %v1596 = vor.u32 %v1591, %v1595
      %v1598 = vshll.u32 %v1459, 16
      %v1600 = vrot.slane %v1598, 1
      %v1601 = vsel %vm568, %v1596, %v1600
      %v1603 = vshrl.u32 %v1460, 16
      %v1605 = vshll.u32 %v1460, 16
      %v1607 = vrot.slane %v1605, 1
      %v1608 = vor.u32 %v1603, %v1607
      %v1610 = vshll.u32 %v1461, 16
      %v1612 = vrot.slane %v1610, 1
      %v1613 = vsel %vm568, %v1608, %v1612
      %v1615 = vshrl.u32 %v1462, 16
      %v1617 = vshll.u32 %v1462, 16
      %v1619 = vrot.slane %v1617, 1
      %v1620 = vor.u32 %v1615, %v1619
      %v1622 = vshll.u32 %v1463, 16
      %v1624 = vrot.slane %v1622, 1
      %v1625 = vsel %vm568, %v1620, %v1624
      %v1627 = vshrl.u32 %v1464, 16
      %v1629 = vshll.u32 %v1464, 16
      %v1631 = vrot.slane %v1629, 1
      %v1632 = vor.u32 %v1627, %v1631
      %v1634 = vshll.u32 %v1465, 16
      %v1636 = vrot.slane %v1634, 1
      %v1637 = vsel %vm568, %v1632, %v1636
      %v1639 = vshrl.u32 %v1466, 16
      %v1641 = vshll.u32 %v1466, 16
      %v1643 = vrot.slane %v1641, 1
      %v1644 = vor.u32 %v1639, %v1643
      %v1646 = vshll.u32 %v1467, 16
      %v1648 = vrot.slane %v1646, 1
      %v1649 = vsel %vm568, %v1644, %v1648
      %v1651 = vshrl.u32 %v1468, 16
      %v1653 = vshll.u32 %v1468, 16
      %v1655 = vrot.slane %v1653, 1
      %v1656 = vor.u32 %v1651, %v1655
      %v1658 = vshll.u32 %v1469, 16
      %v1660 = vrot.slane %v1658, 1
      %v1661 = vsel %vm568, %v1656, %v1660
      %1662 = vrot.lane.b32.xlu0 %v1481, 16
      %v1663 = vpop.permute.xlu0 %1662
      %1664 = vrot.lane.b32.xlu0 %v1493, 16
      %v1665 = vpop.permute.xlu0 %1664
      %1666 = vrot.lane.b32.xlu0 %v1505, 16
      %v1667 = vpop.permute.xlu0 %1666
      %1668 = vrot.lane.b32.xlu0 %v1517, 16
      %v1669 = vpop.permute.xlu0 %1668
      %1670 = vrot.lane.b32.xlu0 %v1529, 16
      %v1671 = vpop.permute.xlu0 %1670
      %1672 = vrot.lane.b32.xlu0 %v1541, 16
      %v1673 = vpop.permute.xlu0 %1672
      %1674 = vrot.lane.b32.xlu0 %v1553, 16
      %v1675 = vpop.permute.xlu0 %1674
      %1676 = vrot.lane.b32.xlu0 %v1565, 16
      %v1677 = vpop.permute.xlu0 %1676
      %1678 = vrot.lane.b32.xlu0 %v1577, 16
      %v1679 = vpop.permute.xlu0 %1678
      %1680 = vrot.lane.b32.xlu0 %v1589, 16
      %v1681 = vpop.permute.xlu0 %1680
      %1682 = vrot.lane.b32.xlu0 %v1601, 16
      %v1683 = vpop.permute.xlu0 %1682
      %1684 = vrot.lane.b32.xlu0 %v1613, 16
      %v1685 = vpop.permute.xlu0 %1684
      %1686 = vrot.lane.b32.xlu0 %v1625, 16
      %v1687 = vpop.permute.xlu0 %1686
      %1688 = vrot.lane.b32.xlu0 %v1637, 16
      %v1689 = vpop.permute.xlu0 %1688
      %1690 = vrot.lane.b32.xlu0 %v1649, 16
      %v1691 = vpop.permute.xlu0 %1690
      %1692 = vrot.lane.b32.xlu0 %v1661, 16
      %v1693 = vpop.permute.xlu0 %1692
      %vm1710 = vcmask 162944
      %1711 = vst.msk [vmem:[#allocation2] sm:$0xff] %vm1710, %v1663
      %1712 = vst.msk [vmem:[#allocation2 + $0x8] sm:$0xff] %vm1710, %v1665
      %1713 = vst.msk [vmem:[#allocation2 + $0x10] sm:$0xff] %vm1710, %v1667
      %1714 = vst.msk [vmem:[#allocation2 + $0x18] sm:$0xff] %vm1710, %v1669
      %1715 = vst.msk [vmem:[#allocation2 + $0x20] sm:$0xff] %vm1710, %v1671
      %1716 = vst.msk [vmem:[#allocation2 + $0x28] sm:$0xff] %vm1710, %v1673
      %1717 = vst.msk [vmem:[#allocation2 + $0x30] sm:$0xff] %vm1710, %v1675
      %1718 = vst.msk [vmem:[#allocation2 + $0x38] sm:$0xff] %vm1710, %v1677
      %1719 = vst.msk [vmem:[#allocation2 + $0x40] sm:$0xff] %vm1710, %v1679
      %1720 = vst.msk [vmem:[#allocation2 + $0x48] sm:$0xff] %vm1710, %v1681
      %1721 = vst.msk [vmem:[#allocation2 + $0x50] sm:$0xff] %vm1710, %v1683
      %1722 = vst.msk [vmem:[#allocation2 + $0x58] sm:$0xff] %vm1710, %v1685
      %1723 = vst.msk [vmem:[#allocation2 + $0x60] sm:$0xff] %vm1710, %v1687
      %1724 = vst.msk [vmem:[#allocation2 + $0x68] sm:$0xff] %vm1710, %v1689
      %1725 = vst.msk [vmem:[#allocation2 + $0x70] sm:$0xff] %vm1710, %v1691
      %1726 = vst.msk [vmem:[#allocation2 + $0x78] sm:$0xff] %vm1710, %v1693
      %v1727 = vld [vmem:[%s1116] sm:$0xe]
      %v1728 = vld [vmem:[%s1116 + $0x4] sm:$0xf]
      %v1729 = vld [vmem:[%s1116 + $0x8] sm:$0x1]
      %v1730 = vld [vmem:[%s1116 + $0xc] sm:$0xe]
      %v1731 = vld [vmem:[%s1116 + $0x10] sm:$0xf]
      %v1732 = vld [vmem:[%s1116 + $0x14] sm:$0x1]
      %v1733 = vld [vmem:[%s1116 + $0x18] sm:$0xe]
      %v1734 = vld [vmem:[%s1116 + $0x1c] sm:$0xf]
      %v1735 = vld [vmem:[%s1116 + $0x20] sm:$0x1]
      %v1736 = vld [vmem:[%s1116 + $0x24] sm:$0xe]
      %v1737 = vld [vmem:[%s1116 + $0x28] sm:$0xf]
      %v1738 = vld [vmem:[%s1116 + $0x2c] sm:$0x1]
      %v1739 = vld [vmem:[%s1116 + $0x30] sm:$0xe]
      %v1740 = vld [vmem:[%s1116 + $0x34] sm:$0xf]
      %v1741 = vld [vmem:[%s1116 + $0x38] sm:$0x1]
      %v1742 = vld [vmem:[%s1116 + $0x3c] sm:$0xe]
      %v1743 = vld [vmem:[%s1116 + $0x40] sm:$0xf]
      %v1744 = vld [vmem:[%s1116 + $0x44] sm:$0x1]
      %v1745 = vld [vmem:[%s1116 + $0x48] sm:$0xe]
      %v1746 = vld [vmem:[%s1116 + $0x4c] sm:$0xf]
      %v1747 = vld [vmem:[%s1116 + $0x50] sm:$0x1]
      %v1748 = vld [vmem:[%s1116 + $0x54] sm:$0xe]
      %v1749 = vld [vmem:[%s1116 + $0x58] sm:$0xf]
      %v1750 = vld [vmem:[%s1116 + $0x5c] sm:$0x1]
      %v1751 = vld [vmem:[%s1116 + $0x60] sm:$0xe]
      %v1752 = vld [vmem:[%s1116 + $0x64] sm:$0xf]
      %v1753 = vld [vmem:[%s1116 + $0x68] sm:$0x1]
      %v1754 = vld [vmem:[%s1116 + $0x6c] sm:$0xe]
      %v1755 = vld [vmem:[%s1116 + $0x70] sm:$0xf]
      %v1756 = vld [vmem:[%s1116 + $0x74] sm:$0x1]
      %v1757 = vld [vmem:[%s1116 + $0x78] sm:$0xe]
      %v1758 = vld [vmem:[%s1116 + $0x7c] sm:$0xf]
      %v1759 = vld [vmem:[%s1116 + $0x80] sm:$0x1]
      %v1760 = vld [vmem:[%s1116 + $0x84] sm:$0xe]
      %v1761 = vld [vmem:[%s1116 + $0x88] sm:$0xf]
      %v1762 = vld [vmem:[%s1116 + $0x8c] sm:$0x1]
      %v1763 = vld [vmem:[%s1116 + $0x90] sm:$0xe]
      %v1764 = vld [vmem:[%s1116 + $0x94] sm:$0xf]
      %v1765 = vld [vmem:[%s1116 + $0x98] sm:$0x1]
      %v1766 = vld [vmem:[%s1116 + $0x9c] sm:$0xe]
      %v1767 = vld [vmem:[%s1116 + $0xa0] sm:$0xf]
      %v1768 = vld [vmem:[%s1116 + $0xa4] sm:$0x1]
      %v1769 = vld [vmem:[%s1116 + $0xa8] sm:$0xe]
      %v1770 = vld [vmem:[%s1116 + $0xac] sm:$0xf]
      %v1771 = vld [vmem:[%s1116 + $0xb0] sm:$0x1]
      %v1772 = vld [vmem:[%s1116 + $0xb4] sm:$0xe]
      %v1773 = vld [vmem:[%s1116 + $0xb8] sm:$0xf]
      %v1774 = vld [vmem:[%s1116 + $0xbc] sm:$0x1]
      %v1823 = vunpack.c.l.b16 %v1727
      %v1824 = vunpack.c.l.b16 %v1728
      %v1825 = vunpack.c.l.b16 %v1729
      %v1826 = vunpack.c.l.b16 %v1730
      %v1827 = vunpack.c.l.b16 %v1731
      %v1828 = vunpack.c.l.b16 %v1732
      %v1829 = vunpack.c.l.b16 %v1733
      %v1830 = vunpack.c.l.b16 %v1734
      %v1831 = vunpack.c.l.b16 %v1735
      %v1832 = vunpack.c.l.b16 %v1736
      %v1833 = vunpack.c.l.b16 %v1737
      %v1834 = vunpack.c.l.b16 %v1738
      %v1835 = vunpack.c.l.b16 %v1739
      %v1836 = vunpack.c.l.b16 %v1740
      %v1837 = vunpack.c.l.b16 %v1741
      %v1838 = vunpack.c.l.b16 %v1742
      %v1839 = vunpack.c.l.b16 %v1743
      %v1840 = vunpack.c.l.b16 %v1744
      %v1841 = vunpack.c.l.b16 %v1745
      %v1842 = vunpack.c.l.b16 %v1746
      %v1843 = vunpack.c.l.b16 %v1747
      %v1844 = vunpack.c.l.b16 %v1748
      %v1845 = vunpack.c.l.b16 %v1749
      %v1846 = vunpack.c.l.b16 %v1750
      %v1847 = vunpack.c.l.b16 %v1751
      %v1848 = vunpack.c.l.b16 %v1752
      %v1849 = vunpack.c.l.b16 %v1753
      %v1850 = vunpack.c.l.b16 %v1754
      %v1851 = vunpack.c.l.b16 %v1755
      %v1852 = vunpack.c.l.b16 %v1756
      %v1853 = vunpack.c.l.b16 %v1757
      %v1854 = vunpack.c.l.b16 %v1758
      %v1855 = vunpack.c.l.b16 %v1759
      %v1856 = vunpack.c.l.b16 %v1760
      %v1857 = vunpack.c.l.b16 %v1761
      %v1858 = vunpack.c.l.b16 %v1762
      %v1859 = vunpack.c.l.b16 %v1763
      %v1860 = vunpack.c.l.b16 %v1764
      %v1861 = vunpack.c.l.b16 %v1765
      %v1862 = vunpack.c.l.b16 %v1766
      %v1863 = vunpack.c.l.b16 %v1767
      %v1864 = vunpack.c.l.b16 %v1768
      %v1865 = vunpack.c.l.b16 %v1769
      %v1866 = vunpack.c.l.b16 %v1770
      %v1867 = vunpack.c.l.b16 %v1771
      %v1868 = vunpack.c.l.b16 %v1772
      %v1869 = vunpack.c.l.b16 %v1773
      %v1870 = vunpack.c.l.b16 %v1774
      %v1871 = vpack.c.b16 %v1824, %v1823
      %v1872 = vpack.c.b16 %v1825, %v1825
      %v1873 = vpack.c.b16 %v1827, %v1826
      %v1874 = vpack.c.b16 %v1828, %v1828
      %v1875 = vpack.c.b16 %v1830, %v1829
      %v1876 = vpack.c.b16 %v1831, %v1831
      %v1877 = vpack.c.b16 %v1833, %v1832
      %v1878 = vpack.c.b16 %v1834, %v1834
      %v1879 = vpack.c.b16 %v1836, %v1835
      %v1880 = vpack.c.b16 %v1837, %v1837
      %v1881 = vpack.c.b16 %v1839, %v1838
      %v1882 = vpack.c.b16 %v1840, %v1840
      %v1883 = vpack.c.b16 %v1842, %v1841
      %v1884 = vpack.c.b16 %v1843, %v1843
      %v1885 = vpack.c.b16 %v1845, %v1844
      %v1886 = vpack.c.b16 %v1846, %v1846
      %v1887 = vpack.c.b16 %v1848, %v1847
      %v1888 = vpack.c.b16 %v1849, %v1849
      %v1889 = vpack.c.b16 %v1851, %v1850
      %v1890 = vpack.c.b16 %v1852, %v1852
      %v1891 = vpack.c.b16 %v1854, %v1853
      %v1892 = vpack.c.b16 %v1855, %v1855
      %v1893 = vpack.c.b16 %v1857, %v1856
      %v1894 = vpack.c.b16 %v1858, %v1858
      %v1895 = vpack.c.b16 %v1860, %v1859
      %v1896 = vpack.c.b16 %v1861, %v1861
      %v1897 = vpack.c.b16 %v1863, %v1862
      %v1898 = vpack.c.b16 %v1864, %v1864
      %v1899 = vpack.c.b16 %v1866, %v1865
      %v1900 = vpack.c.b16 %v1867, %v1867
      %v1901 = vpack.c.b16 %v1869, %v1868
      %v1902 = vpack.c.b16 %v1870, %v1870
      %v1903 = vrot.slane %v1871, 1
      %v1904 = vrot.slane %v1872, 1
      %v1905 = vsel %vm1002, %v1903, %v1904
      %v1906 = vrot.slane %v1873, 1
      %v1907 = vrot.slane %v1874, 1
      %v1908 = vsel %vm1002, %v1906, %v1907
      %v1909 = vrot.slane %v1875, 1
      %v1910 = vrot.slane %v1876, 1
      %v1911 = vsel %vm1002, %v1909, %v1910
      %v1912 = vrot.slane %v1877, 1
      %v1913 = vrot.slane %v1878, 1
      %v1914 = vsel %vm1002, %v1912, %v1913
      %v1915 = vrot.slane %v1879, 1
      %v1916 = vrot.slane %v1880, 1
      %v1917 = vsel %vm1002, %v1915, %v1916
      %v1918 = vrot.slane %v1881, 1
      %v1919 = vrot.slane %v1882, 1
      %v1920 = vsel %vm1002, %v1918, %v1919
      %v1921 = vrot.slane %v1883, 1
      %v1922 = vrot.slane %v1884, 1
      %v1923 = vsel %vm1002, %v1921, %v1922
      %v1924 = vrot.slane %v1885, 1
      %v1925 = vrot.slane %v1886, 1
      %v1926 = vsel %vm1002, %v1924, %v1925
      %v1927 = vrot.slane %v1887, 1
      %v1928 = vrot.slane %v1888, 1
      %v1929 = vsel %vm1002, %v1927, %v1928
      %v1930 = vrot.slane %v1889, 1
      %v1931 = vrot.slane %v1890, 1
      %v1932 = vsel %vm1002, %v1930, %v1931
      %v1933 = vrot.slane %v1891, 1
      %v1934 = vrot.slane %v1892, 1
      %v1935 = vsel %vm1002, %v1933, %v1934
      %v1936 = vrot.slane %v1893, 1
      %v1937 = vrot.slane %v1894, 1
      %v1938 = vsel %vm1002, %v1936, %v1937
      %v1939 = vrot.slane %v1895, 1
      %v1940 = vrot.slane %v1896, 1
      %v1941 = vsel %vm1002, %v1939, %v1940
      %v1942 = vrot.slane %v1897, 1
      %v1943 = vrot.slane %v1898, 1
      %v1944 = vsel %vm1002, %v1942, %v1943
      %v1945 = vrot.slane %v1899, 1
      %v1946 = vrot.slane %v1900, 1
      %v1947 = vsel %vm1002, %v1945, %v1946
      %v1948 = vrot.slane %v1901, 1
      %v1949 = vrot.slane %v1902, 1
      %v1950 = vsel %vm1002, %v1948, %v1949
      %1951 = vrot.lane.b32.xlu0 %v1905, 20
      %v1952 = vpop.permute.xlu0 %1951
      %1953 = vrot.lane.b32.xlu0 %v1908, 20
      %v1954 = vpop.permute.xlu0 %1953
      %1955 = vrot.lane.b32.xlu0 %v1911, 20
      %v1956 = vpop.permute.xlu0 %1955
      %1957 = vrot.lane.b32.xlu0 %v1914, 20
      %v1958 = vpop.permute.xlu0 %1957
      %1959 = vrot.lane.b32.xlu0 %v1917, 20
      %v1960 = vpop.permute.xlu0 %1959
      %1961 = vrot.lane.b32.xlu0 %v1920, 20
      %v1962 = vpop.permute.xlu0 %1961
      %1963 = vrot.lane.b32.xlu0 %v1923, 20
      %v1964 = vpop.permute.xlu0 %1963
      %1965 = vrot.lane.b32.xlu0 %v1926, 20
      %v1966 = vpop.permute.xlu0 %1965
      %1967 = vrot.lane.b32.xlu0 %v1929, 20
      %v1968 = vpop.permute.xlu0 %1967
      %1969 = vrot.lane.b32.xlu0 %v1932, 20
      %v1970 = vpop.permute.xlu0 %1969
      %1971 = vrot.lane.b32.xlu0 %v1935, 20
      %v1972 = vpop.permute.xlu0 %1971
      %1973 = vrot.lane.b32.xlu0 %v1938, 20
      %v1974 = vpop.permute.xlu0 %1973
      %1975 = vrot.lane.b32.xlu0 %v1941, 20
      %v1976 = vpop.permute.xlu0 %1975
      %1977 = vrot.lane.b32.xlu0 %v1944, 20
      %v1978 = vpop.permute.xlu0 %1977
      %1979 = vrot.lane.b32.xlu0 %v1947, 20
      %v1980 = vpop.permute.xlu0 %1979
      %1981 = vrot.lane.b32.xlu0 %v1950, 20
      %v1982 = vpop.permute.xlu0 %1981
      %vm1999 = vcmask 195744
      %2000 = vst.msk [vmem:[#allocation2] sm:$0xff] %vm1999, %v1952
      %2001 = vst.msk [vmem:[#allocation2 + $0x8] sm:$0xff] %vm1999, %v1954
      %2002 = vst.msk [vmem:[#allocation2 + $0x10] sm:$0xff] %vm1999, %v1956
      %2003 = vst.msk [vmem:[#allocation2 + $0x18] sm:$0xff] %vm1999, %v1958
      %2004 = vst.msk [vmem:[#allocation2 + $0x20] sm:$0xff] %vm1999, %v1960
      %2005 = vst.msk [vmem:[#allocation2 + $0x28] sm:$0xff] %vm1999, %v1962
      %2006 = vst.msk [vmem:[#allocation2 + $0x30] sm:$0xff] %vm1999, %v1964
      %2007 = vst.msk [vmem:[#allocation2 + $0x38] sm:$0xff] %vm1999, %v1966
      %2008 = vst.msk [vmem:[#allocation2 + $0x40] sm:$0xff] %vm1999, %v1968
      %2009 = vst.msk [vmem:[#allocation2 + $0x48] sm:$0xff] %vm1999, %v1970
      %2010 = vst.msk [vmem:[#allocation2 + $0x50] sm:$0xff] %vm1999, %v1972
      %2011 = vst.msk [vmem:[#allocation2 + $0x58] sm:$0xff] %vm1999, %v1974
      %2012 = vst.msk [vmem:[#allocation2 + $0x60] sm:$0xff] %vm1999, %v1976
      %2013 = vst.msk [vmem:[#allocation2 + $0x68] sm:$0xff] %vm1999, %v1978
      %2014 = vst.msk [vmem:[#allocation2 + $0x70] sm:$0xff] %vm1999, %v1980
      %2015 = vst.msk [vmem:[#allocation2 + $0x78] sm:$0xff] %vm1999, %v1982
      %s2016 = scalar_lea.vmem %s231, 24
      %v2017 = vld [vmem:[%s2016] sm:$0xf]
      %v2018 = vld [vmem:[%s2016 + $0x4] sm:$0xf]
      %v2019 = vld [vmem:[%s2016 + $0xc] sm:$0xf]
      %v2020 = vld [vmem:[%s2016 + $0x10] sm:$0xf]
      %v2021 = vld [vmem:[%s2016 + $0x18] sm:$0xf]
      %v2022 = vld [vmem:[%s2016 + $0x1c] sm:$0xf]
      %v2023 = vld [vmem:[%s2016 + $0x24] sm:$0xf]
      %v2024 = vld [vmem:[%s2016 + $0x28] sm:$0xf]
      %v2025 = vld [vmem:[%s2016 + $0x30] sm:$0xf]
      %v2026 = vld [vmem:[%s2016 + $0x34] sm:$0xf]
      %v2027 = vld [vmem:[%s2016 + $0x3c] sm:$0xf]
      %v2028 = vld [vmem:[%s2016 + $0x40] sm:$0xf]
      %v2029 = vld [vmem:[%s2016 + $0x48] sm:$0xf]
      %v2030 = vld [vmem:[%s2016 + $0x4c] sm:$0xf]
      %v2031 = vld [vmem:[%s2016 + $0x54] sm:$0xf]
      %v2032 = vld [vmem:[%s2016 + $0x58] sm:$0xf]
      %v2033 = vld [vmem:[%s2016 + $0x60] sm:$0xf]
      %v2034 = vld [vmem:[%s2016 + $0x64] sm:$0xf]
      %v2035 = vld [vmem:[%s2016 + $0x6c] sm:$0xf]
      %v2036 = vld [vmem:[%s2016 + $0x70] sm:$0xf]
      %v2037 = vld [vmem:[%s2016 + $0x78] sm:$0xf]
      %v2038 = vld [vmem:[%s2016 + $0x7c] sm:$0xf]
      %v2039 = vld [vmem:[%s2016 + $0x84] sm:$0xf]
      %v2040 = vld [vmem:[%s2016 + $0x88] sm:$0xf]
      %v2041 = vld [vmem:[%s2016 + $0x90] sm:$0xf]
      %v2042 = vld [vmem:[%s2016 + $0x94] sm:$0xf]
      %v2043 = vld [vmem:[%s2016 + $0x9c] sm:$0xf]
      %v2044 = vld [vmem:[%s2016 + $0xa0] sm:$0xf]
      %v2045 = vld [vmem:[%s2016 + $0xa8] sm:$0xf]
      %v2046 = vld [vmem:[%s2016 + $0xac] sm:$0xf]
      %v2047 = vld [vmem:[%s2016 + $0xb4] sm:$0xf]
      %v2048 = vld [vmem:[%s2016 + $0xb8] sm:$0xf]
      %v2081 = vunpack.c.l.b16 %v2017
      %v2082 = vunpack.c.l.b16 %v2018
      %v2083 = vunpack.c.l.b16 %v2019
      %v2084 = vunpack.c.l.b16 %v2020
      %v2085 = vunpack.c.l.b16 %v2021
      %v2086 = vunpack.c.l.b16 %v2022
      %v2087 = vunpack.c.l.b16 %v2023
      %v2088 = vunpack.c.l.b16 %v2024
      %v2089 = vunpack.c.l.b16 %v2025
      %v2090 = vunpack.c.l.b16 %v2026
      %v2091 = vunpack.c.l.b16 %v2027
      %v2092 = vunpack.c.l.b16 %v2028
      %v2093 = vunpack.c.l.b16 %v2029
      %v2094 = vunpack.c.l.b16 %v2030
      %v2095 = vunpack.c.l.b16 %v2031
      %v2096 = vunpack.c.l.b16 %v2032
      %v2097 = vunpack.c.l.b16 %v2033
      %v2098 = vunpack.c.l.b16 %v2034
      %v2099 = vunpack.c.l.b16 %v2035
      %v2100 = vunpack.c.l.b16 %v2036
      %v2101 = vunpack.c.l.b16 %v2037
      %v2102 = vunpack.c.l.b16 %v2038
      %v2103 = vunpack.c.l.b16 %v2039
      %v2104 = vunpack.c.l.b16 %v2040
      %v2105 = vunpack.c.l.b16 %v2041
      %v2106 = vunpack.c.l.b16 %v2042
      %v2107 = vunpack.c.l.b16 %v2043
      %v2108 = vunpack.c.l.b16 %v2044
      %v2109 = vunpack.c.l.b16 %v2045
      %v2110 = vunpack.c.l.b16 %v2046
      %v2111 = vunpack.c.l.b16 %v2047
      %v2112 = vunpack.c.l.b16 %v2048
      %v2113 = vpack.c.b16 %v2082, %v2081
      %v2114 = vpack.c.b16 %v2084, %v2083
      %v2115 = vpack.c.b16 %v2086, %v2085
      %v2116 = vpack.c.b16 %v2088, %v2087
      %v2117 = vpack.c.b16 %v2090, %v2089
      %v2118 = vpack.c.b16 %v2092, %v2091
      %v2119 = vpack.c.b16 %v2094, %v2093
      %v2120 = vpack.c.b16 %v2096, %v2095
      %v2121 = vpack.c.b16 %v2098, %v2097
      %v2122 = vpack.c.b16 %v2100, %v2099
      %v2123 = vpack.c.b16 %v2102, %v2101
      %v2124 = vpack.c.b16 %v2104, %v2103
      %v2125 = vpack.c.b16 %v2106, %v2105
      %v2126 = vpack.c.b16 %v2108, %v2107
      %v2127 = vpack.c.b16 %v2110, %v2109
      %v2128 = vpack.c.b16 %v2112, %v2111
      %2129 = vrot.lane.b32.xlu0 %v2113, 24
      %v2130 = vpop.permute.xlu0 %2129
      %2131 = vrot.lane.b32.xlu0 %v2114, 24
      %v2132 = vpop.permute.xlu0 %2131
      %2133 = vrot.lane.b32.xlu0 %v2115, 24
      %v2134 = vpop.permute.xlu0 %2133
      %2135 = vrot.lane.b32.xlu0 %v2116, 24
      %v2136 = vpop.permute.xlu0 %2135
      %2137 = vrot.lane.b32.xlu0 %v2117, 24
      %v2138 = vpop.permute.xlu0 %2137
      %2139 = vrot.lane.b32.xlu0 %v2118, 24
      %v2140 = vpop.permute.xlu0 %2139
      %2141 = vrot.lane.b32.xlu0 %v2119, 24
      %v2142 = vpop.permute.xlu0 %2141
      %2143 = vrot.lane.b32.xlu0 %v2120, 24
      %v2144 = vpop.permute.xlu0 %2143
      %2145 = vrot.lane.b32.xlu0 %v2121, 24
      %v2146 = vpop.permute.xlu0 %2145
      %2147 = vrot.lane.b32.xlu0 %v2122, 24
      %v2148 = vpop.permute.xlu0 %2147
      %2149 = vrot.lane.b32.xlu0 %v2123, 24
      %v2150 = vpop.permute.xlu0 %2149
      %2151 = vrot.lane.b32.xlu0 %v2124, 24
      %v2152 = vpop.permute.xlu0 %2151
      %2153 = vrot.lane.b32.xlu0 %v2125, 24
      %v2154 = vpop.permute.xlu0 %2153
      %2155 = vrot.lane.b32.xlu0 %v2126, 24
      %v2156 = vpop.permute.xlu0 %2155
      %2157 = vrot.lane.b32.xlu0 %v2127, 24
      %v2158 = vpop.permute.xlu0 %2157
      %2159 = vrot.lane.b32.xlu0 %v2128, 24
      %v2160 = vpop.permute.xlu0 %2159
      %vm2177 = vcmask 228544
      %2178 = vst.msk [vmem:[#allocation2] sm:$0xff] %vm2177, %v2130
      %2179 = vst.msk [vmem:[#allocation2 + $0x8] sm:$0xff] %vm2177, %v2132
      %2180 = vst.msk [vmem:[#allocation2 + $0x10] sm:$0xff] %vm2177, %v2134
      %2181 = vst.msk [vmem:[#allocation2 + $0x18] sm:$0xff] %vm2177, %v2136
      %2182 = vst.msk [vmem:[#allocation2 + $0x20] sm:$0xff] %vm2177, %v2138
      %2183 = vst.msk [vmem:[#allocation2 + $0x28] sm:$0xff] %vm2177, %v2140
      %2184 = vst.msk [vmem:[#allocation2 + $0x30] sm:$0xff] %vm2177, %v2142
      %2185 = vst.msk [vmem:[#allocation2 + $0x38] sm:$0xff] %vm2177, %v2144
      %2186 = vst.msk [vmem:[#allocation2 + $0x40] sm:$0xff] %vm2177, %v2146
      %2187 = vst.msk [vmem:[#allocation2 + $0x48] sm:$0xff] %vm2177, %v2148
      %2188 = vst.msk [vmem:[#allocation2 + $0x50] sm:$0xff] %vm2177, %v2150
      %2189 = vst.msk [vmem:[#allocation2 + $0x58] sm:$0xff] %vm2177, %v2152
      %2190 = vst.msk [vmem:[#allocation2 + $0x60] sm:$0xff] %vm2177, %v2154
      %2191 = vst.msk [vmem:[#allocation2 + $0x68] sm:$0xff] %vm2177, %v2156
      %2192 = vst.msk [vmem:[#allocation2 + $0x70] sm:$0xff] %vm2177, %v2158
      %2193 = vst.msk [vmem:[#allocation2 + $0x78] sm:$0xff] %vm2177, %v2160
      %v2194 = vld [vmem:[%s2016] sm:$0xf]
      %v2195 = vld [vmem:[%s2016 + $0x4] sm:$0xf]
      %v2196 = vld [vmem:[%s2016 + $0x8] sm:$0x1]
      %v2197 = vld [vmem:[%s2016 + $0xc] sm:$0xf]
      %v2198 = vld [vmem:[%s2016 + $0x10] sm:$0xf]
      %v2199 = vld [vmem:[%s2016 + $0x14] sm:$0x1]
      %v2200 = vld [vmem:[%s2016 + $0x18] sm:$0xf]
      %v2201 = vld [vmem:[%s2016 + $0x1c] sm:$0xf]
      %v2202 = vld [vmem:[%s2016 + $0x20] sm:$0x1]
      %v2203 = vld [vmem:[%s2016 + $0x24] sm:$0xf]
      %v2204 = vld [vmem:[%s2016 + $0x28] sm:$0xf]
      %v2205 = vld [vmem:[%s2016 + $0x2c] sm:$0x1]
      %v2206 = vld [vmem:[%s2016 + $0x30] sm:$0xf]
      %v2207 = vld [vmem:[%s2016 + $0x34] sm:$0xf]
      %v2208 = vld [vmem:[%s2016 + $0x38] sm:$0x1]
      %v2209 = vld [vmem:[%s2016 + $0x3c] sm:$0xf]
      %v2210 = vld [vmem:[%s2016 + $0x40] sm:$0xf]
      %v2211 = vld [vmem:[%s2016 + $0x44] sm:$0x1]
      %v2212 = vld [vmem:[%s2016 + $0x48] sm:$0xf]
      %v2213 = vld [vmem:[%s2016 + $0x4c] sm:$0xf]
      %v2214 = vld [vmem:[%s2016 + $0x50] sm:$0x1]
      %v2215 = vld [vmem:[%s2016 + $0x54] sm:$0xf]
      %v2216 = vld [vmem:[%s2016 + $0x58] sm:$0xf]
      %v2217 = vld [vmem:[%s2016 + $0x5c] sm:$0x1]
      %v2218 = vld [vmem:[%s2016 + $0x60] sm:$0xf]
      %v2219 = vld [vmem:[%s2016 + $0x64] sm:$0xf]
      %v2220 = vld [vmem:[%s2016 + $0x68] sm:$0x1]
      %v2221 = vld [vmem:[%s2016 + $0x6c] sm:$0xf]
      %v2222 = vld [vmem:[%s2016 + $0x70] sm:$0xf]
      %v2223 = vld [vmem:[%s2016 + $0x74] sm:$0x1]
      %v2224 = vld [vmem:[%s2016 + $0x78] sm:$0xf]
      %v2225 = vld [vmem:[%s2016 + $0x7c] sm:$0xf]
      %v2226 = vld [vmem:[%s2016 + $0x80] sm:$0x1]
      %v2227 = vld [vmem:[%s2016 + $0x84] sm:$0xf]
      %v2228 = vld [vmem:[%s2016 + $0x88] sm:$0xf]
      %v2229 = vld [vmem:[%s2016 + $0x8c] sm:$0x1]
      %v2230 = vld [vmem:[%s2016 + $0x90] sm:$0xf]
      %v2231 = vld [vmem:[%s2016 + $0x94] sm:$0xf]
      %v2232 = vld [vmem:[%s2016 + $0x98] sm:$0x1]
      %v2233 = vld [vmem:[%s2016 + $0x9c] sm:$0xf]
      %v2234 = vld [vmem:[%s2016 + $0xa0] sm:$0xf]
      %v2235 = vld [vmem:[%s2016 + $0xa4] sm:$0x1]
      %v2236 = vld [vmem:[%s2016 + $0xa8] sm:$0xf]
      %v2237 = vld [vmem:[%s2016 + $0xac] sm:$0xf]
      %v2238 = vld [vmem:[%s2016 + $0xb0] sm:$0x1]
      %v2239 = vld [vmem:[%s2016 + $0xb4] sm:$0xf]
      %v2240 = vld [vmem:[%s2016 + $0xb8] sm:$0xf]
      %v2241 = vld [vmem:[%s2016 + $0xbc] sm:$0x1]
      %v2290 = vunpack.c.l.b16 %v2194
      %v2291 = vunpack.c.l.b16 %v2195
      %v2292 = vunpack.c.l.b16 %v2196
      %v2293 = vunpack.c.l.b16 %v2197
      %v2294 = vunpack.c.l.b16 %v2198
      %v2295 = vunpack.c.l.b16 %v2199
      %v2296 = vunpack.c.l.b16 %v2200
      %v2297 = vunpack.c.l.b16 %v2201
      %v2298 = vunpack.c.l.b16 %v2202
      %v2299 = vunpack.c.l.b16 %v2203
      %v2300 = vunpack.c.l.b16 %v2204
      %v2301 = vunpack.c.l.b16 %v2205
      %v2302 = vunpack.c.l.b16 %v2206
      %v2303 = vunpack.c.l.b16 %v2207
      %v2304 = vunpack.c.l.b16 %v2208
      %v2305 = vunpack.c.l.b16 %v2209
      %v2306 = vunpack.c.l.b16 %v2210
      %v2307 = vunpack.c.l.b16 %v2211
      %v2308 = vunpack.c.l.b16 %v2212
      %v2309 = vunpack.c.l.b16 %v2213
      %v2310 = vunpack.c.l.b16 %v2214
      %v2311 = vunpack.c.l.b16 %v2215
      %v2312 = vunpack.c.l.b16 %v2216
      %v2313 = vunpack.c.l.b16 %v2217
      %v2314 = vunpack.c.l.b16 %v2218
      %v2315 = vunpack.c.l.b16 %v2219
      %v2316 = vunpack.c.l.b16 %v2220
      %v2317 = vunpack.c.l.b16 %v2221
      %v2318 = vunpack.c.l.b16 %v2222
      %v2319 = vunpack.c.l.b16 %v2223
      %v2320 = vunpack.c.l.b16 %v2224
      %v2321 = vunpack.c.l.b16 %v2225
      %v2322 = vunpack.c.l.b16 %v2226
      %v2323 = vunpack.c.l.b16 %v2227
      %v2324 = vunpack.c.l.b16 %v2228
      %v2325 = vunpack.c.l.b16 %v2229
      %v2326 = vunpack.c.l.b16 %v2230
      %v2327 = vunpack.c.l.b16 %v2231
      %v2328 = vunpack.c.l.b16 %v2232
      %v2329 = vunpack.c.l.b16 %v2233
      %v2330 = vunpack.c.l.b16 %v2234
      %v2331 = vunpack.c.l.b16 %v2235
      %v2332 = vunpack.c.l.b16 %v2236
      %v2333 = vunpack.c.l.b16 %v2237
      %v2334 = vunpack.c.l.b16 %v2238
      %v2335 = vunpack.c.l.b16 %v2239
      %v2336 = vunpack.c.l.b16 %v2240
      %v2337 = vunpack.c.l.b16 %v2241
      %v2338 = vpack.c.b16 %v2291, %v2290
      %v2339 = vpack.c.b16 %v2292, %v2292
      %v2340 = vpack.c.b16 %v2294, %v2293
      %v2341 = vpack.c.b16 %v2295, %v2295
      %v2342 = vpack.c.b16 %v2297, %v2296
      %v2343 = vpack.c.b16 %v2298, %v2298
      %v2344 = vpack.c.b16 %v2300, %v2299
      %v2345 = vpack.c.b16 %v2301, %v2301
      %v2346 = vpack.c.b16 %v2303, %v2302
      %v2347 = vpack.c.b16 %v2304, %v2304
      %v2348 = vpack.c.b16 %v2306, %v2305
      %v2349 = vpack.c.b16 %v2307, %v2307
      %v2350 = vpack.c.b16 %v2309, %v2308
      %v2351 = vpack.c.b16 %v2310, %v2310
      %v2352 = vpack.c.b16 %v2312, %v2311
      %v2353 = vpack.c.b16 %v2313, %v2313
      %v2354 = vpack.c.b16 %v2315, %v2314
      %v2355 = vpack.c.b16 %v2316, %v2316
      %v2356 = vpack.c.b16 %v2318, %v2317
      %v2357 = vpack.c.b16 %v2319, %v2319
      %v2358 = vpack.c.b16 %v2321, %v2320
      %v2359 = vpack.c.b16 %v2322, %v2322
      %v2360 = vpack.c.b16 %v2324, %v2323
      %v2361 = vpack.c.b16 %v2325, %v2325
      %v2362 = vpack.c.b16 %v2327, %v2326
      %v2363 = vpack.c.b16 %v2328, %v2328
      %v2364 = vpack.c.b16 %v2330, %v2329
      %v2365 = vpack.c.b16 %v2331, %v2331
      %v2366 = vpack.c.b16 %v2333, %v2332
      %v2367 = vpack.c.b16 %v2334, %v2334
      %v2368 = vpack.c.b16 %v2336, %v2335
      %v2369 = vpack.c.b16 %v2337, %v2337
      %v2371 = vshrl.u32 %v2338, 16
      %v2373 = vshll.u32 %v2338, 16
      %v2375 = vrot.slane %v2373, 1
      %v2376 = vor.u32 %v2371, %v2375
      %v2378 = vshll.u32 %v2339, 16
      %v2380 = vrot.slane %v2378, 1
      %v2381 = vsel %vm568, %v2376, %v2380
      %v2383 = vshrl.u32 %v2340, 16
      %v2385 = vshll.u32 %v2340, 16
      %v2387 = vrot.slane %v2385, 1
      %v2388 = vor.u32 %v2383, %v2387
      %v2390 = vshll.u32 %v2341, 16
      %v2392 = vrot.slane %v2390, 1
      %v2393 = vsel %vm568, %v2388, %v2392
      %v2395 = vshrl.u32 %v2342, 16
      %v2397 = vshll.u32 %v2342, 16
      %v2399 = vrot.slane %v2397, 1
      %v2400 = vor.u32 %v2395, %v2399
      %v2402 = vshll.u32 %v2343, 16
      %v2404 = vrot.slane %v2402, 1
      %v2405 = vsel %vm568, %v2400, %v2404
      %v2407 = vshrl.u32 %v2344, 16
      %v2409 = vshll.u32 %v2344, 16
      %v2411 = vrot.slane %v2409, 1
      %v2412 = vor.u32 %v2407, %v2411
      %v2414 = vshll.u32 %v2345, 16
      %v2416 = vrot.slane %v2414, 1
      %v2417 = vsel %vm568, %v2412, %v2416
      %v2419 = vshrl.u32 %v2346, 16
      %v2421 = vshll.u32 %v2346, 16
      %v2423 = vrot.slane %v2421, 1
      %v2424 = vor.u32 %v2419, %v2423
      %v2426 = vshll.u32 %v2347, 16
      %v2428 = vrot.slane %v2426, 1
      %v2429 = vsel %vm568, %v2424, %v2428
      %v2431 = vshrl.u32 %v2348, 16
      %v2433 = vshll.u32 %v2348, 16
      %v2435 = vrot.slane %v2433, 1
      %v2436 = vor.u32 %v2431, %v2435
      %v2438 = vshll.u32 %v2349, 16
      %v2440 = vrot.slane %v2438, 1
      %v2441 = vsel %vm568, %v2436, %v2440
      %v2443 = vshrl.u32 %v2350, 16
      %v2445 = vshll.u32 %v2350, 16
      %v2447 = vrot.slane %v2445, 1
      %v2448 = vor.u32 %v2443, %v2447
      %v2450 = vshll.u32 %v2351, 16
      %v2452 = vrot.slane %v2450, 1
      %v2453 = vsel %vm568, %v2448, %v2452
      %v2455 = vshrl.u32 %v2352, 16
      %v2457 = vshll.u32 %v2352, 16
      %v2459 = vrot.slane %v2457, 1
      %v2460 = vor.u32 %v2455, %v2459
      %v2462 = vshll.u32 %v2353, 16
      %v2464 = vrot.slane %v2462, 1
      %v2465 = vsel %vm568, %v2460, %v2464
      %v2467 = vshrl.u32 %v2354, 16
      %v2469 = vshll.u32 %v2354, 16
      %v2471 = vrot.slane %v2469, 1
      %v2472 = vor.u32 %v2467, %v2471
      %v2474 = vshll.u32 %v2355, 16
      %v2476 = vrot.slane %v2474, 1
      %v2477 = vsel %vm568, %v2472, %v2476
      %v2479 = vshrl.u32 %v2356, 16
      %v2481 = vshll.u32 %v2356, 16
      %v2483 = vrot.slane %v2481, 1
      %v2484 = vor.u32 %v2479, %v2483
      %v2486 = vshll.u32 %v2357, 16
      %v2488 = vrot.slane %v2486, 1
      %v2489 = vsel %vm568, %v2484, %v2488
      %v2491 = vshrl.u32 %v2358, 16
      %v2493 = vshll.u32 %v2358, 16
      %v2495 = vrot.slane %v2493, 1
      %v2496 = vor.u32 %v2491, %v2495
      %v2498 = vshll.u32 %v2359, 16
      %v2500 = vrot.slane %v2498, 1
      %v2501 = vsel %vm568, %v2496, %v2500
      %v2503 = vshrl.u32 %v2360, 16
      %v2505 = vshll.u32 %v2360, 16
      %v2507 = vrot.slane %v2505, 1
      %v2508 = vor.u32 %v2503, %v2507
      %v2510 = vshll.u32 %v2361, 16
      %v2512 = vrot.slane %v2510, 1
      %v2513 = vsel %vm568, %v2508, %v2512
      %v2515 = vshrl.u32 %v2362, 16
      %v2517 = vshll.u32 %v2362, 16
      %v2519 = vrot.slane %v2517, 1
      %v2520 = vor.u32 %v2515, %v2519
      %v2522 = vshll.u32 %v2363, 16
      %v2524 = vrot.slane %v2522, 1
      %v2525 = vsel %vm568, %v2520, %v2524
      %v2527 = vshrl.u32 %v2364, 16
      %v2529 = vshll.u32 %v2364, 16
      %v2531 = vrot.slane %v2529, 1
      %v2532 = vor.u32 %v2527, %v2531
      %v2534 = vshll.u32 %v2365, 16
      %v2536 = vrot.slane %v2534, 1
      %v2537 = vsel %vm568, %v2532, %v2536
      %v2539 = vshrl.u32 %v2366, 16
      %v2541 = vshll.u32 %v2366, 16
      %v2543 = vrot.slane %v2541, 1
      %v2544 = vor.u32 %v2539, %v2543
      %v2546 = vshll.u32 %v2367, 16
      %v2548 = vrot.slane %v2546, 1
      %v2549 = vsel %vm568, %v2544, %v2548
      %v2551 = vshrl.u32 %v2368, 16
      %v2553 = vshll.u32 %v2368, 16
      %v2555 = vrot.slane %v2553, 1
      %v2556 = vor.u32 %v2551, %v2555
      %v2558 = vshll.u32 %v2369, 16
      %v2560 = vrot.slane %v2558, 1
      %v2561 = vsel %vm568, %v2556, %v2560
      %2562 = vrot.lane.b32.xlu0 %v2381, 28
      %v2563 = vpop.permute.xlu0 %2562
      %2564 = vrot.lane.b32.xlu0 %v2393, 28
      %v2565 = vpop.permute.xlu0 %2564
      %2566 = vrot.lane.b32.xlu0 %v2405, 28
      %v2567 = vpop.permute.xlu0 %2566
      %2568 = vrot.lane.b32.xlu0 %v2417, 28
      %v2569 = vpop.permute.xlu0 %2568
      %2570 = vrot.lane.b32.xlu0 %v2429, 28
      %v2571 = vpop.permute.xlu0 %2570
      %2572 = vrot.lane.b32.xlu0 %v2441, 28
      %v2573 = vpop.permute.xlu0 %2572
      %2574 = vrot.lane.b32.xlu0 %v2453, 28
      %v2575 = vpop.permute.xlu0 %2574
      %2576 = vrot.lane.b32.xlu0 %v2465, 28
      %v2577 = vpop.permute.xlu0 %2576
      %2578 = vrot.lane.b32.xlu0 %v2477, 28
      %v2579 = vpop.permute.xlu0 %2578
      %2580 = vrot.lane.b32.xlu0 %v2489, 28
      %v2581 = vpop.permute.xlu0 %2580
      %2582 = vrot.lane.b32.xlu0 %v2501, 28
      %v2583 = vpop.permute.xlu0 %2582
      %2584 = vrot.lane.b32.xlu0 %v2513, 28
      %v2585 = vpop.permute.xlu0 %2584
      %2586 = vrot.lane.b32.xlu0 %v2525, 28
      %v2587 = vpop.permute.xlu0 %2586
      %2588 = vrot.lane.b32.xlu0 %v2537, 28
      %v2589 = vpop.permute.xlu0 %2588
      %2590 = vrot.lane.b32.xlu0 %v2549, 28
      %v2591 = vpop.permute.xlu0 %2590
      %2592 = vrot.lane.b32.xlu0 %v2561, 28
      %v2593 = vpop.permute.xlu0 %2592
      %vm2610 = vcmask 261344
      %2611 = vst.msk [vmem:[#allocation2] sm:$0xff] %vm2610, %v2563
      %2612 = vst.msk [vmem:[#allocation2 + $0x8] sm:$0xff] %vm2610, %v2565
      %2613 = vst.msk [vmem:[#allocation2 + $0x10] sm:$0xff] %vm2610, %v2567
      %2614 = vst.msk [vmem:[#allocation2 + $0x18] sm:$0xff] %vm2610, %v2569
      %2615 = vst.msk [vmem:[#allocation2 + $0x20] sm:$0xff] %vm2610, %v2571
      %2616 = vst.msk [vmem:[#allocation2 + $0x28] sm:$0xff] %vm2610, %v2573
      %2617 = vst.msk [vmem:[#allocation2 + $0x30] sm:$0xff] %vm2610, %v2575
      %2618 = vst.msk [vmem:[#allocation2 + $0x38] sm:$0xff] %vm2610, %v2577
      %2619 = vst.msk [vmem:[#allocation2 + $0x40] sm:$0xff] %vm2610, %v2579
      %2620 = vst.msk [vmem:[#allocation2 + $0x48] sm:$0xff] %vm2610, %v2581
      %2621 = vst.msk [vmem:[#allocation2 + $0x50] sm:$0xff] %vm2610, %v2583
      %2622 = vst.msk [vmem:[#allocation2 + $0x58] sm:$0xff] %vm2610, %v2585
      %2623 = vst.msk [vmem:[#allocation2 + $0x60] sm:$0xff] %vm2610, %v2587
      %2624 = vst.msk [vmem:[#allocation2 + $0x68] sm:$0xff] %vm2610, %v2589
      %2625 = vst.msk [vmem:[#allocation2 + $0x70] sm:$0xff] %vm2610, %v2591
      %2626 = vst.msk [vmem:[#allocation2 + $0x78] sm:$0xff] %vm2610, %v2593
      %v2627 = vld [vmem:[%s2016] sm:$0xe]
      %v2628 = vld [vmem:[%s2016 + $0x4] sm:$0xf]
      %v2629 = vld [vmem:[%s2016 + $0x8] sm:$0x1]
      %v2630 = vld [vmem:[%s2016 + $0xc] sm:$0xe]
      %v2631 = vld [vmem:[%s2016 + $0x10] sm:$0xf]
      %v2632 = vld [vmem:[%s2016 + $0x14] sm:$0x1]
      %v2633 = vld [vmem:[%s2016 + $0x18] sm:$0xe]
      %v2634 = vld [vmem:[%s2016 + $0x1c] sm:$0xf]
      %v2635 = vld [vmem:[%s2016 + $0x20] sm:$0x1]
      %v2636 = vld [vmem:[%s2016 + $0x24] sm:$0xe]
      %v2637 = vld [vmem:[%s2016 + $0x28] sm:$0xf]
      %v2638 = vld [vmem:[%s2016 + $0x2c] sm:$0x1]
      %v2639 = vld [vmem:[%s2016 + $0x30] sm:$0xe]
      %v2640 = vld [vmem:[%s2016 + $0x34] sm:$0xf]
      %v2641 = vld [vmem:[%s2016 + $0x38] sm:$0x1]
      %v2642 = vld [vmem:[%s2016 + $0x3c] sm:$0xe]
      %v2643 = vld [vmem:[%s2016 + $0x40] sm:$0xf]
      %v2644 = vld [vmem:[%s2016 + $0x44] sm:$0x1]
      %v2645 = vld [vmem:[%s2016 + $0x48] sm:$0xe]
      %v2646 = vld [vmem:[%s2016 + $0x4c] sm:$0xf]
      %v2647 = vld [vmem:[%s2016 + $0x50] sm:$0x1]
      %v2648 = vld [vmem:[%s2016 + $0x54] sm:$0xe]
      %v2649 = vld [vmem:[%s2016 + $0x58] sm:$0xf]
      %v2650 = vld [vmem:[%s2016 + $0x5c] sm:$0x1]
      %v2651 = vld [vmem:[%s2016 + $0x60] sm:$0xe]
      %v2652 = vld [vmem:[%s2016 + $0x64] sm:$0xf]
      %v2653 = vld [vmem:[%s2016 + $0x68] sm:$0x1]
      %v2654 = vld [vmem:[%s2016 + $0x6c] sm:$0xe]
      %v2655 = vld [vmem:[%s2016 + $0x70] sm:$0xf]
      %v2656 = vld [vmem:[%s2016 + $0x74] sm:$0x1]
      %v2657 = vld [vmem:[%s2016 + $0x78] sm:$0xe]
      %v2658 = vld [vmem:[%s2016 + $0x7c] sm:$0xf]
      %v2659 = vld [vmem:[%s2016 + $0x80] sm:$0x1]
      %v2660 = vld [vmem:[%s2016 + $0x84] sm:$0xe]
      %v2661 = vld [vmem:[%s2016 + $0x88] sm:$0xf]
      %v2662 = vld [vmem:[%s2016 + $0x8c] sm:$0x1]
      %v2663 = vld [vmem:[%s2016 + $0x90] sm:$0xe]
      %v2664 = vld [vmem:[%s2016 + $0x94] sm:$0xf]
      %v2665 = vld [vmem:[%s2016 + $0x98] sm:$0x1]
      %v2666 = vld [vmem:[%s2016 + $0x9c] sm:$0xe]
      %v2667 = vld [vmem:[%s2016 + $0xa0] sm:$0xf]
      %v2668 = vld [vmem:[%s2016 + $0xa4] sm:$0x1]
      %v2669 = vld [vmem:[%s2016 + $0xa8] sm:$0xe]
      %v2670 = vld [vmem:[%s2016 + $0xac] sm:$0xf]
      %v2671 = vld [vmem:[%s2016 + $0xb0] sm:$0x1]
      %v2672 = vld [vmem:[%s2016 + $0xb4] sm:$0xe]
      %v2673 = vld [vmem:[%s2016 + $0xb8] sm:$0xf]
      %v2674 = vld [vmem:[%s2016 + $0xbc] sm:$0x1]
      %v2723 = vunpack.c.l.b16 %v2627
      %v2724 = vunpack.c.l.b16 %v2628
      %v2725 = vunpack.c.l.b16 %v2629
      %v2726 = vunpack.c.l.b16 %v2630
      %v2727 = vunpack.c.l.b16 %v2631
      %v2728 = vunpack.c.l.b16 %v2632
      %v2729 = vunpack.c.l.b16 %v2633
      %v2730 = vunpack.c.l.b16 %v2634
      %v2731 = vunpack.c.l.b16 %v2635
      %v2732 = vunpack.c.l.b16 %v2636
      %v2733 = vunpack.c.l.b16 %v2637
      %v2734 = vunpack.c.l.b16 %v2638
      %v2735 = vunpack.c.l.b16 %v2639
      %v2736 = vunpack.c.l.b16 %v2640
      %v2737 = vunpack.c.l.b16 %v2641
      %v2738 = vunpack.c.l.b16 %v2642
      %v2739 = vunpack.c.l.b16 %v2643
      %v2740 = vunpack.c.l.b16 %v2644
      %v2741 = vunpack.c.l.b16 %v2645
      %v2742 = vunpack.c.l.b16 %v2646
      %v2743 = vunpack.c.l.b16 %v2647
      %v2744 = vunpack.c.l.b16 %v2648
      %v2745 = vunpack.c.l.b16 %v2649
      %v2746 = vunpack.c.l.b16 %v2650
      %v2747 = vunpack.c.l.b16 %v2651
      %v2748 = vunpack.c.l.b16 %v2652
      %v2749 = vunpack.c.l.b16 %v2653
      %v2750 = vunpack.c.l.b16 %v2654
      %v2751 = vunpack.c.l.b16 %v2655
      %v2752 = vunpack.c.l.b16 %v2656
      %v2753 = vunpack.c.l.b16 %v2657
      %v2754 = vunpack.c.l.b16 %v2658
      %v2755 = vunpack.c.l.b16 %v2659
      %v2756 = vunpack.c.l.b16 %v2660
      %v2757 = vunpack.c.l.b16 %v2661
      %v2758 = vunpack.c.l.b16 %v2662
      %v2759 = vunpack.c.l.b16 %v2663
      %v2760 = vunpack.c.l.b16 %v2664
      %v2761 = vunpack.c.l.b16 %v2665
      %v2762 = vunpack.c.l.b16 %v2666
      %v2763 = vunpack.c.l.b16 %v2667
      %v2764 = vunpack.c.l.b16 %v2668
      %v2765 = vunpack.c.l.b16 %v2669
      %v2766 = vunpack.c.l.b16 %v2670
      %v2767 = vunpack.c.l.b16 %v2671
      %v2768 = vunpack.c.l.b16 %v2672
      %v2769 = vunpack.c.l.b16 %v2673
      %v2770 = vunpack.c.l.b16 %v2674
      %v2771 = vpack.c.b16 %v2724, %v2723
      %v2772 = vpack.c.b16 %v2725, %v2725
      %v2773 = vpack.c.b16 %v2727, %v2726
      %v2774 = vpack.c.b16 %v2728, %v2728
      %v2775 = vpack.c.b16 %v2730, %v2729
      %v2776 = vpack.c.b16 %v2731, %v2731
      %v2777 = vpack.c.b16 %v2733, %v2732
      %v2778 = vpack.c.b16 %v2734, %v2734
      %v2779 = vpack.c.b16 %v2736, %v2735
      %v2780 = vpack.c.b16 %v2737, %v2737
      %v2781 = vpack.c.b16 %v2739, %v2738
      %v2782 = vpack.c.b16 %v2740, %v2740
      %v2783 = vpack.c.b16 %v2742, %v2741
      %v2784 = vpack.c.b16 %v2743, %v2743
      %v2785 = vpack.c.b16 %v2745, %v2744
      %v2786 = vpack.c.b16 %v2746, %v2746
      %v2787 = vpack.c.b16 %v2748, %v2747
      %v2788 = vpack.c.b16 %v2749, %v2749
      %v2789 = vpack.c.b16 %v2751, %v2750
      %v2790 = vpack.c.b16 %v2752, %v2752
      %v2791 = vpack.c.b16 %v2754, %v2753
      %v2792 = vpack.c.b16 %v2755, %v2755
      %v2793 = vpack.c.b16 %v2757, %v2756
      %v2794 = vpack.c.b16 %v2758, %v2758
      %v2795 = vpack.c.b16 %v2760, %v2759
      %v2796 = vpack.c.b16 %v2761, %v2761
      %v2797 = vpack.c.b16 %v2763, %v2762
      %v2798 = vpack.c.b16 %v2764, %v2764
      %v2799 = vpack.c.b16 %v2766, %v2765
      %v2800 = vpack.c.b16 %v2767, %v2767
      %v2801 = vpack.c.b16 %v2769, %v2768
      %v2802 = vpack.c.b16 %v2770, %v2770
      %v2803 = vrot.slane %v2771, 1
      %v2804 = vrot.slane %v2772, 1
      %v2805 = vsel %vm1002, %v2803, %v2804
      %v2806 = vrot.slane %v2773, 1
      %v2807 = vrot.slane %v2774, 1
      %v2808 = vsel %vm1002, %v2806, %v2807
      %v2809 = vrot.slane %v2775, 1
      %v2810 = vrot.slane %v2776, 1
      %v2811 = vsel %vm1002, %v2809, %v2810
      %v2812 = vrot.slane %v2777, 1
      %v2813 = vrot.slane %v2778, 1
      %v2814 = vsel %vm1002, %v2812, %v2813
      %v2815 = vrot.slane %v2779, 1
      %v2816 = vrot.slane %v2780, 1
      %v2817 = vsel %vm1002, %v2815, %v2816
      %v2818 = vrot.slane %v2781, 1
      %v2819 = vrot.slane %v2782, 1
      %v2820 = vsel %vm1002, %v2818, %v2819
      %v2821 = vrot.slane %v2783, 1
      %v2822 = vrot.slane %v2784, 1
      %v2823 = vsel %vm1002, %v2821, %v2822
      %v2824 = vrot.slane %v2785, 1
      %v2825 = vrot.slane %v2786, 1
      %v2826 = vsel %vm1002, %v2824, %v2825
      %v2827 = vrot.slane %v2787, 1
      %v2828 = vrot.slane %v2788, 1
      %v2829 = vsel %vm1002, %v2827, %v2828
      %v2830 = vrot.slane %v2789, 1
      %v2831 = vrot.slane %v2790, 1
      %v2832 = vsel %vm1002, %v2830, %v2831
      %v2833 = vrot.slane %v2791, 1
      %v2834 = vrot.slane %v2792, 1
      %v2835 = vsel %vm1002, %v2833, %v2834
      %v2836 = vrot.slane %v2793, 1
      %v2837 = vrot.slane %v2794, 1
      %v2838 = vsel %vm1002, %v2836, %v2837
      %v2839 = vrot.slane %v2795, 1
      %v2840 = vrot.slane %v2796, 1
      %v2841 = vsel %vm1002, %v2839, %v2840
      %v2842 = vrot.slane %v2797, 1
      %v2843 = vrot.slane %v2798, 1
      %v2844 = vsel %vm1002, %v2842, %v2843
      %v2845 = vrot.slane %v2799, 1
      %v2846 = vrot.slane %v2800, 1
      %v2847 = vsel %vm1002, %v2845, %v2846
      %v2848 = vrot.slane %v2801, 1
      %v2849 = vrot.slane %v2802, 1
      %v2850 = vsel %vm1002, %v2848, %v2849
      %2851 = vrot.lane.b32.xlu0 %v2805, 32
      %v2852 = vpop.permute.xlu0 %2851
      %2853 = vrot.lane.b32.xlu0 %v2808, 32
      %v2854 = vpop.permute.xlu0 %2853
      %2855 = vrot.lane.b32.xlu0 %v2811, 32
      %v2856 = vpop.permute.xlu0 %2855
      %2857 = vrot.lane.b32.xlu0 %v2814, 32
      %v2858 = vpop.permute.xlu0 %2857
      %2859 = vrot.lane.b32.xlu0 %v2817, 32
      %v2860 = vpop.permute.xlu0 %2859
      %2861 = vrot.lane.b32.xlu0 %v2820, 32
      %v2862 = vpop.permute.xlu0 %2861
      %2863 = vrot.lane.b32.xlu0 %v2823, 32
      %v2864 = vpop.permute.xlu0 %2863
      %2865 = vrot.lane.b32.xlu0 %v2826, 32
      %v2866 = vpop.permute.xlu0 %2865
      %2867 = vrot.lane.b32.xlu0 %v2829, 32
      %v2868 = vpop.permute.xlu0 %2867
      %2869 = vrot.lane.b32.xlu0 %v2832, 32
      %v2870 = vpop.permute.xlu0 %2869
      %2871 = vrot.lane.b32.xlu0 %v2835, 32
      %v2872 = vpop.permute.xlu0 %2871
      %2873 = vrot.lane.b32.xlu0 %v2838, 32
      %v2874 = vpop.permute.xlu0 %2873
      %2875 = vrot.lane.b32.xlu0 %v2841, 32
      %v2876 = vpop.permute.xlu0 %2875
      %2877 = vrot.lane.b32.xlu0 %v2844, 32
      %v2878 = vpop.permute.xlu0 %2877
      %2879 = vrot.lane.b32.xlu0 %v2847, 32
      %v2880 = vpop.permute.xlu0 %2879
      %2881 = vrot.lane.b32.xlu0 %v2850, 32
      %v2882 = vpop.permute.xlu0 %2881
      %vm2899 = vcmask 294144
      %2900 = vst.msk [vmem:[#allocation2] sm:$0xff] %vm2899, %v2852
      %2901 = vst.msk [vmem:[#allocation2 + $0x8] sm:$0xff] %vm2899, %v2854
      %2902 = vst.msk [vmem:[#allocation2 + $0x10] sm:$0xff] %vm2899, %v2856
      %2903 = vst.msk [vmem:[#allocation2 + $0x18] sm:$0xff] %vm2899, %v2858
      %2904 = vst.msk [vmem:[#allocation2 + $0x20] sm:$0xff] %vm2899, %v2860
      %2905 = vst.msk [vmem:[#allocation2 + $0x28] sm:$0xff] %vm2899, %v2862
      %2906 = vst.msk [vmem:[#allocation2 + $0x30] sm:$0xff] %vm2899, %v2864
      %2907 = vst.msk [vmem:[#allocation2 + $0x38] sm:$0xff] %vm2899, %v2866
      %2908 = vst.msk [vmem:[#allocation2 + $0x40] sm:$0xff] %vm2899, %v2868
      %2909 = vst.msk [vmem:[#allocation2 + $0x48] sm:$0xff] %vm2899, %v2870
      %2910 = vst.msk [vmem:[#allocation2 + $0x50] sm:$0xff] %vm2899, %v2872
      %2911 = vst.msk [vmem:[#allocation2 + $0x58] sm:$0xff] %vm2899, %v2874
      %2912 = vst.msk [vmem:[#allocation2 + $0x60] sm:$0xff] %vm2899, %v2876
      %2913 = vst.msk [vmem:[#allocation2 + $0x68] sm:$0xff] %vm2899, %v2878
      %2914 = vst.msk [vmem:[#allocation2 + $0x70] sm:$0xff] %vm2899, %v2880
      %2915 = vst.msk [vmem:[#allocation2 + $0x78] sm:$0xff] %vm2899, %v2882
      %v2916 = vld [vmem:[#allocation2] sm:$0xff]
      %v2917 = vld [vmem:[#allocation2 + $0x8] sm:$0xff]
      %v2918 = vld [vmem:[#allocation2 + $0x10] sm:$0xff]
      %v2919 = vld [vmem:[#allocation2 + $0x18] sm:$0xff]
      %v2920 = vld [vmem:[#allocation2 + $0x20] sm:$0xff]
      %v2921 = vld [vmem:[#allocation2 + $0x28] sm:$0xff]
      %v2922 = vld [vmem:[#allocation2 + $0x30] sm:$0xff]
      %v2923 = vld [vmem:[#allocation2 + $0x38] sm:$0xff]
      %v2924 = vld [vmem:[#allocation2 + $0x40] sm:$0xff]
      %v2925 = vld [vmem:[#allocation2 + $0x48] sm:$0xff]
      %v2926 = vld [vmem:[#allocation2 + $0x50] sm:$0xff]
      %v2927 = vld [vmem:[#allocation2 + $0x58] sm:$0xff]
      %v2928 = vld [vmem:[#allocation2 + $0x60] sm:$0xff]
      %v2929 = vld [vmem:[#allocation2 + $0x68] sm:$0xff]
      %v2930 = vld [vmem:[#allocation2 + $0x70] sm:$0xff]
      %v2931 = vld [vmem:[#allocation2 + $0x78] sm:$0xff]
      %v2932 = vld [vmem:[%s1] sm:$0xf]
      %v2933 = vld [vmem:[%s1 + $0x4] sm:$0xf]
      %v2934 = vld [vmem:[%s1 + $0x8] sm:$0xf]
      %v2935 = vld [vmem:[%s1 + $0xc] sm:$0xf]
      %v2936 = vld [vmem:[%s1 + $0x10] sm:$0x3]
      %v2937 = vld [vmem:[%s2] sm:$0x1]
      %v2939 = vlaneseq
      %v2940 = vshrl.u32 %v2939, 7
      %v2941 = vsub.s32 0, %v2940
      %v2942 = vrot.slane %v2937, %v2941
      %v2949 = vunpack.c.l.b16 %v2932
      %v2950 = vunpack.c.l.b16 %v2933
      %v2951 = vunpack.c.l.b16 %v2934
      %v2952 = vunpack.c.l.b16 %v2935
      %v2953 = vunpack.c.l.b16 %v2936
      %v2954 = vpack.c.b16 %v2950, %v2949
      %v2955 = vpack.c.b16 %v2952, %v2951
      %v2956 = vpack.c.b16 %v2953, %v2953
      %vm2959 = vcmask 293888
      %v2961 = vsel %vm2959, %v2916, 0
      %v2964 = vsel %vm2959, %v2917, 0
      %v2967 = vsel %vm2959, %v2918, 0
      %v2970 = vsel %vm2959, %v2919, 0
      %v2973 = vsel %vm2959, %v2920, 0
      %v2976 = vsel %vm2959, %v2921, 0
      %v2979 = vsel %vm2959, %v2922, 0
      %v2982 = vsel %vm2959, %v2923, 0
      %v2985 = vsel %vm2959, %v2924, 0
      %v2988 = vsel %vm2959, %v2925, 0
      %v2991 = vsel %vm2959, %v2926, 0
      %v2994 = vsel %vm2959, %v2927, 0
      %v2997 = vsel %vm2959, %v2928, 0
      %v3000 = vsel %vm2959, %v2929, 0
      %v3003 = vsel %vm2959, %v2930, 0
      %v3006 = vsel %vm2959, %v2931, 0
      %vm3008 = vcmask 1041408
      %v3010 = vsel %vm3008, %v2956, 0
      %3012 = vmatprep.subr.bf16.mxu0 0
      %3013 = vmatpush1.bf16.msra.mxu0 %v2954
      %3014 = vmatprep.subr.bf16.mxu0 0
      %3015 = vmatpush1.bf16.msra.mxu0 %v2955
      %3016 = vmatprep.subr.bf16.mxu0 0
      %3017 = vmatpush1.bf16.msra.mxu0 %v3010
      %3018 = vmatprep.subr.bf16.mxu0 0
      %3019 = vmatpush1.bf16.msra.mxu0 0
      %3020 = vmatprep.subr.bf16.mxu0 0
      %3021 = vmatpush1.bf16.msra.mxu0 0
      %3022 = vmatprep.subr.bf16.mxu0 0
      %3023 = vmatpush1.bf16.msra.mxu0 0
      %3024 = vmatprep.subr.bf16.mxu0 0
      %3025 = vmatpush1.bf16.msra.mxu0 0
      %3026 = vmatprep.subr.bf16.mxu0 0
      %3027 = vmatpush1.bf16.msra.mxu0 0
      %3028 = vmatprep.subr.bf16.mxu0 0
      %3029 = vmatpush1.bf16.msra.mxu0 0
      %3030 = vmatprep.subr.bf16.mxu0 0
      %3031 = vmatpush1.bf16.msra.mxu0 0
      %3032 = vmatprep.subr.bf16.mxu0 0
      %3033 = vmatpush1.bf16.msra.mxu0 0
      %3034 = vmatprep.subr.bf16.mxu0 0
      %3035 = vmatpush1.bf16.msra.mxu0 0
      %3036 = vmatprep.subr.bf16.mxu0 0
      %3037 = vmatpush1.bf16.msra.mxu0 0
      %3038 = vmatprep.subr.bf16.mxu0 0
      %3039 = vmatpush1.bf16.msra.mxu0 0
      %3040 = vmatprep.subr.bf16.mxu0 0
      %3041 = vmatpush1.bf16.msra.mxu0 0
      %3042 = vmatprep.subr.bf16.mxu0 0
      %3043 = vmatpush1.bf16.msra.mxu0 0
      %3044 = vmatprep.mubr.bf16.mxu0 0
      %3045 = vmatmul.mubr.bf16.gmra.mrb[0].mxu0 %v2961
      %v3046 = vpop.f32.mrb[0].mxu0
      %v3047 = vadd.f32 %v2942, %v3046
      %v3048 = vpop.f32.mrb[0].mxu0
      %v3049 = vpop.f32.mrb[0].mxu0
      %v3050 = vadd.f32 %v2942, %v3049
      %v3051 = vpop.f32.mrb[0].mxu0
      %3052 = vmatprep.mubr.bf16.mxu0 0
      %3053 = vmatmul.mubr.bf16.gmra.mrb[0].mxu0 %v2964
      %v3054 = vpop.f32.mrb[0].mxu0
      %v3055 = vadd.f32 %v2942, %v3054
      %v3056 = vpop.f32.mrb[0].mxu0
      %v3057 = vpop.f32.mrb[0].mxu0
      %v3058 = vadd.f32 %v2942, %v3057
      %v3059 = vpop.f32.mrb[0].mxu0
      %3060 = vmatprep.mubr.bf16.mxu0 0
      %3061 = vmatmul.mubr.bf16.gmra.mrb[0].mxu0 %v2967
      %v3062 = vpop.f32.mrb[0].mxu0
      %v3063 = vadd.f32 %v2942, %v3062
      %v3064 = vpop.f32.mrb[0].mxu0
      %v3065 = vpop.f32.mrb[0].mxu0
      %v3066 = vadd.f32 %v2942, %v3065
      %v3067 = vpop.f32.mrb[0].mxu0
      %3068 = vmatprep.mubr.bf16.mxu0 0
      %3069 = vmatmul.mubr.bf16.gmra.mrb[0].mxu0 %v2970
      %v3070 = vpop.f32.mrb[0].mxu0
      %v3071 = vadd.f32 %v2942, %v3070
      %v3072 = vpop.f32.mrb[0].mxu0
      %v3073 = vpop.f32.mrb[0].mxu0
      %v3074 = vadd.f32 %v2942, %v3073
      %v3075 = vpop.f32.mrb[0].mxu0
      %3076 = vmatprep.mubr.bf16.mxu0 0
      %3077 = vmatmul.mubr.bf16.gmra.mrb[0].mxu0 %v2973
      %v3078 = vpop.f32.mrb[0].mxu0
      %v3079 = vadd.f32 %v2942, %v3078
      %v3080 = vpop.f32.mrb[0].mxu0
      %v3081 = vpop.f32.mrb[0].mxu0
      %v3082 = vadd.f32 %v2942, %v3081
      %v3083 = vpop.f32.mrb[0].mxu0
      %3084 = vmatprep.mubr.bf16.mxu0 0
      %3085 = vmatmul.mubr.bf16.gmra.mrb[0].mxu0 %v2976
      %v3086 = vpop.f32.mrb[0].mxu0
      %v3087 = vadd.f32 %v2942, %v3086
      %v3088 = vpop.f32.mrb[0].mxu0
      %v3089 = vpop.f32.mrb[0].mxu0
      %v3090 = vadd.f32 %v2942, %v3089
      %v3091 = vpop.f32.mrb[0].mxu0
      %3092 = vmatprep.mubr.bf16.mxu0 0
      %3093 = vmatmul.mubr.bf16.gmra.mrb[0].mxu0 %v2979
      %v3094 = vpop.f32.mrb[0].mxu0
      %v3095 = vadd.f32 %v2942, %v3094
      %v3096 = vpop.f32.mrb[0].mxu0
      %v3097 = vpop.f32.mrb[0].mxu0
      %v3098 = vadd.f32 %v2942, %v3097
      %v3099 = vpop.f32.mrb[0].mxu0
      %3100 = vmatprep.mubr.bf16.mxu0 0
      %3101 = vmatmul.mubr.bf16.gmra.mrb[0].mxu0 %v2982
      %v3102 = vpop.f32.mrb[0].mxu0
      %v3103 = vadd.f32 %v2942, %v3102
      %v3104 = vpop.f32.mrb[0].mxu0
      %v3105 = vpop.f32.mrb[0].mxu0
      %v3106 = vadd.f32 %v2942, %v3105
      %v3107 = vpop.f32.mrb[0].mxu0
      %3108 = vmatprep.mubr.bf16.mxu0 0
      %3109 = vmatmul.mubr.bf16.gmra.mrb[0].mxu0 %v2985
      %v3110 = vpop.f32.mrb[0].mxu0
      %v3111 = vadd.f32 %v2942, %v3110
      %v3112 = vpop.f32.mrb[0].mxu0
      %v3113 = vpop.f32.mrb[0].mxu0
      %v3114 = vadd.f32 %v2942, %v3113
      %v3115 = vpop.f32.mrb[0].mxu0
      %3116 = vmatprep.mubr.bf16.mxu0 0
      %3117 = vmatmul.mubr.bf16.gmra.mrb[0].mxu0 %v2988
      %v3118 = vpop.f32.mrb[0].mxu0
      %v3119 = vadd.f32 %v2942, %v3118
      %v3120 = vpop.f32.mrb[0].mxu0
      %v3121 = vpop.f32.mrb[0].mxu0
      %v3122 = vadd.f32 %v2942, %v3121
      %v3123 = vpop.f32.mrb[0].mxu0
      %3124 = vmatprep.mubr.bf16.mxu0 0
      %3125 = vmatmul.mubr.bf16.gmra.mrb[0].mxu0 %v2991
      %v3126 = vpop.f32.mrb[0].mxu0
      %v3127 = vadd.f32 %v2942, %v3126
      %v3128 = vpop.f32.mrb[0].mxu0
      %v3129 = vpop.f32.mrb[0].mxu0
      %v3130 = vadd.f32 %v2942, %v3129
      %v3131 = vpop.f32.mrb[0].mxu0
      %3132 = vmatprep.mubr.bf16.mxu0 0
      %3133 = vmatmul.mubr.bf16.gmra.mrb[0].mxu0 %v2994
      %v3134 = vpop.f32.mrb[0].mxu0
      %v3135 = vadd.f32 %v2942, %v3134
      %v3136 = vpop.f32.mrb[0].mxu0
      %v3137 = vpop.f32.mrb[0].mxu0
      %v3138 = vadd.f32 %v2942, %v3137
      %v3139 = vpop.f32.mrb[0].mxu0
      %3140 = vmatprep.mubr.bf16.mxu0 0
      %3141 = vmatmul.mubr.bf16.gmra.mrb[0].mxu0 %v2997
      %v3142 = vpop.f32.mrb[0].mxu0
      %v3143 = vadd.f32 %v2942, %v3142
      %v3144 = vpop.f32.mrb[0].mxu0
      %v3145 = vpop.f32.mrb[0].mxu0
      %v3146 = vadd.f32 %v2942, %v3145
      %v3147 = vpop.f32.mrb[0].mxu0
      %3148 = vmatprep.mubr.bf16.mxu0 0
      %3149 = vmatmul.mubr.bf16.gmra.mrb[0].mxu0 %v3000
      %v3150 = vpop.f32.mrb[0].mxu0
      %v3151 = vadd.f32 %v2942, %v3150
      %v3152 = vpop.f32.mrb[0].mxu0
      %v3153 = vpop.f32.mrb[0].mxu0
      %v3154 = vadd.f32 %v2942, %v3153
      %v3155 = vpop.f32.mrb[0].mxu0
      %3156 = vmatprep.mubr.bf16.mxu0 0
      %3157 = vmatmul.mubr.bf16.gmra.mrb[0].mxu0 %v3003
      %v3158 = vpop.f32.mrb[0].mxu0
      %v3159 = vadd.f32 %v2942, %v3158
      %v3160 = vpop.f32.mrb[0].mxu0
      %v3161 = vpop.f32.mrb[0].mxu0
      %v3162 = vadd.f32 %v2942, %v3161
      %v3163 = vpop.f32.mrb[0].mxu0
      %3164 = vmatprep.mubr.bf16.mxu0 0
      %3165 = vmatmul.mubr.bf16.gmra.mrb[0].mxu0 %v3006
      %v3166 = vpop.f32.mrb[0].mxu0
      %v3167 = vadd.f32 %v2942, %v3166
      %v3168 = vpop.f32.mrb[0].mxu0
      %v3169 = vpop.f32.mrb[0].mxu0
      %v3170 = vadd.f32 %v2942, %v3169
      %v3171 = vpop.f32.mrb[0].mxu0
      %3172 = vdwg.mxu0
      %3173 = vst [vmem:[%s237] sm:$0xff] %v3047
      %3174 = vst [vmem:[%s237 + $0x8] sm:$0xff] %v3050
      %3175 = vst [vmem:[%s237 + $0x10] sm:$0xff] %v3055
      %3176 = vst [vmem:[%s237 + $0x18] sm:$0xff] %v3058
      %3177 = vst [vmem:[%s237 + $0x20] sm:$0xff] %v3063
      %3178 = vst [vmem:[%s237 + $0x28] sm:$0xff] %v3066
      %3179 = vst [vmem:[%s237 + $0x30] sm:$0xff] %v3071
      %3180 = vst [vmem:[%s237 + $0x38] sm:$0xff] %v3074
      %3181 = vst [vmem:[%s237 + $0x40] sm:$0xff] %v3079
      %3182 = vst [vmem:[%s237 + $0x48] sm:$0xff] %v3082
      %3183 = vst [vmem:[%s237 + $0x50] sm:$0xff] %v3087
      %3184 = vst [vmem:[%s237 + $0x58] sm:$0xff] %v3090
      %3185 = vst [vmem:[%s237 + $0x60] sm:$0xff] %v3095
      %3186 = vst [vmem:[%s237 + $0x68] sm:$0xff] %v3098
      %3187 = vst [vmem:[%s237 + $0x70] sm:$0xff] %v3103
      %3188 = vst [vmem:[%s237 + $0x78] sm:$0xff] %v3106
      %3189 = vst [vmem:[%s237 + $0x80] sm:$0xff] %v3111
      %3190 = vst [vmem:[%s237 + $0x88] sm:$0xff] %v3114
      %3191 = vst [vmem:[%s237 + $0x90] sm:$0xff] %v3119
      %3192 = vst [vmem:[%s237 + $0x98] sm:$0xff] %v3122
      %3193 = vst [vmem:[%s237 + $0xa0] sm:$0xff] %v3127
      %3194 = vst [vmem:[%s237 + $0xa8] sm:$0xff] %v3130
      %3195 = vst [vmem:[%s237 + $0xb0] sm:$0xff] %v3135
      %3196 = vst [vmem:[%s237 + $0xb8] sm:$0xff] %v3138
      %3197 = vst [vmem:[%s237 + $0xc0] sm:$0xff] %v3143
      %3198 = vst [vmem:[%s237 + $0xc8] sm:$0xff] %v3146
      %3199 = vst [vmem:[%s237 + $0xd0] sm:$0xff] %v3151
      %3200 = vst [vmem:[%s237 + $0xd8] sm:$0xff] %v3154
      %3201 = vst [vmem:[%s237 + $0xe0] sm:$0xff] %v3159
      %3202 = vst [vmem:[%s237 + $0xe8] sm:$0xff] %v3162
      %3203 = vst [vmem:[%s237 + $0xf0] sm:$0xff] %v3167
      %3204 = vst [vmem:[%s237 + $0xf8] sm:$0xff] %v3170
      %3205 = vst [vmem:[%s244] sm:$0xff] 0.0
      %v3206 = vadd.f32 %v3047, %v3050
      %v3207 = vadd.f32 %v3206, %v3055
      %v3208 = vadd.f32 %v3207, %v3058
      %v3209 = vadd.f32 %v3208, %v3063
      %v3210 = vadd.f32 %v3209, %v3066
      %v3211 = vadd.f32 %v3210, %v3071
      %v3212 = vadd.f32 %v3211, %v3074
      %v3213 = vadd.f32 %v3212, %v3079
      %v3214 = vadd.f32 %v3213, %v3082
      %v3215 = vadd.f32 %v3214, %v3087
      %v3216 = vadd.f32 %v3215, %v3090
      %v3217 = vadd.f32 %v3216, %v3095
      %v3218 = vadd.f32 %v3217, %v3098
      %v3219 = vadd.f32 %v3218, %v3103
      %v3220 = vadd.f32 %v3219, %v3106
      %v3221 = vadd.f32 %v3220, %v3111
      %v3222 = vadd.f32 %v3221, %v3114
      %v3223 = vadd.f32 %v3222, %v3119
      %v3224 = vadd.f32 %v3223, %v3122
      %v3225 = vadd.f32 %v3224, %v3127
      %v3226 = vadd.f32 %v3225, %v3130
      %v3227 = vadd.f32 %v3226, %v3135
      %v3228 = vadd.f32 %v3227, %v3138
      %v3229 = vadd.f32 %v3228, %v3143
      %v3230 = vadd.f32 %v3229, %v3146
      %v3231 = vadd.f32 %v3230, %v3151
      %v3232 = vadd.f32 %v3231, %v3154
      %v3233 = vadd.f32 %v3232, %v3159
      %v3234 = vadd.f32 %v3233, %v3162
      %v3235 = vadd.f32 %v3234, %v3167
      %v3236 = vadd.f32 %v3235, %v3170
      %v3237 = vrot.slane %v3236, 4
      %v3238 = vadd.f32 %v3236, %v3237
      %v3239 = vrot.slane %v3238, 2
      %v3240 = vadd.f32 %v3238, %v3239
      %v3241 = vrot.slane %v3240, 1
      %v3242 = vadd.f32 %v3240, %v3241
      %3243 = vst [vmem:[%s244] sm:$0x1] %v3242
      %v3244 = vmul.f32 %v3047, %v3047
      %v3245 = vmul.f32 %v3050, %v3050
      %v3246 = vmul.f32 %v3055, %v3055
      %v3247 = vmul.f32 %v3058, %v3058
      %v3248 = vmul.f32 %v3063, %v3063
      %v3249 = vmul.f32 %v3066, %v3066
      %v3250 = vmul.f32 %v3071, %v3071
      %v3251 = vmul.f32 %v3074, %v3074
      %v3252 = vmul.f32 %v3079, %v3079
      %v3253 = vmul.f32 %v3082, %v3082
      %v3254 = vmul.f32 %v3087, %v3087
      %v3255 = vmul.f32 %v3090, %v3090
      %v3256 = vmul.f32 %v3095, %v3095
      %v3257 = vmul.f32 %v3098, %v3098
      %v3258 = vmul.f32 %v3103, %v3103
      %v3259 = vmul.f32 %v3106, %v3106
      %v3260 = vmul.f32 %v3111, %v3111
      %v3261 = vmul.f32 %v3114, %v3114
      %v3262 = vmul.f32 %v3119, %v3119
      %v3263 = vmul.f32 %v3122, %v3122
      %v3264 = vmul.f32 %v3127, %v3127
      %v3265 = vmul.f32 %v3130, %v3130
      %v3266 = vmul.f32 %v3135, %v3135
      %v3267 = vmul.f32 %v3138, %v3138
      %v3268 = vmul.f32 %v3143, %v3143
      %v3269 = vmul.f32 %v3146, %v3146
      %v3270 = vmul.f32 %v3151, %v3151
      %v3271 = vmul.f32 %v3154, %v3154
      %v3272 = vmul.f32 %v3159, %v3159
      %v3273 = vmul.f32 %v3162, %v3162
      %v3274 = vmul.f32 %v3167, %v3167
      %v3275 = vmul.f32 %v3170, %v3170
      %v3276 = vadd.f32 %v3244, %v3245
      %v3277 = vadd.f32 %v3276, %v3246
      %v3278 = vadd.f32 %v3277, %v3247
      %v3279 = vadd.f32 %v3278, %v3248
      %v3280 = vadd.f32 %v3279, %v3249
      %v3281 = vadd.f32 %v3280, %v3250
      %v3282 = vadd.f32 %v3281, %v3251
      %v3283 = vadd.f32 %v3282, %v3252
      %v3284 = vadd.f32 %v3283, %v3253
      %v3285 = vadd.f32 %v3284, %v3254
      %v3286 = vadd.f32 %v3285, %v3255
      %v3287 = vadd.f32 %v3286, %v3256
      %v3288 = vadd.f32 %v3287, %v3257
      %v3289 = vadd.f32 %v3288, %v3258
      %v3290 = vadd.f32 %v3289, %v3259
      %v3291 = vadd.f32 %v3290, %v3260
      %v3292 = vadd.f32 %v3291, %v3261
      %v3293 = vadd.f32 %v3292, %v3262
      %v3294 = vadd.f32 %v3293, %v3263
      %v3295 = vadd.f32 %v3294, %v3264
      %v3296 = vadd.f32 %v3295, %v3265
      %v3297 = vadd.f32 %v3296, %v3266
      %v3298 = vadd.f32 %v3297, %v3267
      %v3299 = vadd.f32 %v3298, %v3268
      %v3300 = vadd.f32 %v3299, %v3269
      %v3301 = vadd.f32 %v3300, %v3270
      %v3302 = vadd.f32 %v3301, %v3271
      %v3303 = vadd.f32 %v3302, %v3272
      %v3304 = vadd.f32 %v3303, %v3273
      %v3305 = vadd.f32 %v3304, %v3274
      %v3306 = vadd.f32 %v3305, %v3275
      %v3307 = vrot.slane %v3306, 4
      %v3308 = vadd.f32 %v3306, %v3307
      %v3309 = vrot.slane %v3308, 2
      %v3310 = vadd.f32 %v3308, %v3309
      %v3311 = vrot.slane %v3310, 1
      %v3312 = vadd.f32 %v3310, %v3311
      %3313 = vst [vmem:[%s244 + $0x1] sm:$0x1] %v3312
      %s3314 = sadd.s32 %s20, %s21
      %s3315 = smul.u32 32, %s3314
      %p3316 = scmp.lt.s32.totalorder %s3315, 63
      %s3317 = scalar_select %p3316, %s3315, 63
      %s3318 = smul.addr %s3317, 8
      %s3319 = scalar_lea.vmem %s3, %s3318
      %s3320 = sadd.s32 %s20, %s21
      %p3321 = scmp.lt.s32.totalorder %s3320, 1
      %s3322 = scalar_select %p3321, %s3320, 1
      %s3323 = smul.addr %s3322, 8
      %s3324 = scalar_lea.vmem %s4, %s3323
      // Predicated region
      $region33: #{down_forward.5} parent=31 // pred_check
        %p3325 = pneg %p118
      $region34: #{down_forward.5} parent=31 // pred_check_branch
        %3327 = sbr.rel (%p3325) target = $region36
      $region35: #{down_forward.5} parent=31 // pred_region
        %s3328 = sadd.s32 %s20, %s21
        %s3329 = smul.u32 32, %s3328
      $region36: #{down_forward.5} parent=31 // pred_fallthru
        _
      // Predicated region
      $region37: #{down_forward.5} parent=31 // pred_check
        %p3330 = pneg %p146
      $region38: #{down_forward.5} parent=31 // pred_check_branch
        %3332 = sbr.rel (%p3330) target = $region40
      $region39: #{down_forward.5} parent=31 // pred_region
        %s3333 = sadd.s32 %s20, %s21
      $region40: #{down_forward.5} parent=31 // pred_fallthru
        _
    $region32: #{down_forward.5} parent=5 // pred_fallthru
      _
    %p3334 = scmp.le.s32.totalorder 2, %s11
    // Predicated region
    $region41: #{down_forward.5} parent=5 // pred_check
      %p3335 = pneg %p3334
    $region42: #{down_forward.5} parent=5 // pred_check_branch
      %3337 = sbr.rel (%p3335) target = $region44
    $region43: #{down_forward.5} parent=5 // pred_region
      %s3338 = ssub.s32 %s11, 2
      // Predicated region
      $region45: #{down_forward.5} parent=43 // pred_check
        %p3339 = pneg %p124
      $region46: #{down_forward.5} parent=43 // pred_check_branch
        %3341 = sbr.rel (%p3339) target = $region48
      $region47: #{down_forward.5} parent=43 // pred_region
        %s3342 = sadd.s32 %s22, %s23
        %s3343 = smul.u32 32, %s3342
        %p3344 = scmp.lt.s32.totalorder %s3343, 63
        %s3345 = scalar_select %p3344, %s3343, 63
        %s3346 = smul.addr %s3345, 8
        %s3347 = scalar_lea.vmem %s3, %s3346
      $region48: #{down_forward.5} parent=43 // pred_fallthru
        _
      // Predicated region
      $region49: #{down_forward.5} parent=43 // pred_check
        %p3348 = pneg %p152
      $region50: #{down_forward.5} parent=43 // pred_check_branch
        %3350 = sbr.rel (%p3348) target = $region52
      $region51: #{down_forward.5} parent=43 // pred_region
        %s3351 = sadd.s32 %s22, %s23
        %p3352 = scmp.lt.s32.totalorder %s3351, 1
        %s3353 = scalar_select %p3352, %s3351, 1
        %s3354 = smul.addr %s3353, 8
        %s3355 = scalar_lea.vmem %s4, %s3354
      $region52: #{down_forward.5} parent=43 // pred_fallthru
        _
    $region44: #{down_forward.5} parent=5 // pred_fallthru
      _
  $region6: #{down_forward.5} parent=0 // loop_footer
    %s15 = sadd.s32 1, %s11
  $region7: #{down_forward.5} parent=0 // loop_footer_branch
    %10 = sbr.rel target = $region3
  $region8: #{down_forward.5} parent=0 // loop_exit
    _

</llo_original>
